<compile_context>
chip_gen: v6e
topology: v6e:2x2x1
jax: 0.10.0
libtpu: 0.0.40
codegen_flags: <defaults>
</compile_context>

<pallas_src>
import functools

import jax
import jax.numpy as jnp
import numpy as np
from jax import lax
from jax.experimental import pallas as pl
from jax.experimental.pallas import tpu as pltpu

BN_EPS = 1e-5
VMEM_LIMIT = 48 * 1024 * 1024   # headroom inside v7x's 64 MiB physical VMEM


# ---------------------------------------------------------------------------
# Fused kernel: whole bottleneck block for one batch element.
# ---------------------------------------------------------------------------
def _bottleneck_kernel(x_ref, w1_ref, s1_ref, wtap_ref, s0_ref,
                       wfc1_ref, sf1_ref, wfc2_ref, bfc2_ref,
                       w3_ref, s3_ref, o_ref, pad_ref,
                       *, H, W, radix, gw, pad0):
    HW = H * W
    cdt = pad_ref.dtype
    cr = radix * gw

    # --- 1x1 conv -> BN -> ReLU (BN scale pre-folded into w1) ---------------
    y1 = jnp.dot(x_ref[0].astype(w1_ref.dtype), w1_ref[...],
                 preferred_element_type=jnp.float32) + s1_ref[...]
    y1 = jnp.maximum(y1, 0.0)                                   # (HW, gw) f32

    # --- row-padded slab for the 9 shifted taps of the 3x3 conv -------------
    # (aligned stores: zero whole slab, then place y1 at sublane-aligned pad0)
    pad_ref[...] = jnp.zeros_like(pad_ref)
    pad_ref[pad0:pad0 + HW, :] = y1.astype(cdt)

    col = lax.broadcasted_iota(jnp.int32, (HW, 1), 0) % W
    not_left = col != 0
    not_right = col != (W - 1)

    # --- grouped 3x3 conv as 9 block-diagonal (gw x Cr) tap matmuls ---------
    base = pad0 - (W + 1)
    acc = jnp.zeros((HW, cr), jnp.float32)
    for kh in range(3):
        for kw in range(3):
            start = base + kh * W + kw          # static offset into padded slab
            patch = pad_ref[start:start + HW, :]
            if kw == 0:
                patch = jnp.where(not_left, patch, 0.0)
            elif kw == 2:
                patch = jnp.where(not_right, patch, 0.0)
            acc = acc + jnp.dot(patch, wtap_ref[kh * 3 + kw],
                                preferred_element_type=jnp.float32)
    act = jnp.maximum(acc + s0_ref[...], 0.0)                   # (HW, Cr) f32

    # --- radix-sum global average pool -> fc1(+BN,+ReLU) -> fc2 -------------
    gap = act[:, 0:gw]
    for r in range(1, radix):
        gap = gap + act[:, r * gw:(r + 1) * gw]
    gap = jnp.sum(gap, axis=0, keepdims=True) * (1.0 / HW)      # (1, gw)

    h = jnp.dot(gap.astype(wfc1_ref.dtype), wfc1_ref[...],
                preferred_element_type=jnp.float32) + sf1_ref[...]
    h = jnp.maximum(h, 0.0)
    logits = jnp.dot(h.astype(wfc2_ref.dtype), wfc2_ref[...],
                     preferred_element_type=jnp.float32) + bfc2_ref[...]  # (1, Cr)

    # --- rSoftMax over radix -------------------------------------------------
    parts = [logits[:, r * gw:(r + 1) * gw] for r in range(radix)]
    m = parts[0]
    for prt in parts[1:]:
        m = jnp.maximum(m, prt)
    exps = [jnp.exp(prt - m) for prt in parts]
    denom = exps[0]
    for e in exps[1:]:
        denom = denom + e
    inv = 1.0 / denom

    # --- attention-weighted split mix + 1x1 conv (+BN) + residual + ReLU ----
    mixed = (exps[0] * inv) * act[:, 0:gw]
    for r in range(1, radix):
        mixed = mixed + (exps[r] * inv) * act[:, r * gw:(r + 1) * gw]
    out = jnp.dot(mixed.astype(w3_ref.dtype), w3_ref[...],
                  preferred_element_type=jnp.float32) + s3_ref[...] + x_ref[0]
    o_ref[0] = jnp.maximum(out, 0.0).astype(o_ref.dtype)


def fused_bottleneck(x_nhwc, p, *, H, W):
    B, HW, cin = x_nhwc.shape
    gw, radix, cr = p["gw"], p["radix"], p["Cr"]
    cout, inter, cdtype = p["Cout"], p["inter"], p["cdtype"]
    pad0 = ((W + 1 + 15) // 16) * 16            # sublane-aligned pad rows
    kern = functools.partial(_bottleneck_kernel, H=H, W=W, radix=radix,
                             gw=gw, pad0=pad0)
    return pl.pallas_call(
        kern,
        out_shape=jax.ShapeDtypeStruct((B, HW, cout), jnp.float32),
        grid=(B,),
        in_specs=[
            pl.BlockSpec((1, HW, cin), lambda b: (b, 0, 0)),
            pl.BlockSpec((cin, gw), lambda b: (0, 0)),
            pl.BlockSpec((1, gw), lambda b: (0, 0)),
            pl.BlockSpec((9, gw, cr), lambda b: (0, 0, 0)),
            pl.BlockSpec((1, cr), lambda b: (0, 0)),
            pl.BlockSpec((gw, inter), lambda b: (0, 0)),
            pl.BlockSpec((1, inter), lambda b: (0, 0)),
            pl.BlockSpec((inter, cr), lambda b: (0, 0)),
            pl.BlockSpec((1, cr), lambda b: (0, 0)),
            pl.BlockSpec((gw, cout), lambda b: (0, 0)),
            pl.BlockSpec((1, cout), lambda b: (0, 0)),
        ],
        out_specs=pl.BlockSpec((1, HW, cout), lambda b: (b, 0, 0)),
        scratch_shapes=[pltpu.VMEM((2 * pad0 + HW, gw), cdtype)],
        compiler_params=pltpu.CompilerParams(
            dimension_semantics=("parallel",),
            vmem_limit_bytes=VMEM_LIMIT),
    )(x_nhwc, p["w1f"], p["shift1"], p["w_tapf"], p["shift0"],
      p["w_fc1f"], p["shift_fc1"], p["w_fc2f"], p["b_fc2"],
      p["w3f"], p["shift3"])


# ---------------------------------------------------------------------------
# Parameters (deterministic, inference-mode BatchNorm folded to scale/shift)
# ---------------------------------------------------------------------------
def make_bn_scale_shift(key, c, conv_bias=None):
    k1, k2, k3, k4 = jax.random.split(key, 4)
    gamma = 1.0 + 0.1 * jax.random.normal(k1, (c,), jnp.float32)
    beta = 0.1 * jax.random.normal(k2, (c,), jnp.float32)
    mean = 0.1 * jax.random.normal(k3, (c,), jnp.float32)
    var = 0.5 + jnp.abs(jax.random.normal(k4, (c,), jnp.float32))
    scale = gamma / jnp.sqrt(var + BN_EPS)
    bias = jnp.zeros((c,), jnp.float32) if conv_bias is None else conv_bias
    shift = beta + (bias - mean) * scale
    return scale, shift


def init_params(key, in_channels, channels, radix=2, groups=1,
                bottleneck_width=64, reduction_factor=4, cdtype=jnp.bfloat16):
    assert groups == 1, "TODO(synk): groups>1 needs group-interleaved rSoftMax layout"
    gw = int(channels * (bottleneck_width / 64.0)) * groups   # group_width
    cr = gw * radix                                           # splat conv out-channels
    G = groups * radix                                        # splat conv groups
    cin_g = gw // G
    out_g = cr // G
    inter = max(cr // reduction_factor, 32)                   # attention hidden width
    cout = channels * 4
    assert in_channels == cout, "downsample=None requires in_channels == channels*4"

    keys = jax.random.split(key, 11)
    # raw f32 parameters (torch layouts, used by the pure-JAX reference)
    w1 = 0.1 * jax.random.normal(keys[0], (in_channels, gw), jnp.float32)
    scale1, shift1 = make_bn_scale_shift(keys[1], gw)
    w_sp = 0.1 * jax.random.normal(keys[2], (cr, cin_g, 3, 3), jnp.float32)   # (O, I/G, kh, kw)
    scale0, shift0 = make_bn_scale_shift(keys[3], cr)
    w_fc1 = 0.1 * jax.random.normal(keys[4], (gw, inter), jnp.float32)
    b_fc1 = 0.1 * jax.random.normal(keys[5], (inter,), jnp.float32)
    scale_f, shift_f = make_bn_scale_shift(keys[6], inter, conv_bias=b_fc1)
    w_fc2 = 0.1 * jax.random.normal(keys[7], (inter, cr), jnp.float32)
    b_fc2 = 0.1 * jax.random.normal(keys[8], (cr,), jnp.float32)
    w3 = 0.1 * jax.random.normal(keys[9], (gw, cout), jnp.float32)
    scale3, shift3 = make_bn_scale_shift(keys[10], cout)

    # 3x3 grouped-conv weights as 9 block-diagonal (gw, Cr) taps, BN scale folded.
    w5 = w_sp.reshape(G, out_g, cin_g, 3, 3)                   # group-major outputs
    w_tap_g = jnp.transpose(w5, (3, 4, 0, 2, 1)).reshape(9, G, cin_g, out_g)
    w_bd = jnp.zeros((9, G, cin_g, G, out_g), jnp.float32)
    for g in range(G):
        w_bd = w_bd.at[:, g, :, g, :].set(w_tap_g[:, g])
    w_bd = w_bd.reshape(9, gw, cr) * scale0[None, None, :]

    return {
        "gw": gw, "Cr": cr, "radix": radix, "Cout": cout, "inter": inter,
        "cdtype": cdtype,
        "w1f": (w1 * scale1[None, :]).astype(cdtype),
        "shift1": shift1.reshape(1, gw),
        "w_tapf": w_bd.astype(cdtype),
        "shift0": shift0.reshape(1, cr),
        "w_fc1f": (w_fc1 * scale_f[None, :]).astype(cdtype),
        "shift_fc1": shift_f.reshape(1, inter),
        "w_fc2f": w_fc2.astype(cdtype),
        "b_fc2": b_fc2.reshape(1, cr),
        "w3f": (w3 * scale3[None, :]).astype(cdtype),
        "shift3": shift3.reshape(1, cout),
        "ref": dict(w1=w1, scale1=scale1, shift1=shift1, w_sp=w_sp, scale0=scale0,
                    shift0=shift0, w_fc1=w_fc1, scale_fc1=scale_f, shift_fc1=shift_f,
                    w_fc2=w_fc2, b_fc2=b_fc2, w3=w3, scale3=scale3, shift3=shift3,
                    G=G),
    }


# ---------------------------------------------------------------------------
# Forward (stride=1, is_first=False, downsample=None -> no AvgPool, residual = x)
# ---------------------------------------------------------------------------
def resnest_bottleneck_forward(x_nchw, p):
    B, cin, H, W = x_nchw.shape
    HW = H * W
    x_nhwc = jnp.transpose(x_nchw, (0, 2, 3, 1)).reshape(B, HW, cin)
    out = fused_bottleneck(x_nhwc, p, H=H, W=W)                 # (B, HW, Cout) f32
    return jnp.transpose(out.reshape(B, H, W, p["Cout"]), (0, 3, 1, 2))


# ---------------------------------------------------------------------------
# Pure-JAX reference for validation (f32, torch channel order)
# ---------------------------------------------------------------------------
def reference_forward(x_nchw, p):
    r = p["ref"]
    gw = p["gw"]
    B = x_nchw.shape[0]
    x = jnp.transpose(x_nchw, (0, 2, 3, 1)).astype(jnp.float32)
    y1 = jnp.maximum(x @ r["w1"] * r["scale1"] + r["shift1"], 0.0)
    w_hwio = jnp.transpose(r["w_sp"], (2, 3, 1, 0))
    y2 = lax.conv_general_dilated(y1, w_hwio, (1, 1), "SAME",
                                  dimension_numbers=("NHWC", "HWIO", "NHWC"),
                                  feature_group_count=r["G"])
    y2 = jnp.maximum(y2 * r["scale0"] + r["shift0"], 0.0)
    s0, s1 = y2[..., :gw], y2[..., gw:]
    gap = (s0 + s1).mean(axis=(1, 2))
    g1 = jnp.maximum(gap @ r["w_fc1"] * r["scale_fc1"] + r["shift_fc1"], 0.0)
    logits = g1 @ r["w_fc2"] + r["b_fc2"]
    att = jax.nn.softmax(logits.reshape(B, 2, gw), axis=1)
    y_att = att[:, 0][:, None, None, :] * s0 + att[:, 1][:, None, None, :] * s1
    out = y_att @ r["w3"] * r["scale3"] + r["shift3"] + x
    return jnp.transpose(jnp.maximum(out, 0.0), (0, 3, 1, 2))


if __name__ == "__main__":
    key = jax.random.PRNGKey(0)
    k_x, k_p = jax.random.split(key)

    # downsample=None => residual add requires in_channels == channels * 4
    B, channels, H, W = 2, 32, 16, 16
    C = channels * 4                      # 128 -> lane-dense in/out channels
    x = jax.random.normal(k_x, (B, C, H, W), jnp.float32)
    params = init_params(k_p, in_channels=C, channels=channels)

    fwd = jax.jit(lambda v: resnest_bottleneck_forward(v, params))
    out = jax.block_until_ready(fwd(x))

    ref = reference_forward(x, params)
    np.testing.assert_allclose(np.asarray(out), np.asarray(ref), rtol=6e-2, atol=6e-2)
    assert out.shape == (B, C, H, W)
    print("KERNEL_OK")
</pallas_src>

<mosaic_0001>
module attributes {stable_mosaic.version = 11 : i64} {
  func.func @_bottleneck_kernel(%arg0: i32, %arg1: memref<1x256x128xf32, #tpu.memory_space<vmem>>, %arg2: memref<128x32xbf16, #tpu.memory_space<vmem>>, %arg3: memref<1x32xf32, #tpu.memory_space<vmem>>, %arg4: memref<9x32x64xbf16, #tpu.memory_space<vmem>>, %arg5: memref<1x64xf32, #tpu.memory_space<vmem>>, %arg6: memref<32x32xbf16, #tpu.memory_space<vmem>>, %arg7: memref<1x32xf32, #tpu.memory_space<vmem>>, %arg8: memref<32x64xbf16, #tpu.memory_space<vmem>>, %arg9: memref<1x64xf32, #tpu.memory_space<vmem>>, %arg10: memref<32x128xbf16, #tpu.memory_space<vmem>>, %arg11: memref<1x128xf32, #tpu.memory_space<vmem>>, %arg12: memref<1x256x128xf32, #tpu.memory_space<vmem>>, %arg13: memref<320x32xbf16, #tpu.memory_space<vmem>>) attributes {dimension_semantics = [#tpu.dimension_semantics<parallel>], iteration_bounds = array<i64: 2>, scalar_prefetch = 0 : i64, scratch_operands = 1 : i64, tpu.core_type = #tpu.core_type<tc>, window_params = [{transform_indices = @transform_0, window_bounds = array<i64: 1, 256, 128>}, {pipeline_mode = #tpu.pipeline_mode<synchronous>, transform_indices = @transform_1, window_bounds = array<i64: 128, 32>}, {pipeline_mode = #tpu.pipeline_mode<synchronous>, transform_indices = @transform_2, window_bounds = array<i64: 1, 32>}, {pipeline_mode = #tpu.pipeline_mode<synchronous>, transform_indices = @transform_3, window_bounds = array<i64: 9, 32, 64>}, {pipeline_mode = #tpu.pipeline_mode<synchronous>, transform_indices = @transform_4, window_bounds = array<i64: 1, 64>}, {pipeline_mode = #tpu.pipeline_mode<synchronous>, transform_indices = @transform_5, window_bounds = array<i64: 32, 32>}, {pipeline_mode = #tpu.pipeline_mode<synchronous>, transform_indices = @transform_6, window_bounds = array<i64: 1, 32>}, {pipeline_mode = #tpu.pipeline_mode<synchronous>, transform_indices = @transform_7, window_bounds = array<i64: 32, 64>}, {pipeline_mode = #tpu.pipeline_mode<synchronous>, transform_indices = @transform_8, window_bounds = array<i64: 1, 64>}, {pipeline_mode = #tpu.pipeline_mode<synchronous>, transform_indices = @transform_9, window_bounds = array<i64: 32, 128>}, {pipeline_mode = #tpu.pipeline_mode<synchronous>, transform_indices = @transform_10, window_bounds = array<i64: 1, 128>}, {transform_indices = @transform_11, window_bounds = array<i64: 1, 256, 128>}]} {
    %c0 = arith.constant 0 : index
    %c0_0 = arith.constant 0 : index
    %c0_1 = arith.constant 0 : index
    %0 = vector.load %arg1[%c0, %c0_0, %c0_1] : memref<1x256x128xf32, #tpu.memory_space<vmem>>, vector<1x256x128xf32>
    %1 = vector.shape_cast %0 : vector<1x256x128xf32> to vector<256x128xf32>
    %2 = arith.truncf %1 : vector<256x128xf32> to vector<256x128xbf16>
    %c0_2 = arith.constant 0 : index
    %c0_3 = arith.constant 0 : index
    %3 = vector.load %arg2[%c0_2, %c0_3] : memref<128x32xbf16, #tpu.memory_space<vmem>>, vector<128x32xbf16>
    %cst = arith.constant dense<0.000000e+00> : vector<256x32xf32>
    %4 = tpu.matmul %2, %3, %cst {dimension_numbers = #tpu.dot_dimension_numbers<[1], [0], [0], [1], [0, 0, 1, 1], [], []>} : vector<256x128xbf16>, vector<128x32xbf16>, vector<256x32xf32> -> vector<256x32xf32>
    %c0_4 = arith.constant 0 : index
    %c0_5 = arith.constant 0 : index
    %5 = vector.load %arg3[%c0_4, %c0_5] : memref<1x32xf32, #tpu.memory_space<vmem>>, vector<1x32xf32>
    %6 = vector.broadcast %5 : vector<1x32xf32> to vector<256x32xf32>
    %7 = arith.addf %4, %6 : vector<256x32xf32>
    %cst_6 = arith.constant 0.000000e+00 : f32
    %8 = vector.broadcast %cst_6 : f32 to vector<256x32xf32>
    %9 = arith.maximumf %7, %8 : vector<256x32xf32>
    %cst_7 = arith.constant 0.000000e+00 : bf16
    %10 = vector.broadcast %cst_7 : bf16 to vector<320x32xbf16>
    %c0_8 = arith.constant 0 : index
    %c0_9 = arith.constant 0 : index
    %11 = vector.load %arg13[%c0_8, %c0_9] : memref<320x32xbf16, #tpu.memory_space<vmem>>, vector<320x32xbf16>
    tpu.vector_store %arg13[%c0_8, %c0_9], %10 {strides = array<i32>} : memref<320x32xbf16, #tpu.memory_space<vmem>>, vector<320x32xbf16>,
    %12 = arith.truncf %9 : vector<256x32xf32> to vector<256x32xbf16>
    %c32 = arith.constant 32 : index
    %c0_10 = arith.constant 0 : index
    %13 = vector.load %arg13[%c32, %c0_10] : memref<320x32xbf16, #tpu.memory_space<vmem>>, vector<256x32xbf16>
    tpu.vector_store %arg13[%c32, %c0_10], %12 {strides = array<i32>} : memref<320x32xbf16, #tpu.memory_space<vmem>>, vector<256x32xbf16>,
    %14 = tpu.iota {dimensions = array<i32: 0>} : vector<256x1xi32>
    %c16_i32 = arith.constant 16 : i32
    %c0_i32 = arith.constant 0 : i32
    %15 = arith.cmpi eq, %c16_i32, %c0_i32 : i32
    %c1_i32 = arith.constant 1 : i32
    %16 = arith.select %15, %c1_i32, %c16_i32 : i32
    %17 = vector.broadcast %16 : i32 to vector<256x1xi32>
    %18 = arith.remsi %14, %17 : vector<256x1xi32>
    %c0_i32_11 = arith.constant 0 : i32
    %19 = vector.broadcast %c0_i32_11 : i32 to vector<256x1xi32>
    %20 = arith.cmpi ne, %18, %19 : vector<256x1xi32>
    %c0_i32_12 = arith.constant 0 : i32
    %21 = vector.broadcast %c0_i32_12 : i32 to vector<256x1xi32>
    %22 = arith.cmpi slt, %18, %21 : vector<256x1xi32>
    %c0_i32_13 = arith.constant 0 : i32
    %23 = arith.cmpi slt, %16, %c0_i32_13 : i32
    %24 = vector.broadcast %23 : i1 to vector<256x1xi1>
    %25 = vector.broadcast %24 : vector<256x1xi1> to vector<256x1xi1>
    %26 = arith.xori %22, %25 : vector<256x1xi1>
    %27 = arith.andi %26, %20 : vector<256x1xi1>
    %28 = vector.broadcast %16 : i32 to vector<256x1xi32>
    %29 = arith.addi %18, %28 : vector<256x1xi32>
    %30 = arith.select %27, %29, %18 : vector<256x1xi1>, vector<256x1xi32>
    %c0_i32_14 = arith.constant 0 : i32
    %31 = vector.broadcast %c0_i32_14 : i32 to vector<256x1xi32>
    %32 = arith.cmpi ne, %30, %31 : vector<256x1xi32>
    %c15_i32 = arith.constant 15 : i32
    %33 = vector.broadcast %c15_i32 : i32 to vector<256x1xi32>
    %34 = arith.cmpi ne, %30, %33 : vector<256x1xi32>
    %cst_15 = arith.constant 0.000000e+00 : f32
    %35 = vector.broadcast %cst_15 : f32 to vector<256x64xf32>
    %c15 = arith.constant 15 : index
    %c0_16 = arith.constant 0 : index
    %36 = vector.load %arg13[%c15, %c0_16] : memref<320x32xbf16, #tpu.memory_space<vmem>>, vector<256x32xbf16>
    %cst_17 = arith.constant 0.000000e+00 : f32
    %37 = arith.truncf %cst_17 : f32 to bf16
    %38 = vector.shape_cast %32 : vector<256x1xi1> to vector<256x1xi1>
    %39 = vector.broadcast %38 : vector<256x1xi1> to vector<256x32xi1>
    %40 = vector.broadcast %37 : bf16 to vector<256x32xbf16>
    %41 = arith.select %39, %36, %40 : vector<256x32xi1>, vector<256x32xbf16>
    %c0_18 = arith.constant 0 : index
    %c0_19 = arith.constant 0 : index
    %c0_20 = arith.constant 0 : index
    %42 = vector.load %arg4[%c0_18, %c0_19, %c0_20] : memref<9x32x64xbf16, #tpu.memory_space<vmem>>, vector<1x32x64xbf16>
    %43 = vector.shape_cast %42 : vector<1x32x64xbf16> to vector<32x64xbf16>
    %cst_21 = arith.constant dense<0.000000e+00> : vector<256x64xf32>
    %44 = tpu.matmul %41, %43, %cst_21 {dimension_numbers = #tpu.dot_dimension_numbers<[1], [0], [0], [1], [0, 0, 1, 1], [], []>} : vector<256x32xbf16>, vector<32x64xbf16>, vector<256x64xf32> -> vector<256x64xf32>
    %45 = arith.addf %35, %44 : vector<256x64xf32>
    %c16 = arith.constant 16 : index
    %c0_22 = arith.constant 0 : index
    %46 = vector.load %arg13[%c16, %c0_22] : memref<320x32xbf16, #tpu.memory_space<vmem>>, vector<256x32xbf16>
    %c1 = arith.constant 1 : index
    %c0_23 = arith.constant 0 : index
    %c0_24 = arith.constant 0 : index
    %47 = vector.load %arg4[%c1, %c0_23, %c0_24] : memref<9x32x64xbf16, #tpu.memory_space<vmem>>, vector<1x32x64xbf16>
    %48 = vector.shape_cast %47 : vector<1x32x64xbf16> to vector<32x64xbf16>
    %cst_25 = arith.constant dense<0.000000e+00> : vector<256x64xf32>
    %49 = tpu.matmul %46, %48, %cst_25 {dimension_numbers = #tpu.dot_dimension_numbers<[1], [0], [0], [1], [0, 0, 1, 1], [], []>} : vector<256x32xbf16>, vector<32x64xbf16>, vector<256x64xf32> -> vector<256x64xf32>
    %50 = arith.addf %45, %49 : vector<256x64xf32>
    %c17 = arith.constant 17 : index
    %c0_26 = arith.constant 0 : index
    %51 = vector.load %arg13[%c17, %c0_26] : memref<320x32xbf16, #tpu.memory_space<vmem>>, vector<256x32xbf16>
    %cst_27 = arith.constant 0.000000e+00 : f32
    %52 = arith.truncf %cst_27 : f32 to bf16
    %53 = vector.shape_cast %34 : vector<256x1xi1> to vector<256x1xi1>
    %54 = vector.broadcast %53 : vector<256x1xi1> to vector<256x32xi1>
    %55 = vector.broadcast %52 : bf16 to vector<256x32xbf16>
    %56 = arith.select %54, %51, %55 : vector<256x32xi1>, vector<256x32xbf16>
    %c2 = arith.constant 2 : index
    %c0_28 = arith.constant 0 : index
    %c0_29 = arith.constant 0 : index
    %57 = vector.load %arg4[%c2, %c0_28, %c0_29] : memref<9x32x64xbf16, #tpu.memory_space<vmem>>, vector<1x32x64xbf16>
    %58 = vector.shape_cast %57 : vector<1x32x64xbf16> to vector<32x64xbf16>
    %cst_30 = arith.constant dense<0.000000e+00> : vector<256x64xf32>
    %59 = tpu.matmul %56, %58, %cst_30 {dimension_numbers = #tpu.dot_dimension_numbers<[1], [0], [0], [1], [0, 0, 1, 1], [], []>} : vector<256x32xbf16>, vector<32x64xbf16>, vector<256x64xf32> -> vector<256x64xf32>
    %60 = arith.addf %50, %59 : vector<256x64xf32>
    %c31 = arith.constant 31 : index
    %c0_31 = arith.constant 0 : index
    %61 = vector.load %arg13[%c31, %c0_31] : memref<320x32xbf16, #tpu.memory_space<vmem>>, vector<256x32xbf16>
    %cst_32 = arith.constant 0.000000e+00 : f32
    %62 = arith.truncf %cst_32 : f32 to bf16
    %63 = vector.shape_cast %32 : vector<256x1xi1> to vector<256x1xi1>
    %64 = vector.broadcast %63 : vector<256x1xi1> to vector<256x32xi1>
    %65 = vector.broadcast %62 : bf16 to vector<256x32xbf16>
    %66 = arith.select %64, %61, %65 : vector<256x32xi1>, vector<256x32xbf16>
    %c3 = arith.constant 3 : index
    %c0_33 = arith.constant 0 : index
    %c0_34 = arith.constant 0 : index
    %67 = vector.load %arg4[%c3, %c0_33, %c0_34] : memref<9x32x64xbf16, #tpu.memory_space<vmem>>, vector<1x32x64xbf16>
    %68 = vector.shape_cast %67 : vector<1x32x64xbf16> to vector<32x64xbf16>
    %cst_35 = arith.constant dense<0.000000e+00> : vector<256x64xf32>
    %69 = tpu.matmul %66, %68, %cst_35 {dimension_numbers = #tpu.dot_dimension_numbers<[1], [0], [0], [1], [0, 0, 1, 1], [], []>} : vector<256x32xbf16>, vector<32x64xbf16>, vector<256x64xf32> -> vector<256x64xf32>
    %70 = arith.addf %60, %69 : vector<256x64xf32>
    %c32_36 = arith.constant 32 : index
    %c0_37 = arith.constant 0 : index
    %71 = vector.load %arg13[%c32_36, %c0_37] : memref<320x32xbf16, #tpu.memory_space<vmem>>, vector<256x32xbf16>
    %c4 = arith.constant 4 : index
    %c0_38 = arith.constant 0 : index
    %c0_39 = arith.constant 0 : index
    %72 = vector.load %arg4[%c4, %c0_38, %c0_39] : memref<9x32x64xbf16, #tpu.memory_space<vmem>>, vector<1x32x64xbf16>
    %73 = vector.shape_cast %72 : vector<1x32x64xbf16> to vector<32x64xbf16>
    %cst_40 = arith.constant dense<0.000000e+00> : vector<256x64xf32>
    %74 = tpu.matmul %71, %73, %cst_40 {dimension_numbers = #tpu.dot_dimension_numbers<[1], [0], [0], [1], [0, 0, 1, 1], [], []>} : vector<256x32xbf16>, vector<32x64xbf16>, vector<256x64xf32> -> vector<256x64xf32>
    %75 = arith.addf %70, %74 : vector<256x64xf32>
    %c33 = arith.constant 33 : index
    %c0_41 = arith.constant 0 : index
    %76 = vector.load %arg13[%c33, %c0_41] : memref<320x32xbf16, #tpu.memory_space<vmem>>, vector<256x32xbf16>
    %cst_42 = arith.constant 0.000000e+00 : f32
    %77 = arith.truncf %cst_42 : f32 to bf16
    %78 = vector.shape_cast %34 : vector<256x1xi1> to vector<256x1xi1>
    %79 = vector.broadcast %78 : vector<256x1xi1> to vector<256x32xi1>
    %80 = vector.broadcast %77 : bf16 to vector<256x32xbf16>
    %81 = arith.select %79, %76, %80 : vector<256x32xi1>, vector<256x32xbf16>
    %c5 = arith.constant 5 : index
    %c0_43 = arith.constant 0 : index
    %c0_44 = arith.constant 0 : index
    %82 = vector.load %arg4[%c5, %c0_43, %c0_44] : memref<9x32x64xbf16, #tpu.memory_space<vmem>>, vector<1x32x64xbf16>
    %83 = vector.shape_cast %82 : vector<1x32x64xbf16> to vector<32x64xbf16>
    %cst_45 = arith.constant dense<0.000000e+00> : vector<256x64xf32>
    %84 = tpu.matmul %81, %83, %cst_45 {dimension_numbers = #tpu.dot_dimension_numbers<[1], [0], [0], [1], [0, 0, 1, 1], [], []>} : vector<256x32xbf16>, vector<32x64xbf16>, vector<256x64xf32> -> vector<256x64xf32>
    %85 = arith.addf %75, %84 : vector<256x64xf32>
    %c47 = arith.constant 47 : index
    %c0_46 = arith.constant 0 : index
    %86 = vector.load %arg13[%c47, %c0_46] : memref<320x32xbf16, #tpu.memory_space<vmem>>, vector<256x32xbf16>
    %cst_47 = arith.constant 0.000000e+00 : f32
    %87 = arith.truncf %cst_47 : f32 to bf16
    %88 = vector.shape_cast %32 : vector<256x1xi1> to vector<256x1xi1>
    %89 = vector.broadcast %88 : vector<256x1xi1> to vector<256x32xi1>
    %90 = vector.broadcast %87 : bf16 to vector<256x32xbf16>
    %91 = arith.select %89, %86, %90 : vector<256x32xi1>, vector<256x32xbf16>
    %c6 = arith.constant 6 : index
    %c0_48 = arith.constant 0 : index
    %c0_49 = arith.constant 0 : index
    %92 = vector.load %arg4[%c6, %c0_48, %c0_49] : memref<9x32x64xbf16, #tpu.memory_space<vmem>>, vector<1x32x64xbf16>
    %93 = vector.shape_cast %92 : vector<1x32x64xbf16> to vector<32x64xbf16>
    %cst_50 = arith.constant dense<0.000000e+00> : vector<256x64xf32>
    %94 = tpu.matmul %91, %93, %cst_50 {dimension_numbers = #tpu.dot_dimension_numbers<[1], [0], [0], [1], [0, 0, 1, 1], [], []>} : vector<256x32xbf16>, vector<32x64xbf16>, vector<256x64xf32> -> vector<256x64xf32>
    %95 = arith.addf %85, %94 : vector<256x64xf32>
    %c48 = arith.constant 48 : index
    %c0_51 = arith.constant 0 : index
    %96 = vector.load %arg13[%c48, %c0_51] : memref<320x32xbf16, #tpu.memory_space<vmem>>, vector<256x32xbf16>
    %c7 = arith.constant 7 : index
    %c0_52 = arith.constant 0 : index
    %c0_53 = arith.constant 0 : index
    %97 = vector.load %arg4[%c7, %c0_52, %c0_53] : memref<9x32x64xbf16, #tpu.memory_space<vmem>>, vector<1x32x64xbf16>
    %98 = vector.shape_cast %97 : vector<1x32x64xbf16> to vector<32x64xbf16>
    %cst_54 = arith.constant dense<0.000000e+00> : vector<256x64xf32>
    %99 = tpu.matmul %96, %98, %cst_54 {dimension_numbers = #tpu.dot_dimension_numbers<[1], [0], [0], [1], [0, 0, 1, 1], [], []>} : vector<256x32xbf16>, vector<32x64xbf16>, vector<256x64xf32> -> vector<256x64xf32>
    %100 = arith.addf %95, %99 : vector<256x64xf32>
    %c49 = arith.constant 49 : index
    %c0_55 = arith.constant 0 : index
    %101 = vector.load %arg13[%c49, %c0_55] : memref<320x32xbf16, #tpu.memory_space<vmem>>, vector<256x32xbf16>
    %cst_56 = arith.constant 0.000000e+00 : f32
    %102 = arith.truncf %cst_56 : f32 to bf16
    %103 = vector.shape_cast %34 : vector<256x1xi1> to vector<256x1xi1>
    %104 = vector.broadcast %103 : vector<256x1xi1> to vector<256x32xi1>
    %105 = vector.broadcast %102 : bf16 to vector<256x32xbf16>
    %106 = arith.select %104, %101, %105 : vector<256x32xi1>, vector<256x32xbf16>
    %c8 = arith.constant 8 : index
    %c0_57 = arith.constant 0 : index
    %c0_58 = arith.constant 0 : index
    %107 = vector.load %arg4[%c8, %c0_57, %c0_58] : memref<9x32x64xbf16, #tpu.memory_space<vmem>>, vector<1x32x64xbf16>
    %108 = vector.shape_cast %107 : vector<1x32x64xbf16> to vector<32x64xbf16>
    %cst_59 = arith.constant dense<0.000000e+00> : vector<256x64xf32>
    %109 = tpu.matmul %106, %108, %cst_59 {dimension_numbers = #tpu.dot_dimension_numbers<[1], [0], [0], [1], [0, 0, 1, 1], [], []>} : vector<256x32xbf16>, vector<32x64xbf16>, vector<256x64xf32> -> vector<256x64xf32>
    %110 = arith.addf %100, %109 : vector<256x64xf32>
    %c0_60 = arith.constant 0 : index
    %c0_61 = arith.constant 0 : index
    %111 = vector.load %arg5[%c0_60, %c0_61] : memref<1x64xf32, #tpu.memory_space<vmem>>, vector<1x64xf32>
    %112 = vector.broadcast %111 : vector<1x64xf32> to vector<256x64xf32>
    %113 = arith.addf %110, %112 : vector<256x64xf32>
    %cst_62 = arith.constant 0.000000e+00 : f32
    %114 = vector.broadcast %cst_62 : f32 to vector<256x64xf32>
    %115 = arith.maximumf %113, %114 : vector<256x64xf32>
    %116 = vector.extract_strided_slice %115 {offsets = [0, 0], sizes = [256, 32], strides = [1, 1]} : vector<256x64xf32> to vector<256x32xf32>
    %117 = vector.extract_strided_slice %115 {offsets = [0, 32], sizes = [256, 32], strides = [1, 1]} : vector<256x64xf32> to vector<256x32xf32>
    %118 = arith.addf %116, %117 : vector<256x32xf32>
    %cst_63 = arith.constant dense<0.000000e+00> : vector<32xf32>
    %119 = vector.multi_reduction <add>, %118, %cst_63 [0] : vector<256x32xf32> to vector<32xf32>
    %120 = vector.shape_cast %119 : vector<32xf32> to vector<1x32xf32>
    %cst_64 = arith.constant 3.906250e-03 : f32
    %121 = vector.broadcast %cst_64 : f32 to vector<1x32xf32>
    %122 = arith.mulf %120, %121 : vector<1x32xf32>
    %123 = arith.truncf %122 : vector<1x32xf32> to vector<1x32xbf16>
    %c0_65 = arith.constant 0 : index
    %c0_66 = arith.constant 0 : index
    %124 = vector.load %arg6[%c0_65, %c0_66] : memref<32x32xbf16, #tpu.memory_space<vmem>>, vector<32x32xbf16>
    %cst_67 = arith.constant dense<0.000000e+00> : vector<1x32xf32>
    %125 = tpu.matmul %123, %124, %cst_67 {dimension_numbers = #tpu.dot_dimension_numbers<[1], [0], [0], [1], [0, 0, 1, 1], [], []>} : vector<1x32xbf16>, vector<32x32xbf16>, vector<1x32xf32> -> vector<1x32xf32>
    %c0_68 = arith.constant 0 : index
    %c0_69 = arith.constant 0 : index
    %126 = vector.load %arg7[%c0_68, %c0_69] : memref<1x32xf32, #tpu.memory_space<vmem>>, vector<1x32xf32>
    %127 = arith.addf %125, %126 : vector<1x32xf32>
    %cst_70 = arith.constant 0.000000e+00 : f32
    %128 = vector.broadcast %cst_70 : f32 to vector<1x32xf32>
    %129 = arith.maximumf %127, %128 : vector<1x32xf32>
    %130 = arith.truncf %129 : vector<1x32xf32> to vector<1x32xbf16>
    %c0_71 = arith.constant 0 : index
    %c0_72 = arith.constant 0 : index
    %131 = vector.load %arg8[%c0_71, %c0_72] : memref<32x64xbf16, #tpu.memory_space<vmem>>, vector<32x64xbf16>
    %cst_73 = arith.constant dense<0.000000e+00> : vector<1x64xf32>
    %132 = tpu.matmul %130, %131, %cst_73 {dimension_numbers = #tpu.dot_dimension_numbers<[1], [0], [0], [1], [0, 0, 1, 1], [], []>} : vector<1x32xbf16>, vector<32x64xbf16>, vector<1x64xf32> -> vector<1x64xf32>
    %c0_74 = arith.constant 0 : index
    %c0_75 = arith.constant 0 : index
    %133 = vector.load %arg9[%c0_74, %c0_75] : memref<1x64xf32, #tpu.memory_space<vmem>>, vector<1x64xf32>
    %134 = arith.addf %132, %133 : vector<1x64xf32>
    %135 = vector.extract_strided_slice %134 {offsets = [0, 0], sizes = [1, 32], strides = [1, 1]} : vector<1x64xf32> to vector<1x32xf32>
    %136 = vector.extract_strided_slice %134 {offsets = [0, 32], sizes = [1, 32], strides = [1, 1]} : vector<1x64xf32> to vector<1x32xf32>
    %137 = arith.maximumf %135, %136 : vector<1x32xf32>
    %138 = arith.subf %135, %137 : vector<1x32xf32>
    %139 = math.exp %138 : vector<1x32xf32>
    %140 = arith.subf %136, %137 : vector<1x32xf32>
    %141 = math.exp %140 : vector<1x32xf32>
    %142 = arith.addf %139, %141 : vector<1x32xf32>
    %cst_76 = arith.constant 1.000000e+00 : f32
    %143 = vector.broadcast %cst_76 : f32 to vector<1x32xf32>
    %144 = arith.divf %143, %142 : vector<1x32xf32>
    %145 = arith.mulf %139, %144 : vector<1x32xf32>
    %146 = vector.extract_strided_slice %115 {offsets = [0, 0], sizes = [256, 32], strides = [1, 1]} : vector<256x64xf32> to vector<256x32xf32>
    %147 = vector.broadcast %145 : vector<1x32xf32> to vector<256x32xf32>
    %148 = arith.mulf %147, %146 : vector<256x32xf32>
    %149 = arith.mulf %141, %144 : vector<1x32xf32>
    %150 = vector.extract_strided_slice %115 {offsets = [0, 32], sizes = [256, 32], strides = [1, 1]} : vector<256x64xf32> to vector<256x32xf32>
    %151 = vector.broadcast %149 : vector<1x32xf32> to vector<256x32xf32>
    %152 = arith.mulf %151, %150 : vector<256x32xf32>
    %153 = arith.addf %148, %152 : vector<256x32xf32>
    %154 = arith.truncf %153 : vector<256x32xf32> to vector<256x32xbf16>
    %c0_77 = arith.constant 0 : index
    %c0_78 = arith.constant 0 : index
    %155 = vector.load %arg10[%c0_77, %c0_78] : memref<32x128xbf16, #tpu.memory_space<vmem>>, vector<32x128xbf16>
    %cst_79 = arith.constant dense<0.000000e+00> : vector<256x128xf32>
    %156 = tpu.matmul %154, %155, %cst_79 {dimension_numbers = #tpu.dot_dimension_numbers<[1], [0], [0], [1], [0, 0, 1, 1], [], []>} : vector<256x32xbf16>, vector<32x128xbf16>, vector<256x128xf32> -> vector<256x128xf32>
    %c0_80 = arith.constant 0 : index
    %c0_81 = arith.constant 0 : index
    %157 = vector.load %arg11[%c0_80, %c0_81] : memref<1x128xf32, #tpu.memory_space<vmem>>, vector<1x128xf32>
    %158 = vector.broadcast %157 : vector<1x128xf32> to vector<256x128xf32>
    %159 = arith.addf %156, %158 : vector<256x128xf32>
    %c0_82 = arith.constant 0 : index
    %c0_83 = arith.constant 0 : index
    %c0_84 = arith.constant 0 : index
    %160 = vector.load %arg1[%c0_82, %c0_83, %c0_84] : memref<1x256x128xf32, #tpu.memory_space<vmem>>, vector<1x256x128xf32>
    %161 = vector.shape_cast %160 : vector<1x256x128xf32> to vector<256x128xf32>
    %162 = arith.addf %159, %161 : vector<256x128xf32>
    %cst_85 = arith.constant 0.000000e+00 : f32
    %163 = vector.broadcast %cst_85 : f32 to vector<256x128xf32>
    %164 = arith.maximumf %162, %163 : vector<256x128xf32>
    %c0_86 = arith.constant 0 : index
    %c0_87 = arith.constant 0 : index
    %c0_88 = arith.constant 0 : index
    %165 = vector.load %arg12[%c0_86, %c0_87, %c0_88] : memref<1x256x128xf32, #tpu.memory_space<vmem>>, vector<1x256x128xf32>
    %166 = vector.shape_cast %165 : vector<1x256x128xf32> to vector<256x128xf32>
    %167 = vector.shape_cast %164 : vector<256x128xf32> to vector<1x256x128xf32>
    tpu.vector_store %arg12[%c0_86, %c0_87, %c0_88], %167 {strides = array<i32>} : memref<1x256x128xf32, #tpu.memory_space<vmem>>, vector<1x256x128xf32>,
    return
  }
  func.func @transform_0(%arg0: i32) -> (i32, i32, i32) {
    %c0_i32 = arith.constant 0 : i32
    %c0_i32_0 = arith.constant 0 : i32
    %c0_i32_1 = arith.constant 0 : i32
    return %arg0, %c0_i32, %c0_i32_0 : i32, i32, i32
  }
  func.func @transform_1(%arg0: i32) -> (i32, i32) {
    %c0_i32 = arith.constant 0 : i32
    %c0_i32_0 = arith.constant 0 : i32
    %c0_i32_1 = arith.constant 0 : i32
    return %c0_i32, %c0_i32_0 : i32, i32
  }
  func.func @transform_2(%arg0: i32) -> (i32, i32) {
    %c0_i32 = arith.constant 0 : i32
    %c0_i32_0 = arith.constant 0 : i32
    %c0_i32_1 = arith.constant 0 : i32
    return %c0_i32, %c0_i32_0 : i32, i32
  }
  func.func @transform_3(%arg0: i32) -> (i32, i32, i32) {
    %c0_i32 = arith.constant 0 : i32
    %c0_i32_0 = arith.constant 0 : i32
    %c0_i32_1 = arith.constant 0 : i32
    %c0_i32_2 = arith.constant 0 : i32
    return %c0_i32, %c0_i32_0, %c0_i32_1 : i32, i32, i32
  }
  func.func @transform_4(%arg0: i32) -> (i32, i32) {
    %c0_i32 = arith.constant 0 : i32
    %c0_i32_0 = arith.constant 0 : i32
    %c0_i32_1 = arith.constant 0 : i32
    return %c0_i32, %c0_i32_0 : i32, i32
  }
  func.func @transform_5(%arg0: i32) -> (i32, i32) {
    %c0_i32 = arith.constant 0 : i32
    %c0_i32_0 = arith.constant 0 : i32
    %c0_i32_1 = arith.constant 0 : i32
    return %c0_i32, %c0_i32_0 : i32, i32
  }
  func.func @transform_6(%arg0: i32) -> (i32, i32) {
    %c0_i32 = arith.constant 0 : i32
    %c0_i32_0 = arith.constant 0 : i32
    %c0_i32_1 = arith.constant 0 : i32
    return %c0_i32, %c0_i32_0 : i32, i32
  }
  func.func @transform_7(%arg0: i32) -> (i32, i32) {
    %c0_i32 = arith.constant 0 : i32
    %c0_i32_0 = arith.constant 0 : i32
    %c0_i32_1 = arith.constant 0 : i32
    return %c0_i32, %c0_i32_0 : i32, i32
  }
  func.func @transform_8(%arg0: i32) -> (i32, i32) {
    %c0_i32 = arith.constant 0 : i32
    %c0_i32_0 = arith.constant 0 : i32
    %c0_i32_1 = arith.constant 0 : i32
    return %c0_i32, %c0_i32_0 : i32, i32
  }
  func.func @transform_9(%arg0: i32) -> (i32, i32) {
    %c0_i32 = arith.constant 0 : i32
    %c0_i32_0 = arith.constant 0 : i32
    %c0_i32_1 = arith.constant 0 : i32
    return %c0_i32, %c0_i32_0 : i32, i32
  }
  func.func @transform_10(%arg0: i32) -> (i32, i32) {
    %c0_i32 = arith.constant 0 : i32
    %c0_i32_0 = arith.constant 0 : i32
    %c0_i32_1 = arith.constant 0 : i32
    return %c0_i32, %c0_i32_0 : i32, i32
  }
  func.func @transform_11(%arg0: i32) -> (i32, i32, i32) {
    %c0_i32 = arith.constant 0 : i32
    %c0_i32_0 = arith.constant 0 : i32
    %c0_i32_1 = arith.constant 0 : i32
    return %arg0, %c0_i32, %c0_i32_0 : i32, i32, i32
  }
}

</mosaic_0001>

<llo_original>
// kernel: _lambda_.1
$region0: #{_lambda_.1}
  #allocation0 [shape = 'u32[]', space=smem, size = 0x4, offset = 0x4, fixed_abs, tag = 'smem constant byte address 0x4 - core index']
  #allocation1 [shape = 'u32[144,128]{1,0:T(1,128)}', space=vmem, size = 0x12000, scoped, tag = 'internal scratch']
  #allocation2 [shape = 'bf16[320,32]{1,0:T(8,128)(2,1)}', space=vmem, size = 0x14000, scoped, tag = 'scratch operand']
  %s0 = inlined_call_operand.hbm [shape: f32[2,256,128], index: 0, kind: input, shape index: {}]
  %s1 = inlined_call_operand.hbm [shape: bf16[128,32], index: 1, kind: input, shape index: {}]
  %s2 = inlined_call_operand.hbm [shape: f32[1,32], index: 2, kind: input, shape index: {}]
  %s3 = inlined_call_operand.hbm [shape: bf16[9,32,64], index: 3, kind: input, shape index: {}]
  %s4 = inlined_call_operand.hbm [shape: f32[1,64], index: 4, kind: input, shape index: {}]
  %s5 = inlined_call_operand.hbm [shape: bf16[32,32], index: 5, kind: input, shape index: {}]
  %s6 = inlined_call_operand.hbm [shape: f32[1,32], index: 6, kind: input, shape index: {}]
  %s7 = inlined_call_operand.hbm [shape: bf16[32,64], index: 7, kind: input, shape index: {}]
  %s8 = inlined_call_operand.vmem [shape: f32[1,64], index: 8, kind: input, shape index: {}]
  %s9 = inlined_call_operand.vmem [shape: bf16[32,128], index: 9, kind: input, shape index: {}]
  %s10 = inlined_call_operand.vmem [shape: f32[1,128], index: 10, kind: input, shape index: {}]
  %s11 = inlined_call_operand.hbm [shape: f32[2,256,128], index: 11, kind: output, shape index: {}]
  %s12 = sld [smem:[#allocation0]]
  $region109: #{_lambda_.1} parent=0
    _
  %s14 = ssub.s32 1, %s12
  %s15 = scalar_select 0, %s14, %s12
  $region1: #{_lambda_.1} parent=0
    #allocation3 [shape = 'u8[262144]{0}', space=vmem, size = 0x40000, scoped, tag = 'input window, operand 0']
    #allocation4 [shape = 's32[2]{0}', space=sflag, size = 0x8, scoped, tag = 'scoped memory for _lambda_.1']
    #allocation5 [shape = 's32[2]{0}', space=sflag, size = 0x8, scoped, tag = 'scoped memory for _lambda_.1']
    #allocation6 [shape = 'u8[32768]{0}', space=vmem, size = 0x8000, scoped, tag = 'input window, operand 1, single buffered']
    #allocation7 [shape = 's32[1]{0}', space=sflag, size = 0x4, scoped, tag = 'scoped memory for _lambda_.1']
    #allocation8 [shape = 'u8[512]{0}', space=vmem, size = 0x400, scoped, tag = 'input window, operand 2, single buffered']
    #allocation9 [shape = 'u8[73728]{0}', space=vmem, size = 0x12000, scoped, tag = 'input window, operand 3, single buffered']
    #allocation10 [shape = 's32[1]{0}', space=sflag, size = 0x4, scoped, tag = 'scoped memory for _lambda_.1']
    #allocation11 [shape = 'u8[512]{0}', space=vmem, size = 0x400, scoped, tag = 'input window, operand 4, single buffered']
    #allocation12 [shape = 'u8[8192]{0}', space=vmem, size = 0x2000, scoped, tag = 'input window, operand 5, single buffered']
    #allocation13 [shape = 's32[1]{0}', space=sflag, size = 0x4, scoped, tag = 'scoped memory for _lambda_.1']
    #allocation14 [shape = 'u8[512]{0}', space=vmem, size = 0x400, scoped, tag = 'input window, operand 6, single buffered']
    #allocation15 [shape = 'u8[8192]{0}', space=vmem, size = 0x2000, scoped, tag = 'input window, operand 7, single buffered']
    #allocation16 [shape = 's32[1]{0}', space=sflag, size = 0x4, scoped, tag = 'scoped memory for _lambda_.1']
    #allocation17 [shape = 'u8[262144]{0}', space=vmem, size = 0x40000, scoped, tag = 'output window, operand 0']
    %16 = vsyncpa [#allocation4], 0
    %s17 = scalar_lea.sflag [#allocation4], 1
    %18 = vsyncpa %s17, 0
    %19 = vsyncpa [#allocation7], 0
    %20 = vsyncpa [#allocation10], 0
    %21 = vsyncpa [#allocation13], 0
    %22 = vsyncpa [#allocation16], 0
    %23 = vsyncpa [#allocation5], 0
    %s24 = scalar_lea.sflag [#allocation5], 1
    %25 = vsyncpa %s24, 0
    loop: start=0, step=1, limit=4
    $region2: #{_lambda_.1} parent=1 // loop_pre_header
      _
    $region3: #{_lambda_.1} parent=1 // loop_header
      %s27 = sphi 0, %s31
      %p28 = scmp.ge.s32.totalorder %s27, 4
      %s37 = sphi 0, %s39
      %s40 = sphi 0, %s37
      %s41 = sphi 0, %s40
      %s57 = sphi 0, %s41
      %s61 = sphi 0, %s61
      %s63 = sphi 0, %s61
      %s64 = sphi 0, %s63
      %s78 = sphi 0, %s64
      %s82 = sphi 0, %s82
      %s84 = sphi 0, %s82
      %s85 = sphi 0, %s84
      %s99 = sphi 0, %s85
      %s103 = sphi 0, %s103
      %s105 = sphi 0, %s103
      %s106 = sphi 0, %s105
      %s120 = sphi 0, %s106
      %s124 = sphi 0, %s124
      %s126 = sphi 0, %s124
      %s127 = sphi 0, %s126
      %s141 = sphi 0, %s127
      %s145 = sphi 0, %s145
      %s147 = sphi 0, %s145
      %s148 = sphi 0, %s147
      %s162 = sphi 0, %s148
      %s166 = sphi 0, %s166
      %s168 = sphi 0, %s166
      %s169 = sphi 0, %s168
      %s183 = sphi 0, %s169
      %s187 = sphi 0, %s187
      %s189 = sphi 0, %s187
      %s190 = sphi 0, %s189
      %s204 = sphi 0, %s190
      %s208 = sphi 0, %s208
      %s210 = sphi 0, %s208
      %s211 = sphi 0, %s210
      %s225 = sphi 0, %s211
      %s229 = sphi 0, %s229
      %s231 = sphi 0, %s229
      %s232 = sphi 0, %s231
      %s246 = sphi 0, %s232
      %s250 = sphi 0, %s250
      %s252 = sphi 0, %s250
      %s253 = sphi 0, %s252
      %s267 = sphi 0, %s253
      %s273 = sphi 0, %s275
      %s276 = sphi 0, %s273
      %s277 = sphi 0, %s276
      %s293 = sphi 0, %s277
    $region4: #{_lambda_.1} parent=1 // loop_header_branch
      %30 = sbr.rel (%p28) target = $region8
    $region5: #{_lambda_.1} parent=1 // loop_body
      %s32 = ssub.s32 %s27, 1
      %s33 = ssub.s32 %s27, 2
      %s34 = sadd.s32 %s27, 1
      %s35 = ssub.s32 %s27, %s34
      %p36 = scmp.eq.s32.totalorder %s35, 0
      %s38 = sadd.s32 %s37, 1
      %s39 = scalar_select %p36, %s37, %s38
      %p42 = pneg %p36
      %p43 = scmp.eq.s32.totalorder %s27, 1
      %p44 = por %p42, %p43
      %p45 = scmp.ne.s32.totalorder %s37, %s40
      %p46 = scmp.eq.s32.totalorder %s27, 0
      %p47 = por %p45, %p46
      %p48 = scmp.ne.s32.totalorder %s37, %s40
      %p49 = scmp.eq.s32.totalorder %s32, 1
      %p50 = por %p48, %p49
      %p51 = scmp.ne.s32.totalorder %s40, %s41
      %p52 = scmp.eq.s32.totalorder %s32, 0
      %p53 = por %p51, %p52
      %p54 = scmp.ne.s32.totalorder %s40, %s41
      %p55 = scmp.eq.s32.totalorder %s33, 1
      %p56 = por %p54, %p55
      %p58 = scmp.ne.s32.totalorder %s41, %s57
      %p59 = scmp.eq.s32.totalorder %s33, 0
      %p60 = por %p58, %p59
      %s62 = sadd.s32 %s61, 1
      %p65 = scmp.eq.s32.totalorder %s27, 1
      %p66 = scmp.ne.s32.totalorder %s61, %s63
      %p67 = scmp.eq.s32.totalorder %s27, 0
      %p68 = por %p66, %p67
      %p69 = scmp.ne.s32.totalorder %s61, %s63
      %p70 = scmp.eq.s32.totalorder %s32, 1
      %p71 = por %p69, %p70
      %p72 = scmp.ne.s32.totalorder %s63, %s64
      %p73 = scmp.eq.s32.totalorder %s32, 0
      %p74 = por %p72, %p73
      %p75 = scmp.ne.s32.totalorder %s63, %s64
      %p76 = scmp.eq.s32.totalorder %s33, 1
      %p77 = por %p75, %p76
      %p79 = scmp.ne.s32.totalorder %s64, %s78
      %p80 = scmp.eq.s32.totalorder %s33, 0
      %p81 = por %p79, %p80
      %s83 = sadd.s32 %s82, 1
      %p86 = scmp.eq.s32.totalorder %s27, 1
      %p87 = scmp.ne.s32.totalorder %s82, %s84
      %p88 = scmp.eq.s32.totalorder %s27, 0
      %p89 = por %p87, %p88
      %p90 = scmp.ne.s32.totalorder %s82, %s84
      %p91 = scmp.eq.s32.totalorder %s32, 1
      %p92 = por %p90, %p91
      %p93 = scmp.ne.s32.totalorder %s84, %s85
      %p94 = scmp.eq.s32.totalorder %s32, 0
      %p95 = por %p93, %p94
      %p96 = scmp.ne.s32.totalorder %s84, %s85
      %p97 = scmp.eq.s32.totalorder %s33, 1
      %p98 = por %p96, %p97
      %p100 = scmp.ne.s32.totalorder %s85, %s99
      %p101 = scmp.eq.s32.totalorder %s33, 0
      %p102 = por %p100, %p101
      %s104 = sadd.s32 %s103, 1
      %p107 = scmp.eq.s32.totalorder %s27, 1
      %p108 = scmp.ne.s32.totalorder %s103, %s105
      %p109 = scmp.eq.s32.totalorder %s27, 0
      %p110 = por %p108, %p109
      %p111 = scmp.ne.s32.totalorder %s103, %s105
      %p112 = scmp.eq.s32.totalorder %s32, 1
      %p113 = por %p111, %p112
      %p114 = scmp.ne.s32.totalorder %s105, %s106
      %p115 = scmp.eq.s32.totalorder %s32, 0
      %p116 = por %p114, %p115
      %p117 = scmp.ne.s32.totalorder %s105, %s106
      %p118 = scmp.eq.s32.totalorder %s33, 1
      %p119 = por %p117, %p118
      %p121 = scmp.ne.s32.totalorder %s106, %s120
      %p122 = scmp.eq.s32.totalorder %s33, 0
      %p123 = por %p121, %p122
      %s125 = sadd.s32 %s124, 1
      %p128 = scmp.eq.s32.totalorder %s27, 1
      %p129 = scmp.ne.s32.totalorder %s124, %s126
      %p130 = scmp.eq.s32.totalorder %s27, 0
      %p131 = por %p129, %p130
      %p132 = scmp.ne.s32.totalorder %s124, %s126
      %p133 = scmp.eq.s32.totalorder %s32, 1
      %p134 = por %p132, %p133
      %p135 = scmp.ne.s32.totalorder %s126, %s127
      %p136 = scmp.eq.s32.totalorder %s32, 0
      %p137 = por %p135, %p136
      %p138 = scmp.ne.s32.totalorder %s126, %s127
      %p139 = scmp.eq.s32.totalorder %s33, 1
      %p140 = por %p138, %p139
      %p142 = scmp.ne.s32.totalorder %s127, %s141
      %p143 = scmp.eq.s32.totalorder %s33, 0
      %p144 = por %p142, %p143
      %s146 = sadd.s32 %s145, 1
      %p149 = scmp.eq.s32.totalorder %s27, 1
      %p150 = scmp.ne.s32.totalorder %s145, %s147
      %p151 = scmp.eq.s32.totalorder %s27, 0
      %p152 = por %p150, %p151
      %p153 = scmp.ne.s32.totalorder %s145, %s147
      %p154 = scmp.eq.s32.totalorder %s32, 1
      %p155 = por %p153, %p154
      %p156 = scmp.ne.s32.totalorder %s147, %s148
      %p157 = scmp.eq.s32.totalorder %s32, 0
      %p158 = por %p156, %p157
      %p159 = scmp.ne.s32.totalorder %s147, %s148
      %p160 = scmp.eq.s32.totalorder %s33, 1
      %p161 = por %p159, %p160
      %p163 = scmp.ne.s32.totalorder %s148, %s162
      %p164 = scmp.eq.s32.totalorder %s33, 0
      %p165 = por %p163, %p164
      %s167 = sadd.s32 %s166, 1
      %p170 = scmp.eq.s32.totalorder %s27, 1
      %p171 = scmp.ne.s32.totalorder %s166, %s168
      %p172 = scmp.eq.s32.totalorder %s27, 0
      %p173 = por %p171, %p172
      %p174 = scmp.ne.s32.totalorder %s166, %s168
      %p175 = scmp.eq.s32.totalorder %s32, 1
      %p176 = por %p174, %p175
      %p177 = scmp.ne.s32.totalorder %s168, %s169
      %p178 = scmp.eq.s32.totalorder %s32, 0
      %p179 = por %p177, %p178
      %p180 = scmp.ne.s32.totalorder %s168, %s169
      %p181 = scmp.eq.s32.totalorder %s33, 1
      %p182 = por %p180, %p181
      %p184 = scmp.ne.s32.totalorder %s169, %s183
      %p185 = scmp.eq.s32.totalorder %s33, 0
      %p186 = por %p184, %p185
      %s188 = sadd.s32 %s187, 1
      %p191 = scmp.eq.s32.totalorder %s27, 1
      %p192 = scmp.ne.s32.totalorder %s187, %s189
      %p193 = scmp.eq.s32.totalorder %s27, 0
      %p194 = por %p192, %p193
      %p195 = scmp.ne.s32.totalorder %s187, %s189
      %p196 = scmp.eq.s32.totalorder %s32, 1
      %p197 = por %p195, %p196
      %p198 = scmp.ne.s32.totalorder %s189, %s190
      %p199 = scmp.eq.s32.totalorder %s32, 0
      %p200 = por %p198, %p199
      %p201 = scmp.ne.s32.totalorder %s189, %s190
      %p202 = scmp.eq.s32.totalorder %s33, 1
      %p203 = por %p201, %p202
      %p205 = scmp.ne.s32.totalorder %s190, %s204
      %p206 = scmp.eq.s32.totalorder %s33, 0
      %p207 = por %p205, %p206
      %s209 = sadd.s32 %s208, 1
      %p212 = scmp.eq.s32.totalorder %s27, 1
      %p213 = scmp.ne.s32.totalorder %s208, %s210
      %p214 = scmp.eq.s32.totalorder %s27, 0
      %p215 = por %p213, %p214
      %p216 = scmp.ne.s32.totalorder %s208, %s210
      %p217 = scmp.eq.s32.totalorder %s32, 1
      %p218 = por %p216, %p217
      %p219 = scmp.ne.s32.totalorder %s210, %s211
      %p220 = scmp.eq.s32.totalorder %s32, 0
      %p221 = por %p219, %p220
      %p222 = scmp.ne.s32.totalorder %s210, %s211
      %p223 = scmp.eq.s32.totalorder %s33, 1
      %p224 = por %p222, %p223
      %p226 = scmp.ne.s32.totalorder %s211, %s225
      %p227 = scmp.eq.s32.totalorder %s33, 0
      %p228 = por %p226, %p227
      %s230 = sadd.s32 %s229, 1
      %p233 = scmp.eq.s32.totalorder %s27, 1
      %p234 = scmp.ne.s32.totalorder %s229, %s231
      %p235 = scmp.eq.s32.totalorder %s27, 0
      %p236 = por %p234, %p235
      %p237 = scmp.ne.s32.totalorder %s229, %s231
      %p238 = scmp.eq.s32.totalorder %s32, 1
      %p239 = por %p237, %p238
      %p240 = scmp.ne.s32.totalorder %s231, %s232
      %p241 = scmp.eq.s32.totalorder %s32, 0
      %p242 = por %p240, %p241
      %p243 = scmp.ne.s32.totalorder %s231, %s232
      %p244 = scmp.eq.s32.totalorder %s33, 1
      %p245 = por %p243, %p244
      %p247 = scmp.ne.s32.totalorder %s232, %s246
      %p248 = scmp.eq.s32.totalorder %s33, 0
      %p249 = por %p247, %p248
      %s251 = sadd.s32 %s250, 1
      %p254 = scmp.eq.s32.totalorder %s27, 1
      %p255 = scmp.ne.s32.totalorder %s250, %s252
      %p256 = scmp.eq.s32.totalorder %s27, 0
      %p257 = por %p255, %p256
      %p258 = scmp.ne.s32.totalorder %s250, %s252
      %p259 = scmp.eq.s32.totalorder %s32, 1
      %p260 = por %p258, %p259
      %p261 = scmp.ne.s32.totalorder %s252, %s253
      %p262 = scmp.eq.s32.totalorder %s32, 0
      %p263 = por %p261, %p262
      %p264 = scmp.ne.s32.totalorder %s252, %s253
      %p265 = scmp.eq.s32.totalorder %s33, 1
      %p266 = por %p264, %p265
      %p268 = scmp.ne.s32.totalorder %s253, %s267
      %p269 = scmp.eq.s32.totalorder %s33, 0
      %p270 = por %p268, %p269
      %s271 = ssub.s32 %s27, %s34
      %p272 = scmp.eq.s32.totalorder %s271, 0
      %s274 = sadd.s32 %s273, 1
      %s275 = scalar_select %p272, %s273, %s274
      %p278 = pneg %p272
      %p279 = scmp.eq.s32.totalorder %s27, 1
      %p280 = por %p278, %p279
      %p281 = scmp.ne.s32.totalorder %s273, %s276
      %p282 = scmp.eq.s32.totalorder %s27, 0
      %p283 = por %p281, %p282
      %p284 = scmp.ne.s32.totalorder %s273, %s276
      %p285 = scmp.eq.s32.totalorder %s32, 1
      %p286 = por %p284, %p285
      %p287 = scmp.ne.s32.totalorder %s276, %s277
      %p288 = scmp.eq.s32.totalorder %s32, 0
      %p289 = por %p287, %p288
      %p290 = scmp.ne.s32.totalorder %s276, %s277
      %p291 = scmp.eq.s32.totalorder %s33, 1
      %p292 = por %p290, %p291
      %p294 = scmp.ne.s32.totalorder %s277, %s293
      %p295 = scmp.eq.s32.totalorder %s33, 0
      %p296 = por %p294, %p295
      %p297 = scmp.le.s32.totalorder 1, %s27
      %p298 = scmp.lt.s32.totalorder %s27, 3
      %p299 = pnand %p297, %p298
      %p300 = pneg %p299
      // Predicated region
      $region9: #{_lambda_.1} parent=5 // pred_check
        _
      $region10: #{_lambda_.1} parent=5 // pred_check_branch
        %302 = sbr.rel (%p299) target = $region12
      $region11: #{_lambda_.1} parent=5 // pred_region
        %s303 = ssub.s32 %s27, 1
        // Predicated region
        $region13: #{_lambda_.1} parent=11 // pred_check
          %p304 = pneg %p74
        $region14: #{_lambda_.1} parent=11 // pred_check_branch
          %306 = sbr.rel (%p304) target = $region16
        $region15: #{_lambda_.1} parent=11 // pred_region
          %s308 = ssub.s32 1024, 1024
          %309 = vsyncadd [#allocation7], %s308
          %s310 = sshll.u32 [#allocation6], 4
          %s311 = int_to_ptr.vmem [resolvable:$true] %s310
          %316 = dma.hbm_to_vmem [thread:$0]  %s1, 1024, %s311, [#allocation7], 64, 64, 4
        $region16: #{_lambda_.1} parent=11 // pred_fallthru
          _
        // Predicated region
        $region17: #{_lambda_.1} parent=11 // pred_check
          %p317 = pneg %p95
        $region18: #{_lambda_.1} parent=11 // pred_check_branch
          %319 = sbr.rel (%p317) target = $region20
        $region19: #{_lambda_.1} parent=11 // pred_region
          %s321 = ssub.s32 16, 16
          %322 = vsyncadd [#allocation7], %s321
          %s324 = sshll.u32 [#allocation8], 4
          %s325 = int_to_ptr.vmem [resolvable:$true] %s324
          %327 = dma.hbm_to_vmem [thread:$0]  %s2, 16, %s325, [#allocation7]
        $region20: #{_lambda_.1} parent=11 // pred_fallthru
          _
        // Predicated region
        $region21: #{_lambda_.1} parent=11 // pred_check
          %p328 = pneg %p116
        $region22: #{_lambda_.1} parent=11 // pred_check_branch
          %330 = sbr.rel (%p328) target = $region24
        $region23: #{_lambda_.1} parent=11 // pred_region
          %s332 = ssub.s32 2304, 2304
          %333 = vsyncadd [#allocation10], %s332
          %s334 = sshll.u32 [#allocation9], 4
          %s335 = int_to_ptr.vmem [resolvable:$true] %s334
          %340 = dma.hbm_to_vmem [thread:$0]  %s3, 2304, %s335, [#allocation10], 64, 64, 4
        $region24: #{_lambda_.1} parent=11 // pred_fallthru
          _
        // Predicated region
        $region25: #{_lambda_.1} parent=11 // pred_check
          %p341 = pneg %p137
        $region26: #{_lambda_.1} parent=11 // pred_check_branch
          %343 = sbr.rel (%p341) target = $region28
        $region27: #{_lambda_.1} parent=11 // pred_region
          %s345 = ssub.s32 16, 16
          %346 = vsyncadd [#allocation10], %s345
          %s348 = sshll.u32 [#allocation11], 4
          %s349 = int_to_ptr.vmem [resolvable:$true] %s348
          %351 = dma.hbm_to_vmem [thread:$0]  %s4, 16, %s349, [#allocation10]
        $region28: #{_lambda_.1} parent=11 // pred_fallthru
          _
        // Predicated region
        $region29: #{_lambda_.1} parent=11 // pred_check
          %p352 = pneg %p158
        $region30: #{_lambda_.1} parent=11 // pred_check_branch
          %354 = sbr.rel (%p352) target = $region32
        $region31: #{_lambda_.1} parent=11 // pred_region
          %s356 = ssub.s32 256, 256
          %357 = vsyncadd [#allocation13], %s356
          %s358 = sshll.u32 [#allocation12], 4
          %s359 = int_to_ptr.vmem [resolvable:$true] %s358
          %364 = dma.hbm_to_vmem [thread:$0]  %s5, 256, %s359, [#allocation13], 64, 64, 4
        $region32: #{_lambda_.1} parent=11 // pred_fallthru
          _
        // Predicated region
        $region33: #{_lambda_.1} parent=11 // pred_check
          %p365 = pneg %p179
        $region34: #{_lambda_.1} parent=11 // pred_check_branch
          %367 = sbr.rel (%p365) target = $region36
        $region35: #{_lambda_.1} parent=11 // pred_region
          %s369 = ssub.s32 16, 16
          %370 = vsyncadd [#allocation13], %s369
          %s372 = sshll.u32 [#allocation14], 4
          %s373 = int_to_ptr.vmem [resolvable:$true] %s372
          %375 = dma.hbm_to_vmem [thread:$0]  %s6, 16, %s373, [#allocation13]
        $region36: #{_lambda_.1} parent=11 // pred_fallthru
          _
        // Predicated region
        $region37: #{_lambda_.1} parent=11 // pred_check
          %p376 = pneg %p200
        $region38: #{_lambda_.1} parent=11 // pred_check_branch
          %378 = sbr.rel (%p376) target = $region40
        $region39: #{_lambda_.1} parent=11 // pred_region
          %s380 = ssub.s32 256, 256
          %381 = vsyncadd [#allocation16], %s380
          %s382 = sshll.u32 [#allocation15], 4
          %s383 = int_to_ptr.vmem [resolvable:$true] %s382
          %388 = dma.hbm_to_vmem [thread:$0]  %s7, 256, %s383, [#allocation16], 64, 64, 4
        $region40: #{_lambda_.1} parent=11 // pred_fallthru
          _
        // Predicated region
        $region41: #{_lambda_.1} parent=11 // pred_check
          %p389 = pneg %p221
        $region42: #{_lambda_.1} parent=11 // pred_check_branch
          %391 = sbr.rel (%p389) target = $region44
        $region43: #{_lambda_.1} parent=11 // pred_region
          _
        $region44: #{_lambda_.1} parent=11 // pred_fallthru
          _
        // Predicated region
        $region45: #{_lambda_.1} parent=11 // pred_check
          %p392 = pneg %p242
        $region46: #{_lambda_.1} parent=11 // pred_check_branch
          %394 = sbr.rel (%p392) target = $region48
        $region47: #{_lambda_.1} parent=11 // pred_region
          _
        $region48: #{_lambda_.1} parent=11 // pred_fallthru
          _
        // Predicated region
        $region49: #{_lambda_.1} parent=11 // pred_check
          %p395 = pneg %p263
        $region50: #{_lambda_.1} parent=11 // pred_check_branch
          %397 = sbr.rel (%p395) target = $region52
        $region51: #{_lambda_.1} parent=11 // pred_region
          _
        $region52: #{_lambda_.1} parent=11 // pred_fallthru
          _
      $region12: #{_lambda_.1} parent=5 // pred_fallthru
        _
      %p398 = scmp.lt.s32.totalorder %s27, 2
      // Predicated region
      $region53: #{_lambda_.1} parent=5 // pred_check
        %p399 = pneg %p398
      $region54: #{_lambda_.1} parent=5 // pred_check_branch
        %401 = sbr.rel (%p399) target = $region56
      $region55: #{_lambda_.1} parent=5 // pred_region
        // Predicated region
        $region57: #{_lambda_.1} parent=55 // pred_check
          %p402 = pneg %p47
        $region58: #{_lambda_.1} parent=55 // pred_check_branch
          %404 = sbr.rel (%p402) target = $region60
        $region59: #{_lambda_.1} parent=55 // pred_region
          %s405 = sand.u32 %s37, 1
          %s406 = scalar_lea.sflag [#allocation4], %s405
          %s407 = sand.u32 %s37, 1
          %s408 = smul.addr %s407, 256
          %s409 = scalar_lea.vmem [#allocation3], %s408
          %s411 = ssub.s32 4096, 4096
          %412 = vsyncadd %s406, %s411
          %s413 = smul.addr %s27, 32
          %s414 = smul.addr %s413, 128
          %s415 = scalar_lea.hbm %s0, %s414
          %s416 = sshll.u32 %s409, 4
          %s417 = int_to_ptr.vmem [resolvable:$true] %s416
          %422 = dma.hbm_to_vmem [thread:$0]  %s415, 4096, %s417, %s406, 128, 128, 8
        $region60: #{_lambda_.1} parent=55 // pred_fallthru
          _
      $region56: #{_lambda_.1} parent=5 // pred_fallthru
        _
      %p423 = scmp.le.s32.totalorder 1, %s27
      %p424 = scmp.lt.s32.totalorder %s27, 3
      %p425 = pnand %p423, %p424
      %p426 = pneg %p425
      // Predicated region
      $region61: #{_lambda_.1} parent=5 // pred_check
        _
      $region62: #{_lambda_.1} parent=5 // pred_check_branch
        %428 = sbr.rel (%p425) target = $region64
      $region63: #{_lambda_.1} parent=5 // pred_region
        %s429 = ssub.s32 %s27, 1
        %s430 = sand.u32 %s40, 1
        %s431 = scalar_lea.sflag [#allocation4], %s430
        %s432 = sand.u32 %s40, 1
        %s433 = smul.addr %s432, 256
        %s434 = scalar_lea.vmem [#allocation3], %s433
        // Predicated region
        $region65: #{_lambda_.1} parent=63 // pred_check
          %p435 = pneg %p53
        $region66: #{_lambda_.1} parent=63 // pred_check_branch
          %437 = sbr.rel (%p435) target = $region68
        $region67: #{_lambda_.1} parent=63 // pred_region
          %438 = dma.done %s431, 4096
        $region68: #{_lambda_.1} parent=63 // pred_fallthru
          _
        // Predicated region
        $region69: #{_lambda_.1} parent=63 // pred_check
          %p439 = pneg %p74
        $region70: #{_lambda_.1} parent=63 // pred_check_branch
          %441 = sbr.rel (%p439) target = $region72
        $region71: #{_lambda_.1} parent=63 // pred_region
          %442 = dma.done [#allocation7], 1024
        $region72: #{_lambda_.1} parent=63 // pred_fallthru
          _
        // Predicated region
        $region73: #{_lambda_.1} parent=63 // pred_check
          %p443 = pneg %p95
        $region74: #{_lambda_.1} parent=63 // pred_check_branch
          %445 = sbr.rel (%p443) target = $region76
        $region75: #{_lambda_.1} parent=63 // pred_region
          %446 = dma.done [#allocation7], 16
        $region76: #{_lambda_.1} parent=63 // pred_fallthru
          _
        // Predicated region
        $region77: #{_lambda_.1} parent=63 // pred_check
          %p447 = pneg %p116
        $region78: #{_lambda_.1} parent=63 // pred_check_branch
          %449 = sbr.rel (%p447) target = $region80
        $region79: #{_lambda_.1} parent=63 // pred_region
          %450 = dma.done [#allocation10], 2304
        $region80: #{_lambda_.1} parent=63 // pred_fallthru
          _
        // Predicated region
        $region81: #{_lambda_.1} parent=63 // pred_check
          %p451 = pneg %p137
        $region82: #{_lambda_.1} parent=63 // pred_check_branch
          %453 = sbr.rel (%p451) target = $region84
        $region83: #{_lambda_.1} parent=63 // pred_region
          %454 = dma.done [#allocation10], 16
        $region84: #{_lambda_.1} parent=63 // pred_fallthru
          _
        // Predicated region
        $region85: #{_lambda_.1} parent=63 // pred_check
          %p455 = pneg %p158
        $region86: #{_lambda_.1} parent=63 // pred_check_branch
          %457 = sbr.rel (%p455) target = $region88
        $region87: #{_lambda_.1} parent=63 // pred_region
          %458 = dma.done [#allocation13], 256
        $region88: #{_lambda_.1} parent=63 // pred_fallthru
          _
        // Predicated region
        $region89: #{_lambda_.1} parent=63 // pred_check
          %p459 = pneg %p179
        $region90: #{_lambda_.1} parent=63 // pred_check_branch
          %461 = sbr.rel (%p459) target = $region92
        $region91: #{_lambda_.1} parent=63 // pred_region
          %462 = dma.done [#allocation13], 16
        $region92: #{_lambda_.1} parent=63 // pred_fallthru
          _
        // Predicated region
        $region93: #{_lambda_.1} parent=63 // pred_check
          %p463 = pneg %p200
        $region94: #{_lambda_.1} parent=63 // pred_check_branch
          %465 = sbr.rel (%p463) target = $region96
        $region95: #{_lambda_.1} parent=63 // pred_region
          %466 = dma.done [#allocation16], 256
        $region96: #{_lambda_.1} parent=63 // pred_fallthru
          _
        %s467 = sand.u32 %s40, 1
        %s468 = scalar_lea.sflag [#allocation4], %s467
        %s469 = sand.u32 %s40, 1
        %s470 = smul.addr %s469, 256
        %s471 = scalar_lea.vmem [#allocation3], %s470
        %p472 = pneg %p53
        %p473 = pneg %p50
        %p474 = pneg %p74
        %p475 = pneg %p71
        %p476 = pneg %p95
        %p477 = pneg %p92
        %p478 = pneg %p116
        %p479 = pneg %p113
        %p480 = pneg %p137
        %p481 = pneg %p134
        %p482 = pneg %p158
        %p483 = pneg %p155
        %p484 = pneg %p179
        %p485 = pneg %p176
        %p486 = pneg %p200
        %p487 = pneg %p197
        %p488 = pneg %p221
        %p489 = pneg %p218
        %p490 = pneg %p242
        %p491 = pneg %p239
        %p492 = pneg %p263
        %p493 = pneg %p260
        %p494 = pneg %p289
        %p495 = pneg %p286
        %s496 = sand.u32 %s276, 1
        %s497 = scalar_lea.sflag [#allocation5], %s496
        %s498 = sand.u32 %s276, 1
        %s499 = smul.addr %s498, 256
        %s500 = scalar_lea.vmem [#allocation17], %s499
        %v504 = vld [vmem:[%s434] sm:$0xff]
        %v505 = vld [vmem:[%s434 + $0x8] sm:$0xff]
        %v506 = vld [vmem:[%s434 + $0x10] sm:$0xff]
        %v507 = vld [vmem:[%s434 + $0x18] sm:$0xff]
        %v508 = vld [vmem:[%s434 + $0x20] sm:$0xff]
        %v509 = vld [vmem:[%s434 + $0x28] sm:$0xff]
        %v510 = vld [vmem:[%s434 + $0x30] sm:$0xff]
        %v511 = vld [vmem:[%s434 + $0x38] sm:$0xff]
        %v512 = vld [vmem:[%s434 + $0x40] sm:$0xff]
        %v513 = vld [vmem:[%s434 + $0x48] sm:$0xff]
        %v514 = vld [vmem:[%s434 + $0x50] sm:$0xff]
        %v515 = vld [vmem:[%s434 + $0x58] sm:$0xff]
        %v516 = vld [vmem:[%s434 + $0x60] sm:$0xff]
        %v517 = vld [vmem:[%s434 + $0x68] sm:$0xff]
        %v518 = vld [vmem:[%s434 + $0x70] sm:$0xff]
        %v519 = vld [vmem:[%s434 + $0x78] sm:$0xff]
        %v520 = vld [vmem:[%s434 + $0x80] sm:$0xff]
        %v521 = vld [vmem:[%s434 + $0x88] sm:$0xff]
        %v522 = vld [vmem:[%s434 + $0x90] sm:$0xff]
        %v523 = vld [vmem:[%s434 + $0x98] sm:$0xff]
        %v524 = vld [vmem:[%s434 + $0xa0] sm:$0xff]
        %v525 = vld [vmem:[%s434 + $0xa8] sm:$0xff]
        %v526 = vld [vmem:[%s434 + $0xb0] sm:$0xff]
        %v527 = vld [vmem:[%s434 + $0xb8] sm:$0xff]
        %v528 = vld [vmem:[%s434 + $0xc0] sm:$0xff]
        %v529 = vld [vmem:[%s434 + $0xc8] sm:$0xff]
        %v530 = vld [vmem:[%s434 + $0xd0] sm:$0xff]
        %v531 = vld [vmem:[%s434 + $0xd8] sm:$0xff]
        %v532 = vld [vmem:[%s434 + $0xe0] sm:$0xff]
        %v533 = vld [vmem:[%s434 + $0xe8] sm:$0xff]
        %v534 = vld [vmem:[%s434 + $0xf0] sm:$0xff]
        %v535 = vld [vmem:[%s434 + $0xf8] sm:$0xff]
        %v536 = vpack.c.bf16 %v505, %v504
        %v537 = vpack.c.bf16 %v507, %v506
        %v538 = vpack.c.bf16 %v509, %v508
        %v539 = vpack.c.bf16 %v511, %v510
        %v540 = vpack.c.bf16 %v513, %v512
        %v541 = vpack.c.bf16 %v515, %v514
        %v542 = vpack.c.bf16 %v517, %v516
        %v543 = vpack.c.bf16 %v519, %v518
        %v544 = vpack.c.bf16 %v521, %v520
        %v545 = vpack.c.bf16 %v523, %v522
        %v546 = vpack.c.bf16 %v525, %v524
        %v547 = vpack.c.bf16 %v527, %v526
        %v548 = vpack.c.bf16 %v529, %v528
        %v549 = vpack.c.bf16 %v531, %v530
        %v550 = vpack.c.bf16 %v533, %v532
        %v551 = vpack.c.bf16 %v535, %v534
        %v552 = vld [vmem:[#allocation6] sm:$0xf]
        %v553 = vld [vmem:[#allocation6 + $0x4] sm:$0xf]
        %v554 = vld [vmem:[#allocation6 + $0x8] sm:$0xf]
        %v555 = vld [vmem:[#allocation6 + $0xc] sm:$0xf]
        %v556 = vld [vmem:[#allocation6 + $0x10] sm:$0xf]
        %v557 = vld [vmem:[#allocation6 + $0x14] sm:$0xf]
        %v558 = vld [vmem:[#allocation6 + $0x18] sm:$0xf]
        %v559 = vld [vmem:[#allocation6 + $0x1c] sm:$0xf]
        %v560 = vld [vmem:[#allocation6 + $0x20] sm:$0xf]
        %v561 = vld [vmem:[#allocation6 + $0x24] sm:$0xf]
        %v562 = vld [vmem:[#allocation6 + $0x28] sm:$0xf]
        %v563 = vld [vmem:[#allocation6 + $0x2c] sm:$0xf]
        %v564 = vld [vmem:[#allocation6 + $0x30] sm:$0xf]
        %v565 = vld [vmem:[#allocation6 + $0x34] sm:$0xf]
        %v566 = vld [vmem:[#allocation6 + $0x38] sm:$0xf]
        %v567 = vld [vmem:[#allocation6 + $0x3c] sm:$0xf]
        %v568 = vld [vmem:[#allocation8] sm:$0x1]
        %v570 = vlaneseq
        %v571 = vshrl.u32 %v570, 7
        %v572 = vsub.s32 0, %v571
        %v573 = vrot.slane %v568, %v572
        %v591 = vunpack.c.l.b16 %v552
        %v592 = vunpack.c.l.b16 %v553
        %v593 = vunpack.c.l.b16 %v554
        %v594 = vunpack.c.l.b16 %v555
        %v595 = vunpack.c.l.b16 %v556
        %v596 = vunpack.c.l.b16 %v557
        %v597 = vunpack.c.l.b16 %v558
        %v598 = vunpack.c.l.b16 %v559
        %v599 = vunpack.c.l.b16 %v560
        %v600 = vunpack.c.l.b16 %v561
        %v601 = vunpack.c.l.b16 %v562
        %v602 = vunpack.c.l.b16 %v563
        %v603 = vunpack.c.l.b16 %v564
        %v604 = vunpack.c.l.b16 %v565
        %v605 = vunpack.c.l.b16 %v566
        %v606 = vunpack.c.l.b16 %v567
        %v607 = vpack.c.b16 %v592, %v591
        %v608 = vpack.c.b16 %v594, %v593
        %v609 = vpack.c.b16 %v596, %v595
        %v610 = vpack.c.b16 %v598, %v597
        %v611 = vpack.c.b16 %v600, %v599
        %v612 = vpack.c.b16 %v602, %v601
        %v613 = vpack.c.b16 %v604, %v603
        %v614 = vpack.c.b16 %v606, %v605
        %623 = vmatprep.subr.bf16.mxu0 0
        %624 = vmatpush1.bf16.msra.mxu0 %v614
        %625 = vmatprep.subr.bf16.mxu0 0
        %626 = vmatpush1.bf16.msra.mxu0 %v613
        %627 = vmatprep.subr.bf16.mxu0 0
        %628 = vmatpush1.bf16.msra.mxu0 %v612
        %629 = vmatprep.subr.bf16.mxu0 0
        %630 = vmatpush1.bf16.msra.mxu0 %v611
        %631 = vmatprep.subr.bf16.mxu0 0
        %632 = vmatpush1.bf16.msra.mxu0 %v610
        %633 = vmatprep.subr.bf16.mxu0 0
        %634 = vmatpush1.bf16.msra.mxu0 %v609
        %635 = vmatprep.subr.bf16.mxu0 0
        %636 = vmatpush1.bf16.msra.mxu0 %v608
        %637 = vmatprep.subr.bf16.mxu0 0
        %638 = vmatpush1.bf16.msra.mxu0 %v607
        %639 = vmatprep.subr.bf16.mxu0 0
        %640 = vmatpush2.bf16.msra.mxu0 0
        %641 = vmatprep.subr.bf16.mxu0 0
        %642 = vmatpush2.bf16.msra.mxu0 0
        %643 = vmatprep.subr.bf16.mxu0 0
        %644 = vmatpush2.bf16.msra.mxu0 0
        %645 = vmatprep.subr.bf16.mxu0 0
        %646 = vmatpush2.bf16.msra.mxu0 0
        %647 = vmatprep.subr.bf16.mxu0 0
        %648 = vmatpush2.bf16.msra.mxu0 0
        %649 = vmatprep.subr.bf16.mxu0 0
        %650 = vmatpush2.bf16.msra.mxu0 0
        %651 = vmatprep.subr.bf16.mxu0 0
        %652 = vmatpush2.bf16.msra.mxu0 0
        %653 = vmatprep.subr.bf16.mxu0 0
        %654 = vmatpush2.bf16.msra.mxu0 0
        %655 = vmatprep.mubr.bf16.mxu0 0
        %656 = vmatmul.mubr.bf16.gmra.mxu0 %v536
        %v657 = vpop.f32.mrf.mxu0
        %v658 = vadd.f32 %v573, %v657
        %v659 = vpop.f32.mrf.mxu0
        %v660 = vpop.f32.mrf.mxu0
        %v661 = vadd.f32 %v573, %v660
        %v662 = vpop.f32.mrf.mxu0
        %663 = vmatprep.mubr.bf16.mxu0 0
        %664 = vmatmul.mubr.bf16.gmra.mxu0 %v537
        %v665 = vpop.f32.mrf.mxu0
        %v666 = vadd.f32 %v573, %v665
        %v667 = vpop.f32.mrf.mxu0
        %v668 = vpop.f32.mrf.mxu0
        %v669 = vadd.f32 %v573, %v668
        %v670 = vpop.f32.mrf.mxu0
        %671 = vmatprep.mubr.bf16.mxu0 0
        %672 = vmatmul.mubr.bf16.gmra.mxu0 %v538
        %v673 = vpop.f32.mrf.mxu0
        %v674 = vadd.f32 %v573, %v673
        %v675 = vpop.f32.mrf.mxu0
        %v676 = vpop.f32.mrf.mxu0
        %v677 = vadd.f32 %v573, %v676
        %v678 = vpop.f32.mrf.mxu0
        %679 = vmatprep.mubr.bf16.mxu0 0
        %680 = vmatmul.mubr.bf16.gmra.mxu0 %v539
        %v681 = vpop.f32.mrf.mxu0
        %v682 = vadd.f32 %v573, %v681
        %v683 = vpop.f32.mrf.mxu0
        %v684 = vpop.f32.mrf.mxu0
        %v685 = vadd.f32 %v573, %v684
        %v686 = vpop.f32.mrf.mxu0
        %687 = vmatprep.mubr.bf16.mxu0 0
        %688 = vmatmul.mubr.bf16.gmra.mxu0 %v540
        %v689 = vpop.f32.mrf.mxu0
        %v690 = vadd.f32 %v573, %v689
        %v691 = vpop.f32.mrf.mxu0
        %v692 = vpop.f32.mrf.mxu0
        %v693 = vadd.f32 %v573, %v692
        %v694 = vpop.f32.mrf.mxu0
        %695 = vmatprep.mubr.bf16.mxu0 0
        %696 = vmatmul.mubr.bf16.gmra.mxu0 %v541
        %v697 = vpop.f32.mrf.mxu0
        %v698 = vadd.f32 %v573, %v697
        %v699 = vpop.f32.mrf.mxu0
        %v700 = vpop.f32.mrf.mxu0
        %v701 = vadd.f32 %v573, %v700
        %v702 = vpop.f32.mrf.mxu0
        %703 = vmatprep.mubr.bf16.mxu0 0
        %704 = vmatmul.mubr.bf16.gmra.mxu0 %v542
        %v705 = vpop.f32.mrf.mxu0
        %v706 = vadd.f32 %v573, %v705
        %v707 = vpop.f32.mrf.mxu0
        %v708 = vpop.f32.mrf.mxu0
        %v709 = vadd.f32 %v573, %v708
        %v710 = vpop.f32.mrf.mxu0
        %711 = vmatprep.mubr.bf16.mxu0 0
        %712 = vmatmul.mubr.bf16.gmra.mxu0 %v543
        %v713 = vpop.f32.mrf.mxu0
        %v714 = vadd.f32 %v573, %v713
        %v715 = vpop.f32.mrf.mxu0
        %v716 = vpop.f32.mrf.mxu0
        %v717 = vadd.f32 %v573, %v716
        %v718 = vpop.f32.mrf.mxu0
        %719 = vmatprep.mubr.bf16.mxu0 0
        %720 = vmatmul.mubr.bf16.gmra.mxu0 %v544
        %v721 = vpop.f32.mrf.mxu0
        %v722 = vadd.f32 %v573, %v721
        %v723 = vpop.f32.mrf.mxu0
        %v724 = vpop.f32.mrf.mxu0
        %v725 = vadd.f32 %v573, %v724
        %v726 = vpop.f32.mrf.mxu0
        %727 = vmatprep.mubr.bf16.mxu0 0
        %728 = vmatmul.mubr.bf16.gmra.mxu0 %v545
        %v729 = vpop.f32.mrf.mxu0
        %v730 = vadd.f32 %v573, %v729
        %v731 = vpop.f32.mrf.mxu0
        %v732 = vpop.f32.mrf.mxu0
        %v733 = vadd.f32 %v573, %v732
        %v734 = vpop.f32.mrf.mxu0
        %735 = vmatprep.mubr.bf16.mxu0 0
        %736 = vmatmul.mubr.bf16.gmra.mxu0 %v546
        %v737 = vpop.f32.mrf.mxu0
        %v738 = vadd.f32 %v573, %v737
        %v739 = vpop.f32.mrf.mxu0
        %v740 = vpop.f32.mrf.mxu0
        %v741 = vadd.f32 %v573, %v740
        %v742 = vpop.f32.mrf.mxu0
        %743 = vmatprep.mubr.bf16.mxu0 0
        %744 = vmatmul.mubr.bf16.gmra.mxu0 %v547
        %v745 = vpop.f32.mrf.mxu0
        %v746 = vadd.f32 %v573, %v745
        %v747 = vpop.f32.mrf.mxu0
        %v748 = vpop.f32.mrf.mxu0
        %v749 = vadd.f32 %v573, %v748
        %v750 = vpop.f32.mrf.mxu0
        %751 = vmatprep.mubr.bf16.mxu0 0
        %752 = vmatmul.mubr.bf16.gmra.mxu0 %v548
        %v753 = vpop.f32.mrf.mxu0
        %v754 = vadd.f32 %v573, %v753
        %v755 = vpop.f32.mrf.mxu0
        %v756 = vpop.f32.mrf.mxu0
        %v757 = vadd.f32 %v573, %v756
        %v758 = vpop.f32.mrf.mxu0
        %759 = vmatprep.mubr.bf16.mxu0 0
        %760 = vmatmul.mubr.bf16.gmra.mxu0 %v549
        %v761 = vpop.f32.mrf.mxu0
        %v762 = vadd.f32 %v573, %v761
        %v763 = vpop.f32.mrf.mxu0
        %v764 = vpop.f32.mrf.mxu0
        %v765 = vadd.f32 %v573, %v764
        %v766 = vpop.f32.mrf.mxu0
        %767 = vmatprep.mubr.bf16.mxu0 0
        %768 = vmatmul.mubr.bf16.gmra.mxu0 %v550
        %v769 = vpop.f32.mrf.mxu0
        %v770 = vadd.f32 %v573, %v769
        %v771 = vpop.f32.mrf.mxu0
        %v772 = vpop.f32.mrf.mxu0
        %v773 = vadd.f32 %v573, %v772
        %v774 = vpop.f32.mrf.mxu0
        %775 = vmatprep.mubr.bf16.mxu0 0
        %776 = vmatmul.mubr.bf16.gmra.mxu0 %v551
        %v777 = vpop.f32.mrf.mxu0
        %v778 = vadd.f32 %v573, %v777
        %v779 = vpop.f32.mrf.mxu0
        %v780 = vpop.f32.mrf.mxu0
        %v781 = vadd.f32 %v573, %v780
        %v782 = vpop.f32.mrf.mxu0
        %783 = vdwg.mxu0
        %v784 = vmax.f32 %v658, 0.0
        %v785 = vmax.f32 %v661, 0.0
        %v786 = vmax.f32 %v666, 0.0
        %v787 = vmax.f32 %v669, 0.0
        %v788 = vmax.f32 %v674, 0.0
        %v789 = vmax.f32 %v677, 0.0
        %v790 = vmax.f32 %v682, 0.0
        %v791 = vmax.f32 %v685, 0.0
        %v792 = vmax.f32 %v690, 0.0
        %v793 = vmax.f32 %v693, 0.0
        %v794 = vmax.f32 %v698, 0.0
        %v795 = vmax.f32 %v701, 0.0
        %v796 = vmax.f32 %v706, 0.0
        %v797 = vmax.f32 %v709, 0.0
        %v798 = vmax.f32 %v714, 0.0
        %v799 = vmax.f32 %v717, 0.0
        %v800 = vmax.f32 %v722, 0.0
        %v801 = vmax.f32 %v725, 0.0
        %v802 = vmax.f32 %v730, 0.0
        %v803 = vmax.f32 %v733, 0.0
        %v804 = vmax.f32 %v738, 0.0
        %v805 = vmax.f32 %v741, 0.0
        %v806 = vmax.f32 %v746, 0.0
        %v807 = vmax.f32 %v749, 0.0
        %v808 = vmax.f32 %v754, 0.0
        %v809 = vmax.f32 %v757, 0.0
        %v810 = vmax.f32 %v762, 0.0
        %v811 = vmax.f32 %v765, 0.0
        %v812 = vmax.f32 %v770, 0.0
        %v813 = vmax.f32 %v773, 0.0
        %v814 = vmax.f32 %v778, 0.0
        %v815 = vmax.f32 %v781, 0.0
        %vm816 = vcmask 257024
        %817 = vst.msk [vmem:[#allocation2] sm:$0xf] %vm816, 0
        %818 = vst.msk [vmem:[#allocation2 + $0x4] sm:$0xf] %vm816, 0
        %819 = vst.msk [vmem:[#allocation2 + $0x8] sm:$0xf] %vm816, 0
        %820 = vst.msk [vmem:[#allocation2 + $0xc] sm:$0xf] %vm816, 0
        %821 = vst.msk [vmem:[#allocation2 + $0x10] sm:$0xf] %vm816, 0
        %822 = vst.msk [vmem:[#allocation2 + $0x14] sm:$0xf] %vm816, 0
        %823 = vst.msk [vmem:[#allocation2 + $0x18] sm:$0xf] %vm816, 0
        %824 = vst.msk [vmem:[#allocation2 + $0x1c] sm:$0xf] %vm816, 0
        %825 = vst.msk [vmem:[#allocation2 + $0x20] sm:$0xf] %vm816, 0
        %826 = vst.msk [vmem:[#allocation2 + $0x24] sm:$0xf] %vm816, 0
        %827 = vst.msk [vmem:[#allocation2 + $0x28] sm:$0xf] %vm816, 0
        %828 = vst.msk [vmem:[#allocation2 + $0x2c] sm:$0xf] %vm816, 0
        %829 = vst.msk [vmem:[#allocation2 + $0x30] sm:$0xf] %vm816, 0
        %830 = vst.msk [vmem:[#allocation2 + $0x34] sm:$0xf] %vm816, 0
        %831 = vst.msk [vmem:[#allocation2 + $0x38] sm:$0xf] %vm816, 0
        %832 = vst.msk [vmem:[#allocation2 + $0x3c] sm:$0xf] %vm816, 0
        %833 = vst.msk [vmem:[#allocation2 + $0x40] sm:$0xf] %vm816, 0
        %834 = vst.msk [vmem:[#allocation2 + $0x44] sm:$0xf] %vm816, 0
        %835 = vst.msk [vmem:[#allocation2 + $0x48] sm:$0xf] %vm816, 0
        %836 = vst.msk [vmem:[#allocation2 + $0x4c] sm:$0xf] %vm816, 0
        %837 = vst.msk [vmem:[#allocation2 + $0x50] sm:$0xf] %vm816, 0
        %838 = vst.msk [vmem:[#allocation2 + $0x54] sm:$0xf] %vm816, 0
        %839 = vst.msk [vmem:[#allocation2 + $0x58] sm:$0xf] %vm816, 0
        %840 = vst.msk [vmem:[#allocation2 + $0x5c] sm:$0xf] %vm816, 0
        %841 = vst.msk [vmem:[#allocation2 + $0x60] sm:$0xf] %vm816, 0
        %842 = vst.msk [vmem:[#allocation2 + $0x64] sm:$0xf] %vm816, 0
        %843 = vst.msk [vmem:[#allocation2 + $0x68] sm:$0xf] %vm816, 0
        %844 = vst.msk [vmem:[#allocation2 + $0x6c] sm:$0xf] %vm816, 0
        %845 = vst.msk [vmem:[#allocation2 + $0x70] sm:$0xf] %vm816, 0
        %846 = vst.msk [vmem:[#allocation2 + $0x74] sm:$0xf] %vm816, 0
        %847 = vst.msk [vmem:[#allocation2 + $0x78] sm:$0xf] %vm816, 0
        %848 = vst.msk [vmem:[#allocation2 + $0x7c] sm:$0xf] %vm816, 0
        %849 = vst.msk [vmem:[#allocation2 + $0x80] sm:$0xf] %vm816, 0
        %850 = vst.msk [vmem:[#allocation2 + $0x84] sm:$0xf] %vm816, 0
        %851 = vst.msk [vmem:[#allocation2 + $0x88] sm:$0xf] %vm816, 0
        %852 = vst.msk [vmem:[#allocation2 + $0x8c] sm:$0xf] %vm816, 0
        %853 = vst.msk [vmem:[#allocation2 + $0x90] sm:$0xf] %vm816, 0
        %854 = vst.msk [vmem:[#allocation2 + $0x94] sm:$0xf] %vm816, 0
        %855 = vst.msk [vmem:[#allocation2 + $0x98] sm:$0xf] %vm816, 0
        %856 = vst.msk [vmem:[#allocation2 + $0x9c] sm:$0xf] %vm816, 0
        %v857 = vpack.c.bf16 %v785, %v784
        %v858 = vpack.c.bf16 %v787, %v786
        %v859 = vpack.c.bf16 %v789, %v788
        %v860 = vpack.c.bf16 %v791, %v790
        %v861 = vpack.c.bf16 %v793, %v792
        %v862 = vpack.c.bf16 %v795, %v794
        %v863 = vpack.c.bf16 %v797, %v796
        %v864 = vpack.c.bf16 %v799, %v798
        %v865 = vpack.c.bf16 %v801, %v800
        %v866 = vpack.c.bf16 %v803, %v802
        %v867 = vpack.c.bf16 %v805, %v804
        %v868 = vpack.c.bf16 %v807, %v806
        %v869 = vpack.c.bf16 %v809, %v808
        %v870 = vpack.c.bf16 %v811, %v810
        %v871 = vpack.c.bf16 %v813, %v812
        %v872 = vpack.c.bf16 %v815, %v814
        %v889 = vunpack.c.l.b16 %v857
        %v890 = vunpack.c.h.b16 %v857
        %v891 = vunpack.c.l.b16 %v858
        %v892 = vunpack.c.h.b16 %v858
        %v893 = vunpack.c.l.b16 %v859
        %v894 = vunpack.c.h.b16 %v859
        %v895 = vunpack.c.l.b16 %v860
        %v896 = vunpack.c.h.b16 %v860
        %v897 = vunpack.c.l.b16 %v861
        %v898 = vunpack.c.h.b16 %v861
        %v899 = vunpack.c.l.b16 %v862
        %v900 = vunpack.c.h.b16 %v862
        %v901 = vunpack.c.l.b16 %v863
        %v902 = vunpack.c.h.b16 %v863
        %v903 = vunpack.c.l.b16 %v864
        %v904 = vunpack.c.h.b16 %v864
        %v905 = vunpack.c.l.b16 %v865
        %v906 = vunpack.c.h.b16 %v865
        %v907 = vunpack.c.l.b16 %v866
        %v908 = vunpack.c.h.b16 %v866
        %v909 = vunpack.c.l.b16 %v867
        %v910 = vunpack.c.h.b16 %v867
        %v911 = vunpack.c.l.b16 %v868
        %v912 = vunpack.c.h.b16 %v868
        %v913 = vunpack.c.l.b16 %v869
        %v914 = vunpack.c.h.b16 %v869
        %v915 = vunpack.c.l.b16 %v870
        %v916 = vunpack.c.h.b16 %v870
        %v917 = vunpack.c.l.b16 %v871
        %v918 = vunpack.c.h.b16 %v871
        %v919 = vunpack.c.l.b16 %v872
        %v920 = vunpack.c.h.b16 %v872
        %v921 = vpack.c.b16 %v889, %v889
        %v922 = vpack.c.b16 %v890, %v890
        %v923 = vpack.c.b16 %v891, %v891
        %v924 = vpack.c.b16 %v892, %v892
        %v925 = vpack.c.b16 %v893, %v893
        %v926 = vpack.c.b16 %v894, %v894
        %v927 = vpack.c.b16 %v895, %v895
        %v928 = vpack.c.b16 %v896, %v896
        %v929 = vpack.c.b16 %v897, %v897
        %v930 = vpack.c.b16 %v898, %v898
        %v931 = vpack.c.b16 %v899, %v899
        %v932 = vpack.c.b16 %v900, %v900
        %v933 = vpack.c.b16 %v901, %v901
        %v934 = vpack.c.b16 %v902, %v902
        %v935 = vpack.c.b16 %v903, %v903
        %v936 = vpack.c.b16 %v904, %v904
        %v937 = vpack.c.b16 %v905, %v905
        %v938 = vpack.c.b16 %v906, %v906
        %v939 = vpack.c.b16 %v907, %v907
        %v940 = vpack.c.b16 %v908, %v908
        %v941 = vpack.c.b16 %v909, %v909
        %v942 = vpack.c.b16 %v910, %v910
        %v943 = vpack.c.b16 %v911, %v911
        %v944 = vpack.c.b16 %v912, %v912
        %v945 = vpack.c.b16 %v913, %v913
        %v946 = vpack.c.b16 %v914, %v914
        %v947 = vpack.c.b16 %v915, %v915
        %v948 = vpack.c.b16 %v916, %v916
        %v949 = vpack.c.b16 %v917, %v917
        %v950 = vpack.c.b16 %v918, %v918
        %v951 = vpack.c.b16 %v919, %v919
        %v952 = vpack.c.b16 %v920, %v920
        %985 = vst.msk [vmem:[#allocation2 + $0x10] sm:$0xf] %vm816, %v921
        %986 = vst.msk [vmem:[#allocation2 + $0x14] sm:$0xf] %vm816, %v922
        %987 = vst.msk [vmem:[#allocation2 + $0x18] sm:$0xf] %vm816, %v923
        %988 = vst.msk [vmem:[#allocation2 + $0x1c] sm:$0xf] %vm816, %v924
        %989 = vst.msk [vmem:[#allocation2 + $0x20] sm:$0xf] %vm816, %v925
        %990 = vst.msk [vmem:[#allocation2 + $0x24] sm:$0xf] %vm816, %v926
        %991 = vst.msk [vmem:[#allocation2 + $0x28] sm:$0xf] %vm816, %v927
        %992 = vst.msk [vmem:[#allocation2 + $0x2c] sm:$0xf] %vm816, %v928
        %993 = vst.msk [vmem:[#allocation2 + $0x30] sm:$0xf] %vm816, %v929
        %994 = vst.msk [vmem:[#allocation2 + $0x34] sm:$0xf] %vm816, %v930
        %995 = vst.msk [vmem:[#allocation2 + $0x38] sm:$0xf] %vm816, %v931
        %996 = vst.msk [vmem:[#allocation2 + $0x3c] sm:$0xf] %vm816, %v932
        %997 = vst.msk [vmem:[#allocation2 + $0x40] sm:$0xf] %vm816, %v933
        %998 = vst.msk [vmem:[#allocation2 + $0x44] sm:$0xf] %vm816, %v934
        %999 = vst.msk [vmem:[#allocation2 + $0x48] sm:$0xf] %vm816, %v935
        %1000 = vst.msk [vmem:[#allocation2 + $0x4c] sm:$0xf] %vm816, %v936
        %1001 = vst.msk [vmem:[#allocation2 + $0x50] sm:$0xf] %vm816, %v937
        %1002 = vst.msk [vmem:[#allocation2 + $0x54] sm:$0xf] %vm816, %v938
        %1003 = vst.msk [vmem:[#allocation2 + $0x58] sm:$0xf] %vm816, %v939
        %1004 = vst.msk [vmem:[#allocation2 + $0x5c] sm:$0xf] %vm816, %v940
        %1005 = vst.msk [vmem:[#allocation2 + $0x60] sm:$0xf] %vm816, %v941
        %1006 = vst.msk [vmem:[#allocation2 + $0x64] sm:$0xf] %vm816, %v942
        %1007 = vst.msk [vmem:[#allocation2 + $0x68] sm:$0xf] %vm816, %v943
        %1008 = vst.msk [vmem:[#allocation2 + $0x6c] sm:$0xf] %vm816, %v944
        %1009 = vst.msk [vmem:[#allocation2 + $0x70] sm:$0xf] %vm816, %v945
        %1010 = vst.msk [vmem:[#allocation2 + $0x74] sm:$0xf] %vm816, %v946
        %1011 = vst.msk [vmem:[#allocation2 + $0x78] sm:$0xf] %vm816, %v947
        %1012 = vst.msk [vmem:[#allocation2 + $0x7c] sm:$0xf] %vm816, %v948
        %1013 = vst.msk [vmem:[#allocation2 + $0x80] sm:$0xf] %vm816, %v949
        %1014 = vst.msk [vmem:[#allocation2 + $0x84] sm:$0xf] %vm816, %v950
        %1015 = vst.msk [vmem:[#allocation2 + $0x88] sm:$0xf] %vm816, %v951
        %1016 = vst.msk [vmem:[#allocation2 + $0x8c] sm:$0xf] %vm816, %v952
        %v1017 = vlaneseq
        %v1018 = vshrl.u32 %v1017, 7
        %v1019 = vadd.s32 %v1018, 8
        %v1020 = vadd.s32 %v1018, 16
        %v1021 = vadd.s32 %v1018, 24
        %v1022 = vadd.s32 %v1018, 32
        %v1023 = vadd.s32 %v1018, 40
        %v1024 = vadd.s32 %v1018, 48
        %v1025 = vadd.s32 %v1018, 56
        %v1026 = vadd.s32 %v1018, 64
        %v1027 = vadd.s32 %v1018, 72
        %v1028 = vadd.s32 %v1018, 80
        %v1029 = vadd.s32 %v1018, 88
        %v1030 = vadd.s32 %v1018, 96
        %v1031 = vadd.s32 %v1018, 104
        %v1032 = vadd.s32 %v1018, 112
        %v1033 = vadd.s32 %v1018, 120
        %v1034 = vadd.s32 %v1018, 128
        %v1035 = vadd.s32 %v1018, 136
        %v1036 = vadd.s32 %v1018, 144
        %v1037 = vadd.s32 %v1018, 152
        %v1038 = vadd.s32 %v1018, 160
        %v1039 = vadd.s32 %v1018, 168
        %v1040 = vadd.s32 %v1018, 176
        %v1041 = vadd.s32 %v1018, 184
        %v1042 = vadd.s32 %v1018, 192
        %v1043 = vadd.s32 %v1018, 200
        %v1044 = vadd.s32 %v1018, 208
        %v1045 = vadd.s32 %v1018, 216
        %v1046 = vadd.s32 %v1018, 224
        %v1047 = vadd.s32 %v1018, 232
        %v1048 = vadd.s32 %v1018, 240
        %v1049 = vadd.s32 %v1018, 248
        %vm1050 = vcmp.lt.s32.totalorder %v1018, 0
        %v1051 = vsub.s32 0, %v1018
        %v1052 = vsel %vm1050, %v1051, %v1018
        %v1053 = vshrl.u32 %v1052, 4
        %v1054 = vand.u32 %v1052, 15
        %v1055 = vsub.s32 0, %v1054
        %v1056 = vsel %vm1050, %v1055, %v1054
        %vm1057 = vcmp.lt.s32.totalorder %v1019, 0
        %v1058 = vsub.s32 0, %v1019
        %v1059 = vsel %vm1057, %v1058, %v1019
        %v1060 = vshrl.u32 %v1059, 4
        %v1061 = vand.u32 %v1059, 15
        %v1062 = vsub.s32 0, %v1061
        %v1063 = vsel %vm1057, %v1062, %v1061
        %vm1064 = vcmp.lt.s32.totalorder %v1020, 0
        %v1065 = vsub.s32 0, %v1020
        %v1066 = vsel %vm1064, %v1065, %v1020
        %v1067 = vshrl.u32 %v1066, 4
        %v1068 = vand.u32 %v1066, 15
        %v1069 = vsub.s32 0, %v1068
        %v1070 = vsel %vm1064, %v1069, %v1068
        %vm1071 = vcmp.lt.s32.totalorder %v1021, 0
        %v1072 = vsub.s32 0, %v1021
        %v1073 = vsel %vm1071, %v1072, %v1021
        %v1074 = vshrl.u32 %v1073, 4
        %v1075 = vand.u32 %v1073, 15
        %v1076 = vsub.s32 0, %v1075
        %v1077 = vsel %vm1071, %v1076, %v1075
        %vm1078 = vcmp.lt.s32.totalorder %v1022, 0
        %v1079 = vsub.s32 0, %v1022
        %v1080 = vsel %vm1078, %v1079, %v1022
        %v1081 = vshrl.u32 %v1080, 4
        %v1082 = vand.u32 %v1080, 15
        %v1083 = vsub.s32 0, %v1082
        %v1084 = vsel %vm1078, %v1083, %v1082
        %vm1085 = vcmp.lt.s32.totalorder %v1023, 0
        %v1086 = vsub.s32 0, %v1023
        %v1087 = vsel %vm1085, %v1086, %v1023
        %v1088 = vshrl.u32 %v1087, 4
        %v1089 = vand.u32 %v1087, 15
        %v1090 = vsub.s32 0, %v1089
        %v1091 = vsel %vm1085, %v1090, %v1089
        %vm1092 = vcmp.lt.s32.totalorder %v1024, 0
        %v1093 = vsub.s32 0, %v1024
        %v1094 = vsel %vm1092, %v1093, %v1024
        %v1095 = vshrl.u32 %v1094, 4
        %v1096 = vand.u32 %v1094, 15
        %v1097 = vsub.s32 0, %v1096
        %v1098 = vsel %vm1092, %v1097, %v1096
        %vm1099 = vcmp.lt.s32.totalorder %v1025, 0
        %v1100 = vsub.s32 0, %v1025
        %v1101 = vsel %vm1099, %v1100, %v1025
        %v1102 = vshrl.u32 %v1101, 4
        %v1103 = vand.u32 %v1101, 15
        %v1104 = vsub.s32 0, %v1103
        %v1105 = vsel %vm1099, %v1104, %v1103
        %vm1106 = vcmp.lt.s32.totalorder %v1026, 0
        %v1107 = vsub.s32 0, %v1026
        %v1108 = vsel %vm1106, %v1107, %v1026
        %v1109 = vshrl.u32 %v1108, 4
        %v1110 = vand.u32 %v1108, 15
        %v1111 = vsub.s32 0, %v1110
        %v1112 = vsel %vm1106, %v1111, %v1110
        %vm1113 = vcmp.lt.s32.totalorder %v1027, 0
        %v1114 = vsub.s32 0, %v1027
        %v1115 = vsel %vm1113, %v1114, %v1027
        %v1116 = vshrl.u32 %v1115, 4
        %v1117 = vand.u32 %v1115, 15
        %v1118 = vsub.s32 0, %v1117
        %v1119 = vsel %vm1113, %v1118, %v1117
        %vm1120 = vcmp.lt.s32.totalorder %v1028, 0
        %v1121 = vsub.s32 0, %v1028
        %v1122 = vsel %vm1120, %v1121, %v1028
        %v1123 = vshrl.u32 %v1122, 4
        %v1124 = vand.u32 %v1122, 15
        %v1125 = vsub.s32 0, %v1124
        %v1126 = vsel %vm1120, %v1125, %v1124
        %vm1127 = vcmp.lt.s32.totalorder %v1029, 0
        %v1128 = vsub.s32 0, %v1029
        %v1129 = vsel %vm1127, %v1128, %v1029
        %v1130 = vshrl.u32 %v1129, 4
        %v1131 = vand.u32 %v1129, 15
        %v1132 = vsub.s32 0, %v1131
        %v1133 = vsel %vm1127, %v1132, %v1131
        %vm1134 = vcmp.lt.s32.totalorder %v1030, 0
        %v1135 = vsub.s32 0, %v1030
        %v1136 = vsel %vm1134, %v1135, %v1030
        %v1137 = vshrl.u32 %v1136, 4
        %v1138 = vand.u32 %v1136, 15
        %v1139 = vsub.s32 0, %v1138
        %v1140 = vsel %vm1134, %v1139, %v1138
        %vm1141 = vcmp.lt.s32.totalorder %v1031, 0
        %v1142 = vsub.s32 0, %v1031
        %v1143 = vsel %vm1141, %v1142, %v1031
        %v1144 = vshrl.u32 %v1143, 4
        %v1145 = vand.u32 %v1143, 15
        %v1146 = vsub.s32 0, %v1145
        %v1147 = vsel %vm1141, %v1146, %v1145
        %vm1148 = vcmp.lt.s32.totalorder %v1032, 0
        %v1149 = vsub.s32 0, %v1032
        %v1150 = vsel %vm1148, %v1149, %v1032
        %v1151 = vshrl.u32 %v1150, 4
        %v1152 = vand.u32 %v1150, 15
        %v1153 = vsub.s32 0, %v1152
        %v1154 = vsel %vm1148, %v1153, %v1152
        %vm1155 = vcmp.lt.s32.totalorder %v1033, 0
        %v1156 = vsub.s32 0, %v1033
        %v1157 = vsel %vm1155, %v1156, %v1033
        %v1158 = vshrl.u32 %v1157, 4
        %v1159 = vand.u32 %v1157, 15
        %v1160 = vsub.s32 0, %v1159
        %v1161 = vsel %vm1155, %v1160, %v1159
        %vm1162 = vcmp.lt.s32.totalorder %v1034, 0
        %v1163 = vsub.s32 0, %v1034
        %v1164 = vsel %vm1162, %v1163, %v1034
        %v1165 = vshrl.u32 %v1164, 4
        %v1166 = vand.u32 %v1164, 15
        %v1167 = vsub.s32 0, %v1166
        %v1168 = vsel %vm1162, %v1167, %v1166
        %vm1169 = vcmp.lt.s32.totalorder %v1035, 0
        %v1170 = vsub.s32 0, %v1035
        %v1171 = vsel %vm1169, %v1170, %v1035
        %v1172 = vshrl.u32 %v1171, 4
        %v1173 = vand.u32 %v1171, 15
        %v1174 = vsub.s32 0, %v1173
        %v1175 = vsel %vm1169, %v1174, %v1173
        %vm1176 = vcmp.lt.s32.totalorder %v1036, 0
        %v1177 = vsub.s32 0, %v1036
        %v1178 = vsel %vm1176, %v1177, %v1036
        %v1179 = vshrl.u32 %v1178, 4
        %v1180 = vand.u32 %v1178, 15
        %v1181 = vsub.s32 0, %v1180
        %v1182 = vsel %vm1176, %v1181, %v1180
        %vm1183 = vcmp.lt.s32.totalorder %v1037, 0
        %v1184 = vsub.s32 0, %v1037
        %v1185 = vsel %vm1183, %v1184, %v1037
        %v1186 = vshrl.u32 %v1185, 4
        %v1187 = vand.u32 %v1185, 15
        %v1188 = vsub.s32 0, %v1187
        %v1189 = vsel %vm1183, %v1188, %v1187
        %vm1190 = vcmp.lt.s32.totalorder %v1038, 0
        %v1191 = vsub.s32 0, %v1038
        %v1192 = vsel %vm1190, %v1191, %v1038
        %v1193 = vshrl.u32 %v1192, 4
        %v1194 = vand.u32 %v1192, 15
        %v1195 = vsub.s32 0, %v1194
        %v1196 = vsel %vm1190, %v1195, %v1194
        %vm1197 = vcmp.lt.s32.totalorder %v1039, 0
        %v1198 = vsub.s32 0, %v1039
        %v1199 = vsel %vm1197, %v1198, %v1039
        %v1200 = vshrl.u32 %v1199, 4
        %v1201 = vand.u32 %v1199, 15
        %v1202 = vsub.s32 0, %v1201
        %v1203 = vsel %vm1197, %v1202, %v1201
        %vm1204 = vcmp.lt.s32.totalorder %v1040, 0
        %v1205 = vsub.s32 0, %v1040
        %v1206 = vsel %vm1204, %v1205, %v1040
        %v1207 = vshrl.u32 %v1206, 4
        %v1208 = vand.u32 %v1206, 15
        %v1209 = vsub.s32 0, %v1208
        %v1210 = vsel %vm1204, %v1209, %v1208
        %vm1211 = vcmp.lt.s32.totalorder %v1041, 0
        %v1212 = vsub.s32 0, %v1041
        %v1213 = vsel %vm1211, %v1212, %v1041
        %v1214 = vshrl.u32 %v1213, 4
        %v1215 = vand.u32 %v1213, 15
        %v1216 = vsub.s32 0, %v1215
        %v1217 = vsel %vm1211, %v1216, %v1215
        %vm1218 = vcmp.lt.s32.totalorder %v1042, 0
        %v1219 = vsub.s32 0, %v1042
        %v1220 = vsel %vm1218, %v1219, %v1042
        %v1221 = vshrl.u32 %v1220, 4
        %v1222 = vand.u32 %v1220, 15
        %v1223 = vsub.s32 0, %v1222
        %v1224 = vsel %vm1218, %v1223, %v1222
        %vm1225 = vcmp.lt.s32.totalorder %v1043, 0
        %v1226 = vsub.s32 0, %v1043
        %v1227 = vsel %vm1225, %v1226, %v1043
        %v1228 = vshrl.u32 %v1227, 4
        %v1229 = vand.u32 %v1227, 15
        %v1230 = vsub.s32 0, %v1229
        %v1231 = vsel %vm1225, %v1230, %v1229
        %vm1232 = vcmp.lt.s32.totalorder %v1044, 0
        %v1233 = vsub.s32 0, %v1044
        %v1234 = vsel %vm1232, %v1233, %v1044
        %v1235 = vshrl.u32 %v1234, 4
        %v1236 = vand.u32 %v1234, 15
        %v1237 = vsub.s32 0, %v1236
        %v1238 = vsel %vm1232, %v1237, %v1236
        %vm1239 = vcmp.lt.s32.totalorder %v1045, 0
        %v1240 = vsub.s32 0, %v1045
        %v1241 = vsel %vm1239, %v1240, %v1045
        %v1242 = vshrl.u32 %v1241, 4
        %v1243 = vand.u32 %v1241, 15
        %v1244 = vsub.s32 0, %v1243
        %v1245 = vsel %vm1239, %v1244, %v1243
        %vm1246 = vcmp.lt.s32.totalorder %v1046, 0
        %v1247 = vsub.s32 0, %v1046
        %v1248 = vsel %vm1246, %v1247, %v1046
        %v1249 = vshrl.u32 %v1248, 4
        %v1250 = vand.u32 %v1248, 15
        %v1251 = vsub.s32 0, %v1250
        %v1252 = vsel %vm1246, %v1251, %v1250
        %vm1253 = vcmp.lt.s32.totalorder %v1047, 0
        %v1254 = vsub.s32 0, %v1047
        %v1255 = vsel %vm1253, %v1254, %v1047
        %v1256 = vshrl.u32 %v1255, 4
        %v1257 = vand.u32 %v1255, 15
        %v1258 = vsub.s32 0, %v1257
        %v1259 = vsel %vm1253, %v1258, %v1257
        %vm1260 = vcmp.lt.s32.totalorder %v1048, 0
        %v1261 = vsub.s32 0, %v1048
        %v1262 = vsel %vm1260, %v1261, %v1048
        %v1263 = vshrl.u32 %v1262, 4
        %v1264 = vand.u32 %v1262, 15
        %v1265 = vsub.s32 0, %v1264
        %v1266 = vsel %vm1260, %v1265, %v1264
        %vm1267 = vcmp.lt.s32.totalorder %v1049, 0
        %v1268 = vsub.s32 0, %v1049
        %v1269 = vsel %vm1267, %v1268, %v1049
        %v1270 = vshrl.u32 %v1269, 4
        %v1271 = vand.u32 %v1269, 15
        %v1272 = vsub.s32 0, %v1271
        %v1273 = vsel %vm1267, %v1272, %v1271
        %vm1274 = vcmp.ne.s32.totalorder %v1056, 0
        %vm1275 = vcmp.ne.s32.totalorder %v1063, 0
        %vm1276 = vcmp.ne.s32.totalorder %v1070, 0
        %vm1277 = vcmp.ne.s32.totalorder %v1077, 0
        %vm1278 = vcmp.ne.s32.totalorder %v1084, 0
        %vm1279 = vcmp.ne.s32.totalorder %v1091, 0
        %vm1280 = vcmp.ne.s32.totalorder %v1098, 0
        %vm1281 = vcmp.ne.s32.totalorder %v1105, 0
        %vm1282 = vcmp.ne.s32.totalorder %v1112, 0
        %vm1283 = vcmp.ne.s32.totalorder %v1119, 0
        %vm1284 = vcmp.ne.s32.totalorder %v1126, 0
        %vm1285 = vcmp.ne.s32.totalorder %v1133, 0
        %vm1286 = vcmp.ne.s32.totalorder %v1140, 0
        %vm1287 = vcmp.ne.s32.totalorder %v1147, 0
        %vm1288 = vcmp.ne.s32.totalorder %v1154, 0
        %vm1289 = vcmp.ne.s32.totalorder %v1161, 0
        %vm1290 = vcmp.ne.s32.totalorder %v1168, 0
        %vm1291 = vcmp.ne.s32.totalorder %v1175, 0
        %vm1292 = vcmp.ne.s32.totalorder %v1182, 0
        %vm1293 = vcmp.ne.s32.totalorder %v1189, 0
        %vm1294 = vcmp.ne.s32.totalorder %v1196, 0
        %vm1295 = vcmp.ne.s32.totalorder %v1203, 0
        %vm1296 = vcmp.ne.s32.totalorder %v1210, 0
        %vm1297 = vcmp.ne.s32.totalorder %v1217, 0
        %vm1298 = vcmp.ne.s32.totalorder %v1224, 0
        %vm1299 = vcmp.ne.s32.totalorder %v1231, 0
        %vm1300 = vcmp.ne.s32.totalorder %v1238, 0
        %vm1301 = vcmp.ne.s32.totalorder %v1245, 0
        %vm1302 = vcmp.ne.s32.totalorder %v1252, 0
        %vm1303 = vcmp.ne.s32.totalorder %v1259, 0
        %vm1304 = vcmp.ne.s32.totalorder %v1266, 0
        %vm1305 = vcmp.ne.s32.totalorder %v1273, 0
        %vm1306 = vcmp.lt.s32.totalorder %v1056, 0
        %vm1307 = vcmp.lt.s32.totalorder %v1063, 0
        %vm1308 = vcmp.lt.s32.totalorder %v1070, 0
        %vm1309 = vcmp.lt.s32.totalorder %v1077, 0
        %vm1310 = vcmp.lt.s32.totalorder %v1084, 0
        %vm1311 = vcmp.lt.s32.totalorder %v1091, 0
        %vm1312 = vcmp.lt.s32.totalorder %v1098, 0
        %vm1313 = vcmp.lt.s32.totalorder %v1105, 0
        %vm1314 = vcmp.lt.s32.totalorder %v1112, 0
        %vm1315 = vcmp.lt.s32.totalorder %v1119, 0
        %vm1316 = vcmp.lt.s32.totalorder %v1126, 0
        %vm1317 = vcmp.lt.s32.totalorder %v1133, 0
        %vm1318 = vcmp.lt.s32.totalorder %v1140, 0
        %vm1319 = vcmp.lt.s32.totalorder %v1147, 0
        %vm1320 = vcmp.lt.s32.totalorder %v1154, 0
        %vm1321 = vcmp.lt.s32.totalorder %v1161, 0
        %vm1322 = vcmp.lt.s32.totalorder %v1168, 0
        %vm1323 = vcmp.lt.s32.totalorder %v1175, 0
        %vm1324 = vcmp.lt.s32.totalorder %v1182, 0
        %vm1325 = vcmp.lt.s32.totalorder %v1189, 0
        %vm1326 = vcmp.lt.s32.totalorder %v1196, 0
        %vm1327 = vcmp.lt.s32.totalorder %v1203, 0
        %vm1328 = vcmp.lt.s32.totalorder %v1210, 0
        %vm1329 = vcmp.lt.s32.totalorder %v1217, 0
        %vm1330 = vcmp.lt.s32.totalorder %v1224, 0
        %vm1331 = vcmp.lt.s32.totalorder %v1231, 0
        %vm1332 = vcmp.lt.s32.totalorder %v1238, 0
        %vm1333 = vcmp.lt.s32.totalorder %v1245, 0
        %vm1334 = vcmp.lt.s32.totalorder %v1252, 0
        %vm1335 = vcmp.lt.s32.totalorder %v1259, 0
        %vm1336 = vcmp.lt.s32.totalorder %v1266, 0
        %vm1337 = vcmp.lt.s32.totalorder %v1273, 0
        %vm1338 = vmand %vm1306, %vm1274
        %vm1339 = vmand %vm1307, %vm1275
        %vm1340 = vmand %vm1308, %vm1276
        %vm1341 = vmand %vm1309, %vm1277
        %vm1342 = vmand %vm1310, %vm1278
        %vm1343 = vmand %vm1311, %vm1279
        %vm1344 = vmand %vm1312, %vm1280
        %vm1345 = vmand %vm1313, %vm1281
        %vm1346 = vmand %vm1314, %vm1282
        %vm1347 = vmand %vm1315, %vm1283
        %vm1348 = vmand %vm1316, %vm1284
        %vm1349 = vmand %vm1317, %vm1285
        %vm1350 = vmand %vm1318, %vm1286
        %vm1351 = vmand %vm1319, %vm1287
        %vm1352 = vmand %vm1320, %vm1288
        %vm1353 = vmand %vm1321, %vm1289
        %vm1354 = vmand %vm1322, %vm1290
        %vm1355 = vmand %vm1323, %vm1291
        %vm1356 = vmand %vm1324, %vm1292
        %vm1357 = vmand %vm1325, %vm1293
        %vm1358 = vmand %vm1326, %vm1294
        %vm1359 = vmand %vm1327, %vm1295
        %vm1360 = vmand %vm1328, %vm1296
        %vm1361 = vmand %vm1329, %vm1297
        %vm1362 = vmand %vm1330, %vm1298
        %vm1363 = vmand %vm1331, %vm1299
        %vm1364 = vmand %vm1332, %vm1300
        %vm1365 = vmand %vm1333, %vm1301
        %vm1366 = vmand %vm1334, %vm1302
        %vm1367 = vmand %vm1335, %vm1303
        %vm1368 = vmand %vm1336, %vm1304
        %vm1369 = vmand %vm1337, %vm1305
        %v1370 = vadd.s32 %v1056, 16
        %v1371 = vadd.s32 %v1063, 16
        %v1372 = vadd.s32 %v1070, 16
        %v1373 = vadd.s32 %v1077, 16
        %v1374 = vadd.s32 %v1084, 16
        %v1375 = vadd.s32 %v1091, 16
        %v1376 = vadd.s32 %v1098, 16
        %v1377 = vadd.s32 %v1105, 16
        %v1378 = vadd.s32 %v1112, 16
        %v1379 = vadd.s32 %v1119, 16
        %v1380 = vadd.s32 %v1126, 16
        %v1381 = vadd.s32 %v1133, 16
        %v1382 = vadd.s32 %v1140, 16
        %v1383 = vadd.s32 %v1147, 16
        %v1384 = vadd.s32 %v1154, 16
        %v1385 = vadd.s32 %v1161, 16
        %v1386 = vadd.s32 %v1168, 16
        %v1387 = vadd.s32 %v1175, 16
        %v1388 = vadd.s32 %v1182, 16
        %v1389 = vadd.s32 %v1189, 16
        %v1390 = vadd.s32 %v1196, 16
        %v1391 = vadd.s32 %v1203, 16
        %v1392 = vadd.s32 %v1210, 16
        %v1393 = vadd.s32 %v1217, 16
        %v1394 = vadd.s32 %v1224, 16
        %v1395 = vadd.s32 %v1231, 16
        %v1396 = vadd.s32 %v1238, 16
        %v1397 = vadd.s32 %v1245, 16
        %v1398 = vadd.s32 %v1252, 16
        %v1399 = vadd.s32 %v1259, 16
        %v1400 = vadd.s32 %v1266, 16
        %v1401 = vadd.s32 %v1273, 16
        %v1402 = vsel %vm1338, %v1370, %v1056
        %v1403 = vsel %vm1339, %v1371, %v1063
        %v1404 = vsel %vm1340, %v1372, %v1070
        %v1405 = vsel %vm1341, %v1373, %v1077
        %v1406 = vsel %vm1342, %v1374, %v1084
        %v1407 = vsel %vm1343, %v1375, %v1091
        %v1408 = vsel %vm1344, %v1376, %v1098
        %v1409 = vsel %vm1345, %v1377, %v1105
        %v1410 = vsel %vm1346, %v1378, %v1112
        %v1411 = vsel %vm1347, %v1379, %v1119
        %v1412 = vsel %vm1348, %v1380, %v1126
        %v1413 = vsel %vm1349, %v1381, %v1133
        %v1414 = vsel %vm1350, %v1382, %v1140
        %v1415 = vsel %vm1351, %v1383, %v1147
        %v1416 = vsel %vm1352, %v1384, %v1154
        %v1417 = vsel %vm1353, %v1385, %v1161
        %v1418 = vsel %vm1354, %v1386, %v1168
        %v1419 = vsel %vm1355, %v1387, %v1175
        %v1420 = vsel %vm1356, %v1388, %v1182
        %v1421 = vsel %vm1357, %v1389, %v1189
        %v1422 = vsel %vm1358, %v1390, %v1196
        %v1423 = vsel %vm1359, %v1391, %v1203
        %v1424 = vsel %vm1360, %v1392, %v1210
        %v1425 = vsel %vm1361, %v1393, %v1217
        %v1426 = vsel %vm1362, %v1394, %v1224
        %v1427 = vsel %vm1363, %v1395, %v1231
        %v1428 = vsel %vm1364, %v1396, %v1238
        %v1429 = vsel %vm1365, %v1397, %v1245
        %v1430 = vsel %vm1366, %v1398, %v1252
        %v1431 = vsel %vm1367, %v1399, %v1259
        %v1432 = vsel %vm1368, %v1400, %v1266
        %v1433 = vsel %vm1369, %v1401, %v1273
        %vm1434 = vcmp.ne.s32.totalorder %v1402, 0
        %vm1435 = vcmp.ne.s32.totalorder %v1403, 0
        %vm1436 = vcmp.ne.s32.totalorder %v1404, 0
        %vm1437 = vcmp.ne.s32.totalorder %v1405, 0
        %vm1438 = vcmp.ne.s32.totalorder %v1406, 0
        %vm1439 = vcmp.ne.s32.totalorder %v1407, 0
        %vm1440 = vcmp.ne.s32.totalorder %v1408, 0
        %vm1441 = vcmp.ne.s32.totalorder %v1409, 0
        %vm1442 = vcmp.ne.s32.totalorder %v1410, 0
        %vm1443 = vcmp.ne.s32.totalorder %v1411, 0
        %vm1444 = vcmp.ne.s32.totalorder %v1412, 0
        %vm1445 = vcmp.ne.s32.totalorder %v1413, 0
        %vm1446 = vcmp.ne.s32.totalorder %v1414, 0
        %vm1447 = vcmp.ne.s32.totalorder %v1415, 0
        %vm1448 = vcmp.ne.s32.totalorder %v1416, 0
        %vm1449 = vcmp.ne.s32.totalorder %v1417, 0
        %vm1450 = vcmp.ne.s32.totalorder %v1418, 0
        %vm1451 = vcmp.ne.s32.totalorder %v1419, 0
        %vm1452 = vcmp.ne.s32.totalorder %v1420, 0
        %vm1453 = vcmp.ne.s32.totalorder %v1421, 0
        %vm1454 = vcmp.ne.s32.totalorder %v1422, 0
        %vm1455 = vcmp.ne.s32.totalorder %v1423, 0
        %vm1456 = vcmp.ne.s32.totalorder %v1424, 0
        %vm1457 = vcmp.ne.s32.totalorder %v1425, 0
        %vm1458 = vcmp.ne.s32.totalorder %v1426, 0
        %vm1459 = vcmp.ne.s32.totalorder %v1427, 0
        %vm1460 = vcmp.ne.s32.totalorder %v1428, 0
        %vm1461 = vcmp.ne.s32.totalorder %v1429, 0
        %vm1462 = vcmp.ne.s32.totalorder %v1430, 0
        %vm1463 = vcmp.ne.s32.totalorder %v1431, 0
        %vm1464 = vcmp.ne.s32.totalorder %v1432, 0
        %vm1465 = vcmp.ne.s32.totalorder %v1433, 0
        %vm1466 = vcmp.ne.s32.totalorder %v1402, 15
        %vm1467 = vcmp.ne.s32.totalorder %v1403, 15
        %vm1468 = vcmp.ne.s32.totalorder %v1404, 15
        %vm1469 = vcmp.ne.s32.totalorder %v1405, 15
        %vm1470 = vcmp.ne.s32.totalorder %v1406, 15
        %vm1471 = vcmp.ne.s32.totalorder %v1407, 15
        %vm1472 = vcmp.ne.s32.totalorder %v1408, 15
        %vm1473 = vcmp.ne.s32.totalorder %v1409, 15
        %vm1474 = vcmp.ne.s32.totalorder %v1410, 15
        %vm1475 = vcmp.ne.s32.totalorder %v1411, 15
        %vm1476 = vcmp.ne.s32.totalorder %v1412, 15
        %vm1477 = vcmp.ne.s32.totalorder %v1413, 15
        %vm1478 = vcmp.ne.s32.totalorder %v1414, 15
        %vm1479 = vcmp.ne.s32.totalorder %v1415, 15
        %vm1480 = vcmp.ne.s32.totalorder %v1416, 15
        %vm1481 = vcmp.ne.s32.totalorder %v1417, 15
        %vm1482 = vcmp.ne.s32.totalorder %v1418, 15
        %vm1483 = vcmp.ne.s32.totalorder %v1419, 15
        %vm1484 = vcmp.ne.s32.totalorder %v1420, 15
        %vm1485 = vcmp.ne.s32.totalorder %v1421, 15
        %vm1486 = vcmp.ne.s32.totalorder %v1422, 15
        %vm1487 = vcmp.ne.s32.totalorder %v1423, 15
        %vm1488 = vcmp.ne.s32.totalorder %v1424, 15
        %vm1489 = vcmp.ne.s32.totalorder %v1425, 15
        %vm1490 = vcmp.ne.s32.totalorder %v1426, 15
        %vm1491 = vcmp.ne.s32.totalorder %v1427, 15
        %vm1492 = vcmp.ne.s32.totalorder %v1428, 15
        %vm1493 = vcmp.ne.s32.totalorder %v1429, 15
        %vm1494 = vcmp.ne.s32.totalorder %v1430, 15
        %vm1495 = vcmp.ne.s32.totalorder %v1431, 15
        %vm1496 = vcmp.ne.s32.totalorder %v1432, 15
        %vm1497 = vcmp.ne.s32.totalorder %v1433, 15
        %v1498 = vld [vmem:[#allocation2 + $0x4] sm:$0x8]
        %v1499 = vld [vmem:[#allocation2 + $0x8] sm:$0xf]
        %v1500 = vld [vmem:[#allocation2 + $0xc] sm:$0xf]
        %v1501 = vld [vmem:[#allocation2 + $0x10] sm:$0xf]
        %v1502 = vld [vmem:[#allocation2 + $0x14] sm:$0xf]
        %v1503 = vld [vmem:[#allocation2 + $0x18] sm:$0xf]
        %v1504 = vld [vmem:[#allocation2 + $0x1c] sm:$0xf]
        %v1505 = vld [vmem:[#allocation2 + $0x20] sm:$0xf]
        %v1506 = vld [vmem:[#allocation2 + $0x24] sm:$0xf]
        %v1507 = vld [vmem:[#allocation2 + $0x28] sm:$0xf]
        %v1508 = vld [vmem:[#allocation2 + $0x2c] sm:$0xf]
        %v1509 = vld [vmem:[#allocation2 + $0x30] sm:$0xf]
        %v1510 = vld [vmem:[#allocation2 + $0x34] sm:$0xf]
        %v1511 = vld [vmem:[#allocation2 + $0x38] sm:$0xf]
        %v1512 = vld [vmem:[#allocation2 + $0x3c] sm:$0xf]
        %v1513 = vld [vmem:[#allocation2 + $0x40] sm:$0xf]
        %v1514 = vld [vmem:[#allocation2 + $0x44] sm:$0xf]
        %v1515 = vld [vmem:[#allocation2 + $0x48] sm:$0xf]
        %v1516 = vld [vmem:[#allocation2 + $0x4c] sm:$0xf]
        %v1517 = vld [vmem:[#allocation2 + $0x50] sm:$0xf]
        %v1518 = vld [vmem:[#allocation2 + $0x54] sm:$0xf]
        %v1519 = vld [vmem:[#allocation2 + $0x58] sm:$0xf]
        %v1520 = vld [vmem:[#allocation2 + $0x5c] sm:$0xf]
        %v1521 = vld [vmem:[#allocation2 + $0x60] sm:$0xf]
        %v1522 = vld [vmem:[#allocation2 + $0x64] sm:$0xf]
        %v1523 = vld [vmem:[#allocation2 + $0x68] sm:$0xf]
        %v1524 = vld [vmem:[#allocation2 + $0x6c] sm:$0xf]
        %v1525 = vld [vmem:[#allocation2 + $0x70] sm:$0xf]
        %v1526 = vld [vmem:[#allocation2 + $0x74] sm:$0xf]
        %v1527 = vld [vmem:[#allocation2 + $0x78] sm:$0xf]
        %v1528 = vld [vmem:[#allocation2 + $0x7c] sm:$0xf]
        %v1529 = vld [vmem:[#allocation2 + $0x80] sm:$0xf]
        %v1530 = vld [vmem:[#allocation2 + $0x84] sm:$0xf]
        %v1531 = vsel %vm1434, 1, 0
        %v1532 = vsel %vm1435, 1, 0
        %v1533 = vsel %vm1436, 1, 0
        %v1534 = vsel %vm1437, 1, 0
        %v1535 = vsel %vm1438, 1, 0
        %v1536 = vsel %vm1439, 1, 0
        %v1537 = vsel %vm1440, 1, 0
        %v1538 = vsel %vm1441, 1, 0
        %v1539 = vsel %vm1442, 1, 0
        %v1540 = vsel %vm1443, 1, 0
        %v1541 = vsel %vm1444, 1, 0
        %v1542 = vsel %vm1445, 1, 0
        %v1543 = vsel %vm1446, 1, 0
        %v1544 = vsel %vm1447, 1, 0
        %v1545 = vsel %vm1448, 1, 0
        %v1546 = vsel %vm1449, 1, 0
        %v1547 = vsel %vm1450, 1, 0
        %v1548 = vsel %vm1451, 1, 0
        %v1549 = vsel %vm1452, 1, 0
        %v1550 = vsel %vm1453, 1, 0
        %v1551 = vsel %vm1454, 1, 0
        %v1552 = vsel %vm1455, 1, 0
        %v1553 = vsel %vm1456, 1, 0
        %v1554 = vsel %vm1457, 1, 0
        %v1555 = vsel %vm1458, 1, 0
        %v1556 = vsel %vm1459, 1, 0
        %v1557 = vsel %vm1460, 1, 0
        %v1558 = vsel %vm1461, 1, 0
        %v1559 = vsel %vm1462, 1, 0
        %v1560 = vsel %vm1463, 1, 0
        %v1561 = vsel %vm1464, 1, 0
        %v1562 = vsel %vm1465, 1, 0
        %vm1563 = vcmp.eq.s32.totalorder %v1531, 1
        %vm1564 = vcmp.eq.s32.totalorder %v1532, 1
        %vm1565 = vcmp.eq.s32.totalorder %v1533, 1
        %vm1566 = vcmp.eq.s32.totalorder %v1534, 1
        %vm1567 = vcmp.eq.s32.totalorder %v1535, 1
        %vm1568 = vcmp.eq.s32.totalorder %v1536, 1
        %vm1569 = vcmp.eq.s32.totalorder %v1537, 1
        %vm1570 = vcmp.eq.s32.totalorder %v1538, 1
        %vm1571 = vcmp.eq.s32.totalorder %v1539, 1
        %vm1572 = vcmp.eq.s32.totalorder %v1540, 1
        %vm1573 = vcmp.eq.s32.totalorder %v1541, 1
        %vm1574 = vcmp.eq.s32.totalorder %v1542, 1
        %vm1575 = vcmp.eq.s32.totalorder %v1543, 1
        %vm1576 = vcmp.eq.s32.totalorder %v1544, 1
        %vm1577 = vcmp.eq.s32.totalorder %v1545, 1
        %vm1578 = vcmp.eq.s32.totalorder %v1546, 1
        %vm1579 = vcmp.eq.s32.totalorder %v1547, 1
        %vm1580 = vcmp.eq.s32.totalorder %v1548, 1
        %vm1581 = vcmp.eq.s32.totalorder %v1549, 1
        %vm1582 = vcmp.eq.s32.totalorder %v1550, 1
        %vm1583 = vcmp.eq.s32.totalorder %v1551, 1
        %vm1584 = vcmp.eq.s32.totalorder %v1552, 1
        %vm1585 = vcmp.eq.s32.totalorder %v1553, 1
        %vm1586 = vcmp.eq.s32.totalorder %v1554, 1
        %vm1587 = vcmp.eq.s32.totalorder %v1555, 1
        %vm1588 = vcmp.eq.s32.totalorder %v1556, 1
        %vm1589 = vcmp.eq.s32.totalorder %v1557, 1
        %vm1590 = vcmp.eq.s32.totalorder %v1558, 1
        %vm1591 = vcmp.eq.s32.totalorder %v1559, 1
        %vm1592 = vcmp.eq.s32.totalorder %v1560, 1
        %vm1593 = vcmp.eq.s32.totalorder %v1561, 1
        %vm1594 = vcmp.eq.s32.totalorder %v1562, 1
        %vm1595 = vmpackc.low %vm1563, %vm1563
        %vm1596 = vmpackc.low %vm1564, %vm1564
        %vm1597 = vmpackc.low %vm1565, %vm1565
        %vm1598 = vmpackc.low %vm1566, %vm1566
        %vm1599 = vmpackc.low %vm1567, %vm1567
        %vm1600 = vmpackc.low %vm1568, %vm1568
        %vm1601 = vmpackc.low %vm1569, %vm1569
        %vm1602 = vmpackc.low %vm1570, %vm1570
        %vm1603 = vmpackc.low %vm1571, %vm1571
        %vm1604 = vmpackc.low %vm1572, %vm1572
        %vm1605 = vmpackc.low %vm1573, %vm1573
        %vm1606 = vmpackc.low %vm1574, %vm1574
        %vm1607 = vmpackc.low %vm1575, %vm1575
        %vm1608 = vmpackc.low %vm1576, %vm1576
        %vm1609 = vmpackc.low %vm1577, %vm1577
        %vm1610 = vmpackc.low %vm1578, %vm1578
        %vm1611 = vmpackc.low %vm1579, %vm1579
        %vm1612 = vmpackc.low %vm1580, %vm1580
        %vm1613 = vmpackc.low %vm1581, %vm1581
        %vm1614 = vmpackc.low %vm1582, %vm1582
        %vm1615 = vmpackc.low %vm1583, %vm1583
        %vm1616 = vmpackc.low %vm1584, %vm1584
        %vm1617 = vmpackc.low %vm1585, %vm1585
        %vm1618 = vmpackc.low %vm1586, %vm1586
        %vm1619 = vmpackc.low %vm1587, %vm1587
        %vm1620 = vmpackc.low %vm1588, %vm1588
        %vm1621 = vmpackc.low %vm1589, %vm1589
        %vm1622 = vmpackc.low %vm1590, %vm1590
        %vm1623 = vmpackc.low %vm1591, %vm1591
        %vm1624 = vmpackc.low %vm1592, %vm1592
        %vm1625 = vmpackc.low %vm1593, %vm1593
        %vm1626 = vmpackc.low %vm1594, %vm1594
        %v1627 = vsel %vm1595, 65537, 0
        %v1628 = vsel %vm1596, 65537, 0
        %v1629 = vsel %vm1597, 65537, 0
        %v1630 = vsel %vm1598, 65537, 0
        %v1631 = vsel %vm1599, 65537, 0
        %v1632 = vsel %vm1600, 65537, 0
        %v1633 = vsel %vm1601, 65537, 0
        %v1634 = vsel %vm1602, 65537, 0
        %v1635 = vsel %vm1603, 65537, 0
        %v1636 = vsel %vm1604, 65537, 0
        %v1637 = vsel %vm1605, 65537, 0
        %v1638 = vsel %vm1606, 65537, 0
        %v1639 = vsel %vm1607, 65537, 0
        %v1640 = vsel %vm1608, 65537, 0
        %v1641 = vsel %vm1609, 65537, 0
        %v1642 = vsel %vm1610, 65537, 0
        %v1643 = vsel %vm1611, 65537, 0
        %v1644 = vsel %vm1612, 65537, 0
        %v1645 = vsel %vm1613, 65537, 0
        %v1646 = vsel %vm1614, 65537, 0
        %v1647 = vsel %vm1615, 65537, 0
        %v1648 = vsel %vm1616, 65537, 0
        %v1649 = vsel %vm1617, 65537, 0
        %v1650 = vsel %vm1618, 65537, 0
        %v1651 = vsel %vm1619, 65537, 0
        %v1652 = vsel %vm1620, 65537, 0
        %v1653 = vsel %vm1621, 65537, 0
        %v1654 = vsel %vm1622, 65537, 0
        %v1655 = vsel %vm1623, 65537, 0
        %v1656 = vsel %vm1624, 65537, 0
        %v1657 = vsel %vm1625, 65537, 0
        %v1658 = vsel %vm1626, 65537, 0
        %vm1659 = vsmask.f32 3328
        %vm1660 = vsmask.f32 7440
        %vm1661 = vmor %vm1659, %vm1660
        %v1663 = vshll.u32 %v1627, 16
        %v1665 = vrot.slane %v1663, 5
        %v1666 = vshrl.u32 %v1627, 16
        %v1668 = vrot.slane %v1666, 4
        %v1669 = vor.u32 %v1668, %v1665
        %v1670 = vrot.slane %v1669, 4
        %v1672 = vshll.u32 %v1628, 16
        %v1674 = vrot.slane %v1672, 5
        %v1675 = vsel %vm1661, %v1670, %v1674
        %v1676 = vshrl.u32 %v1628, 16
        %v1678 = vrot.slane %v1676, 4
        %v1679 = vor.u32 %v1678, %v1674
        %v1680 = vrot.slane %v1679, 4
        %v1682 = vshll.u32 %v1629, 16
        %v1684 = vrot.slane %v1682, 5
        %v1685 = vsel %vm1661, %v1680, %v1684
        %v1686 = vshrl.u32 %v1629, 16
        %v1688 = vrot.slane %v1686, 4
        %v1689 = vor.u32 %v1688, %v1684
        %v1690 = vrot.slane %v1689, 4
        %v1692 = vshll.u32 %v1630, 16
        %v1694 = vrot.slane %v1692, 5
        %v1695 = vsel %vm1661, %v1690, %v1694
        %v1696 = vshrl.u32 %v1630, 16
        %v1698 = vrot.slane %v1696, 4
        %v1699 = vor.u32 %v1698, %v1694
        %v1700 = vrot.slane %v1699, 4
        %v1702 = vshll.u32 %v1631, 16
        %v1704 = vrot.slane %v1702, 5
        %v1705 = vsel %vm1661, %v1700, %v1704
        %v1706 = vshrl.u32 %v1631, 16
        %v1708 = vrot.slane %v1706, 4
        %v1709 = vor.u32 %v1708, %v1704
        %v1710 = vrot.slane %v1709, 4
        %v1712 = vshll.u32 %v1632, 16
        %v1714 = vrot.slane %v1712, 5
        %v1715 = vsel %vm1661, %v1710, %v1714
        %v1716 = vshrl.u32 %v1632, 16
        %v1718 = vrot.slane %v1716, 4
        %v1719 = vor.u32 %v1718, %v1714
        %v1720 = vrot.slane %v1719, 4
        %v1722 = vshll.u32 %v1633, 16
        %v1724 = vrot.slane %v1722, 5
        %v1725 = vsel %vm1661, %v1720, %v1724
        %v1726 = vshrl.u32 %v1633, 16
        %v1728 = vrot.slane %v1726, 4
        %v1729 = vor.u32 %v1728, %v1724
        %v1730 = vrot.slane %v1729, 4
        %v1732 = vshll.u32 %v1634, 16
        %v1734 = vrot.slane %v1732, 5
        %v1735 = vsel %vm1661, %v1730, %v1734
        %v1736 = vshrl.u32 %v1634, 16
        %v1738 = vrot.slane %v1736, 4
        %v1739 = vor.u32 %v1738, %v1734
        %v1740 = vrot.slane %v1739, 4
        %v1742 = vshll.u32 %v1635, 16
        %v1744 = vrot.slane %v1742, 5
        %v1745 = vsel %vm1661, %v1740, %v1744
        %v1746 = vshrl.u32 %v1635, 16
        %v1748 = vrot.slane %v1746, 4
        %v1749 = vor.u32 %v1748, %v1744
        %v1750 = vrot.slane %v1749, 4
        %v1752 = vshll.u32 %v1636, 16
        %v1754 = vrot.slane %v1752, 5
        %v1755 = vsel %vm1661, %v1750, %v1754
        %v1756 = vshrl.u32 %v1636, 16
        %v1758 = vrot.slane %v1756, 4
        %v1759 = vor.u32 %v1758, %v1754
        %v1760 = vrot.slane %v1759, 4
        %v1762 = vshll.u32 %v1637, 16
        %v1764 = vrot.slane %v1762, 5
        %v1765 = vsel %vm1661, %v1760, %v1764
        %v1766 = vshrl.u32 %v1637, 16
        %v1768 = vrot.slane %v1766, 4
        %v1769 = vor.u32 %v1768, %v1764
        %v1770 = vrot.slane %v1769, 4
        %v1772 = vshll.u32 %v1638, 16
        %v1774 = vrot.slane %v1772, 5
        %v1775 = vsel %vm1661, %v1770, %v1774
        %v1776 = vshrl.u32 %v1638, 16
        %v1778 = vrot.slane %v1776, 4
        %v1779 = vor.u32 %v1778, %v1774
        %v1780 = vrot.slane %v1779, 4
        %v1782 = vshll.u32 %v1639, 16
        %v1784 = vrot.slane %v1782, 5
        %v1785 = vsel %vm1661, %v1780, %v1784
        %v1786 = vshrl.u32 %v1639, 16
        %v1788 = vrot.slane %v1786, 4
        %v1789 = vor.u32 %v1788, %v1784
        %v1790 = vrot.slane %v1789, 4
        %v1792 = vshll.u32 %v1640, 16
        %v1794 = vrot.slane %v1792, 5
        %v1795 = vsel %vm1661, %v1790, %v1794
        %v1796 = vshrl.u32 %v1640, 16
        %v1798 = vrot.slane %v1796, 4
        %v1799 = vor.u32 %v1798, %v1794
        %v1800 = vrot.slane %v1799, 4
        %v1802 = vshll.u32 %v1641, 16
        %v1804 = vrot.slane %v1802, 5
        %v1805 = vsel %vm1661, %v1800, %v1804
        %v1806 = vshrl.u32 %v1641, 16
        %v1808 = vrot.slane %v1806, 4
        %v1809 = vor.u32 %v1808, %v1804
        %v1810 = vrot.slane %v1809, 4
        %v1812 = vshll.u32 %v1642, 16
        %v1814 = vrot.slane %v1812, 5
        %v1815 = vsel %vm1661, %v1810, %v1814
        %v1816 = vshrl.u32 %v1642, 16
        %v1818 = vrot.slane %v1816, 4
        %v1819 = vor.u32 %v1818, %v1814
        %v1820 = vrot.slane %v1819, 4
        %v1822 = vshll.u32 %v1643, 16
        %v1824 = vrot.slane %v1822, 5
        %v1825 = vsel %vm1661, %v1820, %v1824
        %v1826 = vshrl.u32 %v1643, 16
        %v1828 = vrot.slane %v1826, 4
        %v1829 = vor.u32 %v1828, %v1824
        %v1830 = vrot.slane %v1829, 4
        %v1832 = vshll.u32 %v1644, 16
        %v1834 = vrot.slane %v1832, 5
        %v1835 = vsel %vm1661, %v1830, %v1834
        %v1836 = vshrl.u32 %v1644, 16
        %v1838 = vrot.slane %v1836, 4
        %v1839 = vor.u32 %v1838, %v1834
        %v1840 = vrot.slane %v1839, 4
        %v1842 = vshll.u32 %v1645, 16
        %v1844 = vrot.slane %v1842, 5
        %v1845 = vsel %vm1661, %v1840, %v1844
        %v1846 = vshrl.u32 %v1645, 16
        %v1848 = vrot.slane %v1846, 4
        %v1849 = vor.u32 %v1848, %v1844
        %v1850 = vrot.slane %v1849, 4
        %v1852 = vshll.u32 %v1646, 16
        %v1854 = vrot.slane %v1852, 5
        %v1855 = vsel %vm1661, %v1850, %v1854
        %v1856 = vshrl.u32 %v1646, 16
        %v1858 = vrot.slane %v1856, 4
        %v1859 = vor.u32 %v1858, %v1854
        %v1860 = vrot.slane %v1859, 4
        %v1862 = vshll.u32 %v1647, 16
        %v1864 = vrot.slane %v1862, 5
        %v1865 = vsel %vm1661, %v1860, %v1864
        %v1866 = vshrl.u32 %v1647, 16
        %v1868 = vrot.slane %v1866, 4
        %v1869 = vor.u32 %v1868, %v1864
        %v1870 = vrot.slane %v1869, 4
        %v1872 = vshll.u32 %v1648, 16
        %v1874 = vrot.slane %v1872, 5
        %v1875 = vsel %vm1661, %v1870, %v1874
        %v1876 = vshrl.u32 %v1648, 16
        %v1878 = vrot.slane %v1876, 4
        %v1879 = vor.u32 %v1878, %v1874
        %v1880 = vrot.slane %v1879, 4
        %v1882 = vshll.u32 %v1649, 16
        %v1884 = vrot.slane %v1882, 5
        %v1885 = vsel %vm1661, %v1880, %v1884
        %v1886 = vshrl.u32 %v1649, 16
        %v1888 = vrot.slane %v1886, 4
        %v1889 = vor.u32 %v1888, %v1884
        %v1890 = vrot.slane %v1889, 4
        %v1892 = vshll.u32 %v1650, 16
        %v1894 = vrot.slane %v1892, 5
        %v1895 = vsel %vm1661, %v1890, %v1894
        %v1896 = vshrl.u32 %v1650, 16
        %v1898 = vrot.slane %v1896, 4
        %v1899 = vor.u32 %v1898, %v1894
        %v1900 = vrot.slane %v1899, 4
        %v1902 = vshll.u32 %v1651, 16
        %v1904 = vrot.slane %v1902, 5
        %v1905 = vsel %vm1661, %v1900, %v1904
        %v1906 = vshrl.u32 %v1651, 16
        %v1908 = vrot.slane %v1906, 4
        %v1909 = vor.u32 %v1908, %v1904
        %v1910 = vrot.slane %v1909, 4
        %v1912 = vshll.u32 %v1652, 16
        %v1914 = vrot.slane %v1912, 5
        %v1915 = vsel %vm1661, %v1910, %v1914
        %v1916 = vshrl.u32 %v1652, 16
        %v1918 = vrot.slane %v1916, 4
        %v1919 = vor.u32 %v1918, %v1914
        %v1920 = vrot.slane %v1919, 4
        %v1922 = vshll.u32 %v1653, 16
        %v1924 = vrot.slane %v1922, 5
        %v1925 = vsel %vm1661, %v1920, %v1924
        %v1926 = vshrl.u32 %v1653, 16
        %v1928 = vrot.slane %v1926, 4
        %v1929 = vor.u32 %v1928, %v1924
        %v1930 = vrot.slane %v1929, 4
        %v1932 = vshll.u32 %v1654, 16
        %v1934 = vrot.slane %v1932, 5
        %v1935 = vsel %vm1661, %v1930, %v1934
        %v1936 = vshrl.u32 %v1654, 16
        %v1938 = vrot.slane %v1936, 4
        %v1939 = vor.u32 %v1938, %v1934
        %v1940 = vrot.slane %v1939, 4
        %v1942 = vshll.u32 %v1655, 16
        %v1944 = vrot.slane %v1942, 5
        %v1945 = vsel %vm1661, %v1940, %v1944
        %v1946 = vshrl.u32 %v1655, 16
        %v1948 = vrot.slane %v1946, 4
        %v1949 = vor.u32 %v1948, %v1944
        %v1950 = vrot.slane %v1949, 4
        %v1952 = vshll.u32 %v1656, 16
        %v1954 = vrot.slane %v1952, 5
        %v1955 = vsel %vm1661, %v1950, %v1954
        %v1956 = vshrl.u32 %v1656, 16
        %v1958 = vrot.slane %v1956, 4
        %v1959 = vor.u32 %v1958, %v1954
        %v1960 = vrot.slane %v1959, 4
        %v1962 = vshll.u32 %v1657, 16
        %v1964 = vrot.slane %v1962, 5
        %v1965 = vsel %vm1661, %v1960, %v1964
        %v1966 = vshrl.u32 %v1657, 16
        %v1968 = vrot.slane %v1966, 4
        %v1969 = vor.u32 %v1968, %v1964
        %v1970 = vrot.slane %v1969, 4
        %v1972 = vshll.u32 %v1658, 16
        %v1974 = vrot.slane %v1972, 5
        %v1975 = vsel %vm1661, %v1970, %v1974
        %v1976 = vshrl.u32 %v1658, 16
        %v1978 = vrot.slane %v1976, 4
        %v1979 = vor.u32 %v1978, %v1974
        %v1980 = vrot.slane %v1979, 4
        %vm1981 = vcmp.ne.s16.totalorder %v1665, 0
        %vm1982 = vcmp.ne.s16.totalorder %v1675, 0
        %vm1983 = vcmp.ne.s16.totalorder %v1685, 0
        %vm1984 = vcmp.ne.s16.totalorder %v1695, 0
        %vm1985 = vcmp.ne.s16.totalorder %v1705, 0
        %vm1986 = vcmp.ne.s16.totalorder %v1715, 0
        %vm1987 = vcmp.ne.s16.totalorder %v1725, 0
        %vm1988 = vcmp.ne.s16.totalorder %v1735, 0
        %vm1989 = vcmp.ne.s16.totalorder %v1745, 0
        %vm1990 = vcmp.ne.s16.totalorder %v1755, 0
        %vm1991 = vcmp.ne.s16.totalorder %v1765, 0
        %vm1992 = vcmp.ne.s16.totalorder %v1775, 0
        %vm1993 = vcmp.ne.s16.totalorder %v1785, 0
        %vm1994 = vcmp.ne.s16.totalorder %v1795, 0
        %vm1995 = vcmp.ne.s16.totalorder %v1805, 0
        %vm1996 = vcmp.ne.s16.totalorder %v1815, 0
        %vm1997 = vcmp.ne.s16.totalorder %v1825, 0
        %vm1998 = vcmp.ne.s16.totalorder %v1835, 0
        %vm1999 = vcmp.ne.s16.totalorder %v1845, 0
        %vm2000 = vcmp.ne.s16.totalorder %v1855, 0
        %vm2001 = vcmp.ne.s16.totalorder %v1865, 0
        %vm2002 = vcmp.ne.s16.totalorder %v1875, 0
        %vm2003 = vcmp.ne.s16.totalorder %v1885, 0
        %vm2004 = vcmp.ne.s16.totalorder %v1895, 0
        %vm2005 = vcmp.ne.s16.totalorder %v1905, 0
        %vm2006 = vcmp.ne.s16.totalorder %v1915, 0
        %vm2007 = vcmp.ne.s16.totalorder %v1925, 0
        %vm2008 = vcmp.ne.s16.totalorder %v1935, 0
        %vm2009 = vcmp.ne.s16.totalorder %v1945, 0
        %vm2010 = vcmp.ne.s16.totalorder %v1955, 0
        %vm2011 = vcmp.ne.s16.totalorder %v1965, 0
        %vm2012 = vcmp.ne.s16.totalorder %v1975, 0
        %vm2013 = vcmp.ne.s16.totalorder %v1980, 0
        %v2014 = vsel %vm1981, %v1498, 0
        %v2015 = vsel %vm1982, %v1499, 0
        %v2016 = vsel %vm1983, %v1500, 0
        %v2017 = vsel %vm1984, %v1501, 0
        %v2018 = vsel %vm1985, %v1502, 0
        %v2019 = vsel %vm1986, %v1503, 0
        %v2020 = vsel %vm1987, %v1504, 0
        %v2021 = vsel %vm1988, %v1505, 0
        %v2022 = vsel %vm1989, %v1506, 0
        %v2023 = vsel %vm1990, %v1507, 0
        %v2024 = vsel %vm1991, %v1508, 0
        %v2025 = vsel %vm1992, %v1509, 0
        %v2026 = vsel %vm1993, %v1510, 0
        %v2027 = vsel %vm1994, %v1511, 0
        %v2028 = vsel %vm1995, %v1512, 0
        %v2029 = vsel %vm1996, %v1513, 0
        %v2030 = vsel %vm1997, %v1514, 0
        %v2031 = vsel %vm1998, %v1515, 0
        %v2032 = vsel %vm1999, %v1516, 0
        %v2033 = vsel %vm2000, %v1517, 0
        %v2034 = vsel %vm2001, %v1518, 0
        %v2035 = vsel %vm2002, %v1519, 0
        %v2036 = vsel %vm2003, %v1520, 0
        %v2037 = vsel %vm2004, %v1521, 0
        %v2038 = vsel %vm2005, %v1522, 0
        %v2039 = vsel %vm2006, %v1523, 0
        %v2040 = vsel %vm2007, %v1524, 0
        %v2041 = vsel %vm2008, %v1525, 0
        %v2042 = vsel %vm2009, %v1526, 0
        %v2043 = vsel %vm2010, %v1527, 0
        %v2044 = vsel %vm2011, %v1528, 0
        %v2045 = vsel %vm2012, %v1529, 0
        %v2046 = vsel %vm2013, %v1530, 0
        %v2047 = vld [vmem:[#allocation9] sm:$0xf]
        %v2048 = vld [vmem:[#allocation9 + $0x4] sm:$0xf]
        %v2049 = vld [vmem:[#allocation9 + $0x8] sm:$0xf]
        %v2050 = vld [vmem:[#allocation9 + $0xc] sm:$0xf]
        %s2051 = scalar_lea.vmem [#allocation9], 16
        %v2052 = vld [vmem:[%s2051] sm:$0xf]
        %v2053 = vld [vmem:[%s2051 + $0x4] sm:$0xf]
        %v2054 = vld [vmem:[%s2051 + $0x8] sm:$0xf]
        %v2055 = vld [vmem:[%s2051 + $0xc] sm:$0xf]
        %v2088 = vunpack.c.l.b16 %v1499
        %v2089 = vunpack.c.l.b16 %v1500
        %v2090 = vunpack.c.l.b16 %v1501
        %v2091 = vunpack.c.l.b16 %v1502
        %v2092 = vunpack.c.l.b16 %v1503
        %v2093 = vunpack.c.l.b16 %v1504
        %v2094 = vunpack.c.l.b16 %v1505
        %v2095 = vunpack.c.l.b16 %v1506
        %v2096 = vunpack.c.l.b16 %v1507
        %v2097 = vunpack.c.l.b16 %v1508
        %v2098 = vunpack.c.l.b16 %v1509
        %v2099 = vunpack.c.l.b16 %v1510
        %v2100 = vunpack.c.l.b16 %v1511
        %v2101 = vunpack.c.l.b16 %v1512
        %v2102 = vunpack.c.l.b16 %v1513
        %v2103 = vunpack.c.l.b16 %v1514
        %v2104 = vunpack.c.l.b16 %v1515
        %v2105 = vunpack.c.l.b16 %v1516
        %v2106 = vunpack.c.l.b16 %v1517
        %v2107 = vunpack.c.l.b16 %v1518
        %v2108 = vunpack.c.l.b16 %v1519
        %v2109 = vunpack.c.l.b16 %v1520
        %v2110 = vunpack.c.l.b16 %v1521
        %v2111 = vunpack.c.l.b16 %v1522
        %v2112 = vunpack.c.l.b16 %v1523
        %v2113 = vunpack.c.l.b16 %v1524
        %v2114 = vunpack.c.l.b16 %v1525
        %v2115 = vunpack.c.l.b16 %v1526
        %v2116 = vunpack.c.l.b16 %v1527
        %v2117 = vunpack.c.l.b16 %v1528
        %v2118 = vunpack.c.l.b16 %v1529
        %v2119 = vunpack.c.l.b16 %v1530
        %v2120 = vpack.c.b16 %v2089, %v2088
        %v2121 = vpack.c.b16 %v2091, %v2090
        %v2122 = vpack.c.b16 %v2093, %v2092
        %v2123 = vpack.c.b16 %v2095, %v2094
        %v2124 = vpack.c.b16 %v2097, %v2096
        %v2125 = vpack.c.b16 %v2099, %v2098
        %v2126 = vpack.c.b16 %v2101, %v2100
        %v2127 = vpack.c.b16 %v2103, %v2102
        %v2128 = vpack.c.b16 %v2105, %v2104
        %v2129 = vpack.c.b16 %v2107, %v2106
        %v2130 = vpack.c.b16 %v2109, %v2108
        %v2131 = vpack.c.b16 %v2111, %v2110
        %v2132 = vpack.c.b16 %v2113, %v2112
        %v2133 = vpack.c.b16 %v2115, %v2114
        %v2134 = vpack.c.b16 %v2117, %v2116
        %v2135 = vpack.c.b16 %v2119, %v2118
        %v2140 = vunpack.c.l.b16 %v2052
        %v2141 = vunpack.c.l.b16 %v2053
        %v2142 = vunpack.c.l.b16 %v2054
        %v2143 = vunpack.c.l.b16 %v2055
        %v2144 = vpack.c.b16 %v2141, %v2140
        %v2145 = vpack.c.b16 %v2143, %v2142
        %vm2148 = vcmask 261120
        %v2150 = vsel %vm2148, %v2120, 0
        %v2153 = vsel %vm2148, %v2121, 0
        %v2156 = vsel %vm2148, %v2122, 0
        %v2159 = vsel %vm2148, %v2123, 0
        %v2162 = vsel %vm2148, %v2124, 0
        %v2165 = vsel %vm2148, %v2125, 0
        %v2168 = vsel %vm2148, %v2126, 0
        %v2171 = vsel %vm2148, %v2127, 0
        %v2174 = vsel %vm2148, %v2128, 0
        %v2177 = vsel %vm2148, %v2129, 0
        %v2180 = vsel %vm2148, %v2130, 0
        %v2183 = vsel %vm2148, %v2131, 0
        %v2186 = vsel %vm2148, %v2132, 0
        %v2189 = vsel %vm2148, %v2133, 0
        %v2192 = vsel %vm2148, %v2134, 0
        %v2195 = vsel %vm2148, %v2135, 0
        %2197 = vmatprep.subr.bf16.mxu0 0
        %2198 = vmatpush1.bf16.msra.mxu0 0
        %2199 = vmatprep.subr.bf16.mxu0 0
        %2200 = vmatpush1.bf16.msra.mxu0 0
        %2201 = vmatprep.subr.bf16.mxu0 0
        %2202 = vmatpush1.bf16.msra.mxu0 0
        %2203 = vmatprep.subr.bf16.mxu0 0
        %2204 = vmatpush1.bf16.msra.mxu0 0
        %2205 = vmatprep.subr.bf16.mxu0 0
        %2206 = vmatpush1.bf16.msra.mxu0 0
        %2207 = vmatprep.subr.bf16.mxu0 0
        %2208 = vmatpush1.bf16.msra.mxu0 0
        %2209 = vmatprep.subr.bf16.mxu0 0
        %2210 = vmatpush1.bf16.msra.mxu0 %v2145
        %2211 = vmatprep.subr.bf16.mxu0 0
        %2212 = vmatpush1.bf16.msra.mxu0 %v2144
        %2213 = vmatprep.subr.bf16.mxu0 0
        %2214 = vmatpush2.bf16.msra.mxu0 0
        %2215 = vmatprep.subr.bf16.mxu0 0
        %2216 = vmatpush2.bf16.msra.mxu0 0
        %2217 = vmatprep.subr.bf16.mxu0 0
        %2218 = vmatpush2.bf16.msra.mxu0 0
        %2219 = vmatprep.subr.bf16.mxu0 0
        %2220 = vmatpush2.bf16.msra.mxu0 0
        %2221 = vmatprep.subr.bf16.mxu0 0
        %2222 = vmatpush2.bf16.msra.mxu0 0
        %2223 = vmatprep.subr.bf16.mxu0 0
        %2224 = vmatpush2.bf16.msra.mxu0 0
        %2225 = vmatprep.subr.bf16.mxu0 0
        %2226 = vmatpush2.bf16.msra.mxu0 0
        %2227 = vmatprep.subr.bf16.mxu0 0
        %2228 = vmatpush2.bf16.msra.mxu0 0
        %2229 = vmatprep.mubr.bf16.mxu0 0
        %2230 = vmatmul.mubr.bf16.gmra.mxu0 %v2150
        %v2231 = vpop.f32.mrf.mxu0
        %v2232 = vadd.f32 0.0, %v2231
        %v2233 = vpop.f32.mrf.mxu0
        %v2234 = vpop.f32.mrf.mxu0
        %v2235 = vadd.f32 0.0, %v2234
        %v2236 = vpop.f32.mrf.mxu0
        %2237 = vmatprep.mubr.bf16.mxu0 0
        %2238 = vmatmul.mubr.bf16.gmra.mxu0 %v2153
        %v2239 = vpop.f32.mrf.mxu0
        %v2240 = vadd.f32 0.0, %v2239
        %v2241 = vpop.f32.mrf.mxu0
        %v2242 = vpop.f32.mrf.mxu0
        %v2243 = vadd.f32 0.0, %v2242
        %v2244 = vpop.f32.mrf.mxu0
        %2245 = vmatprep.mubr.bf16.mxu0 0
        %2246 = vmatmul.mubr.bf16.gmra.mxu0 %v2156
        %v2247 = vpop.f32.mrf.mxu0
        %v2248 = vadd.f32 0.0, %v2247
        %v2249 = vpop.f32.mrf.mxu0
        %v2250 = vpop.f32.mrf.mxu0
        %v2251 = vadd.f32 0.0, %v2250
        %v2252 = vpop.f32.mrf.mxu0
        %2253 = vmatprep.mubr.bf16.mxu0 0
        %2254 = vmatmul.mubr.bf16.gmra.mxu0 %v2159
        %v2255 = vpop.f32.mrf.mxu0
        %v2256 = vadd.f32 0.0, %v2255
        %v2257 = vpop.f32.mrf.mxu0
        %v2258 = vpop.f32.mrf.mxu0
        %v2259 = vadd.f32 0.0, %v2258
        %v2260 = vpop.f32.mrf.mxu0
        %2261 = vmatprep.mubr.bf16.mxu0 0
        %2262 = vmatmul.mubr.bf16.gmra.mxu0 %v2162
        %v2263 = vpop.f32.mrf.mxu0
        %v2264 = vadd.f32 0.0, %v2263
        %v2265 = vpop.f32.mrf.mxu0
        %v2266 = vpop.f32.mrf.mxu0
        %v2267 = vadd.f32 0.0, %v2266
        %v2268 = vpop.f32.mrf.mxu0
        %2269 = vmatprep.mubr.bf16.mxu0 0
        %2270 = vmatmul.mubr.bf16.gmra.mxu0 %v2165
        %v2271 = vpop.f32.mrf.mxu0
        %v2272 = vadd.f32 0.0, %v2271
        %v2273 = vpop.f32.mrf.mxu0
        %v2274 = vpop.f32.mrf.mxu0
        %v2275 = vadd.f32 0.0, %v2274
        %v2276 = vpop.f32.mrf.mxu0
        %2277 = vmatprep.mubr.bf16.mxu0 0
        %2278 = vmatmul.mubr.bf16.gmra.mxu0 %v2168
        %v2279 = vpop.f32.mrf.mxu0
        %v2280 = vadd.f32 0.0, %v2279
        %v2281 = vpop.f32.mrf.mxu0
        %v2282 = vpop.f32.mrf.mxu0
        %v2283 = vadd.f32 0.0, %v2282
        %v2284 = vpop.f32.mrf.mxu0
        %2285 = vmatprep.mubr.bf16.mxu0 0
        %2286 = vmatmul.mubr.bf16.gmra.mxu0 %v2171
        %v2287 = vpop.f32.mrf.mxu0
        %v2288 = vadd.f32 0.0, %v2287
        %v2289 = vpop.f32.mrf.mxu0
        %v2290 = vpop.f32.mrf.mxu0
        %v2291 = vadd.f32 0.0, %v2290
        %v2292 = vpop.f32.mrf.mxu0
        %2293 = vmatprep.mubr.bf16.mxu0 0
        %2294 = vmatmul.mubr.bf16.gmra.mxu0 %v2174
        %v2295 = vpop.f32.mrf.mxu0
        %v2296 = vadd.f32 0.0, %v2295
        %v2297 = vpop.f32.mrf.mxu0
        %v2298 = vpop.f32.mrf.mxu0
        %v2299 = vadd.f32 0.0, %v2298
        %v2300 = vpop.f32.mrf.mxu0
        %2301 = vmatprep.mubr.bf16.mxu0 0
        %2302 = vmatmul.mubr.bf16.gmra.mxu0 %v2177
        %v2303 = vpop.f32.mrf.mxu0
        %v2304 = vadd.f32 0.0, %v2303
        %v2305 = vpop.f32.mrf.mxu0
        %v2306 = vpop.f32.mrf.mxu0
        %v2307 = vadd.f32 0.0, %v2306
        %v2308 = vpop.f32.mrf.mxu0
        %2309 = vmatprep.mubr.bf16.mxu0 0
        %2310 = vmatmul.mubr.bf16.gmra.mxu0 %v2180
        %v2311 = vpop.f32.mrf.mxu0
        %v2312 = vadd.f32 0.0, %v2311
        %v2313 = vpop.f32.mrf.mxu0
        %v2314 = vpop.f32.mrf.mxu0
        %v2315 = vadd.f32 0.0, %v2314
        %v2316 = vpop.f32.mrf.mxu0
        %2317 = vmatprep.mubr.bf16.mxu0 0
        %2318 = vmatmul.mubr.bf16.gmra.mxu0 %v2183
        %v2319 = vpop.f32.mrf.mxu0
        %v2320 = vadd.f32 0.0, %v2319
        %v2321 = vpop.f32.mrf.mxu0
        %v2322 = vpop.f32.mrf.mxu0
        %v2323 = vadd.f32 0.0, %v2322
        %v2324 = vpop.f32.mrf.mxu0
        %2325 = vmatprep.mubr.bf16.mxu0 0
        %2326 = vmatmul.mubr.bf16.gmra.mxu0 %v2186
        %v2327 = vpop.f32.mrf.mxu0
        %v2328 = vadd.f32 0.0, %v2327
        %v2329 = vpop.f32.mrf.mxu0
        %v2330 = vpop.f32.mrf.mxu0
        %v2331 = vadd.f32 0.0, %v2330
        %v2332 = vpop.f32.mrf.mxu0
        %2333 = vmatprep.mubr.bf16.mxu0 0
        %2334 = vmatmul.mubr.bf16.gmra.mxu0 %v2189
        %v2335 = vpop.f32.mrf.mxu0
        %v2336 = vadd.f32 0.0, %v2335
        %v2337 = vpop.f32.mrf.mxu0
        %v2338 = vpop.f32.mrf.mxu0
        %v2339 = vadd.f32 0.0, %v2338
        %v2340 = vpop.f32.mrf.mxu0
        %2341 = vmatprep.mubr.bf16.mxu0 0
        %2342 = vmatmul.mubr.bf16.gmra.mxu0 %v2192
        %v2343 = vpop.f32.mrf.mxu0
        %v2344 = vadd.f32 0.0, %v2343
        %v2345 = vpop.f32.mrf.mxu0
        %v2346 = vpop.f32.mrf.mxu0
        %v2347 = vadd.f32 0.0, %v2346
        %v2348 = vpop.f32.mrf.mxu0
        %2349 = vmatprep.mubr.bf16.mxu0 0
        %2350 = vmatmul.mubr.bf16.gmra.mxu0 %v2195
        %v2351 = vpop.f32.mrf.mxu0
        %v2352 = vadd.f32 0.0, %v2351
        %v2353 = vpop.f32.mrf.mxu0
        %v2354 = vpop.f32.mrf.mxu0
        %v2355 = vadd.f32 0.0, %v2354
        %v2356 = vpop.f32.mrf.mxu0
        %2357 = vdwg.mxu0
        %v2391 = vunpack.c.l.b16 %v2014
        %v2392 = vunpack.c.l.b16 %v2015
        %v2393 = vunpack.c.l.b16 %v2016
        %v2394 = vunpack.c.l.b16 %v2017
        %v2395 = vunpack.c.l.b16 %v2018
        %v2396 = vunpack.c.l.b16 %v2019
        %v2397 = vunpack.c.l.b16 %v2020
        %v2398 = vunpack.c.l.b16 %v2021
        %v2399 = vunpack.c.l.b16 %v2022
        %v2400 = vunpack.c.l.b16 %v2023
        %v2401 = vunpack.c.l.b16 %v2024
        %v2402 = vunpack.c.l.b16 %v2025
        %v2403 = vunpack.c.l.b16 %v2026
        %v2404 = vunpack.c.l.b16 %v2027
        %v2405 = vunpack.c.l.b16 %v2028
        %v2406 = vunpack.c.l.b16 %v2029
        %v2407 = vunpack.c.l.b16 %v2030
        %v2408 = vunpack.c.l.b16 %v2031
        %v2409 = vunpack.c.l.b16 %v2032
        %v2410 = vunpack.c.l.b16 %v2033
        %v2411 = vunpack.c.l.b16 %v2034
        %v2412 = vunpack.c.l.b16 %v2035
        %v2413 = vunpack.c.l.b16 %v2036
        %v2414 = vunpack.c.l.b16 %v2037
        %v2415 = vunpack.c.l.b16 %v2038
        %v2416 = vunpack.c.l.b16 %v2039
        %v2417 = vunpack.c.l.b16 %v2040
        %v2418 = vunpack.c.l.b16 %v2041
        %v2419 = vunpack.c.l.b16 %v2042
        %v2420 = vunpack.c.l.b16 %v2043
        %v2421 = vunpack.c.l.b16 %v2044
        %v2422 = vunpack.c.l.b16 %v2045
        %v2423 = vunpack.c.l.b16 %v2046
        %v2424 = vpack.c.b16 %v2392, %v2391
        %v2425 = vpack.c.b16 %v2394, %v2393
        %v2426 = vpack.c.b16 %v2396, %v2395
        %v2427 = vpack.c.b16 %v2398, %v2397
        %v2428 = vpack.c.b16 %v2400, %v2399
        %v2429 = vpack.c.b16 %v2402, %v2401
        %v2430 = vpack.c.b16 %v2404, %v2403
        %v2431 = vpack.c.b16 %v2406, %v2405
        %v2432 = vpack.c.b16 %v2408, %v2407
        %v2433 = vpack.c.b16 %v2410, %v2409
        %v2434 = vpack.c.b16 %v2412, %v2411
        %v2435 = vpack.c.b16 %v2414, %v2413
        %v2436 = vpack.c.b16 %v2416, %v2415
        %v2437 = vpack.c.b16 %v2418, %v2417
        %v2438 = vpack.c.b16 %v2420, %v2419
        %v2439 = vpack.c.b16 %v2422, %v2421
        %v2440 = vpack.c.b16 %v2423, %v2423
        %vm2441 = vsmask.f32 4352
        %v2443 = vshrl.u32 %v2424, 16
        %v2445 = vrot.slane %v2443, 3
        %v2446 = vshll.u32 %v2424, 16
        %v2448 = vrot.slane %v2446, 4
        %v2449 = vor.u32 %v2445, %v2448
        %v2451 = vshrl.u32 %v2425, 16
        %v2453 = vrot.slane %v2451, 3
        %v2454 = vshll.u32 %v2425, 16
        %v2456 = vrot.slane %v2454, 4
        %v2457 = vor.u32 %v2453, %v2456
        %v2458 = vsel %vm2441, %v2449, %v2457
        %v2460 = vshrl.u32 %v2426, 16
        %v2462 = vrot.slane %v2460, 3
        %v2463 = vshll.u32 %v2426, 16
        %v2465 = vrot.slane %v2463, 4
        %v2466 = vor.u32 %v2462, %v2465
        %v2467 = vsel %vm2441, %v2457, %v2466
        %v2469 = vshrl.u32 %v2427, 16
        %v2471 = vrot.slane %v2469, 3
        %v2472 = vshll.u32 %v2427, 16
        %v2474 = vrot.slane %v2472, 4
        %v2475 = vor.u32 %v2471, %v2474
        %v2476 = vsel %vm2441, %v2466, %v2475
        %v2478 = vshrl.u32 %v2428, 16
        %v2480 = vrot.slane %v2478, 3
        %v2481 = vshll.u32 %v2428, 16
        %v2483 = vrot.slane %v2481, 4
        %v2484 = vor.u32 %v2480, %v2483
        %v2485 = vsel %vm2441, %v2475, %v2484
        %v2487 = vshrl.u32 %v2429, 16
        %v2489 = vrot.slane %v2487, 3
        %v2490 = vshll.u32 %v2429, 16
        %v2492 = vrot.slane %v2490, 4
        %v2493 = vor.u32 %v2489, %v2492
        %v2494 = vsel %vm2441, %v2484, %v2493
        %v2496 = vshrl.u32 %v2430, 16
        %v2498 = vrot.slane %v2496, 3
        %v2499 = vshll.u32 %v2430, 16
        %v2501 = vrot.slane %v2499, 4
        %v2502 = vor.u32 %v2498, %v2501
        %v2503 = vsel %vm2441, %v2493, %v2502
        %v2505 = vshrl.u32 %v2431, 16
        %v2507 = vrot.slane %v2505, 3
        %v2508 = vshll.u32 %v2431, 16
        %v2510 = vrot.slane %v2508, 4
        %v2511 = vor.u32 %v2507, %v2510
        %v2512 = vsel %vm2441, %v2502, %v2511
        %v2514 = vshrl.u32 %v2432, 16
        %v2516 = vrot.slane %v2514, 3
        %v2517 = vshll.u32 %v2432, 16
        %v2519 = vrot.slane %v2517, 4
        %v2520 = vor.u32 %v2516, %v2519
        %v2521 = vsel %vm2441, %v2511, %v2520
        %v2523 = vshrl.u32 %v2433, 16
        %v2525 = vrot.slane %v2523, 3
        %v2526 = vshll.u32 %v2433, 16
        %v2528 = vrot.slane %v2526, 4
        %v2529 = vor.u32 %v2525, %v2528
        %v2530 = vsel %vm2441, %v2520, %v2529
        %v2532 = vshrl.u32 %v2434, 16
        %v2534 = vrot.slane %v2532, 3
        %v2535 = vshll.u32 %v2434, 16
        %v2537 = vrot.slane %v2535, 4
        %v2538 = vor.u32 %v2534, %v2537
        %v2539 = vsel %vm2441, %v2529, %v2538
        %v2541 = vshrl.u32 %v2435, 16
        %v2543 = vrot.slane %v2541, 3
        %v2544 = vshll.u32 %v2435, 16
        %v2546 = vrot.slane %v2544, 4
        %v2547 = vor.u32 %v2543, %v2546
        %v2548 = vsel %vm2441, %v2538, %v2547
        %v2550 = vshrl.u32 %v2436, 16
        %v2552 = vrot.slane %v2550, 3
        %v2553 = vshll.u32 %v2436, 16
        %v2555 = vrot.slane %v2553, 4
        %v2556 = vor.u32 %v2552, %v2555
        %v2557 = vsel %vm2441, %v2547, %v2556
        %v2559 = vshrl.u32 %v2437, 16
        %v2561 = vrot.slane %v2559, 3
        %v2562 = vshll.u32 %v2437, 16
        %v2564 = vrot.slane %v2562, 4
        %v2565 = vor.u32 %v2561, %v2564
        %v2566 = vsel %vm2441, %v2556, %v2565
        %v2568 = vshrl.u32 %v2438, 16
        %v2570 = vrot.slane %v2568, 3
        %v2571 = vshll.u32 %v2438, 16
        %v2573 = vrot.slane %v2571, 4
        %v2574 = vor.u32 %v2570, %v2573
        %v2575 = vsel %vm2441, %v2565, %v2574
        %v2577 = vshrl.u32 %v2439, 16
        %v2579 = vrot.slane %v2577, 3
        %v2580 = vshll.u32 %v2439, 16
        %v2582 = vrot.slane %v2580, 4
        %v2583 = vor.u32 %v2579, %v2582
        %v2584 = vsel %vm2441, %v2574, %v2583
        %v2586 = vshrl.u32 %v2440, 16
        %v2588 = vrot.slane %v2586, 3
        %v2589 = vshll.u32 %v2440, 16
        %v2591 = vrot.slane %v2589, 4
        %v2592 = vor.u32 %v2588, %v2591
        %v2593 = vsel %vm2441, %v2583, %v2592
        %v2598 = vunpack.c.l.b16 %v2047
        %v2599 = vunpack.c.l.b16 %v2048
        %v2600 = vunpack.c.l.b16 %v2049
        %v2601 = vunpack.c.l.b16 %v2050
        %v2602 = vpack.c.b16 %v2599, %v2598
        %v2603 = vpack.c.b16 %v2601, %v2600
        %v2607 = vsel %vm2148, %v2458, 0
        %v2610 = vsel %vm2148, %v2467, 0
        %v2613 = vsel %vm2148, %v2476, 0
        %v2616 = vsel %vm2148, %v2485, 0
        %v2619 = vsel %vm2148, %v2494, 0
        %v2622 = vsel %vm2148, %v2503, 0
        %v2625 = vsel %vm2148, %v2512, 0
        %v2628 = vsel %vm2148, %v2521, 0
        %v2631 = vsel %vm2148, %v2530, 0
        %v2634 = vsel %vm2148, %v2539, 0
        %v2637 = vsel %vm2148, %v2548, 0
        %v2640 = vsel %vm2148, %v2557, 0
        %v2643 = vsel %vm2148, %v2566, 0
        %v2646 = vsel %vm2148, %v2575, 0
        %v2649 = vsel %vm2148, %v2584, 0
        %v2652 = vsel %vm2148, %v2593, 0
        %2654 = vmatprep.subr.bf16.mxu0 0
        %2655 = vmatpush1.bf16.msra.mxu0 0
        %2656 = vmatprep.subr.bf16.mxu0 0
        %2657 = vmatpush1.bf16.msra.mxu0 0
        %2658 = vmatprep.subr.bf16.mxu0 0
        %2659 = vmatpush1.bf16.msra.mxu0 0
        %2660 = vmatprep.subr.bf16.mxu0 0
        %2661 = vmatpush1.bf16.msra.mxu0 0
        %2662 = vmatprep.subr.bf16.mxu0 0
        %2663 = vmatpush1.bf16.msra.mxu0 0
        %2664 = vmatprep.subr.bf16.mxu0 0
        %2665 = vmatpush1.bf16.msra.mxu0 0
        %2666 = vmatprep.subr.bf16.mxu0 0
        %2667 = vmatpush1.bf16.msra.mxu0 %v2603
        %2668 = vmatprep.subr.bf16.mxu0 0
        %2669 = vmatpush1.bf16.msra.mxu0 %v2602
        %2670 = vmatprep.subr.bf16.mxu0 0
        %2671 = vmatpush2.bf16.msra.mxu0 0
        %2672 = vmatprep.subr.bf16.mxu0 0
        %2673 = vmatpush2.bf16.msra.mxu0 0
        %2674 = vmatprep.subr.bf16.mxu0 0
        %2675 = vmatpush2.bf16.msra.mxu0 0
        %2676 = vmatprep.subr.bf16.mxu0 0
        %2677 = vmatpush2.bf16.msra.mxu0 0
        %2678 = vmatprep.subr.bf16.mxu0 0
        %2679 = vmatpush2.bf16.msra.mxu0 0
        %2680 = vmatprep.subr.bf16.mxu0 0
        %2681 = vmatpush2.bf16.msra.mxu0 0
        %2682 = vmatprep.subr.bf16.mxu0 0
        %2683 = vmatpush2.bf16.msra.mxu0 0
        %2684 = vmatprep.subr.bf16.mxu0 0
        %2685 = vmatpush2.bf16.msra.mxu0 0
        %2686 = vmatprep.mubr.bf16.mxu0 0
        %2687 = vmatmul.mubr.bf16.gmra.mxu0 %v2607
        %v2688 = vpop.f32.mrf.mxu0
        %v2689 = vadd.f32 %v2232, %v2688
        %v2690 = vpop.f32.mrf.mxu0
        %v2691 = vpop.f32.mrf.mxu0
        %v2692 = vadd.f32 %v2235, %v2691
        %v2693 = vpop.f32.mrf.mxu0
        %2694 = vmatprep.mubr.bf16.mxu0 0
        %2695 = vmatmul.mubr.bf16.gmra.mxu0 %v2610
        %v2696 = vpop.f32.mrf.mxu0
        %v2697 = vadd.f32 %v2240, %v2696
        %v2698 = vpop.f32.mrf.mxu0
        %v2699 = vpop.f32.mrf.mxu0
        %v2700 = vadd.f32 %v2243, %v2699
        %v2701 = vpop.f32.mrf.mxu0
        %2702 = vmatprep.mubr.bf16.mxu0 0
        %2703 = vmatmul.mubr.bf16.gmra.mxu0 %v2613
        %v2704 = vpop.f32.mrf.mxu0
        %v2705 = vadd.f32 %v2248, %v2704
        %v2706 = vpop.f32.mrf.mxu0
        %v2707 = vpop.f32.mrf.mxu0
        %v2708 = vadd.f32 %v2251, %v2707
        %v2709 = vpop.f32.mrf.mxu0
        %2710 = vmatprep.mubr.bf16.mxu0 0
        %2711 = vmatmul.mubr.bf16.gmra.mxu0 %v2616
        %v2712 = vpop.f32.mrf.mxu0
        %v2713 = vadd.f32 %v2256, %v2712
        %v2714 = vpop.f32.mrf.mxu0
        %v2715 = vpop.f32.mrf.mxu0
        %v2716 = vadd.f32 %v2259, %v2715
        %v2717 = vpop.f32.mrf.mxu0
        %2718 = vmatprep.mubr.bf16.mxu0 0
        %2719 = vmatmul.mubr.bf16.gmra.mxu0 %v2619
        %v2720 = vpop.f32.mrf.mxu0
        %v2721 = vadd.f32 %v2264, %v2720
        %v2722 = vpop.f32.mrf.mxu0
        %v2723 = vpop.f32.mrf.mxu0
        %v2724 = vadd.f32 %v2267, %v2723
        %v2725 = vpop.f32.mrf.mxu0
        %2726 = vmatprep.mubr.bf16.mxu0 0
        %2727 = vmatmul.mubr.bf16.gmra.mxu0 %v2622
        %v2728 = vpop.f32.mrf.mxu0
        %v2729 = vadd.f32 %v2272, %v2728
        %v2730 = vpop.f32.mrf.mxu0
        %v2731 = vpop.f32.mrf.mxu0
        %v2732 = vadd.f32 %v2275, %v2731
        %v2733 = vpop.f32.mrf.mxu0
        %2734 = vmatprep.mubr.bf16.mxu0 0
        %2735 = vmatmul.mubr.bf16.gmra.mxu0 %v2625
        %v2736 = vpop.f32.mrf.mxu0
        %v2737 = vadd.f32 %v2280, %v2736
        %v2738 = vpop.f32.mrf.mxu0
        %v2739 = vpop.f32.mrf.mxu0
        %v2740 = vadd.f32 %v2283, %v2739
        %v2741 = vpop.f32.mrf.mxu0
        %2742 = vmatprep.mubr.bf16.mxu0 0
        %2743 = vmatmul.mubr.bf16.gmra.mxu0 %v2628
        %v2744 = vpop.f32.mrf.mxu0
        %v2745 = vadd.f32 %v2288, %v2744
        %v2746 = vpop.f32.mrf.mxu0
        %v2747 = vpop.f32.mrf.mxu0
        %v2748 = vadd.f32 %v2291, %v2747
        %v2749 = vpop.f32.mrf.mxu0
        %2750 = vmatprep.mubr.bf16.mxu0 0
        %2751 = vmatmul.mubr.bf16.gmra.mxu0 %v2631
        %v2752 = vpop.f32.mrf.mxu0
        %v2753 = vadd.f32 %v2296, %v2752
        %v2754 = vpop.f32.mrf.mxu0
        %v2755 = vpop.f32.mrf.mxu0
        %v2756 = vadd.f32 %v2299, %v2755
        %v2757 = vpop.f32.mrf.mxu0
        %2758 = vmatprep.mubr.bf16.mxu0 0
        %2759 = vmatmul.mubr.bf16.gmra.mxu0 %v2634
        %v2760 = vpop.f32.mrf.mxu0
        %v2761 = vadd.f32 %v2304, %v2760
        %v2762 = vpop.f32.mrf.mxu0
        %v2763 = vpop.f32.mrf.mxu0
        %v2764 = vadd.f32 %v2307, %v2763
        %v2765 = vpop.f32.mrf.mxu0
        %2766 = vmatprep.mubr.bf16.mxu0 0
        %2767 = vmatmul.mubr.bf16.gmra.mxu0 %v2637
        %v2768 = vpop.f32.mrf.mxu0
        %v2769 = vadd.f32 %v2312, %v2768
        %v2770 = vpop.f32.mrf.mxu0
        %v2771 = vpop.f32.mrf.mxu0
        %v2772 = vadd.f32 %v2315, %v2771
        %v2773 = vpop.f32.mrf.mxu0
        %2774 = vmatprep.mubr.bf16.mxu0 0
        %2775 = vmatmul.mubr.bf16.gmra.mxu0 %v2640
        %v2776 = vpop.f32.mrf.mxu0
        %v2777 = vadd.f32 %v2320, %v2776
        %v2778 = vpop.f32.mrf.mxu0
        %v2779 = vpop.f32.mrf.mxu0
        %v2780 = vadd.f32 %v2323, %v2779
        %v2781 = vpop.f32.mrf.mxu0
        %2782 = vmatprep.mubr.bf16.mxu0 0
        %2783 = vmatmul.mubr.bf16.gmra.mxu0 %v2643
        %v2784 = vpop.f32.mrf.mxu0
        %v2785 = vadd.f32 %v2328, %v2784
        %v2786 = vpop.f32.mrf.mxu0
        %v2787 = vpop.f32.mrf.mxu0
        %v2788 = vadd.f32 %v2331, %v2787
        %v2789 = vpop.f32.mrf.mxu0
        %2790 = vmatprep.mubr.bf16.mxu0 0
        %2791 = vmatmul.mubr.bf16.gmra.mxu0 %v2646
        %v2792 = vpop.f32.mrf.mxu0
        %v2793 = vadd.f32 %v2336, %v2792
        %v2794 = vpop.f32.mrf.mxu0
        %v2795 = vpop.f32.mrf.mxu0
        %v2796 = vadd.f32 %v2339, %v2795
        %v2797 = vpop.f32.mrf.mxu0
        %2798 = vmatprep.mubr.bf16.mxu0 0
        %2799 = vmatmul.mubr.bf16.gmra.mxu0 %v2649
        %v2800 = vpop.f32.mrf.mxu0
        %v2801 = vadd.f32 %v2344, %v2800
        %v2802 = vpop.f32.mrf.mxu0
        %v2803 = vpop.f32.mrf.mxu0
        %v2804 = vadd.f32 %v2347, %v2803
        %v2805 = vpop.f32.mrf.mxu0
        %2806 = vmatprep.mubr.bf16.mxu0 0
        %2807 = vmatmul.mubr.bf16.gmra.mxu0 %v2652
        %v2808 = vpop.f32.mrf.mxu0
        %v2809 = vadd.f32 %v2352, %v2808
        %v2810 = vpop.f32.mrf.mxu0
        %v2811 = vpop.f32.mrf.mxu0
        %v2812 = vadd.f32 %v2355, %v2811
        %v2813 = vpop.f32.mrf.mxu0
        %2814 = vdwg.mxu0
        %v2815 = vld [vmem:[#allocation2 + $0x8] sm:$0xf]
        %v2816 = vld [vmem:[#allocation2 + $0xc] sm:$0xf]
        %v2817 = vld [vmem:[#allocation2 + $0x10] sm:$0xf]
        %v2818 = vld [vmem:[#allocation2 + $0x14] sm:$0xf]
        %v2819 = vld [vmem:[#allocation2 + $0x18] sm:$0xf]
        %v2820 = vld [vmem:[#allocation2 + $0x1c] sm:$0xf]
        %v2821 = vld [vmem:[#allocation2 + $0x20] sm:$0xf]
        %v2822 = vld [vmem:[#allocation2 + $0x24] sm:$0xf]
        %v2823 = vld [vmem:[#allocation2 + $0x28] sm:$0xf]
        %v2824 = vld [vmem:[#allocation2 + $0x2c] sm:$0xf]
        %v2825 = vld [vmem:[#allocation2 + $0x30] sm:$0xf]
        %v2826 = vld [vmem:[#allocation2 + $0x34] sm:$0xf]
        %v2827 = vld [vmem:[#allocation2 + $0x38] sm:$0xf]
        %v2828 = vld [vmem:[#allocation2 + $0x3c] sm:$0xf]
        %v2829 = vld [vmem:[#allocation2 + $0x40] sm:$0xf]
        %v2830 = vld [vmem:[#allocation2 + $0x44] sm:$0xf]
        %v2831 = vld [vmem:[#allocation2 + $0x48] sm:$0xf]
        %v2832 = vld [vmem:[#allocation2 + $0x4c] sm:$0xf]
        %v2833 = vld [vmem:[#allocation2 + $0x50] sm:$0xf]
        %v2834 = vld [vmem:[#allocation2 + $0x54] sm:$0xf]
        %v2835 = vld [vmem:[#allocation2 + $0x58] sm:$0xf]
        %v2836 = vld [vmem:[#allocation2 + $0x5c] sm:$0xf]
        %v2837 = vld [vmem:[#allocation2 + $0x60] sm:$0xf]
        %v2838 = vld [vmem:[#allocation2 + $0x64] sm:$0xf]
        %v2839 = vld [vmem:[#allocation2 + $0x68] sm:$0xf]
        %v2840 = vld [vmem:[#allocation2 + $0x6c] sm:$0xf]
        %v2841 = vld [vmem:[#allocation2 + $0x70] sm:$0xf]
        %v2842 = vld [vmem:[#allocation2 + $0x74] sm:$0xf]
        %v2843 = vld [vmem:[#allocation2 + $0x78] sm:$0xf]
        %v2844 = vld [vmem:[#allocation2 + $0x7c] sm:$0xf]
        %v2845 = vld [vmem:[#allocation2 + $0x80] sm:$0xf]
        %v2846 = vld [vmem:[#allocation2 + $0x84] sm:$0xf]
        %v2847 = vld [vmem:[#allocation2 + $0x88] sm:$0x1]
        %v2848 = vsel %vm1466, 1, 0
        %v2849 = vsel %vm1467, 1, 0
        %v2850 = vsel %vm1468, 1, 0
        %v2851 = vsel %vm1469, 1, 0
        %v2852 = vsel %vm1470, 1, 0
        %v2853 = vsel %vm1471, 1, 0
        %v2854 = vsel %vm1472, 1, 0
        %v2855 = vsel %vm1473, 1, 0
        %v2856 = vsel %vm1474, 1, 0
        %v2857 = vsel %vm1475, 1, 0
        %v2858 = vsel %vm1476, 1, 0
        %v2859 = vsel %vm1477, 1, 0
        %v2860 = vsel %vm1478, 1, 0
        %v2861 = vsel %vm1479, 1, 0
        %v2862 = vsel %vm1480, 1, 0
        %v2863 = vsel %vm1481, 1, 0
        %v2864 = vsel %vm1482, 1, 0
        %v2865 = vsel %vm1483, 1, 0
        %v2866 = vsel %vm1484, 1, 0
        %v2867 = vsel %vm1485, 1, 0
        %v2868 = vsel %vm1486, 1, 0
        %v2869 = vsel %vm1487, 1, 0
        %v2870 = vsel %vm1488, 1, 0
        %v2871 = vsel %vm1489, 1, 0
        %v2872 = vsel %vm1490, 1, 0
        %v2873 = vsel %vm1491, 1, 0
        %v2874 = vsel %vm1492, 1, 0
        %v2875 = vsel %vm1493, 1, 0
        %v2876 = vsel %vm1494, 1, 0
        %v2877 = vsel %vm1495, 1, 0
        %v2878 = vsel %vm1496, 1, 0
        %v2879 = vsel %vm1497, 1, 0
        %vm2880 = vcmp.eq.s32.totalorder %v2848, 1
        %vm2881 = vcmp.eq.s32.totalorder %v2849, 1
        %vm2882 = vcmp.eq.s32.totalorder %v2850, 1
        %vm2883 = vcmp.eq.s32.totalorder %v2851, 1
        %vm2884 = vcmp.eq.s32.totalorder %v2852, 1
        %vm2885 = vcmp.eq.s32.totalorder %v2853, 1
        %vm2886 = vcmp.eq.s32.totalorder %v2854, 1
        %vm2887 = vcmp.eq.s32.totalorder %v2855, 1
        %vm2888 = vcmp.eq.s32.totalorder %v2856, 1
        %vm2889 = vcmp.eq.s32.totalorder %v2857, 1
        %vm2890 = vcmp.eq.s32.totalorder %v2858, 1
        %vm2891 = vcmp.eq.s32.totalorder %v2859, 1
        %vm2892 = vcmp.eq.s32.totalorder %v2860, 1
        %vm2893 = vcmp.eq.s32.totalorder %v2861, 1
        %vm2894 = vcmp.eq.s32.totalorder %v2862, 1
        %vm2895 = vcmp.eq.s32.totalorder %v2863, 1
        %vm2896 = vcmp.eq.s32.totalorder %v2864, 1
        %vm2897 = vcmp.eq.s32.totalorder %v2865, 1
        %vm2898 = vcmp.eq.s32.totalorder %v2866, 1
        %vm2899 = vcmp.eq.s32.totalorder %v2867, 1
        %vm2900 = vcmp.eq.s32.totalorder %v2868, 1
        %vm2901 = vcmp.eq.s32.totalorder %v2869, 1
        %vm2902 = vcmp.eq.s32.totalorder %v2870, 1
        %vm2903 = vcmp.eq.s32.totalorder %v2871, 1
        %vm2904 = vcmp.eq.s32.totalorder %v2872, 1
        %vm2905 = vcmp.eq.s32.totalorder %v2873, 1
        %vm2906 = vcmp.eq.s32.totalorder %v2874, 1
        %vm2907 = vcmp.eq.s32.totalorder %v2875, 1
        %vm2908 = vcmp.eq.s32.totalorder %v2876, 1
        %vm2909 = vcmp.eq.s32.totalorder %v2877, 1
        %vm2910 = vcmp.eq.s32.totalorder %v2878, 1
        %vm2911 = vcmp.eq.s32.totalorder %v2879, 1
        %vm2912 = vmpackc.low %vm2880, %vm2880
        %vm2913 = vmpackc.low %vm2881, %vm2881
        %vm2914 = vmpackc.low %vm2882, %vm2882
        %vm2915 = vmpackc.low %vm2883, %vm2883
        %vm2916 = vmpackc.low %vm2884, %vm2884
        %vm2917 = vmpackc.low %vm2885, %vm2885
        %vm2918 = vmpackc.low %vm2886, %vm2886
        %vm2919 = vmpackc.low %vm2887, %vm2887
        %vm2920 = vmpackc.low %vm2888, %vm2888
        %vm2921 = vmpackc.low %vm2889, %vm2889
        %vm2922 = vmpackc.low %vm2890, %vm2890
        %vm2923 = vmpackc.low %vm2891, %vm2891
        %vm2924 = vmpackc.low %vm2892, %vm2892
        %vm2925 = vmpackc.low %vm2893, %vm2893
        %vm2926 = vmpackc.low %vm2894, %vm2894
        %vm2927 = vmpackc.low %vm2895, %vm2895
        %vm2928 = vmpackc.low %vm2896, %vm2896
        %vm2929 = vmpackc.low %vm2897, %vm2897
        %vm2930 = vmpackc.low %vm2898, %vm2898
        %vm2931 = vmpackc.low %vm2899, %vm2899
        %vm2932 = vmpackc.low %vm2900, %vm2900
        %vm2933 = vmpackc.low %vm2901, %vm2901
        %vm2934 = vmpackc.low %vm2902, %vm2902
        %vm2935 = vmpackc.low %vm2903, %vm2903
        %vm2936 = vmpackc.low %vm2904, %vm2904
        %vm2937 = vmpackc.low %vm2905, %vm2905
        %vm2938 = vmpackc.low %vm2906, %vm2906
        %vm2939 = vmpackc.low %vm2907, %vm2907
        %vm2940 = vmpackc.low %vm2908, %vm2908
        %vm2941 = vmpackc.low %vm2909, %vm2909
        %vm2942 = vmpackc.low %vm2910, %vm2910
        %vm2943 = vmpackc.low %vm2911, %vm2911
        %v2944 = vsel %vm2912, 65537, 0
        %v2945 = vsel %vm2913, 65537, 0
        %v2946 = vsel %vm2914, 65537, 0
        %v2947 = vsel %vm2915, 65537, 0
        %v2948 = vsel %vm2916, 65537, 0
        %v2949 = vsel %vm2917, 65537, 0
        %v2950 = vsel %vm2918, 65537, 0
        %v2951 = vsel %vm2919, 65537, 0
        %v2952 = vsel %vm2920, 65537, 0
        %v2953 = vsel %vm2921, 65537, 0
        %v2954 = vsel %vm2922, 65537, 0
        %v2955 = vsel %vm2923, 65537, 0
        %v2956 = vsel %vm2924, 65537, 0
        %v2957 = vsel %vm2925, 65537, 0
        %v2958 = vsel %vm2926, 65537, 0
        %v2959 = vsel %vm2927, 65537, 0
        %v2960 = vsel %vm2928, 65537, 0
        %v2961 = vsel %vm2929, 65537, 0
        %v2962 = vsel %vm2930, 65537, 0
        %v2963 = vsel %vm2931, 65537, 0
        %v2964 = vsel %vm2932, 65537, 0
        %v2965 = vsel %vm2933, 65537, 0
        %v2966 = vsel %vm2934, 65537, 0
        %v2967 = vsel %vm2935, 65537, 0
        %v2968 = vsel %vm2936, 65537, 0
        %v2969 = vsel %vm2937, 65537, 0
        %v2970 = vsel %vm2938, 65537, 0
        %v2971 = vsel %vm2939, 65537, 0
        %v2972 = vsel %vm2940, 65537, 0
        %v2973 = vsel %vm2941, 65537, 0
        %v2974 = vsel %vm2942, 65537, 0
        %v2975 = vsel %vm2943, 65537, 0
        %vm2976 = vsmask.f32 256
        %vm2977 = vsmask.f32 4368
        %vm2978 = vmor %vm2976, %vm2977
        %v2980 = vshrl.u32 %v2944, 16
        %v2982 = vrot.slane %v2980, 7
        %v2983 = vshll.u32 %v2944, 16
        %v2985 = vor.u32 %v2982, %v2983
        %v2986 = vrot.slane %v2982, 4
        %v2988 = vshrl.u32 %v2945, 16
        %v2990 = vrot.slane %v2988, 7
        %v2991 = vshll.u32 %v2945, 16
        %v2993 = vor.u32 %v2990, %v2991
        %v2994 = vsel %vm2978, %v2986, %v2993
        %v2995 = vrot.slane %v2990, 4
        %v2997 = vshrl.u32 %v2946, 16
        %v2999 = vrot.slane %v2997, 7
        %v3000 = vshll.u32 %v2946, 16
        %v3002 = vor.u32 %v2999, %v3000
        %v3003 = vsel %vm2978, %v2995, %v3002
        %v3004 = vrot.slane %v2999, 4
        %v3006 = vshrl.u32 %v2947, 16
        %v3008 = vrot.slane %v3006, 7
        %v3009 = vshll.u32 %v2947, 16
        %v3011 = vor.u32 %v3008, %v3009
        %v3012 = vsel %vm2978, %v3004, %v3011
        %v3013 = vrot.slane %v3008, 4
        %v3015 = vshrl.u32 %v2948, 16
        %v3017 = vrot.slane %v3015, 7
        %v3018 = vshll.u32 %v2948, 16
        %v3020 = vor.u32 %v3017, %v3018
        %v3021 = vsel %vm2978, %v3013, %v3020
        %v3022 = vrot.slane %v3017, 4
        %v3024 = vshrl.u32 %v2949, 16
        %v3026 = vrot.slane %v3024, 7
        %v3027 = vshll.u32 %v2949, 16
        %v3029 = vor.u32 %v3026, %v3027
        %v3030 = vsel %vm2978, %v3022, %v3029
        %v3031 = vrot.slane %v3026, 4
        %v3033 = vshrl.u32 %v2950, 16
        %v3035 = vrot.slane %v3033, 7
        %v3036 = vshll.u32 %v2950, 16
        %v3038 = vor.u32 %v3035, %v3036
        %v3039 = vsel %vm2978, %v3031, %v3038
        %v3040 = vrot.slane %v3035, 4
        %v3042 = vshrl.u32 %v2951, 16
        %v3044 = vrot.slane %v3042, 7
        %v3045 = vshll.u32 %v2951, 16
        %v3047 = vor.u32 %v3044, %v3045
        %v3048 = vsel %vm2978, %v3040, %v3047
        %v3049 = vrot.slane %v3044, 4
        %v3051 = vshrl.u32 %v2952, 16
        %v3053 = vrot.slane %v3051, 7
        %v3054 = vshll.u32 %v2952, 16
        %v3056 = vor.u32 %v3053, %v3054
        %v3057 = vsel %vm2978, %v3049, %v3056
        %v3058 = vrot.slane %v3053, 4
        %v3060 = vshrl.u32 %v2953, 16
        %v3062 = vrot.slane %v3060, 7
        %v3063 = vshll.u32 %v2953, 16
        %v3065 = vor.u32 %v3062, %v3063
        %v3066 = vsel %vm2978, %v3058, %v3065
        %v3067 = vrot.slane %v3062, 4
        %v3069 = vshrl.u32 %v2954, 16
        %v3071 = vrot.slane %v3069, 7
        %v3072 = vshll.u32 %v2954, 16
        %v3074 = vor.u32 %v3071, %v3072
        %v3075 = vsel %vm2978, %v3067, %v3074
        %v3076 = vrot.slane %v3071, 4
        %v3078 = vshrl.u32 %v2955, 16
        %v3080 = vrot.slane %v3078, 7
        %v3081 = vshll.u32 %v2955, 16
        %v3083 = vor.u32 %v3080, %v3081
        %v3084 = vsel %vm2978, %v3076, %v3083
        %v3085 = vrot.slane %v3080, 4
        %v3087 = vshrl.u32 %v2956, 16
        %v3089 = vrot.slane %v3087, 7
        %v3090 = vshll.u32 %v2956, 16
        %v3092 = vor.u32 %v3089, %v3090
        %v3093 = vsel %vm2978, %v3085, %v3092
        %v3094 = vrot.slane %v3089, 4
        %v3096 = vshrl.u32 %v2957, 16
        %v3098 = vrot.slane %v3096, 7
        %v3099 = vshll.u32 %v2957, 16
        %v3101 = vor.u32 %v3098, %v3099
        %v3102 = vsel %vm2978, %v3094, %v3101
        %v3103 = vrot.slane %v3098, 4
        %v3105 = vshrl.u32 %v2958, 16
        %v3107 = vrot.slane %v3105, 7
        %v3108 = vshll.u32 %v2958, 16
        %v3110 = vor.u32 %v3107, %v3108
        %v3111 = vsel %vm2978, %v3103, %v3110
        %v3112 = vrot.slane %v3107, 4
        %v3114 = vshrl.u32 %v2959, 16
        %v3116 = vrot.slane %v3114, 7
        %v3117 = vshll.u32 %v2959, 16
        %v3119 = vor.u32 %v3116, %v3117
        %v3120 = vsel %vm2978, %v3112, %v3119
        %v3121 = vrot.slane %v3116, 4
        %v3123 = vshrl.u32 %v2960, 16
        %v3125 = vrot.slane %v3123, 7
        %v3126 = vshll.u32 %v2960, 16
        %v3128 = vor.u32 %v3125, %v3126
        %v3129 = vsel %vm2978, %v3121, %v3128
        %v3130 = vrot.slane %v3125, 4
        %v3132 = vshrl.u32 %v2961, 16
        %v3134 = vrot.slane %v3132, 7
        %v3135 = vshll.u32 %v2961, 16
        %v3137 = vor.u32 %v3134, %v3135
        %v3138 = vsel %vm2978, %v3130, %v3137
        %v3139 = vrot.slane %v3134, 4
        %v3141 = vshrl.u32 %v2962, 16
        %v3143 = vrot.slane %v3141, 7
        %v3144 = vshll.u32 %v2962, 16
        %v3146 = vor.u32 %v3143, %v3144
        %v3147 = vsel %vm2978, %v3139, %v3146
        %v3148 = vrot.slane %v3143, 4
        %v3150 = vshrl.u32 %v2963, 16
        %v3152 = vrot.slane %v3150, 7
        %v3153 = vshll.u32 %v2963, 16
        %v3155 = vor.u32 %v3152, %v3153
        %v3156 = vsel %vm2978, %v3148, %v3155
        %v3157 = vrot.slane %v3152, 4
        %v3159 = vshrl.u32 %v2964, 16
        %v3161 = vrot.slane %v3159, 7
        %v3162 = vshll.u32 %v2964, 16
        %v3164 = vor.u32 %v3161, %v3162
        %v3165 = vsel %vm2978, %v3157, %v3164
        %v3166 = vrot.slane %v3161, 4
        %v3168 = vshrl.u32 %v2965, 16
        %v3170 = vrot.slane %v3168, 7
        %v3171 = vshll.u32 %v2965, 16
        %v3173 = vor.u32 %v3170, %v3171
        %v3174 = vsel %vm2978, %v3166, %v3173
        %v3175 = vrot.slane %v3170, 4
        %v3177 = vshrl.u32 %v2966, 16
        %v3179 = vrot.slane %v3177, 7
        %v3180 = vshll.u32 %v2966, 16
        %v3182 = vor.u32 %v3179, %v3180
        %v3183 = vsel %vm2978, %v3175, %v3182
        %v3184 = vrot.slane %v3179, 4
        %v3186 = vshrl.u32 %v2967, 16
        %v3188 = vrot.slane %v3186, 7
        %v3189 = vshll.u32 %v2967, 16
        %v3191 = vor.u32 %v3188, %v3189
        %v3192 = vsel %vm2978, %v3184, %v3191
        %v3193 = vrot.slane %v3188, 4
        %v3195 = vshrl.u32 %v2968, 16
        %v3197 = vrot.slane %v3195, 7
        %v3198 = vshll.u32 %v2968, 16
        %v3200 = vor.u32 %v3197, %v3198
        %v3201 = vsel %vm2978, %v3193, %v3200
        %v3202 = vrot.slane %v3197, 4
        %v3204 = vshrl.u32 %v2969, 16
        %v3206 = vrot.slane %v3204, 7
        %v3207 = vshll.u32 %v2969, 16
        %v3209 = vor.u32 %v3206, %v3207
        %v3210 = vsel %vm2978, %v3202, %v3209
        %v3211 = vrot.slane %v3206, 4
        %v3213 = vshrl.u32 %v2970, 16
        %v3215 = vrot.slane %v3213, 7
        %v3216 = vshll.u32 %v2970, 16
        %v3218 = vor.u32 %v3215, %v3216
        %v3219 = vsel %vm2978, %v3211, %v3218
        %v3220 = vrot.slane %v3215, 4
        %v3222 = vshrl.u32 %v2971, 16
        %v3224 = vrot.slane %v3222, 7
        %v3225 = vshll.u32 %v2971, 16
        %v3227 = vor.u32 %v3224, %v3225
        %v3228 = vsel %vm2978, %v3220, %v3227
        %v3229 = vrot.slane %v3224, 4
        %v3231 = vshrl.u32 %v2972, 16
        %v3233 = vrot.slane %v3231, 7
        %v3234 = vshll.u32 %v2972, 16
        %v3236 = vor.u32 %v3233, %v3234
        %v3237 = vsel %vm2978, %v3229, %v3236
        %v3238 = vrot.slane %v3233, 4
        %v3240 = vshrl.u32 %v2973, 16
        %v3242 = vrot.slane %v3240, 7
        %v3243 = vshll.u32 %v2973, 16
        %v3245 = vor.u32 %v3242, %v3243
        %v3246 = vsel %vm2978, %v3238, %v3245
        %v3247 = vrot.slane %v3242, 4
        %v3249 = vshrl.u32 %v2974, 16
        %v3251 = vrot.slane %v3249, 7
        %v3252 = vshll.u32 %v2974, 16
        %v3254 = vor.u32 %v3251, %v3252
        %v3255 = vsel %vm2978, %v3247, %v3254
        %v3256 = vrot.slane %v3251, 4
        %v3258 = vshrl.u32 %v2975, 16
        %v3260 = vrot.slane %v3258, 7
        %v3261 = vshll.u32 %v2975, 16
        %v3263 = vor.u32 %v3260, %v3261
        %v3264 = vsel %vm2978, %v3256, %v3263
        %v3265 = vrot.slane %v3260, 4
        %vm3266 = vcmp.ne.s16.totalorder %v2985, 0
        %vm3267 = vcmp.ne.s16.totalorder %v2994, 0
        %vm3268 = vcmp.ne.s16.totalorder %v3003, 0
        %vm3269 = vcmp.ne.s16.totalorder %v3012, 0
        %vm3270 = vcmp.ne.s16.totalorder %v3021, 0
        %vm3271 = vcmp.ne.s16.totalorder %v3030, 0
        %vm3272 = vcmp.ne.s16.totalorder %v3039, 0
        %vm3273 = vcmp.ne.s16.totalorder %v3048, 0
        %vm3274 = vcmp.ne.s16.totalorder %v3057, 0
        %vm3275 = vcmp.ne.s16.totalorder %v3066, 0
        %vm3276 = vcmp.ne.s16.totalorder %v3075, 0
        %vm3277 = vcmp.ne.s16.totalorder %v3084, 0
        %vm3278 = vcmp.ne.s16.totalorder %v3093, 0
        %vm3279 = vcmp.ne.s16.totalorder %v3102, 0
        %vm3280 = vcmp.ne.s16.totalorder %v3111, 0
        %vm3281 = vcmp.ne.s16.totalorder %v3120, 0
        %vm3282 = vcmp.ne.s16.totalorder %v3129, 0
        %vm3283 = vcmp.ne.s16.totalorder %v3138, 0
        %vm3284 = vcmp.ne.s16.totalorder %v3147, 0
        %vm3285 = vcmp.ne.s16.totalorder %v3156, 0
        %vm3286 = vcmp.ne.s16.totalorder %v3165, 0
        %vm3287 = vcmp.ne.s16.totalorder %v3174, 0
        %vm3288 = vcmp.ne.s16.totalorder %v3183, 0
        %vm3289 = vcmp.ne.s16.totalorder %v3192, 0
        %vm3290 = vcmp.ne.s16.totalorder %v3201, 0
        %vm3291 = vcmp.ne.s16.totalorder %v3210, 0
        %vm3292 = vcmp.ne.s16.totalorder %v3219, 0
        %vm3293 = vcmp.ne.s16.totalorder %v3228, 0
        %vm3294 = vcmp.ne.s16.totalorder %v3237, 0
        %vm3295 = vcmp.ne.s16.totalorder %v3246, 0
        %vm3296 = vcmp.ne.s16.totalorder %v3255, 0
        %vm3297 = vcmp.ne.s16.totalorder %v3264, 0
        %vm3298 = vcmp.ne.s16.totalorder %v3265, 0
        %v3299 = vsel %vm3266, %v2815, 0
        %v3300 = vsel %vm3267, %v2816, 0
        %v3301 = vsel %vm3268, %v2817, 0
        %v3302 = vsel %vm3269, %v2818, 0
        %v3303 = vsel %vm3270, %v2819, 0
        %v3304 = vsel %vm3271, %v2820, 0
        %v3305 = vsel %vm3272, %v2821, 0
        %v3306 = vsel %vm3273, %v2822, 0
        %v3307 = vsel %vm3274, %v2823, 0
        %v3308 = vsel %vm3275, %v2824, 0
        %v3309 = vsel %vm3276, %v2825, 0
        %v3310 = vsel %vm3277, %v2826, 0
        %v3311 = vsel %vm3278, %v2827, 0
        %v3312 = vsel %vm3279, %v2828, 0
        %v3313 = vsel %vm3280, %v2829, 0
        %v3314 = vsel %vm3281, %v2830, 0
        %v3315 = vsel %vm3282, %v2831, 0
        %v3316 = vsel %vm3283, %v2832, 0
        %v3317 = vsel %vm3284, %v2833, 0
        %v3318 = vsel %vm3285, %v2834, 0
        %v3319 = vsel %vm3286, %v2835, 0
        %v3320 = vsel %vm3287, %v2836, 0
        %v3321 = vsel %vm3288, %v2837, 0
        %v3322 = vsel %vm3289, %v2838, 0
        %v3323 = vsel %vm3290, %v2839, 0
        %v3324 = vsel %vm3291, %v2840, 0
        %v3325 = vsel %vm3292, %v2841, 0
        %v3326 = vsel %vm3293, %v2842, 0
        %v3327 = vsel %vm3294, %v2843, 0
        %v3328 = vsel %vm3295, %v2844, 0
        %v3329 = vsel %vm3296, %v2845, 0
        %v3330 = vsel %vm3297, %v2846, 0
        %v3331 = vsel %vm3298, %v2847, 0
        %s3332 = scalar_lea.vmem [#allocation9], 32
        %v3333 = vld [vmem:[%s3332] sm:$0xf]
        %v3334 = vld [vmem:[%s3332 + $0x4] sm:$0xf]
        %v3335 = vld [vmem:[%s3332 + $0x8] sm:$0xf]
        %v3336 = vld [vmem:[%s3332 + $0xc] sm:$0xf]
        %v3370 = vunpack.c.l.b16 %v3299
        %v3371 = vunpack.c.l.b16 %v3300
        %v3372 = vunpack.c.l.b16 %v3301
        %v3373 = vunpack.c.l.b16 %v3302
        %v3374 = vunpack.c.l.b16 %v3303
        %v3375 = vunpack.c.l.b16 %v3304
        %v3376 = vunpack.c.l.b16 %v3305
        %v3377 = vunpack.c.l.b16 %v3306
        %v3378 = vunpack.c.l.b16 %v3307
        %v3379 = vunpack.c.l.b16 %v3308
        %v3380 = vunpack.c.l.b16 %v3309
        %v3381 = vunpack.c.l.b16 %v3310
        %v3382 = vunpack.c.l.b16 %v3311
        %v3383 = vunpack.c.l.b16 %v3312
        %v3384 = vunpack.c.l.b16 %v3313
        %v3385 = vunpack.c.l.b16 %v3314
        %v3386 = vunpack.c.l.b16 %v3315
        %v3387 = vunpack.c.l.b16 %v3316
        %v3388 = vunpack.c.l.b16 %v3317
        %v3389 = vunpack.c.l.b16 %v3318
        %v3390 = vunpack.c.l.b16 %v3319
        %v3391 = vunpack.c.l.b16 %v3320
        %v3392 = vunpack.c.l.b16 %v3321
        %v3393 = vunpack.c.l.b16 %v3322
        %v3394 = vunpack.c.l.b16 %v3323
        %v3395 = vunpack.c.l.b16 %v3324
        %v3396 = vunpack.c.l.b16 %v3325
        %v3397 = vunpack.c.l.b16 %v3326
        %v3398 = vunpack.c.l.b16 %v3327
        %v3399 = vunpack.c.l.b16 %v3328
        %v3400 = vunpack.c.l.b16 %v3329
        %v3401 = vunpack.c.l.b16 %v3330
        %v3402 = vunpack.c.l.b16 %v3331
        %v3403 = vpack.c.b16 %v3371, %v3370
        %v3404 = vpack.c.b16 %v3373, %v3372
        %v3405 = vpack.c.b16 %v3375, %v3374
        %v3406 = vpack.c.b16 %v3377, %v3376
        %v3407 = vpack.c.b16 %v3379, %v3378
        %v3408 = vpack.c.b16 %v3381, %v3380
        %v3409 = vpack.c.b16 %v3383, %v3382
        %v3410 = vpack.c.b16 %v3385, %v3384
        %v3411 = vpack.c.b16 %v3387, %v3386
        %v3412 = vpack.c.b16 %v3389, %v3388
        %v3413 = vpack.c.b16 %v3391, %v3390
        %v3414 = vpack.c.b16 %v3393, %v3392
        %v3415 = vpack.c.b16 %v3395, %v3394
        %v3416 = vpack.c.b16 %v3397, %v3396
        %v3417 = vpack.c.b16 %v3399, %v3398
        %v3418 = vpack.c.b16 %v3401, %v3400
        %v3419 = vpack.c.b16 %v3402, %v3402
        %vm3420 = vsmask.f32 7424
        %v3422 = vshrl.u32 %v3403, 16
        %v3424 = vshll.u32 %v3403, 16
        %v3426 = vrot.slane %v3424, 1
        %v3427 = vor.u32 %v3422, %v3426
        %v3429 = vshll.u32 %v3404, 16
        %v3431 = vrot.slane %v3429, 1
        %v3432 = vsel %vm3420, %v3427, %v3431
        %v3433 = vshrl.u32 %v3404, 16
        %v3435 = vor.u32 %v3433, %v3431
        %v3437 = vshll.u32 %v3405, 16
        %v3439 = vrot.slane %v3437, 1
        %v3440 = vsel %vm3420, %v3435, %v3439
        %v3441 = vshrl.u32 %v3405, 16
        %v3443 = vor.u32 %v3441, %v3439
        %v3445 = vshll.u32 %v3406, 16
        %v3447 = vrot.slane %v3445, 1
        %v3448 = vsel %vm3420, %v3443, %v3447
        %v3449 = vshrl.u32 %v3406, 16
        %v3451 = vor.u32 %v3449, %v3447
        %v3453 = vshll.u32 %v3407, 16
        %v3455 = vrot.slane %v3453, 1
        %v3456 = vsel %vm3420, %v3451, %v3455
        %v3457 = vshrl.u32 %v3407, 16
        %v3459 = vor.u32 %v3457, %v3455
        %v3461 = vshll.u32 %v3408, 16
        %v3463 = vrot.slane %v3461, 1
        %v3464 = vsel %vm3420, %v3459, %v3463
        %v3465 = vshrl.u32 %v3408, 16
        %v3467 = vor.u32 %v3465, %v3463
        %v3469 = vshll.u32 %v3409, 16
        %v3471 = vrot.slane %v3469, 1
        %v3472 = vsel %vm3420, %v3467, %v3471
        %v3473 = vshrl.u32 %v3409, 16
        %v3475 = vor.u32 %v3473, %v3471
        %v3477 = vshll.u32 %v3410, 16
        %v3479 = vrot.slane %v3477, 1
        %v3480 = vsel %vm3420, %v3475, %v3479
        %v3481 = vshrl.u32 %v3410, 16
        %v3483 = vor.u32 %v3481, %v3479
        %v3485 = vshll.u32 %v3411, 16
        %v3487 = vrot.slane %v3485, 1
        %v3488 = vsel %vm3420, %v3483, %v3487
        %v3489 = vshrl.u32 %v3411, 16
        %v3491 = vor.u32 %v3489, %v3487
        %v3493 = vshll.u32 %v3412, 16
        %v3495 = vrot.slane %v3493, 1
        %v3496 = vsel %vm3420, %v3491, %v3495
        %v3497 = vshrl.u32 %v3412, 16
        %v3499 = vor.u32 %v3497, %v3495
        %v3501 = vshll.u32 %v3413, 16
        %v3503 = vrot.slane %v3501, 1
        %v3504 = vsel %vm3420, %v3499, %v3503
        %v3505 = vshrl.u32 %v3413, 16
        %v3507 = vor.u32 %v3505, %v3503
        %v3509 = vshll.u32 %v3414, 16
        %v3511 = vrot.slane %v3509, 1
        %v3512 = vsel %vm3420, %v3507, %v3511
        %v3513 = vshrl.u32 %v3414, 16
        %v3515 = vor.u32 %v3513, %v3511
        %v3517 = vshll.u32 %v3415, 16
        %v3519 = vrot.slane %v3517, 1
        %v3520 = vsel %vm3420, %v3515, %v3519
        %v3521 = vshrl.u32 %v3415, 16
        %v3523 = vor.u32 %v3521, %v3519
        %v3525 = vshll.u32 %v3416, 16
        %v3527 = vrot.slane %v3525, 1
        %v3528 = vsel %vm3420, %v3523, %v3527
        %v3529 = vshrl.u32 %v3416, 16
        %v3531 = vor.u32 %v3529, %v3527
        %v3533 = vshll.u32 %v3417, 16
        %v3535 = vrot.slane %v3533, 1
        %v3536 = vsel %vm3420, %v3531, %v3535
        %v3537 = vshrl.u32 %v3417, 16
        %v3539 = vor.u32 %v3537, %v3535
        %v3541 = vshll.u32 %v3418, 16
        %v3543 = vrot.slane %v3541, 1
        %v3544 = vsel %vm3420, %v3539, %v3543
        %v3545 = vshrl.u32 %v3418, 16
        %v3547 = vor.u32 %v3545, %v3543
        %v3549 = vshll.u32 %v3419, 16
        %v3551 = vrot.slane %v3549, 1
        %v3552 = vsel %vm3420, %v3547, %v3551
        %v3557 = vunpack.c.l.b16 %v3333
        %v3558 = vunpack.c.l.b16 %v3334
        %v3559 = vunpack.c.l.b16 %v3335
        %v3560 = vunpack.c.l.b16 %v3336
        %v3561 = vpack.c.b16 %v3558, %v3557
        %v3562 = vpack.c.b16 %v3560, %v3559
        %v3566 = vsel %vm2148, %v3432, 0
        %v3569 = vsel %vm2148, %v3440, 0
        %v3572 = vsel %vm2148, %v3448, 0
        %v3575 = vsel %vm2148, %v3456, 0
        %v3578 = vsel %vm2148, %v3464, 0
        %v3581 = vsel %vm2148, %v3472, 0
        %v3584 = vsel %vm2148, %v3480, 0
        %v3587 = vsel %vm2148, %v3488, 0
        %v3590 = vsel %vm2148, %v3496, 0
        %v3593 = vsel %vm2148, %v3504, 0
        %v3596 = vsel %vm2148, %v3512, 0
        %v3599 = vsel %vm2148, %v3520, 0
        %v3602 = vsel %vm2148, %v3528, 0
        %v3605 = vsel %vm2148, %v3536, 0
        %v3608 = vsel %vm2148, %v3544, 0
        %v3611 = vsel %vm2148, %v3552, 0
        %3613 = vmatprep.subr.bf16.mxu0 0
        %3614 = vmatpush1.bf16.msra.mxu0 0
        %3615 = vmatprep.subr.bf16.mxu0 0
        %3616 = vmatpush1.bf16.msra.mxu0 0
        %3617 = vmatprep.subr.bf16.mxu0 0
        %3618 = vmatpush1.bf16.msra.mxu0 0
        %3619 = vmatprep.subr.bf16.mxu0 0
        %3620 = vmatpush1.bf16.msra.mxu0 0
        %3621 = vmatprep.subr.bf16.mxu0 0
        %3622 = vmatpush1.bf16.msra.mxu0 0
        %3623 = vmatprep.subr.bf16.mxu0 0
        %3624 = vmatpush1.bf16.msra.mxu0 0
        %3625 = vmatprep.subr.bf16.mxu0 0
        %3626 = vmatpush1.bf16.msra.mxu0 %v3562
        %3627 = vmatprep.subr.bf16.mxu0 0
        %3628 = vmatpush1.bf16.msra.mxu0 %v3561
        %3629 = vmatprep.subr.bf16.mxu0 0
        %3630 = vmatpush2.bf16.msra.mxu0 0
        %3631 = vmatprep.subr.bf16.mxu0 0
        %3632 = vmatpush2.bf16.msra.mxu0 0
        %3633 = vmatprep.subr.bf16.mxu0 0
        %3634 = vmatpush2.bf16.msra.mxu0 0
        %3635 = vmatprep.subr.bf16.mxu0 0
        %3636 = vmatpush2.bf16.msra.mxu0 0
        %3637 = vmatprep.subr.bf16.mxu0 0
        %3638 = vmatpush2.bf16.msra.mxu0 0
        %3639 = vmatprep.subr.bf16.mxu0 0
        %3640 = vmatpush2.bf16.msra.mxu0 0
        %3641 = vmatprep.subr.bf16.mxu0 0
        %3642 = vmatpush2.bf16.msra.mxu0 0
        %3643 = vmatprep.subr.bf16.mxu0 0
        %3644 = vmatpush2.bf16.msra.mxu0 0
        %3645 = vmatprep.mubr.bf16.mxu0 0
        %3646 = vmatmul.mubr.bf16.gmra.mxu0 %v3566
        %v3647 = vpop.f32.mrf.mxu0
        %v3648 = vadd.f32 0.0, %v3647
        %v3649 = vpop.f32.mrf.mxu0
        %v3650 = vpop.f32.mrf.mxu0
        %v3651 = vadd.f32 0.0, %v3650
        %v3652 = vpop.f32.mrf.mxu0
        %3653 = vmatprep.mubr.bf16.mxu0 0
        %3654 = vmatmul.mubr.bf16.gmra.mxu0 %v3569
        %v3655 = vpop.f32.mrf.mxu0
        %v3656 = vadd.f32 0.0, %v3655
        %v3657 = vpop.f32.mrf.mxu0
        %v3658 = vpop.f32.mrf.mxu0
        %v3659 = vadd.f32 0.0, %v3658
        %v3660 = vpop.f32.mrf.mxu0
        %3661 = vmatprep.mubr.bf16.mxu0 0
        %3662 = vmatmul.mubr.bf16.gmra.mxu0 %v3572
        %v3663 = vpop.f32.mrf.mxu0
        %v3664 = vadd.f32 0.0, %v3663
        %v3665 = vpop.f32.mrf.mxu0
        %v3666 = vpop.f32.mrf.mxu0
        %v3667 = vadd.f32 0.0, %v3666
        %v3668 = vpop.f32.mrf.mxu0
        %3669 = vmatprep.mubr.bf16.mxu0 0
        %3670 = vmatmul.mubr.bf16.gmra.mxu0 %v3575
        %v3671 = vpop.f32.mrf.mxu0
        %v3672 = vadd.f32 0.0, %v3671
        %v3673 = vpop.f32.mrf.mxu0
        %v3674 = vpop.f32.mrf.mxu0
        %v3675 = vadd.f32 0.0, %v3674
        %v3676 = vpop.f32.mrf.mxu0
        %3677 = vmatprep.mubr.bf16.mxu0 0
        %3678 = vmatmul.mubr.bf16.gmra.mxu0 %v3578
        %v3679 = vpop.f32.mrf.mxu0
        %v3680 = vadd.f32 0.0, %v3679
        %v3681 = vpop.f32.mrf.mxu0
        %v3682 = vpop.f32.mrf.mxu0
        %v3683 = vadd.f32 0.0, %v3682
        %v3684 = vpop.f32.mrf.mxu0
        %3685 = vmatprep.mubr.bf16.mxu0 0
        %3686 = vmatmul.mubr.bf16.gmra.mxu0 %v3581
        %v3687 = vpop.f32.mrf.mxu0
        %v3688 = vadd.f32 0.0, %v3687
        %v3689 = vpop.f32.mrf.mxu0
        %v3690 = vpop.f32.mrf.mxu0
        %v3691 = vadd.f32 0.0, %v3690
        %v3692 = vpop.f32.mrf.mxu0
        %3693 = vmatprep.mubr.bf16.mxu0 0
        %3694 = vmatmul.mubr.bf16.gmra.mxu0 %v3584
        %v3695 = vpop.f32.mrf.mxu0
        %v3696 = vadd.f32 0.0, %v3695
        %v3697 = vpop.f32.mrf.mxu0
        %v3698 = vpop.f32.mrf.mxu0
        %v3699 = vadd.f32 0.0, %v3698
        %v3700 = vpop.f32.mrf.mxu0
        %3701 = vmatprep.mubr.bf16.mxu0 0
        %3702 = vmatmul.mubr.bf16.gmra.mxu0 %v3587
        %v3703 = vpop.f32.mrf.mxu0
        %v3704 = vadd.f32 0.0, %v3703
        %v3705 = vpop.f32.mrf.mxu0
        %v3706 = vpop.f32.mrf.mxu0
        %v3707 = vadd.f32 0.0, %v3706
        %v3708 = vpop.f32.mrf.mxu0
        %3709 = vmatprep.mubr.bf16.mxu0 0
        %3710 = vmatmul.mubr.bf16.gmra.mxu0 %v3590
        %v3711 = vpop.f32.mrf.mxu0
        %v3712 = vadd.f32 0.0, %v3711
        %v3713 = vpop.f32.mrf.mxu0
        %v3714 = vpop.f32.mrf.mxu0
        %v3715 = vadd.f32 0.0, %v3714
        %v3716 = vpop.f32.mrf.mxu0
        %3717 = vmatprep.mubr.bf16.mxu0 0
        %3718 = vmatmul.mubr.bf16.gmra.mxu0 %v3593
        %v3719 = vpop.f32.mrf.mxu0
        %v3720 = vadd.f32 0.0, %v3719
        %v3721 = vpop.f32.mrf.mxu0
        %v3722 = vpop.f32.mrf.mxu0
        %v3723 = vadd.f32 0.0, %v3722
        %v3724 = vpop.f32.mrf.mxu0
        %3725 = vmatprep.mubr.bf16.mxu0 0
        %3726 = vmatmul.mubr.bf16.gmra.mxu0 %v3596
        %v3727 = vpop.f32.mrf.mxu0
        %v3728 = vadd.f32 0.0, %v3727
        %v3729 = vpop.f32.mrf.mxu0
        %v3730 = vpop.f32.mrf.mxu0
        %v3731 = vadd.f32 0.0, %v3730
        %v3732 = vpop.f32.mrf.mxu0
        %3733 = vmatprep.mubr.bf16.mxu0 0
        %3734 = vmatmul.mubr.bf16.gmra.mxu0 %v3599
        %v3735 = vpop.f32.mrf.mxu0
        %v3736 = vadd.f32 0.0, %v3735
        %v3737 = vpop.f32.mrf.mxu0
        %v3738 = vpop.f32.mrf.mxu0
        %v3739 = vadd.f32 0.0, %v3738
        %v3740 = vpop.f32.mrf.mxu0
        %3741 = vmatprep.mubr.bf16.mxu0 0
        %3742 = vmatmul.mubr.bf16.gmra.mxu0 %v3602
        %v3743 = vpop.f32.mrf.mxu0
        %v3744 = vadd.f32 0.0, %v3743
        %v3745 = vpop.f32.mrf.mxu0
        %v3746 = vpop.f32.mrf.mxu0
        %v3747 = vadd.f32 0.0, %v3746
        %v3748 = vpop.f32.mrf.mxu0
        %3749 = vmatprep.mubr.bf16.mxu0 0
        %3750 = vmatmul.mubr.bf16.gmra.mxu0 %v3605
        %v3751 = vpop.f32.mrf.mxu0
        %v3752 = vadd.f32 0.0, %v3751
        %v3753 = vpop.f32.mrf.mxu0
        %v3754 = vpop.f32.mrf.mxu0
        %v3755 = vadd.f32 0.0, %v3754
        %v3756 = vpop.f32.mrf.mxu0
        %3757 = vmatprep.mubr.bf16.mxu0 0
        %3758 = vmatmul.mubr.bf16.gmra.mxu0 %v3608
        %v3759 = vpop.f32.mrf.mxu0
        %v3760 = vadd.f32 0.0, %v3759
        %v3761 = vpop.f32.mrf.mxu0
        %v3762 = vpop.f32.mrf.mxu0
        %v3763 = vadd.f32 0.0, %v3762
        %v3764 = vpop.f32.mrf.mxu0
        %3765 = vmatprep.mubr.bf16.mxu0 0
        %3766 = vmatmul.mubr.bf16.gmra.mxu0 %v3611
        %v3767 = vpop.f32.mrf.mxu0
        %v3768 = vadd.f32 0.0, %v3767
        %v3769 = vpop.f32.mrf.mxu0
        %v3770 = vpop.f32.mrf.mxu0
        %v3771 = vadd.f32 0.0, %v3770
        %v3772 = vpop.f32.mrf.mxu0
        %3773 = vdwg.mxu0
        %v3774 = vadd.f32 %v2689, %v3648
        %v3775 = vadd.f32 %v2692, %v3651
        %v3776 = vadd.f32 %v2697, %v3656
        %v3777 = vadd.f32 %v2700, %v3659
        %v3778 = vadd.f32 %v2705, %v3664
        %v3779 = vadd.f32 %v2708, %v3667
        %v3780 = vadd.f32 %v2713, %v3672
        %v3781 = vadd.f32 %v2716, %v3675
        %v3782 = vadd.f32 %v2721, %v3680
        %v3783 = vadd.f32 %v2724, %v3683
        %v3784 = vadd.f32 %v2729, %v3688
        %v3785 = vadd.f32 %v2732, %v3691
        %v3786 = vadd.f32 %v2737, %v3696
        %v3787 = vadd.f32 %v2740, %v3699
        %v3788 = vadd.f32 %v2745, %v3704
        %v3789 = vadd.f32 %v2748, %v3707
        %v3790 = vadd.f32 %v2753, %v3712
        %v3791 = vadd.f32 %v2756, %v3715
        %v3792 = vadd.f32 %v2761, %v3720
        %v3793 = vadd.f32 %v2764, %v3723
        %v3794 = vadd.f32 %v2769, %v3728
        %v3795 = vadd.f32 %v2772, %v3731
        %v3796 = vadd.f32 %v2777, %v3736
        %v3797 = vadd.f32 %v2780, %v3739
        %v3798 = vadd.f32 %v2785, %v3744
        %v3799 = vadd.f32 %v2788, %v3747
        %v3800 = vadd.f32 %v2793, %v3752
        %v3801 = vadd.f32 %v2796, %v3755
        %v3802 = vadd.f32 %v2801, %v3760
        %v3803 = vadd.f32 %v2804, %v3763
        %v3804 = vadd.f32 %v2809, %v3768
        %v3805 = vadd.f32 %v2812, %v3771
        %v3806 = vld [vmem:[#allocation2 + $0xc] sm:$0x8]
        %v3807 = vld [vmem:[#allocation2 + $0x10] sm:$0xf]
        %v3808 = vld [vmem:[#allocation2 + $0x14] sm:$0xf]
        %v3809 = vld [vmem:[#allocation2 + $0x18] sm:$0xf]
        %v3810 = vld [vmem:[#allocation2 + $0x1c] sm:$0xf]
        %v3811 = vld [vmem:[#allocation2 + $0x20] sm:$0xf]
        %v3812 = vld [vmem:[#allocation2 + $0x24] sm:$0xf]
        %v3813 = vld [vmem:[#allocation2 + $0x28] sm:$0xf]
        %v3814 = vld [vmem:[#allocation2 + $0x2c] sm:$0xf]
        %v3815 = vld [vmem:[#allocation2 + $0x30] sm:$0xf]
        %v3816 = vld [vmem:[#allocation2 + $0x34] sm:$0xf]
        %v3817 = vld [vmem:[#allocation2 + $0x38] sm:$0xf]
        %v3818 = vld [vmem:[#allocation2 + $0x3c] sm:$0xf]
        %v3819 = vld [vmem:[#allocation2 + $0x40] sm:$0xf]
        %v3820 = vld [vmem:[#allocation2 + $0x44] sm:$0xf]
        %v3821 = vld [vmem:[#allocation2 + $0x48] sm:$0xf]
        %v3822 = vld [vmem:[#allocation2 + $0x4c] sm:$0xf]
        %v3823 = vld [vmem:[#allocation2 + $0x50] sm:$0xf]
        %v3824 = vld [vmem:[#allocation2 + $0x54] sm:$0xf]
        %v3825 = vld [vmem:[#allocation2 + $0x58] sm:$0xf]
        %v3826 = vld [vmem:[#allocation2 + $0x5c] sm:$0xf]
        %v3827 = vld [vmem:[#allocation2 + $0x60] sm:$0xf]
        %v3828 = vld [vmem:[#allocation2 + $0x64] sm:$0xf]
        %v3829 = vld [vmem:[#allocation2 + $0x68] sm:$0xf]
        %v3830 = vld [vmem:[#allocation2 + $0x6c] sm:$0xf]
        %v3831 = vld [vmem:[#allocation2 + $0x70] sm:$0xf]
        %v3832 = vld [vmem:[#allocation2 + $0x74] sm:$0xf]
        %v3833 = vld [vmem:[#allocation2 + $0x78] sm:$0xf]
        %v3834 = vld [vmem:[#allocation2 + $0x7c] sm:$0xf]
        %v3835 = vld [vmem:[#allocation2 + $0x80] sm:$0xf]
        %v3836 = vld [vmem:[#allocation2 + $0x84] sm:$0xf]
        %v3837 = vld [vmem:[#allocation2 + $0x88] sm:$0xf]
        %v3838 = vld [vmem:[#allocation2 + $0x8c] sm:$0xf]
        %v3839 = vsel %vm1981, %v3806, 0
        %v3840 = vsel %vm1982, %v3807, 0
        %v3841 = vsel %vm1983, %v3808, 0
        %v3842 = vsel %vm1984, %v3809, 0
        %v3843 = vsel %vm1985, %v3810, 0
        %v3844 = vsel %vm1986, %v3811, 0
        %v3845 = vsel %vm1987, %v3812, 0
        %v3846 = vsel %vm1988, %v3813, 0
        %v3847 = vsel %vm1989, %v3814, 0
        %v3848 = vsel %vm1990, %v3815, 0
        %v3849 = vsel %vm1991, %v3816, 0
        %v3850 = vsel %vm1992, %v3817, 0
        %v3851 = vsel %vm1993, %v3818, 0
        %v3852 = vsel %vm1994, %v3819, 0
        %v3853 = vsel %vm1995, %v3820, 0
        %v3854 = vsel %vm1996, %v3821, 0
        %v3855 = vsel %vm1997, %v3822, 0
        %v3856 = vsel %vm1998, %v3823, 0
        %v3857 = vsel %vm1999, %v3824, 0
        %v3858 = vsel %vm2000, %v3825, 0
        %v3859 = vsel %vm2001, %v3826, 0
        %v3860 = vsel %vm2002, %v3827, 0
        %v3861 = vsel %vm2003, %v3828, 0
        %v3862 = vsel %vm2004, %v3829, 0
        %v3863 = vsel %vm2005, %v3830, 0
        %v3864 = vsel %vm2006, %v3831, 0
        %v3865 = vsel %vm2007, %v3832, 0
        %v3866 = vsel %vm2008, %v3833, 0
        %v3867 = vsel %vm2009, %v3834, 0
        %v3868 = vsel %vm2010, %v3835, 0
        %v3869 = vsel %vm2011, %v3836, 0
        %v3870 = vsel %vm2012, %v3837, 0
        %v3871 = vsel %vm2013, %v3838, 0
        %s3872 = scalar_lea.vmem [#allocation9], 48
        %v3873 = vld [vmem:[%s3872] sm:$0xf]
        %v3874 = vld [vmem:[%s3872 + $0x4] sm:$0xf]
        %v3875 = vld [vmem:[%s3872 + $0x8] sm:$0xf]
        %v3876 = vld [vmem:[%s3872 + $0xc] sm:$0xf]
        %v3910 = vunpack.c.l.b16 %v3839
        %v3911 = vunpack.c.l.b16 %v3840
        %v3912 = vunpack.c.l.b16 %v3841
        %v3913 = vunpack.c.l.b16 %v3842
        %v3914 = vunpack.c.l.b16 %v3843
        %v3915 = vunpack.c.l.b16 %v3844
        %v3916 = vunpack.c.l.b16 %v3845
        %v3917 = vunpack.c.l.b16 %v3846
        %v3918 = vunpack.c.l.b16 %v3847
        %v3919 = vunpack.c.l.b16 %v3848
        %v3920 = vunpack.c.l.b16 %v3849
        %v3921 = vunpack.c.l.b16 %v3850
        %v3922 = vunpack.c.l.b16 %v3851
        %v3923 = vunpack.c.l.b16 %v3852
        %v3924 = vunpack.c.l.b16 %v3853
        %v3925 = vunpack.c.l.b16 %v3854
        %v3926 = vunpack.c.l.b16 %v3855
        %v3927 = vunpack.c.l.b16 %v3856
        %v3928 = vunpack.c.l.b16 %v3857
        %v3929 = vunpack.c.l.b16 %v3858
        %v3930 = vunpack.c.l.b16 %v3859
        %v3931 = vunpack.c.l.b16 %v3860
        %v3932 = vunpack.c.l.b16 %v3861
        %v3933 = vunpack.c.l.b16 %v3862
        %v3934 = vunpack.c.l.b16 %v3863
        %v3935 = vunpack.c.l.b16 %v3864
        %v3936 = vunpack.c.l.b16 %v3865
        %v3937 = vunpack.c.l.b16 %v3866
        %v3938 = vunpack.c.l.b16 %v3867
        %v3939 = vunpack.c.l.b16 %v3868
        %v3940 = vunpack.c.l.b16 %v3869
        %v3941 = vunpack.c.l.b16 %v3870
        %v3942 = vunpack.c.l.b16 %v3871
        %v3943 = vpack.c.b16 %v3911, %v3910
        %v3944 = vpack.c.b16 %v3913, %v3912
        %v3945 = vpack.c.b16 %v3915, %v3914
        %v3946 = vpack.c.b16 %v3917, %v3916
        %v3947 = vpack.c.b16 %v3919, %v3918
        %v3948 = vpack.c.b16 %v3921, %v3920
        %v3949 = vpack.c.b16 %v3923, %v3922
        %v3950 = vpack.c.b16 %v3925, %v3924
        %v3951 = vpack.c.b16 %v3927, %v3926
        %v3952 = vpack.c.b16 %v3929, %v3928
        %v3953 = vpack.c.b16 %v3931, %v3930
        %v3954 = vpack.c.b16 %v3933, %v3932
        %v3955 = vpack.c.b16 %v3935, %v3934
        %v3956 = vpack.c.b16 %v3937, %v3936
        %v3957 = vpack.c.b16 %v3939, %v3938
        %v3958 = vpack.c.b16 %v3941, %v3940
        %v3959 = vpack.c.b16 %v3942, %v3942
        %v3961 = vshrl.u32 %v3943, 16
        %v3963 = vrot.slane %v3961, 3
        %v3964 = vshll.u32 %v3943, 16
        %v3966 = vrot.slane %v3964, 4
        %v3967 = vor.u32 %v3963, %v3966
        %v3969 = vshrl.u32 %v3944, 16
        %v3971 = vrot.slane %v3969, 3
        %v3972 = vshll.u32 %v3944, 16
        %v3974 = vrot.slane %v3972, 4
        %v3975 = vor.u32 %v3971, %v3974
        %v3976 = vsel %vm2441, %v3967, %v3975
        %v3978 = vshrl.u32 %v3945, 16
        %v3980 = vrot.slane %v3978, 3
        %v3981 = vshll.u32 %v3945, 16
        %v3983 = vrot.slane %v3981, 4
        %v3984 = vor.u32 %v3980, %v3983
        %v3985 = vsel %vm2441, %v3975, %v3984
        %v3987 = vshrl.u32 %v3946, 16
        %v3989 = vrot.slane %v3987, 3
        %v3990 = vshll.u32 %v3946, 16
        %v3992 = vrot.slane %v3990, 4
        %v3993 = vor.u32 %v3989, %v3992
        %v3994 = vsel %vm2441, %v3984, %v3993
        %v3996 = vshrl.u32 %v3947, 16
        %v3998 = vrot.slane %v3996, 3
        %v3999 = vshll.u32 %v3947, 16
        %v4001 = vrot.slane %v3999, 4
        %v4002 = vor.u32 %v3998, %v4001
        %v4003 = vsel %vm2441, %v3993, %v4002
        %v4005 = vshrl.u32 %v3948, 16
        %v4007 = vrot.slane %v4005, 3
        %v4008 = vshll.u32 %v3948, 16
        %v4010 = vrot.slane %v4008, 4
        %v4011 = vor.u32 %v4007, %v4010
        %v4012 = vsel %vm2441, %v4002, %v4011
        %v4014 = vshrl.u32 %v3949, 16
        %v4016 = vrot.slane %v4014, 3
        %v4017 = vshll.u32 %v3949, 16
        %v4019 = vrot.slane %v4017, 4
        %v4020 = vor.u32 %v4016, %v4019
        %v4021 = vsel %vm2441, %v4011, %v4020
        %v4023 = vshrl.u32 %v3950, 16
        %v4025 = vrot.slane %v4023, 3
        %v4026 = vshll.u32 %v3950, 16
        %v4028 = vrot.slane %v4026, 4
        %v4029 = vor.u32 %v4025, %v4028
        %v4030 = vsel %vm2441, %v4020, %v4029
        %v4032 = vshrl.u32 %v3951, 16
        %v4034 = vrot.slane %v4032, 3
        %v4035 = vshll.u32 %v3951, 16
        %v4037 = vrot.slane %v4035, 4
        %v4038 = vor.u32 %v4034, %v4037
        %v4039 = vsel %vm2441, %v4029, %v4038
        %v4041 = vshrl.u32 %v3952, 16
        %v4043 = vrot.slane %v4041, 3
        %v4044 = vshll.u32 %v3952, 16
        %v4046 = vrot.slane %v4044, 4
        %v4047 = vor.u32 %v4043, %v4046
        %v4048 = vsel %vm2441, %v4038, %v4047
        %v4050 = vshrl.u32 %v3953, 16
        %v4052 = vrot.slane %v4050, 3
        %v4053 = vshll.u32 %v3953, 16
        %v4055 = vrot.slane %v4053, 4
        %v4056 = vor.u32 %v4052, %v4055
        %v4057 = vsel %vm2441, %v4047, %v4056
        %v4059 = vshrl.u32 %v3954, 16
        %v4061 = vrot.slane %v4059, 3
        %v4062 = vshll.u32 %v3954, 16
        %v4064 = vrot.slane %v4062, 4
        %v4065 = vor.u32 %v4061, %v4064
        %v4066 = vsel %vm2441, %v4056, %v4065
        %v4068 = vshrl.u32 %v3955, 16
        %v4070 = vrot.slane %v4068, 3
        %v4071 = vshll.u32 %v3955, 16
        %v4073 = vrot.slane %v4071, 4
        %v4074 = vor.u32 %v4070, %v4073
        %v4075 = vsel %vm2441, %v4065, %v4074
        %v4077 = vshrl.u32 %v3956, 16
        %v4079 = vrot.slane %v4077, 3
        %v4080 = vshll.u32 %v3956, 16
        %v4082 = vrot.slane %v4080, 4
        %v4083 = vor.u32 %v4079, %v4082
        %v4084 = vsel %vm2441, %v4074, %v4083
        %v4086 = vshrl.u32 %v3957, 16
        %v4088 = vrot.slane %v4086, 3
        %v4089 = vshll.u32 %v3957, 16
        %v4091 = vrot.slane %v4089, 4
        %v4092 = vor.u32 %v4088, %v4091
        %v4093 = vsel %vm2441, %v4083, %v4092
        %v4095 = vshrl.u32 %v3958, 16
        %v4097 = vrot.slane %v4095, 3
        %v4098 = vshll.u32 %v3958, 16
        %v4100 = vrot.slane %v4098, 4
        %v4101 = vor.u32 %v4097, %v4100
        %v4102 = vsel %vm2441, %v4092, %v4101
        %v4104 = vshrl.u32 %v3959, 16
        %v4106 = vrot.slane %v4104, 3
        %v4107 = vshll.u32 %v3959, 16
        %v4109 = vrot.slane %v4107, 4
        %v4110 = vor.u32 %v4106, %v4109
        %v4111 = vsel %vm2441, %v4101, %v4110
        %v4116 = vunpack.c.l.b16 %v3873
        %v4117 = vunpack.c.l.b16 %v3874
        %v4118 = vunpack.c.l.b16 %v3875
        %v4119 = vunpack.c.l.b16 %v3876
        %v4120 = vpack.c.b16 %v4117, %v4116
        %v4121 = vpack.c.b16 %v4119, %v4118
        %v4125 = vsel %vm2148, %v3976, 0
        %v4128 = vsel %vm2148, %v3985, 0
        %v4131 = vsel %vm2148, %v3994, 0
        %v4134 = vsel %vm2148, %v4003, 0
        %v4137 = vsel %vm2148, %v4012, 0
        %v4140 = vsel %vm2148, %v4021, 0
        %v4143 = vsel %vm2148, %v4030, 0
        %v4146 = vsel %vm2148, %v4039, 0
        %v4149 = vsel %vm2148, %v4048, 0
        %v4152 = vsel %vm2148, %v4057, 0
        %v4155 = vsel %vm2148, %v4066, 0
        %v4158 = vsel %vm2148, %v4075, 0
        %v4161 = vsel %vm2148, %v4084, 0
        %v4164 = vsel %vm2148, %v4093, 0
        %v4167 = vsel %vm2148, %v4102, 0
        %v4170 = vsel %vm2148, %v4111, 0
        %4172 = vmatprep.subr.bf16.mxu0 0
        %4173 = vmatpush1.bf16.msra.mxu0 0
        %4174 = vmatprep.subr.bf16.mxu0 0
        %4175 = vmatpush1.bf16.msra.mxu0 0
        %4176 = vmatprep.subr.bf16.mxu0 0
        %4177 = vmatpush1.bf16.msra.mxu0 0
        %4178 = vmatprep.subr.bf16.mxu0 0
        %4179 = vmatpush1.bf16.msra.mxu0 0
        %4180 = vmatprep.subr.bf16.mxu0 0
        %4181 = vmatpush1.bf16.msra.mxu0 0
        %4182 = vmatprep.subr.bf16.mxu0 0
        %4183 = vmatpush1.bf16.msra.mxu0 0
        %4184 = vmatprep.subr.bf16.mxu0 0
        %4185 = vmatpush1.bf16.msra.mxu0 %v4121
        %4186 = vmatprep.subr.bf16.mxu0 0
        %4187 = vmatpush1.bf16.msra.mxu0 %v4120
        %4188 = vmatprep.subr.bf16.mxu0 0
        %4189 = vmatpush2.bf16.msra.mxu0 0
        %4190 = vmatprep.subr.bf16.mxu0 0
        %4191 = vmatpush2.bf16.msra.mxu0 0
        %4192 = vmatprep.subr.bf16.mxu0 0
        %4193 = vmatpush2.bf16.msra.mxu0 0
        %4194 = vmatprep.subr.bf16.mxu0 0
        %4195 = vmatpush2.bf16.msra.mxu0 0
        %4196 = vmatprep.subr.bf16.mxu0 0
        %4197 = vmatpush2.bf16.msra.mxu0 0
        %4198 = vmatprep.subr.bf16.mxu0 0
        %4199 = vmatpush2.bf16.msra.mxu0 0
        %4200 = vmatprep.subr.bf16.mxu0 0
        %4201 = vmatpush2.bf16.msra.mxu0 0
        %4202 = vmatprep.subr.bf16.mxu0 0
        %4203 = vmatpush2.bf16.msra.mxu0 0
        %4204 = vmatprep.mubr.bf16.mxu0 0
        %4205 = vmatmul.mubr.bf16.gmra.mxu0 %v4125
        %v4206 = vpop.f32.mrf.mxu0
        %v4207 = vadd.f32 0.0, %v4206
        %v4208 = vpop.f32.mrf.mxu0
        %v4209 = vpop.f32.mrf.mxu0
        %v4210 = vadd.f32 0.0, %v4209
        %v4211 = vpop.f32.mrf.mxu0
        %4212 = vmatprep.mubr.bf16.mxu0 0
        %4213 = vmatmul.mubr.bf16.gmra.mxu0 %v4128
        %v4214 = vpop.f32.mrf.mxu0
        %v4215 = vadd.f32 0.0, %v4214
        %v4216 = vpop.f32.mrf.mxu0
        %v4217 = vpop.f32.mrf.mxu0
        %v4218 = vadd.f32 0.0, %v4217
        %v4219 = vpop.f32.mrf.mxu0
        %4220 = vmatprep.mubr.bf16.mxu0 0
        %4221 = vmatmul.mubr.bf16.gmra.mxu0 %v4131
        %v4222 = vpop.f32.mrf.mxu0
        %v4223 = vadd.f32 0.0, %v4222
        %v4224 = vpop.f32.mrf.mxu0
        %v4225 = vpop.f32.mrf.mxu0
        %v4226 = vadd.f32 0.0, %v4225
        %v4227 = vpop.f32.mrf.mxu0
        %4228 = vmatprep.mubr.bf16.mxu0 0
        %4229 = vmatmul.mubr.bf16.gmra.mxu0 %v4134
        %v4230 = vpop.f32.mrf.mxu0
        %v4231 = vadd.f32 0.0, %v4230
        %v4232 = vpop.f32.mrf.mxu0
        %v4233 = vpop.f32.mrf.mxu0
        %v4234 = vadd.f32 0.0, %v4233
        %v4235 = vpop.f32.mrf.mxu0
        %4236 = vmatprep.mubr.bf16.mxu0 0
        %4237 = vmatmul.mubr.bf16.gmra.mxu0 %v4137
        %v4238 = vpop.f32.mrf.mxu0
        %v4239 = vadd.f32 0.0, %v4238
        %v4240 = vpop.f32.mrf.mxu0
        %v4241 = vpop.f32.mrf.mxu0
        %v4242 = vadd.f32 0.0, %v4241
        %v4243 = vpop.f32.mrf.mxu0
        %4244 = vmatprep.mubr.bf16.mxu0 0
        %4245 = vmatmul.mubr.bf16.gmra.mxu0 %v4140
        %v4246 = vpop.f32.mrf.mxu0
        %v4247 = vadd.f32 0.0, %v4246
        %v4248 = vpop.f32.mrf.mxu0
        %v4249 = vpop.f32.mrf.mxu0
        %v4250 = vadd.f32 0.0, %v4249
        %v4251 = vpop.f32.mrf.mxu0
        %4252 = vmatprep.mubr.bf16.mxu0 0
        %4253 = vmatmul.mubr.bf16.gmra.mxu0 %v4143
        %v4254 = vpop.f32.mrf.mxu0
        %v4255 = vadd.f32 0.0, %v4254
        %v4256 = vpop.f32.mrf.mxu0
        %v4257 = vpop.f32.mrf.mxu0
        %v4258 = vadd.f32 0.0, %v4257
        %v4259 = vpop.f32.mrf.mxu0
        %4260 = vmatprep.mubr.bf16.mxu0 0
        %4261 = vmatmul.mubr.bf16.gmra.mxu0 %v4146
        %v4262 = vpop.f32.mrf.mxu0
        %v4263 = vadd.f32 0.0, %v4262
        %v4264 = vpop.f32.mrf.mxu0
        %v4265 = vpop.f32.mrf.mxu0
        %v4266 = vadd.f32 0.0, %v4265
        %v4267 = vpop.f32.mrf.mxu0
        %4268 = vmatprep.mubr.bf16.mxu0 0
        %4269 = vmatmul.mubr.bf16.gmra.mxu0 %v4149
        %v4270 = vpop.f32.mrf.mxu0
        %v4271 = vadd.f32 0.0, %v4270
        %v4272 = vpop.f32.mrf.mxu0
        %v4273 = vpop.f32.mrf.mxu0
        %v4274 = vadd.f32 0.0, %v4273
        %v4275 = vpop.f32.mrf.mxu0
        %4276 = vmatprep.mubr.bf16.mxu0 0
        %4277 = vmatmul.mubr.bf16.gmra.mxu0 %v4152
        %v4278 = vpop.f32.mrf.mxu0
        %v4279 = vadd.f32 0.0, %v4278
        %v4280 = vpop.f32.mrf.mxu0
        %v4281 = vpop.f32.mrf.mxu0
        %v4282 = vadd.f32 0.0, %v4281
        %v4283 = vpop.f32.mrf.mxu0
        %4284 = vmatprep.mubr.bf16.mxu0 0
        %4285 = vmatmul.mubr.bf16.gmra.mxu0 %v4155
        %v4286 = vpop.f32.mrf.mxu0
        %v4287 = vadd.f32 0.0, %v4286
        %v4288 = vpop.f32.mrf.mxu0
        %v4289 = vpop.f32.mrf.mxu0
        %v4290 = vadd.f32 0.0, %v4289
        %v4291 = vpop.f32.mrf.mxu0
        %4292 = vmatprep.mubr.bf16.mxu0 0
        %4293 = vmatmul.mubr.bf16.gmra.mxu0 %v4158
        %v4294 = vpop.f32.mrf.mxu0
        %v4295 = vadd.f32 0.0, %v4294
        %v4296 = vpop.f32.mrf.mxu0
        %v4297 = vpop.f32.mrf.mxu0
        %v4298 = vadd.f32 0.0, %v4297
        %v4299 = vpop.f32.mrf.mxu0
        %4300 = vmatprep.mubr.bf16.mxu0 0
        %4301 = vmatmul.mubr.bf16.gmra.mxu0 %v4161
        %v4302 = vpop.f32.mrf.mxu0
        %v4303 = vadd.f32 0.0, %v4302
        %v4304 = vpop.f32.mrf.mxu0
        %v4305 = vpop.f32.mrf.mxu0
        %v4306 = vadd.f32 0.0, %v4305
        %v4307 = vpop.f32.mrf.mxu0
        %4308 = vmatprep.mubr.bf16.mxu0 0
        %4309 = vmatmul.mubr.bf16.gmra.mxu0 %v4164
        %v4310 = vpop.f32.mrf.mxu0
        %v4311 = vadd.f32 0.0, %v4310
        %v4312 = vpop.f32.mrf.mxu0
        %v4313 = vpop.f32.mrf.mxu0
        %v4314 = vadd.f32 0.0, %v4313
        %v4315 = vpop.f32.mrf.mxu0
        %4316 = vmatprep.mubr.bf16.mxu0 0
        %4317 = vmatmul.mubr.bf16.gmra.mxu0 %v4167
        %v4318 = vpop.f32.mrf.mxu0
        %v4319 = vadd.f32 0.0, %v4318
        %v4320 = vpop.f32.mrf.mxu0
        %v4321 = vpop.f32.mrf.mxu0
        %v4322 = vadd.f32 0.0, %v4321
        %v4323 = vpop.f32.mrf.mxu0
        %4324 = vmatprep.mubr.bf16.mxu0 0
        %4325 = vmatmul.mubr.bf16.gmra.mxu0 %v4170
        %v4326 = vpop.f32.mrf.mxu0
        %v4327 = vadd.f32 0.0, %v4326
        %v4328 = vpop.f32.mrf.mxu0
        %v4329 = vpop.f32.mrf.mxu0
        %v4330 = vadd.f32 0.0, %v4329
        %v4331 = vpop.f32.mrf.mxu0
        %4332 = vdwg.mxu0
        %v4333 = vadd.f32 %v3774, %v4207
        %v4334 = vadd.f32 %v3775, %v4210
        %v4335 = vadd.f32 %v3776, %v4215
        %v4336 = vadd.f32 %v3777, %v4218
        %v4337 = vadd.f32 %v3778, %v4223
        %v4338 = vadd.f32 %v3779, %v4226
        %v4339 = vadd.f32 %v3780, %v4231
        %v4340 = vadd.f32 %v3781, %v4234
        %v4341 = vadd.f32 %v3782, %v4239
        %v4342 = vadd.f32 %v3783, %v4242
        %v4343 = vadd.f32 %v3784, %v4247
        %v4344 = vadd.f32 %v3785, %v4250
        %v4345 = vadd.f32 %v3786, %v4255
        %v4346 = vadd.f32 %v3787, %v4258
        %v4347 = vadd.f32 %v3788, %v4263
        %v4348 = vadd.f32 %v3789, %v4266
        %v4349 = vadd.f32 %v3790, %v4271
        %v4350 = vadd.f32 %v3791, %v4274
        %v4351 = vadd.f32 %v3792, %v4279
        %v4352 = vadd.f32 %v3793, %v4282
        %v4353 = vadd.f32 %v3794, %v4287
        %v4354 = vadd.f32 %v3795, %v4290
        %v4355 = vadd.f32 %v3796, %v4295
        %v4356 = vadd.f32 %v3797, %v4298
        %v4357 = vadd.f32 %v3798, %v4303
        %v4358 = vadd.f32 %v3799, %v4306
        %v4359 = vadd.f32 %v3800, %v4311
        %v4360 = vadd.f32 %v3801, %v4314
        %v4361 = vadd.f32 %v3802, %v4319
        %v4362 = vadd.f32 %v3803, %v4322
        %v4363 = vadd.f32 %v3804, %v4327
        %v4364 = vadd.f32 %v3805, %v4330
        %s4365 = scalar_lea.vmem [#allocation9], 64
        %v4366 = vld [vmem:[%s4365] sm:$0xf]
        %v4367 = vld [vmem:[%s4365 + $0x4] sm:$0xf]
        %v4368 = vld [vmem:[%s4365 + $0x8] sm:$0xf]
        %v4369 = vld [vmem:[%s4365 + $0xc] sm:$0xf]
        %v4402 = vunpack.c.l.b16 %v3807
        %v4403 = vunpack.c.l.b16 %v3808
        %v4404 = vunpack.c.l.b16 %v3809
        %v4405 = vunpack.c.l.b16 %v3810
        %v4406 = vunpack.c.l.b16 %v3811
        %v4407 = vunpack.c.l.b16 %v3812
        %v4408 = vunpack.c.l.b16 %v3813
        %v4409 = vunpack.c.l.b16 %v3814
        %v4410 = vunpack.c.l.b16 %v3815
        %v4411 = vunpack.c.l.b16 %v3816
        %v4412 = vunpack.c.l.b16 %v3817
        %v4413 = vunpack.c.l.b16 %v3818
        %v4414 = vunpack.c.l.b16 %v3819
        %v4415 = vunpack.c.l.b16 %v3820
        %v4416 = vunpack.c.l.b16 %v3821
        %v4417 = vunpack.c.l.b16 %v3822
        %v4418 = vunpack.c.l.b16 %v3823
        %v4419 = vunpack.c.l.b16 %v3824
        %v4420 = vunpack.c.l.b16 %v3825
        %v4421 = vunpack.c.l.b16 %v3826
        %v4422 = vunpack.c.l.b16 %v3827
        %v4423 = vunpack.c.l.b16 %v3828
        %v4424 = vunpack.c.l.b16 %v3829
        %v4425 = vunpack.c.l.b16 %v3830
        %v4426 = vunpack.c.l.b16 %v3831
        %v4427 = vunpack.c.l.b16 %v3832
        %v4428 = vunpack.c.l.b16 %v3833
        %v4429 = vunpack.c.l.b16 %v3834
        %v4430 = vunpack.c.l.b16 %v3835
        %v4431 = vunpack.c.l.b16 %v3836
        %v4432 = vunpack.c.l.b16 %v3837
        %v4433 = vunpack.c.l.b16 %v3838
        %v4434 = vpack.c.b16 %v4403, %v4402
        %v4435 = vpack.c.b16 %v4405, %v4404
        %v4436 = vpack.c.b16 %v4407, %v4406
        %v4437 = vpack.c.b16 %v4409, %v4408
        %v4438 = vpack.c.b16 %v4411, %v4410
        %v4439 = vpack.c.b16 %v4413, %v4412
        %v4440 = vpack.c.b16 %v4415, %v4414
        %v4441 = vpack.c.b16 %v4417, %v4416
        %v4442 = vpack.c.b16 %v4419, %v4418
        %v4443 = vpack.c.b16 %v4421, %v4420
        %v4444 = vpack.c.b16 %v4423, %v4422
        %v4445 = vpack.c.b16 %v4425, %v4424
        %v4446 = vpack.c.b16 %v4427, %v4426
        %v4447 = vpack.c.b16 %v4429, %v4428
        %v4448 = vpack.c.b16 %v4431, %v4430
        %v4449 = vpack.c.b16 %v4433, %v4432
        %v4454 = vunpack.c.l.b16 %v4366
        %v4455 = vunpack.c.l.b16 %v4367
        %v4456 = vunpack.c.l.b16 %v4368
        %v4457 = vunpack.c.l.b16 %v4369
        %v4458 = vpack.c.b16 %v4455, %v4454
        %v4459 = vpack.c.b16 %v4457, %v4456
        %v4463 = vsel %vm2148, %v4434, 0
        %v4466 = vsel %vm2148, %v4435, 0
        %v4469 = vsel %vm2148, %v4436, 0
        %v4472 = vsel %vm2148, %v4437, 0
        %v4475 = vsel %vm2148, %v4438, 0
        %v4478 = vsel %vm2148, %v4439, 0
        %v4481 = vsel %vm2148, %v4440, 0
        %v4484 = vsel %vm2148, %v4441, 0
        %v4487 = vsel %vm2148, %v4442, 0
        %v4490 = vsel %vm2148, %v4443, 0
        %v4493 = vsel %vm2148, %v4444, 0
        %v4496 = vsel %vm2148, %v4445, 0
        %v4499 = vsel %vm2148, %v4446, 0
        %v4502 = vsel %vm2148, %v4447, 0
        %v4505 = vsel %vm2148, %v4448, 0
        %v4508 = vsel %vm2148, %v4449, 0
        %4510 = vmatprep.subr.bf16.mxu0 0
        %4511 = vmatpush1.bf16.msra.mxu0 0
        %4512 = vmatprep.subr.bf16.mxu0 0
        %4513 = vmatpush1.bf16.msra.mxu0 0
        %4514 = vmatprep.subr.bf16.mxu0 0
        %4515 = vmatpush1.bf16.msra.mxu0 0
        %4516 = vmatprep.subr.bf16.mxu0 0
        %4517 = vmatpush1.bf16.msra.mxu0 0
        %4518 = vmatprep.subr.bf16.mxu0 0
        %4519 = vmatpush1.bf16.msra.mxu0 0
        %4520 = vmatprep.subr.bf16.mxu0 0
        %4521 = vmatpush1.bf16.msra.mxu0 0
        %4522 = vmatprep.subr.bf16.mxu0 0
        %4523 = vmatpush1.bf16.msra.mxu0 %v4459
        %4524 = vmatprep.subr.bf16.mxu0 0
        %4525 = vmatpush1.bf16.msra.mxu0 %v4458
        %4526 = vmatprep.subr.bf16.mxu0 0
        %4527 = vmatpush2.bf16.msra.mxu0 0
        %4528 = vmatprep.subr.bf16.mxu0 0
        %4529 = vmatpush2.bf16.msra.mxu0 0
        %4530 = vmatprep.subr.bf16.mxu0 0
        %4531 = vmatpush2.bf16.msra.mxu0 0
        %4532 = vmatprep.subr.bf16.mxu0 0
        %4533 = vmatpush2.bf16.msra.mxu0 0
        %4534 = vmatprep.subr.bf16.mxu0 0
        %4535 = vmatpush2.bf16.msra.mxu0 0
        %4536 = vmatprep.subr.bf16.mxu0 0
        %4537 = vmatpush2.bf16.msra.mxu0 0
        %4538 = vmatprep.subr.bf16.mxu0 0
        %4539 = vmatpush2.bf16.msra.mxu0 0
        %4540 = vmatprep.subr.bf16.mxu0 0
        %4541 = vmatpush2.bf16.msra.mxu0 0
        %4542 = vmatprep.mubr.bf16.mxu0 0
        %4543 = vmatmul.mubr.bf16.gmra.mxu0 %v4463
        %v4544 = vpop.f32.mrf.mxu0
        %v4545 = vadd.f32 0.0, %v4544
        %v4546 = vpop.f32.mrf.mxu0
        %v4547 = vpop.f32.mrf.mxu0
        %v4548 = vadd.f32 0.0, %v4547
        %v4549 = vpop.f32.mrf.mxu0
        %4550 = vmatprep.mubr.bf16.mxu0 0
        %4551 = vmatmul.mubr.bf16.gmra.mxu0 %v4466
        %v4552 = vpop.f32.mrf.mxu0
        %v4553 = vadd.f32 0.0, %v4552
        %v4554 = vpop.f32.mrf.mxu0
        %v4555 = vpop.f32.mrf.mxu0
        %v4556 = vadd.f32 0.0, %v4555
        %v4557 = vpop.f32.mrf.mxu0
        %4558 = vmatprep.mubr.bf16.mxu0 0
        %4559 = vmatmul.mubr.bf16.gmra.mxu0 %v4469
        %v4560 = vpop.f32.mrf.mxu0
        %v4561 = vadd.f32 0.0, %v4560
        %v4562 = vpop.f32.mrf.mxu0
        %v4563 = vpop.f32.mrf.mxu0
        %v4564 = vadd.f32 0.0, %v4563
        %v4565 = vpop.f32.mrf.mxu0
        %4566 = vmatprep.mubr.bf16.mxu0 0
        %4567 = vmatmul.mubr.bf16.gmra.mxu0 %v4472
        %v4568 = vpop.f32.mrf.mxu0
        %v4569 = vadd.f32 0.0, %v4568
        %v4570 = vpop.f32.mrf.mxu0
        %v4571 = vpop.f32.mrf.mxu0
        %v4572 = vadd.f32 0.0, %v4571
        %v4573 = vpop.f32.mrf.mxu0
        %4574 = vmatprep.mubr.bf16.mxu0 0
        %4575 = vmatmul.mubr.bf16.gmra.mxu0 %v4475
        %v4576 = vpop.f32.mrf.mxu0
        %v4577 = vadd.f32 0.0, %v4576
        %v4578 = vpop.f32.mrf.mxu0
        %v4579 = vpop.f32.mrf.mxu0
        %v4580 = vadd.f32 0.0, %v4579
        %v4581 = vpop.f32.mrf.mxu0
        %4582 = vmatprep.mubr.bf16.mxu0 0
        %4583 = vmatmul.mubr.bf16.gmra.mxu0 %v4478
        %v4584 = vpop.f32.mrf.mxu0
        %v4585 = vadd.f32 0.0, %v4584
        %v4586 = vpop.f32.mrf.mxu0
        %v4587 = vpop.f32.mrf.mxu0
        %v4588 = vadd.f32 0.0, %v4587
        %v4589 = vpop.f32.mrf.mxu0
        %4590 = vmatprep.mubr.bf16.mxu0 0
        %4591 = vmatmul.mubr.bf16.gmra.mxu0 %v4481
        %v4592 = vpop.f32.mrf.mxu0
        %v4593 = vadd.f32 0.0, %v4592
        %v4594 = vpop.f32.mrf.mxu0
        %v4595 = vpop.f32.mrf.mxu0
        %v4596 = vadd.f32 0.0, %v4595
        %v4597 = vpop.f32.mrf.mxu0
        %4598 = vmatprep.mubr.bf16.mxu0 0
        %4599 = vmatmul.mubr.bf16.gmra.mxu0 %v4484
        %v4600 = vpop.f32.mrf.mxu0
        %v4601 = vadd.f32 0.0, %v4600
        %v4602 = vpop.f32.mrf.mxu0
        %v4603 = vpop.f32.mrf.mxu0
        %v4604 = vadd.f32 0.0, %v4603
        %v4605 = vpop.f32.mrf.mxu0
        %4606 = vmatprep.mubr.bf16.mxu0 0
        %4607 = vmatmul.mubr.bf16.gmra.mxu0 %v4487
        %v4608 = vpop.f32.mrf.mxu0
        %v4609 = vadd.f32 0.0, %v4608
        %v4610 = vpop.f32.mrf.mxu0
        %v4611 = vpop.f32.mrf.mxu0
        %v4612 = vadd.f32 0.0, %v4611
        %v4613 = vpop.f32.mrf.mxu0
        %4614 = vmatprep.mubr.bf16.mxu0 0
        %4615 = vmatmul.mubr.bf16.gmra.mxu0 %v4490
        %v4616 = vpop.f32.mrf.mxu0
        %v4617 = vadd.f32 0.0, %v4616
        %v4618 = vpop.f32.mrf.mxu0
        %v4619 = vpop.f32.mrf.mxu0
        %v4620 = vadd.f32 0.0, %v4619
        %v4621 = vpop.f32.mrf.mxu0
        %4622 = vmatprep.mubr.bf16.mxu0 0
        %4623 = vmatmul.mubr.bf16.gmra.mxu0 %v4493
        %v4624 = vpop.f32.mrf.mxu0
        %v4625 = vadd.f32 0.0, %v4624
        %v4626 = vpop.f32.mrf.mxu0
        %v4627 = vpop.f32.mrf.mxu0
        %v4628 = vadd.f32 0.0, %v4627
        %v4629 = vpop.f32.mrf.mxu0
        %4630 = vmatprep.mubr.bf16.mxu0 0
        %4631 = vmatmul.mubr.bf16.gmra.mxu0 %v4496
        %v4632 = vpop.f32.mrf.mxu0
        %v4633 = vadd.f32 0.0, %v4632
        %v4634 = vpop.f32.mrf.mxu0
        %v4635 = vpop.f32.mrf.mxu0
        %v4636 = vadd.f32 0.0, %v4635
        %v4637 = vpop.f32.mrf.mxu0
        %4638 = vmatprep.mubr.bf16.mxu0 0
        %4639 = vmatmul.mubr.bf16.gmra.mxu0 %v4499
        %v4640 = vpop.f32.mrf.mxu0
        %v4641 = vadd.f32 0.0, %v4640
        %v4642 = vpop.f32.mrf.mxu0
        %v4643 = vpop.f32.mrf.mxu0
        %v4644 = vadd.f32 0.0, %v4643
        %v4645 = vpop.f32.mrf.mxu0
        %4646 = vmatprep.mubr.bf16.mxu0 0
        %4647 = vmatmul.mubr.bf16.gmra.mxu0 %v4502
        %v4648 = vpop.f32.mrf.mxu0
        %v4649 = vadd.f32 0.0, %v4648
        %v4650 = vpop.f32.mrf.mxu0
        %v4651 = vpop.f32.mrf.mxu0
        %v4652 = vadd.f32 0.0, %v4651
        %v4653 = vpop.f32.mrf.mxu0
        %4654 = vmatprep.mubr.bf16.mxu0 0
        %4655 = vmatmul.mubr.bf16.gmra.mxu0 %v4505
        %v4656 = vpop.f32.mrf.mxu0
        %v4657 = vadd.f32 0.0, %v4656
        %v4658 = vpop.f32.mrf.mxu0
        %v4659 = vpop.f32.mrf.mxu0
        %v4660 = vadd.f32 0.0, %v4659
        %v4661 = vpop.f32.mrf.mxu0
        %4662 = vmatprep.mubr.bf16.mxu0 0
        %4663 = vmatmul.mubr.bf16.gmra.mxu0 %v4508
        %v4664 = vpop.f32.mrf.mxu0
        %v4665 = vadd.f32 0.0, %v4664
        %v4666 = vpop.f32.mrf.mxu0
        %v4667 = vpop.f32.mrf.mxu0
        %v4668 = vadd.f32 0.0, %v4667
        %v4669 = vpop.f32.mrf.mxu0
        %4670 = vdwg.mxu0
        %v4671 = vadd.f32 %v4333, %v4545
        %v4672 = vadd.f32 %v4334, %v4548
        %v4673 = vadd.f32 %v4335, %v4553
        %v4674 = vadd.f32 %v4336, %v4556
        %v4675 = vadd.f32 %v4337, %v4561
        %v4676 = vadd.f32 %v4338, %v4564
        %v4677 = vadd.f32 %v4339, %v4569
        %v4678 = vadd.f32 %v4340, %v4572
        %v4679 = vadd.f32 %v4341, %v4577
        %v4680 = vadd.f32 %v4342, %v4580
        %v4681 = vadd.f32 %v4343, %v4585
        %v4682 = vadd.f32 %v4344, %v4588
        %v4683 = vadd.f32 %v4345, %v4593
        %v4684 = vadd.f32 %v4346, %v4596
        %v4685 = vadd.f32 %v4347, %v4601
        %v4686 = vadd.f32 %v4348, %v4604
        %v4687 = vadd.f32 %v4349, %v4609
        %v4688 = vadd.f32 %v4350, %v4612
        %v4689 = vadd.f32 %v4351, %v4617
        %v4690 = vadd.f32 %v4352, %v4620
        %v4691 = vadd.f32 %v4353, %v4625
        %v4692 = vadd.f32 %v4354, %v4628
        %v4693 = vadd.f32 %v4355, %v4633
        %v4694 = vadd.f32 %v4356, %v4636
        %v4695 = vadd.f32 %v4357, %v4641
        %v4696 = vadd.f32 %v4358, %v4644
        %v4697 = vadd.f32 %v4359, %v4649
        %v4698 = vadd.f32 %v4360, %v4652
        %v4699 = vadd.f32 %v4361, %v4657
        %v4700 = vadd.f32 %v4362, %v4660
        %v4701 = vadd.f32 %v4363, %v4665
        %v4702 = vadd.f32 %v4364, %v4668
        %v4703 = vld [vmem:[#allocation2 + $0x10] sm:$0xf]
        %v4704 = vld [vmem:[#allocation2 + $0x14] sm:$0xf]
        %v4705 = vld [vmem:[#allocation2 + $0x18] sm:$0xf]
        %v4706 = vld [vmem:[#allocation2 + $0x1c] sm:$0xf]
        %v4707 = vld [vmem:[#allocation2 + $0x20] sm:$0xf]
        %v4708 = vld [vmem:[#allocation2 + $0x24] sm:$0xf]
        %v4709 = vld [vmem:[#allocation2 + $0x28] sm:$0xf]
        %v4710 = vld [vmem:[#allocation2 + $0x2c] sm:$0xf]
        %v4711 = vld [vmem:[#allocation2 + $0x30] sm:$0xf]
        %v4712 = vld [vmem:[#allocation2 + $0x34] sm:$0xf]
        %v4713 = vld [vmem:[#allocation2 + $0x38] sm:$0xf]
        %v4714 = vld [vmem:[#allocation2 + $0x3c] sm:$0xf]
        %v4715 = vld [vmem:[#allocation2 + $0x40] sm:$0xf]
        %v4716 = vld [vmem:[#allocation2 + $0x44] sm:$0xf]
        %v4717 = vld [vmem:[#allocation2 + $0x48] sm:$0xf]
        %v4718 = vld [vmem:[#allocation2 + $0x4c] sm:$0xf]
        %v4719 = vld [vmem:[#allocation2 + $0x50] sm:$0xf]
        %v4720 = vld [vmem:[#allocation2 + $0x54] sm:$0xf]
        %v4721 = vld [vmem:[#allocation2 + $0x58] sm:$0xf]
        %v4722 = vld [vmem:[#allocation2 + $0x5c] sm:$0xf]
        %v4723 = vld [vmem:[#allocation2 + $0x60] sm:$0xf]
        %v4724 = vld [vmem:[#allocation2 + $0x64] sm:$0xf]
        %v4725 = vld [vmem:[#allocation2 + $0x68] sm:$0xf]
        %v4726 = vld [vmem:[#allocation2 + $0x6c] sm:$0xf]
        %v4727 = vld [vmem:[#allocation2 + $0x70] sm:$0xf]
        %v4728 = vld [vmem:[#allocation2 + $0x74] sm:$0xf]
        %v4729 = vld [vmem:[#allocation2 + $0x78] sm:$0xf]
        %v4730 = vld [vmem:[#allocation2 + $0x7c] sm:$0xf]
        %v4731 = vld [vmem:[#allocation2 + $0x80] sm:$0xf]
        %v4732 = vld [vmem:[#allocation2 + $0x84] sm:$0xf]
        %v4733 = vld [vmem:[#allocation2 + $0x88] sm:$0xf]
        %v4734 = vld [vmem:[#allocation2 + $0x8c] sm:$0xf]
        %v4735 = vld [vmem:[#allocation2 + $0x90] sm:$0x1]
        %v4736 = vsel %vm3266, %v4703, 0
        %v4737 = vsel %vm3267, %v4704, 0
        %v4738 = vsel %vm3268, %v4705, 0
        %v4739 = vsel %vm3269, %v4706, 0
        %v4740 = vsel %vm3270, %v4707, 0
        %v4741 = vsel %vm3271, %v4708, 0
        %v4742 = vsel %vm3272, %v4709, 0
        %v4743 = vsel %vm3273, %v4710, 0
        %v4744 = vsel %vm3274, %v4711, 0
        %v4745 = vsel %vm3275, %v4712, 0
        %v4746 = vsel %vm3276, %v4713, 0
        %v4747 = vsel %vm3277, %v4714, 0
        %v4748 = vsel %vm3278, %v4715, 0
        %v4749 = vsel %vm3279, %v4716, 0
        %v4750 = vsel %vm3280, %v4717, 0
        %v4751 = vsel %vm3281, %v4718, 0
        %v4752 = vsel %vm3282, %v4719, 0
        %v4753 = vsel %vm3283, %v4720, 0
        %v4754 = vsel %vm3284, %v4721, 0
        %v4755 = vsel %vm3285, %v4722, 0
        %v4756 = vsel %vm3286, %v4723, 0
        %v4757 = vsel %vm3287, %v4724, 0
        %v4758 = vsel %vm3288, %v4725, 0
        %v4759 = vsel %vm3289, %v4726, 0
        %v4760 = vsel %vm3290, %v4727, 0
        %v4761 = vsel %vm3291, %v4728, 0
        %v4762 = vsel %vm3292, %v4729, 0
        %v4763 = vsel %vm3293, %v4730, 0
        %v4764 = vsel %vm3294, %v4731, 0
        %v4765 = vsel %vm3295, %v4732, 0
        %v4766 = vsel %vm3296, %v4733, 0
        %v4767 = vsel %vm3297, %v4734, 0
        %v4768 = vsel %vm3298, %v4735, 0
        %s4769 = scalar_lea.vmem [#allocation9], 80
        %v4770 = vld [vmem:[%s4769] sm:$0xf]
        %v4771 = vld [vmem:[%s4769 + $0x4] sm:$0xf]
        %v4772 = vld [vmem:[%s4769 + $0x8] sm:$0xf]
        %v4773 = vld [vmem:[%s4769 + $0xc] sm:$0xf]
        %v4807 = vunpack.c.l.b16 %v4736
        %v4808 = vunpack.c.l.b16 %v4737
        %v4809 = vunpack.c.l.b16 %v4738
        %v4810 = vunpack.c.l.b16 %v4739
        %v4811 = vunpack.c.l.b16 %v4740
        %v4812 = vunpack.c.l.b16 %v4741
        %v4813 = vunpack.c.l.b16 %v4742
        %v4814 = vunpack.c.l.b16 %v4743
        %v4815 = vunpack.c.l.b16 %v4744
        %v4816 = vunpack.c.l.b16 %v4745
        %v4817 = vunpack.c.l.b16 %v4746
        %v4818 = vunpack.c.l.b16 %v4747
        %v4819 = vunpack.c.l.b16 %v4748
        %v4820 = vunpack.c.l.b16 %v4749
        %v4821 = vunpack.c.l.b16 %v4750
        %v4822 = vunpack.c.l.b16 %v4751
        %v4823 = vunpack.c.l.b16 %v4752
        %v4824 = vunpack.c.l.b16 %v4753
        %v4825 = vunpack.c.l.b16 %v4754
        %v4826 = vunpack.c.l.b16 %v4755
        %v4827 = vunpack.c.l.b16 %v4756
        %v4828 = vunpack.c.l.b16 %v4757
        %v4829 = vunpack.c.l.b16 %v4758
        %v4830 = vunpack.c.l.b16 %v4759
        %v4831 = vunpack.c.l.b16 %v4760
        %v4832 = vunpack.c.l.b16 %v4761
        %v4833 = vunpack.c.l.b16 %v4762
        %v4834 = vunpack.c.l.b16 %v4763
        %v4835 = vunpack.c.l.b16 %v4764
        %v4836 = vunpack.c.l.b16 %v4765
        %v4837 = vunpack.c.l.b16 %v4766
        %v4838 = vunpack.c.l.b16 %v4767
        %v4839 = vunpack.c.l.b16 %v4768
        %v4840 = vpack.c.b16 %v4808, %v4807
        %v4841 = vpack.c.b16 %v4810, %v4809
        %v4842 = vpack.c.b16 %v4812, %v4811
        %v4843 = vpack.c.b16 %v4814, %v4813
        %v4844 = vpack.c.b16 %v4816, %v4815
        %v4845 = vpack.c.b16 %v4818, %v4817
        %v4846 = vpack.c.b16 %v4820, %v4819
        %v4847 = vpack.c.b16 %v4822, %v4821
        %v4848 = vpack.c.b16 %v4824, %v4823
        %v4849 = vpack.c.b16 %v4826, %v4825
        %v4850 = vpack.c.b16 %v4828, %v4827
        %v4851 = vpack.c.b16 %v4830, %v4829
        %v4852 = vpack.c.b16 %v4832, %v4831
        %v4853 = vpack.c.b16 %v4834, %v4833
        %v4854 = vpack.c.b16 %v4836, %v4835
        %v4855 = vpack.c.b16 %v4838, %v4837
        %v4856 = vpack.c.b16 %v4839, %v4839
        %v4858 = vshrl.u32 %v4840, 16
        %v4860 = vshll.u32 %v4840, 16
        %v4862 = vrot.slane %v4860, 1
        %v4863 = vor.u32 %v4858, %v4862
        %v4865 = vshll.u32 %v4841, 16
        %v4867 = vrot.slane %v4865, 1
        %v4868 = vsel %vm3420, %v4863, %v4867
        %v4869 = vshrl.u32 %v4841, 16
        %v4871 = vor.u32 %v4869, %v4867
        %v4873 = vshll.u32 %v4842, 16
        %v4875 = vrot.slane %v4873, 1
        %v4876 = vsel %vm3420, %v4871, %v4875
        %v4877 = vshrl.u32 %v4842, 16
        %v4879 = vor.u32 %v4877, %v4875
        %v4881 = vshll.u32 %v4843, 16
        %v4883 = vrot.slane %v4881, 1
        %v4884 = vsel %vm3420, %v4879, %v4883
        %v4885 = vshrl.u32 %v4843, 16
        %v4887 = vor.u32 %v4885, %v4883
        %v4889 = vshll.u32 %v4844, 16
        %v4891 = vrot.slane %v4889, 1
        %v4892 = vsel %vm3420, %v4887, %v4891
        %v4893 = vshrl.u32 %v4844, 16
        %v4895 = vor.u32 %v4893, %v4891
        %v4897 = vshll.u32 %v4845, 16
        %v4899 = vrot.slane %v4897, 1
        %v4900 = vsel %vm3420, %v4895, %v4899
        %v4901 = vshrl.u32 %v4845, 16
        %v4903 = vor.u32 %v4901, %v4899
        %v4905 = vshll.u32 %v4846, 16
        %v4907 = vrot.slane %v4905, 1
        %v4908 = vsel %vm3420, %v4903, %v4907
        %v4909 = vshrl.u32 %v4846, 16
        %v4911 = vor.u32 %v4909, %v4907
        %v4913 = vshll.u32 %v4847, 16
        %v4915 = vrot.slane %v4913, 1
        %v4916 = vsel %vm3420, %v4911, %v4915
        %v4917 = vshrl.u32 %v4847, 16
        %v4919 = vor.u32 %v4917, %v4915
        %v4921 = vshll.u32 %v4848, 16
        %v4923 = vrot.slane %v4921, 1
        %v4924 = vsel %vm3420, %v4919, %v4923
        %v4925 = vshrl.u32 %v4848, 16
        %v4927 = vor.u32 %v4925, %v4923
        %v4929 = vshll.u32 %v4849, 16
        %v4931 = vrot.slane %v4929, 1
        %v4932 = vsel %vm3420, %v4927, %v4931
        %v4933 = vshrl.u32 %v4849, 16
        %v4935 = vor.u32 %v4933, %v4931
        %v4937 = vshll.u32 %v4850, 16
        %v4939 = vrot.slane %v4937, 1
        %v4940 = vsel %vm3420, %v4935, %v4939
        %v4941 = vshrl.u32 %v4850, 16
        %v4943 = vor.u32 %v4941, %v4939
        %v4945 = vshll.u32 %v4851, 16
        %v4947 = vrot.slane %v4945, 1
        %v4948 = vsel %vm3420, %v4943, %v4947
        %v4949 = vshrl.u32 %v4851, 16
        %v4951 = vor.u32 %v4949, %v4947
        %v4953 = vshll.u32 %v4852, 16
        %v4955 = vrot.slane %v4953, 1
        %v4956 = vsel %vm3420, %v4951, %v4955
        %v4957 = vshrl.u32 %v4852, 16
        %v4959 = vor.u32 %v4957, %v4955
        %v4961 = vshll.u32 %v4853, 16
        %v4963 = vrot.slane %v4961, 1
        %v4964 = vsel %vm3420, %v4959, %v4963
        %v4965 = vshrl.u32 %v4853, 16
        %v4967 = vor.u32 %v4965, %v4963
        %v4969 = vshll.u32 %v4854, 16
        %v4971 = vrot.slane %v4969, 1
        %v4972 = vsel %vm3420, %v4967, %v4971
        %v4973 = vshrl.u32 %v4854, 16
        %v4975 = vor.u32 %v4973, %v4971
        %v4977 = vshll.u32 %v4855, 16
        %v4979 = vrot.slane %v4977, 1
        %v4980 = vsel %vm3420, %v4975, %v4979
        %v4981 = vshrl.u32 %v4855, 16
        %v4983 = vor.u32 %v4981, %v4979
        %v4985 = vshll.u32 %v4856, 16
        %v4987 = vrot.slane %v4985, 1
        %v4988 = vsel %vm3420, %v4983, %v4987
        %v4993 = vunpack.c.l.b16 %v4770
        %v4994 = vunpack.c.l.b16 %v4771
        %v4995 = vunpack.c.l.b16 %v4772
        %v4996 = vunpack.c.l.b16 %v4773
        %v4997 = vpack.c.b16 %v4994, %v4993
        %v4998 = vpack.c.b16 %v4996, %v4995
        %v5002 = vsel %vm2148, %v4868, 0
        %v5005 = vsel %vm2148, %v4876, 0
        %v5008 = vsel %vm2148, %v4884, 0
        %v5011 = vsel %vm2148, %v4892, 0
        %v5014 = vsel %vm2148, %v4900, 0
        %v5017 = vsel %vm2148, %v4908, 0
        %v5020 = vsel %vm2148, %v4916, 0
        %v5023 = vsel %vm2148, %v4924, 0
        %v5026 = vsel %vm2148, %v4932, 0
        %v5029 = vsel %vm2148, %v4940, 0
        %v5032 = vsel %vm2148, %v4948, 0
        %v5035 = vsel %vm2148, %v4956, 0
        %v5038 = vsel %vm2148, %v4964, 0
        %v5041 = vsel %vm2148, %v4972, 0
        %v5044 = vsel %vm2148, %v4980, 0
        %v5047 = vsel %vm2148, %v4988, 0
        %5049 = vmatprep.subr.bf16.mxu0 0
        %5050 = vmatpush1.bf16.msra.mxu0 0
        %5051 = vmatprep.subr.bf16.mxu0 0
        %5052 = vmatpush1.bf16.msra.mxu0 0
        %5053 = vmatprep.subr.bf16.mxu0 0
        %5054 = vmatpush1.bf16.msra.mxu0 0
        %5055 = vmatprep.subr.bf16.mxu0 0
        %5056 = vmatpush1.bf16.msra.mxu0 0
        %5057 = vmatprep.subr.bf16.mxu0 0
        %5058 = vmatpush1.bf16.msra.mxu0 0
        %5059 = vmatprep.subr.bf16.mxu0 0
        %5060 = vmatpush1.bf16.msra.mxu0 0
        %5061 = vmatprep.subr.bf16.mxu0 0
        %5062 = vmatpush1.bf16.msra.mxu0 %v4998
        %5063 = vmatprep.subr.bf16.mxu0 0
        %5064 = vmatpush1.bf16.msra.mxu0 %v4997
        %5065 = vmatprep.subr.bf16.mxu0 0
        %5066 = vmatpush2.bf16.msra.mxu0 0
        %5067 = vmatprep.subr.bf16.mxu0 0
        %5068 = vmatpush2.bf16.msra.mxu0 0
        %5069 = vmatprep.subr.bf16.mxu0 0
        %5070 = vmatpush2.bf16.msra.mxu0 0
        %5071 = vmatprep.subr.bf16.mxu0 0
        %5072 = vmatpush2.bf16.msra.mxu0 0
        %5073 = vmatprep.subr.bf16.mxu0 0
        %5074 = vmatpush2.bf16.msra.mxu0 0
        %5075 = vmatprep.subr.bf16.mxu0 0
        %5076 = vmatpush2.bf16.msra.mxu0 0
        %5077 = vmatprep.subr.bf16.mxu0 0
        %5078 = vmatpush2.bf16.msra.mxu0 0
        %5079 = vmatprep.subr.bf16.mxu0 0
        %5080 = vmatpush2.bf16.msra.mxu0 0
        %5081 = vmatprep.mubr.bf16.mxu0 0
        %5082 = vmatmul.mubr.bf16.gmra.mxu0 %v5002
        %v5083 = vpop.f32.mrf.mxu0
        %v5084 = vadd.f32 0.0, %v5083
        %v5085 = vpop.f32.mrf.mxu0
        %v5086 = vpop.f32.mrf.mxu0
        %v5087 = vadd.f32 0.0, %v5086
        %v5088 = vpop.f32.mrf.mxu0
        %5089 = vmatprep.mubr.bf16.mxu0 0
        %5090 = vmatmul.mubr.bf16.gmra.mxu0 %v5005
        %v5091 = vpop.f32.mrf.mxu0
        %v5092 = vadd.f32 0.0, %v5091
        %v5093 = vpop.f32.mrf.mxu0
        %v5094 = vpop.f32.mrf.mxu0
        %v5095 = vadd.f32 0.0, %v5094
        %v5096 = vpop.f32.mrf.mxu0
        %5097 = vmatprep.mubr.bf16.mxu0 0
        %5098 = vmatmul.mubr.bf16.gmra.mxu0 %v5008
        %v5099 = vpop.f32.mrf.mxu0
        %v5100 = vadd.f32 0.0, %v5099
        %v5101 = vpop.f32.mrf.mxu0
        %v5102 = vpop.f32.mrf.mxu0
        %v5103 = vadd.f32 0.0, %v5102
        %v5104 = vpop.f32.mrf.mxu0
        %5105 = vmatprep.mubr.bf16.mxu0 0
        %5106 = vmatmul.mubr.bf16.gmra.mxu0 %v5011
        %v5107 = vpop.f32.mrf.mxu0
        %v5108 = vadd.f32 0.0, %v5107
        %v5109 = vpop.f32.mrf.mxu0
        %v5110 = vpop.f32.mrf.mxu0
        %v5111 = vadd.f32 0.0, %v5110
        %v5112 = vpop.f32.mrf.mxu0
        %5113 = vmatprep.mubr.bf16.mxu0 0
        %5114 = vmatmul.mubr.bf16.gmra.mxu0 %v5014
        %v5115 = vpop.f32.mrf.mxu0
        %v5116 = vadd.f32 0.0, %v5115
        %v5117 = vpop.f32.mrf.mxu0
        %v5118 = vpop.f32.mrf.mxu0
        %v5119 = vadd.f32 0.0, %v5118
        %v5120 = vpop.f32.mrf.mxu0
        %5121 = vmatprep.mubr.bf16.mxu0 0
        %5122 = vmatmul.mubr.bf16.gmra.mxu0 %v5017
        %v5123 = vpop.f32.mrf.mxu0
        %v5124 = vadd.f32 0.0, %v5123
        %v5125 = vpop.f32.mrf.mxu0
        %v5126 = vpop.f32.mrf.mxu0
        %v5127 = vadd.f32 0.0, %v5126
        %v5128 = vpop.f32.mrf.mxu0
        %5129 = vmatprep.mubr.bf16.mxu0 0
        %5130 = vmatmul.mubr.bf16.gmra.mxu0 %v5020
        %v5131 = vpop.f32.mrf.mxu0
        %v5132 = vadd.f32 0.0, %v5131
        %v5133 = vpop.f32.mrf.mxu0
        %v5134 = vpop.f32.mrf.mxu0
        %v5135 = vadd.f32 0.0, %v5134
        %v5136 = vpop.f32.mrf.mxu0
        %5137 = vmatprep.mubr.bf16.mxu0 0
        %5138 = vmatmul.mubr.bf16.gmra.mxu0 %v5023
        %v5139 = vpop.f32.mrf.mxu0
        %v5140 = vadd.f32 0.0, %v5139
        %v5141 = vpop.f32.mrf.mxu0
        %v5142 = vpop.f32.mrf.mxu0
        %v5143 = vadd.f32 0.0, %v5142
        %v5144 = vpop.f32.mrf.mxu0
        %5145 = vmatprep.mubr.bf16.mxu0 0
        %5146 = vmatmul.mubr.bf16.gmra.mxu0 %v5026
        %v5147 = vpop.f32.mrf.mxu0
        %v5148 = vadd.f32 0.0, %v5147
        %v5149 = vpop.f32.mrf.mxu0
        %v5150 = vpop.f32.mrf.mxu0
        %v5151 = vadd.f32 0.0, %v5150
        %v5152 = vpop.f32.mrf.mxu0
        %5153 = vmatprep.mubr.bf16.mxu0 0
        %5154 = vmatmul.mubr.bf16.gmra.mxu0 %v5029
        %v5155 = vpop.f32.mrf.mxu0
        %v5156 = vadd.f32 0.0, %v5155
        %v5157 = vpop.f32.mrf.mxu0
        %v5158 = vpop.f32.mrf.mxu0
        %v5159 = vadd.f32 0.0, %v5158
        %v5160 = vpop.f32.mrf.mxu0
        %5161 = vmatprep.mubr.bf16.mxu0 0
        %5162 = vmatmul.mubr.bf16.gmra.mxu0 %v5032
        %v5163 = vpop.f32.mrf.mxu0
        %v5164 = vadd.f32 0.0, %v5163
        %v5165 = vpop.f32.mrf.mxu0
        %v5166 = vpop.f32.mrf.mxu0
        %v5167 = vadd.f32 0.0, %v5166
        %v5168 = vpop.f32.mrf.mxu0
        %5169 = vmatprep.mubr.bf16.mxu0 0
        %5170 = vmatmul.mubr.bf16.gmra.mxu0 %v5035
        %v5171 = vpop.f32.mrf.mxu0
        %v5172 = vadd.f32 0.0, %v5171
        %v5173 = vpop.f32.mrf.mxu0
        %v5174 = vpop.f32.mrf.mxu0
        %v5175 = vadd.f32 0.0, %v5174
        %v5176 = vpop.f32.mrf.mxu0
        %5177 = vmatprep.mubr.bf16.mxu0 0
        %5178 = vmatmul.mubr.bf16.gmra.mxu0 %v5038
        %v5179 = vpop.f32.mrf.mxu0
        %v5180 = vadd.f32 0.0, %v5179
        %v5181 = vpop.f32.mrf.mxu0
        %v5182 = vpop.f32.mrf.mxu0
        %v5183 = vadd.f32 0.0, %v5182
        %v5184 = vpop.f32.mrf.mxu0
        %5185 = vmatprep.mubr.bf16.mxu0 0
        %5186 = vmatmul.mubr.bf16.gmra.mxu0 %v5041
        %v5187 = vpop.f32.mrf.mxu0
        %v5188 = vadd.f32 0.0, %v5187
        %v5189 = vpop.f32.mrf.mxu0
        %v5190 = vpop.f32.mrf.mxu0
        %v5191 = vadd.f32 0.0, %v5190
        %v5192 = vpop.f32.mrf.mxu0
        %5193 = vmatprep.mubr.bf16.mxu0 0
        %5194 = vmatmul.mubr.bf16.gmra.mxu0 %v5044
        %v5195 = vpop.f32.mrf.mxu0
        %v5196 = vadd.f32 0.0, %v5195
        %v5197 = vpop.f32.mrf.mxu0
        %v5198 = vpop.f32.mrf.mxu0
        %v5199 = vadd.f32 0.0, %v5198
        %v5200 = vpop.f32.mrf.mxu0
        %5201 = vmatprep.mubr.bf16.mxu0 0
        %5202 = vmatmul.mubr.bf16.gmra.mxu0 %v5047
        %v5203 = vpop.f32.mrf.mxu0
        %v5204 = vadd.f32 0.0, %v5203
        %v5205 = vpop.f32.mrf.mxu0
        %v5206 = vpop.f32.mrf.mxu0
        %v5207 = vadd.f32 0.0, %v5206
        %v5208 = vpop.f32.mrf.mxu0
        %5209 = vdwg.mxu0
        %v5210 = vadd.f32 %v4671, %v5084
        %v5211 = vadd.f32 %v4672, %v5087
        %v5212 = vadd.f32 %v4673, %v5092
        %v5213 = vadd.f32 %v4674, %v5095
        %v5214 = vadd.f32 %v4675, %v5100
        %v5215 = vadd.f32 %v4676, %v5103
        %v5216 = vadd.f32 %v4677, %v5108
        %v5217 = vadd.f32 %v4678, %v5111
        %v5218 = vadd.f32 %v4679, %v5116
        %v5219 = vadd.f32 %v4680, %v5119
        %v5220 = vadd.f32 %v4681, %v5124
        %v5221 = vadd.f32 %v4682, %v5127
        %v5222 = vadd.f32 %v4683, %v5132
        %v5223 = vadd.f32 %v4684, %v5135
        %v5224 = vadd.f32 %v4685, %v5140
        %v5225 = vadd.f32 %v4686, %v5143
        %v5226 = vadd.f32 %v4687, %v5148
        %v5227 = vadd.f32 %v4688, %v5151
        %v5228 = vadd.f32 %v4689, %v5156
        %v5229 = vadd.f32 %v4690, %v5159
        %v5230 = vadd.f32 %v4691, %v5164
        %v5231 = vadd.f32 %v4692, %v5167
        %v5232 = vadd.f32 %v4693, %v5172
        %v5233 = vadd.f32 %v4694, %v5175
        %v5234 = vadd.f32 %v4695, %v5180
        %v5235 = vadd.f32 %v4696, %v5183
        %v5236 = vadd.f32 %v4697, %v5188
        %v5237 = vadd.f32 %v4698, %v5191
        %v5238 = vadd.f32 %v4699, %v5196
        %v5239 = vadd.f32 %v4700, %v5199
        %v5240 = vadd.f32 %v4701, %v5204
        %v5241 = vadd.f32 %v4702, %v5207
        %v5242 = vld [vmem:[#allocation2 + $0x14] sm:$0x8]
        %v5243 = vld [vmem:[#allocation2 + $0x18] sm:$0xf]
        %v5244 = vld [vmem:[#allocation2 + $0x1c] sm:$0xf]
        %v5245 = vld [vmem:[#allocation2 + $0x20] sm:$0xf]
        %v5246 = vld [vmem:[#allocation2 + $0x24] sm:$0xf]
        %v5247 = vld [vmem:[#allocation2 + $0x28] sm:$0xf]
        %v5248 = vld [vmem:[#allocation2 + $0x2c] sm:$0xf]
        %v5249 = vld [vmem:[#allocation2 + $0x30] sm:$0xf]
        %v5250 = vld [vmem:[#allocation2 + $0x34] sm:$0xf]
        %v5251 = vld [vmem:[#allocation2 + $0x38] sm:$0xf]
        %v5252 = vld [vmem:[#allocation2 + $0x3c] sm:$0xf]
        %v5253 = vld [vmem:[#allocation2 + $0x40] sm:$0xf]
        %v5254 = vld [vmem:[#allocation2 + $0x44] sm:$0xf]
        %v5255 = vld [vmem:[#allocation2 + $0x48] sm:$0xf]
        %v5256 = vld [vmem:[#allocation2 + $0x4c] sm:$0xf]
        %v5257 = vld [vmem:[#allocation2 + $0x50] sm:$0xf]
        %v5258 = vld [vmem:[#allocation2 + $0x54] sm:$0xf]
        %v5259 = vld [vmem:[#allocation2 + $0x58] sm:$0xf]
        %v5260 = vld [vmem:[#allocation2 + $0x5c] sm:$0xf]
        %v5261 = vld [vmem:[#allocation2 + $0x60] sm:$0xf]
        %v5262 = vld [vmem:[#allocation2 + $0x64] sm:$0xf]
        %v5263 = vld [vmem:[#allocation2 + $0x68] sm:$0xf]
        %v5264 = vld [vmem:[#allocation2 + $0x6c] sm:$0xf]
        %v5265 = vld [vmem:[#allocation2 + $0x70] sm:$0xf]
        %v5266 = vld [vmem:[#allocation2 + $0x74] sm:$0xf]
        %v5267 = vld [vmem:[#allocation2 + $0x78] sm:$0xf]
        %v5268 = vld [vmem:[#allocation2 + $0x7c] sm:$0xf]
        %v5269 = vld [vmem:[#allocation2 + $0x80] sm:$0xf]
        %v5270 = vld [vmem:[#allocation2 + $0x84] sm:$0xf]
        %v5271 = vld [vmem:[#allocation2 + $0x88] sm:$0xf]
        %v5272 = vld [vmem:[#allocation2 + $0x8c] sm:$0xf]
        %v5273 = vld [vmem:[#allocation2 + $0x90] sm:$0xf]
        %v5274 = vld [vmem:[#allocation2 + $0x94] sm:$0xf]
        %v5275 = vsel %vm1981, %v5242, 0
        %v5276 = vsel %vm1982, %v5243, 0
        %v5277 = vsel %vm1983, %v5244, 0
        %v5278 = vsel %vm1984, %v5245, 0
        %v5279 = vsel %vm1985, %v5246, 0
        %v5280 = vsel %vm1986, %v5247, 0
        %v5281 = vsel %vm1987, %v5248, 0
        %v5282 = vsel %vm1988, %v5249, 0
        %v5283 = vsel %vm1989, %v5250, 0
        %v5284 = vsel %vm1990, %v5251, 0
        %v5285 = vsel %vm1991, %v5252, 0
        %v5286 = vsel %vm1992, %v5253, 0
        %v5287 = vsel %vm1993, %v5254, 0
        %v5288 = vsel %vm1994, %v5255, 0
        %v5289 = vsel %vm1995, %v5256, 0
        %v5290 = vsel %vm1996, %v5257, 0
        %v5291 = vsel %vm1997, %v5258, 0
        %v5292 = vsel %vm1998, %v5259, 0
        %v5293 = vsel %vm1999, %v5260, 0
        %v5294 = vsel %vm2000, %v5261, 0
        %v5295 = vsel %vm2001, %v5262, 0
        %v5296 = vsel %vm2002, %v5263, 0
        %v5297 = vsel %vm2003, %v5264, 0
        %v5298 = vsel %vm2004, %v5265, 0
        %v5299 = vsel %vm2005, %v5266, 0
        %v5300 = vsel %vm2006, %v5267, 0
        %v5301 = vsel %vm2007, %v5268, 0
        %v5302 = vsel %vm2008, %v5269, 0
        %v5303 = vsel %vm2009, %v5270, 0
        %v5304 = vsel %vm2010, %v5271, 0
        %v5305 = vsel %vm2011, %v5272, 0
        %v5306 = vsel %vm2012, %v5273, 0
        %v5307 = vsel %vm2013, %v5274, 0
        %s5308 = scalar_lea.vmem [#allocation9], 96
        %v5309 = vld [vmem:[%s5308] sm:$0xf]
        %v5310 = vld [vmem:[%s5308 + $0x4] sm:$0xf]
        %v5311 = vld [vmem:[%s5308 + $0x8] sm:$0xf]
        %v5312 = vld [vmem:[%s5308 + $0xc] sm:$0xf]
        %v5346 = vunpack.c.l.b16 %v5275
        %v5347 = vunpack.c.l.b16 %v5276
        %v5348 = vunpack.c.l.b16 %v5277
        %v5349 = vunpack.c.l.b16 %v5278
        %v5350 = vunpack.c.l.b16 %v5279
        %v5351 = vunpack.c.l.b16 %v5280
        %v5352 = vunpack.c.l.b16 %v5281
        %v5353 = vunpack.c.l.b16 %v5282
        %v5354 = vunpack.c.l.b16 %v5283
        %v5355 = vunpack.c.l.b16 %v5284
        %v5356 = vunpack.c.l.b16 %v5285
        %v5357 = vunpack.c.l.b16 %v5286
        %v5358 = vunpack.c.l.b16 %v5287
        %v5359 = vunpack.c.l.b16 %v5288
        %v5360 = vunpack.c.l.b16 %v5289
        %v5361 = vunpack.c.l.b16 %v5290
        %v5362 = vunpack.c.l.b16 %v5291
        %v5363 = vunpack.c.l.b16 %v5292
        %v5364 = vunpack.c.l.b16 %v5293
        %v5365 = vunpack.c.l.b16 %v5294
        %v5366 = vunpack.c.l.b16 %v5295
        %v5367 = vunpack.c.l.b16 %v5296
        %v5368 = vunpack.c.l.b16 %v5297
        %v5369 = vunpack.c.l.b16 %v5298
        %v5370 = vunpack.c.l.b16 %v5299
        %v5371 = vunpack.c.l.b16 %v5300
        %v5372 = vunpack.c.l.b16 %v5301
        %v5373 = vunpack.c.l.b16 %v5302
        %v5374 = vunpack.c.l.b16 %v5303
        %v5375 = vunpack.c.l.b16 %v5304
        %v5376 = vunpack.c.l.b16 %v5305
        %v5377 = vunpack.c.l.b16 %v5306
        %v5378 = vunpack.c.l.b16 %v5307
        %v5379 = vpack.c.b16 %v5347, %v5346
        %v5380 = vpack.c.b16 %v5349, %v5348
        %v5381 = vpack.c.b16 %v5351, %v5350
        %v5382 = vpack.c.b16 %v5353, %v5352
        %v5383 = vpack.c.b16 %v5355, %v5354
        %v5384 = vpack.c.b16 %v5357, %v5356
        %v5385 = vpack.c.b16 %v5359, %v5358
        %v5386 = vpack.c.b16 %v5361, %v5360
        %v5387 = vpack.c.b16 %v5363, %v5362
        %v5388 = vpack.c.b16 %v5365, %v5364
        %v5389 = vpack.c.b16 %v5367, %v5366
        %v5390 = vpack.c.b16 %v5369, %v5368
        %v5391 = vpack.c.b16 %v5371, %v5370
        %v5392 = vpack.c.b16 %v5373, %v5372
        %v5393 = vpack.c.b16 %v5375, %v5374
        %v5394 = vpack.c.b16 %v5377, %v5376
        %v5395 = vpack.c.b16 %v5378, %v5378
        %v5397 = vshrl.u32 %v5379, 16
        %v5399 = vrot.slane %v5397, 3
        %v5400 = vshll.u32 %v5379, 16
        %v5402 = vrot.slane %v5400, 4
        %v5403 = vor.u32 %v5399, %v5402
        %v5405 = vshrl.u32 %v5380, 16
        %v5407 = vrot.slane %v5405, 3
        %v5408 = vshll.u32 %v5380, 16
        %v5410 = vrot.slane %v5408, 4
        %v5411 = vor.u32 %v5407, %v5410
        %v5412 = vsel %vm2441, %v5403, %v5411
        %v5414 = vshrl.u32 %v5381, 16
        %v5416 = vrot.slane %v5414, 3
        %v5417 = vshll.u32 %v5381, 16
        %v5419 = vrot.slane %v5417, 4
        %v5420 = vor.u32 %v5416, %v5419
        %v5421 = vsel %vm2441, %v5411, %v5420
        %v5423 = vshrl.u32 %v5382, 16
        %v5425 = vrot.slane %v5423, 3
        %v5426 = vshll.u32 %v5382, 16
        %v5428 = vrot.slane %v5426, 4
        %v5429 = vor.u32 %v5425, %v5428
        %v5430 = vsel %vm2441, %v5420, %v5429
        %v5432 = vshrl.u32 %v5383, 16
        %v5434 = vrot.slane %v5432, 3
        %v5435 = vshll.u32 %v5383, 16
        %v5437 = vrot.slane %v5435, 4
        %v5438 = vor.u32 %v5434, %v5437
        %v5439 = vsel %vm2441, %v5429, %v5438
        %v5441 = vshrl.u32 %v5384, 16
        %v5443 = vrot.slane %v5441, 3
        %v5444 = vshll.u32 %v5384, 16
        %v5446 = vrot.slane %v5444, 4
        %v5447 = vor.u32 %v5443, %v5446
        %v5448 = vsel %vm2441, %v5438, %v5447
        %v5450 = vshrl.u32 %v5385, 16
        %v5452 = vrot.slane %v5450, 3
        %v5453 = vshll.u32 %v5385, 16
        %v5455 = vrot.slane %v5453, 4
        %v5456 = vor.u32 %v5452, %v5455
        %v5457 = vsel %vm2441, %v5447, %v5456
        %v5459 = vshrl.u32 %v5386, 16
        %v5461 = vrot.slane %v5459, 3
        %v5462 = vshll.u32 %v5386, 16
        %v5464 = vrot.slane %v5462, 4
        %v5465 = vor.u32 %v5461, %v5464
        %v5466 = vsel %vm2441, %v5456, %v5465
        %v5468 = vshrl.u32 %v5387, 16
        %v5470 = vrot.slane %v5468, 3
        %v5471 = vshll.u32 %v5387, 16
        %v5473 = vrot.slane %v5471, 4
        %v5474 = vor.u32 %v5470, %v5473
        %v5475 = vsel %vm2441, %v5465, %v5474
        %v5477 = vshrl.u32 %v5388, 16
        %v5479 = vrot.slane %v5477, 3
        %v5480 = vshll.u32 %v5388, 16
        %v5482 = vrot.slane %v5480, 4
        %v5483 = vor.u32 %v5479, %v5482
        %v5484 = vsel %vm2441, %v5474, %v5483
        %v5486 = vshrl.u32 %v5389, 16
        %v5488 = vrot.slane %v5486, 3
        %v5489 = vshll.u32 %v5389, 16
        %v5491 = vrot.slane %v5489, 4
        %v5492 = vor.u32 %v5488, %v5491
        %v5493 = vsel %vm2441, %v5483, %v5492
        %v5495 = vshrl.u32 %v5390, 16
        %v5497 = vrot.slane %v5495, 3
        %v5498 = vshll.u32 %v5390, 16
        %v5500 = vrot.slane %v5498, 4
        %v5501 = vor.u32 %v5497, %v5500
        %v5502 = vsel %vm2441, %v5492, %v5501
        %v5504 = vshrl.u32 %v5391, 16
        %v5506 = vrot.slane %v5504, 3
        %v5507 = vshll.u32 %v5391, 16
        %v5509 = vrot.slane %v5507, 4
        %v5510 = vor.u32 %v5506, %v5509
        %v5511 = vsel %vm2441, %v5501, %v5510
        %v5513 = vshrl.u32 %v5392, 16
        %v5515 = vrot.slane %v5513, 3
        %v5516 = vshll.u32 %v5392, 16
        %v5518 = vrot.slane %v5516, 4
        %v5519 = vor.u32 %v5515, %v5518
        %v5520 = vsel %vm2441, %v5510, %v5519
        %v5522 = vshrl.u32 %v5393, 16
        %v5524 = vrot.slane %v5522, 3
        %v5525 = vshll.u32 %v5393, 16
        %v5527 = vrot.slane %v5525, 4
        %v5528 = vor.u32 %v5524, %v5527
        %v5529 = vsel %vm2441, %v5519, %v5528
        %v5531 = vshrl.u32 %v5394, 16
        %v5533 = vrot.slane %v5531, 3
        %v5534 = vshll.u32 %v5394, 16
        %v5536 = vrot.slane %v5534, 4
        %v5537 = vor.u32 %v5533, %v5536
        %v5538 = vsel %vm2441, %v5528, %v5537
        %v5540 = vshrl.u32 %v5395, 16
        %v5542 = vrot.slane %v5540, 3
        %v5543 = vshll.u32 %v5395, 16
        %v5545 = vrot.slane %v5543, 4
        %v5546 = vor.u32 %v5542, %v5545
        %v5547 = vsel %vm2441, %v5537, %v5546
        %v5552 = vunpack.c.l.b16 %v5309
        %v5553 = vunpack.c.l.b16 %v5310
        %v5554 = vunpack.c.l.b16 %v5311
        %v5555 = vunpack.c.l.b16 %v5312
        %v5556 = vpack.c.b16 %v5553, %v5552
        %v5557 = vpack.c.b16 %v5555, %v5554
        %v5561 = vsel %vm2148, %v5412, 0
        %v5564 = vsel %vm2148, %v5421, 0
        %v5567 = vsel %vm2148, %v5430, 0
        %v5570 = vsel %vm2148, %v5439, 0
        %v5573 = vsel %vm2148, %v5448, 0
        %v5576 = vsel %vm2148, %v5457, 0
        %v5579 = vsel %vm2148, %v5466, 0
        %v5582 = vsel %vm2148, %v5475, 0
        %v5585 = vsel %vm2148, %v5484, 0
        %v5588 = vsel %vm2148, %v5493, 0
        %v5591 = vsel %vm2148, %v5502, 0
        %v5594 = vsel %vm2148, %v5511, 0
        %v5597 = vsel %vm2148, %v5520, 0
        %v5600 = vsel %vm2148, %v5529, 0
        %v5603 = vsel %vm2148, %v5538, 0
        %v5606 = vsel %vm2148, %v5547, 0
        %5608 = vmatprep.subr.bf16.mxu0 0
        %5609 = vmatpush1.bf16.msra.mxu0 0
        %5610 = vmatprep.subr.bf16.mxu0 0
        %5611 = vmatpush1.bf16.msra.mxu0 0
        %5612 = vmatprep.subr.bf16.mxu0 0
        %5613 = vmatpush1.bf16.msra.mxu0 0
        %5614 = vmatprep.subr.bf16.mxu0 0
        %5615 = vmatpush1.bf16.msra.mxu0 0
        %5616 = vmatprep.subr.bf16.mxu0 0
        %5617 = vmatpush1.bf16.msra.mxu0 0
        %5618 = vmatprep.subr.bf16.mxu0 0
        %5619 = vmatpush1.bf16.msra.mxu0 0
        %5620 = vmatprep.subr.bf16.mxu0 0
        %5621 = vmatpush1.bf16.msra.mxu0 %v5557
        %5622 = vmatprep.subr.bf16.mxu0 0
        %5623 = vmatpush1.bf16.msra.mxu0 %v5556
        %5624 = vmatprep.subr.bf16.mxu0 0
        %5625 = vmatpush2.bf16.msra.mxu0 0
        %5626 = vmatprep.subr.bf16.mxu0 0
        %5627 = vmatpush2.bf16.msra.mxu0 0
        %5628 = vmatprep.subr.bf16.mxu0 0
        %5629 = vmatpush2.bf16.msra.mxu0 0
        %5630 = vmatprep.subr.bf16.mxu0 0
        %5631 = vmatpush2.bf16.msra.mxu0 0
        %5632 = vmatprep.subr.bf16.mxu0 0
        %5633 = vmatpush2.bf16.msra.mxu0 0
        %5634 = vmatprep.subr.bf16.mxu0 0
        %5635 = vmatpush2.bf16.msra.mxu0 0
        %5636 = vmatprep.subr.bf16.mxu0 0
        %5637 = vmatpush2.bf16.msra.mxu0 0
        %5638 = vmatprep.subr.bf16.mxu0 0
        %5639 = vmatpush2.bf16.msra.mxu0 0
        %5640 = vmatprep.mubr.bf16.mxu0 0
        %5641 = vmatmul.mubr.bf16.gmra.mxu0 %v5561
        %v5642 = vpop.f32.mrf.mxu0
        %v5643 = vadd.f32 0.0, %v5642
        %v5644 = vpop.f32.mrf.mxu0
        %v5645 = vpop.f32.mrf.mxu0
        %v5646 = vadd.f32 0.0, %v5645
        %v5647 = vpop.f32.mrf.mxu0
        %5648 = vmatprep.mubr.bf16.mxu0 0
        %5649 = vmatmul.mubr.bf16.gmra.mxu0 %v5564
        %v5650 = vpop.f32.mrf.mxu0
        %v5651 = vadd.f32 0.0, %v5650
        %v5652 = vpop.f32.mrf.mxu0
        %v5653 = vpop.f32.mrf.mxu0
        %v5654 = vadd.f32 0.0, %v5653
        %v5655 = vpop.f32.mrf.mxu0
        %5656 = vmatprep.mubr.bf16.mxu0 0
        %5657 = vmatmul.mubr.bf16.gmra.mxu0 %v5567
        %v5658 = vpop.f32.mrf.mxu0
        %v5659 = vadd.f32 0.0, %v5658
        %v5660 = vpop.f32.mrf.mxu0
        %v5661 = vpop.f32.mrf.mxu0
        %v5662 = vadd.f32 0.0, %v5661
        %v5663 = vpop.f32.mrf.mxu0
        %5664 = vmatprep.mubr.bf16.mxu0 0
        %5665 = vmatmul.mubr.bf16.gmra.mxu0 %v5570
        %v5666 = vpop.f32.mrf.mxu0
        %v5667 = vadd.f32 0.0, %v5666
        %v5668 = vpop.f32.mrf.mxu0
        %v5669 = vpop.f32.mrf.mxu0
        %v5670 = vadd.f32 0.0, %v5669
        %v5671 = vpop.f32.mrf.mxu0
        %5672 = vmatprep.mubr.bf16.mxu0 0
        %5673 = vmatmul.mubr.bf16.gmra.mxu0 %v5573
        %v5674 = vpop.f32.mrf.mxu0
        %v5675 = vadd.f32 0.0, %v5674
        %v5676 = vpop.f32.mrf.mxu0
        %v5677 = vpop.f32.mrf.mxu0
        %v5678 = vadd.f32 0.0, %v5677
        %v5679 = vpop.f32.mrf.mxu0
        %5680 = vmatprep.mubr.bf16.mxu0 0
        %5681 = vmatmul.mubr.bf16.gmra.mxu0 %v5576
        %v5682 = vpop.f32.mrf.mxu0
        %v5683 = vadd.f32 0.0, %v5682
        %v5684 = vpop.f32.mrf.mxu0
        %v5685 = vpop.f32.mrf.mxu0
        %v5686 = vadd.f32 0.0, %v5685
        %v5687 = vpop.f32.mrf.mxu0
        %5688 = vmatprep.mubr.bf16.mxu0 0
        %5689 = vmatmul.mubr.bf16.gmra.mxu0 %v5579
        %v5690 = vpop.f32.mrf.mxu0
        %v5691 = vadd.f32 0.0, %v5690
        %v5692 = vpop.f32.mrf.mxu0
        %v5693 = vpop.f32.mrf.mxu0
        %v5694 = vadd.f32 0.0, %v5693
        %v5695 = vpop.f32.mrf.mxu0
        %5696 = vmatprep.mubr.bf16.mxu0 0
        %5697 = vmatmul.mubr.bf16.gmra.mxu0 %v5582
        %v5698 = vpop.f32.mrf.mxu0
        %v5699 = vadd.f32 0.0, %v5698
        %v5700 = vpop.f32.mrf.mxu0
        %v5701 = vpop.f32.mrf.mxu0
        %v5702 = vadd.f32 0.0, %v5701
        %v5703 = vpop.f32.mrf.mxu0
        %5704 = vmatprep.mubr.bf16.mxu0 0
        %5705 = vmatmul.mubr.bf16.gmra.mxu0 %v5585
        %v5706 = vpop.f32.mrf.mxu0
        %v5707 = vadd.f32 0.0, %v5706
        %v5708 = vpop.f32.mrf.mxu0
        %v5709 = vpop.f32.mrf.mxu0
        %v5710 = vadd.f32 0.0, %v5709
        %v5711 = vpop.f32.mrf.mxu0
        %5712 = vmatprep.mubr.bf16.mxu0 0
        %5713 = vmatmul.mubr.bf16.gmra.mxu0 %v5588
        %v5714 = vpop.f32.mrf.mxu0
        %v5715 = vadd.f32 0.0, %v5714
        %v5716 = vpop.f32.mrf.mxu0
        %v5717 = vpop.f32.mrf.mxu0
        %v5718 = vadd.f32 0.0, %v5717
        %v5719 = vpop.f32.mrf.mxu0
        %5720 = vmatprep.mubr.bf16.mxu0 0
        %5721 = vmatmul.mubr.bf16.gmra.mxu0 %v5591
        %v5722 = vpop.f32.mrf.mxu0
        %v5723 = vadd.f32 0.0, %v5722
        %v5724 = vpop.f32.mrf.mxu0
        %v5725 = vpop.f32.mrf.mxu0
        %v5726 = vadd.f32 0.0, %v5725
        %v5727 = vpop.f32.mrf.mxu0
        %5728 = vmatprep.mubr.bf16.mxu0 0
        %5729 = vmatmul.mubr.bf16.gmra.mxu0 %v5594
        %v5730 = vpop.f32.mrf.mxu0
        %v5731 = vadd.f32 0.0, %v5730
        %v5732 = vpop.f32.mrf.mxu0
        %v5733 = vpop.f32.mrf.mxu0
        %v5734 = vadd.f32 0.0, %v5733
        %v5735 = vpop.f32.mrf.mxu0
        %5736 = vmatprep.mubr.bf16.mxu0 0
        %5737 = vmatmul.mubr.bf16.gmra.mxu0 %v5597
        %v5738 = vpop.f32.mrf.mxu0
        %v5739 = vadd.f32 0.0, %v5738
        %v5740 = vpop.f32.mrf.mxu0
        %v5741 = vpop.f32.mrf.mxu0
        %v5742 = vadd.f32 0.0, %v5741
        %v5743 = vpop.f32.mrf.mxu0
        %5744 = vmatprep.mubr.bf16.mxu0 0
        %5745 = vmatmul.mubr.bf16.gmra.mxu0 %v5600
        %v5746 = vpop.f32.mrf.mxu0
        %v5747 = vadd.f32 0.0, %v5746
        %v5748 = vpop.f32.mrf.mxu0
        %v5749 = vpop.f32.mrf.mxu0
        %v5750 = vadd.f32 0.0, %v5749
        %v5751 = vpop.f32.mrf.mxu0
        %5752 = vmatprep.mubr.bf16.mxu0 0
        %5753 = vmatmul.mubr.bf16.gmra.mxu0 %v5603
        %v5754 = vpop.f32.mrf.mxu0
        %v5755 = vadd.f32 0.0, %v5754
        %v5756 = vpop.f32.mrf.mxu0
        %v5757 = vpop.f32.mrf.mxu0
        %v5758 = vadd.f32 0.0, %v5757
        %v5759 = vpop.f32.mrf.mxu0
        %5760 = vmatprep.mubr.bf16.mxu0 0
        %5761 = vmatmul.mubr.bf16.gmra.mxu0 %v5606
        %v5762 = vpop.f32.mrf.mxu0
        %v5763 = vadd.f32 0.0, %v5762
        %v5764 = vpop.f32.mrf.mxu0
        %v5765 = vpop.f32.mrf.mxu0
        %v5766 = vadd.f32 0.0, %v5765
        %v5767 = vpop.f32.mrf.mxu0
        %5768 = vdwg.mxu0
        %v5769 = vadd.f32 %v5210, %v5643
        %v5770 = vadd.f32 %v5211, %v5646
        %v5771 = vadd.f32 %v5212, %v5651
        %v5772 = vadd.f32 %v5213, %v5654
        %v5773 = vadd.f32 %v5214, %v5659
        %v5774 = vadd.f32 %v5215, %v5662
        %v5775 = vadd.f32 %v5216, %v5667
        %v5776 = vadd.f32 %v5217, %v5670
        %v5777 = vadd.f32 %v5218, %v5675
        %v5778 = vadd.f32 %v5219, %v5678
        %v5779 = vadd.f32 %v5220, %v5683
        %v5780 = vadd.f32 %v5221, %v5686
        %v5781 = vadd.f32 %v5222, %v5691
        %v5782 = vadd.f32 %v5223, %v5694
        %v5783 = vadd.f32 %v5224, %v5699
        %v5784 = vadd.f32 %v5225, %v5702
        %v5785 = vadd.f32 %v5226, %v5707
        %v5786 = vadd.f32 %v5227, %v5710
        %v5787 = vadd.f32 %v5228, %v5715
        %v5788 = vadd.f32 %v5229, %v5718
        %v5789 = vadd.f32 %v5230, %v5723
        %v5790 = vadd.f32 %v5231, %v5726
        %v5791 = vadd.f32 %v5232, %v5731
        %v5792 = vadd.f32 %v5233, %v5734
        %v5793 = vadd.f32 %v5234, %v5739
        %v5794 = vadd.f32 %v5235, %v5742
        %v5795 = vadd.f32 %v5236, %v5747
        %v5796 = vadd.f32 %v5237, %v5750
        %v5797 = vadd.f32 %v5238, %v5755
        %v5798 = vadd.f32 %v5239, %v5758
        %v5799 = vadd.f32 %v5240, %v5763
        %v5800 = vadd.f32 %v5241, %v5766
        %s5801 = scalar_lea.vmem [#allocation9], 112
        %v5802 = vld [vmem:[%s5801] sm:$0xf]
        %v5803 = vld [vmem:[%s5801 + $0x4] sm:$0xf]
        %v5804 = vld [vmem:[%s5801 + $0x8] sm:$0xf]
        %v5805 = vld [vmem:[%s5801 + $0xc] sm:$0xf]
        %v5838 = vunpack.c.l.b16 %v5243
        %v5839 = vunpack.c.l.b16 %v5244
        %v5840 = vunpack.c.l.b16 %v5245
        %v5841 = vunpack.c.l.b16 %v5246
        %v5842 = vunpack.c.l.b16 %v5247
        %v5843 = vunpack.c.l.b16 %v5248
        %v5844 = vunpack.c.l.b16 %v5249
        %v5845 = vunpack.c.l.b16 %v5250
        %v5846 = vunpack.c.l.b16 %v5251
        %v5847 = vunpack.c.l.b16 %v5252
        %v5848 = vunpack.c.l.b16 %v5253
        %v5849 = vunpack.c.l.b16 %v5254
        %v5850 = vunpack.c.l.b16 %v5255
        %v5851 = vunpack.c.l.b16 %v5256
        %v5852 = vunpack.c.l.b16 %v5257
        %v5853 = vunpack.c.l.b16 %v5258
        %v5854 = vunpack.c.l.b16 %v5259
        %v5855 = vunpack.c.l.b16 %v5260
        %v5856 = vunpack.c.l.b16 %v5261
        %v5857 = vunpack.c.l.b16 %v5262
        %v5858 = vunpack.c.l.b16 %v5263
        %v5859 = vunpack.c.l.b16 %v5264
        %v5860 = vunpack.c.l.b16 %v5265
        %v5861 = vunpack.c.l.b16 %v5266
        %v5862 = vunpack.c.l.b16 %v5267
        %v5863 = vunpack.c.l.b16 %v5268
        %v5864 = vunpack.c.l.b16 %v5269
        %v5865 = vunpack.c.l.b16 %v5270
        %v5866 = vunpack.c.l.b16 %v5271
        %v5867 = vunpack.c.l.b16 %v5272
        %v5868 = vunpack.c.l.b16 %v5273
        %v5869 = vunpack.c.l.b16 %v5274
        %v5870 = vpack.c.b16 %v5839, %v5838
        %v5871 = vpack.c.b16 %v5841, %v5840
        %v5872 = vpack.c.b16 %v5843, %v5842
        %v5873 = vpack.c.b16 %v5845, %v5844
        %v5874 = vpack.c.b16 %v5847, %v5846
        %v5875 = vpack.c.b16 %v5849, %v5848
        %v5876 = vpack.c.b16 %v5851, %v5850
        %v5877 = vpack.c.b16 %v5853, %v5852
        %v5878 = vpack.c.b16 %v5855, %v5854
        %v5879 = vpack.c.b16 %v5857, %v5856
        %v5880 = vpack.c.b16 %v5859, %v5858
        %v5881 = vpack.c.b16 %v5861, %v5860
        %v5882 = vpack.c.b16 %v5863, %v5862
        %v5883 = vpack.c.b16 %v5865, %v5864
        %v5884 = vpack.c.b16 %v5867, %v5866
        %v5885 = vpack.c.b16 %v5869, %v5868
        %v5890 = vunpack.c.l.b16 %v5802
        %v5891 = vunpack.c.l.b16 %v5803
        %v5892 = vunpack.c.l.b16 %v5804
        %v5893 = vunpack.c.l.b16 %v5805
        %v5894 = vpack.c.b16 %v5891, %v5890
        %v5895 = vpack.c.b16 %v5893, %v5892
        %v5899 = vsel %vm2148, %v5870, 0
        %v5902 = vsel %vm2148, %v5871, 0
        %v5905 = vsel %vm2148, %v5872, 0
        %v5908 = vsel %vm2148, %v5873, 0
        %v5911 = vsel %vm2148, %v5874, 0
        %v5914 = vsel %vm2148, %v5875, 0
        %v5917 = vsel %vm2148, %v5876, 0
        %v5920 = vsel %vm2148, %v5877, 0
        %v5923 = vsel %vm2148, %v5878, 0
        %v5926 = vsel %vm2148, %v5879, 0
        %v5929 = vsel %vm2148, %v5880, 0
        %v5932 = vsel %vm2148, %v5881, 0
        %v5935 = vsel %vm2148, %v5882, 0
        %v5938 = vsel %vm2148, %v5883, 0
        %v5941 = vsel %vm2148, %v5884, 0
        %v5944 = vsel %vm2148, %v5885, 0
        %5946 = vmatprep.subr.bf16.mxu0 0
        %5947 = vmatpush1.bf16.msra.mxu0 0
        %5948 = vmatprep.subr.bf16.mxu0 0
        %5949 = vmatpush1.bf16.msra.mxu0 0
        %5950 = vmatprep.subr.bf16.mxu0 0
        %5951 = vmatpush1.bf16.msra.mxu0 0
        %5952 = vmatprep.subr.bf16.mxu0 0
        %5953 = vmatpush1.bf16.msra.mxu0 0
        %5954 = vmatprep.subr.bf16.mxu0 0
        %5955 = vmatpush1.bf16.msra.mxu0 0
        %5956 = vmatprep.subr.bf16.mxu0 0
        %5957 = vmatpush1.bf16.msra.mxu0 0
        %5958 = vmatprep.subr.bf16.mxu0 0
        %5959 = vmatpush1.bf16.msra.mxu0 %v5895
        %5960 = vmatprep.subr.bf16.mxu0 0
        %5961 = vmatpush1.bf16.msra.mxu0 %v5894
        %5962 = vmatprep.subr.bf16.mxu0 0
        %5963 = vmatpush2.bf16.msra.mxu0 0
        %5964 = vmatprep.subr.bf16.mxu0 0
        %5965 = vmatpush2.bf16.msra.mxu0 0
        %5966 = vmatprep.subr.bf16.mxu0 0
        %5967 = vmatpush2.bf16.msra.mxu0 0
        %5968 = vmatprep.subr.bf16.mxu0 0
        %5969 = vmatpush2.bf16.msra.mxu0 0
        %5970 = vmatprep.subr.bf16.mxu0 0
        %5971 = vmatpush2.bf16.msra.mxu0 0
        %5972 = vmatprep.subr.bf16.mxu0 0
        %5973 = vmatpush2.bf16.msra.mxu0 0
        %5974 = vmatprep.subr.bf16.mxu0 0
        %5975 = vmatpush2.bf16.msra.mxu0 0
        %5976 = vmatprep.subr.bf16.mxu0 0
        %5977 = vmatpush2.bf16.msra.mxu0 0
        %5978 = vmatprep.mubr.bf16.mxu0 0
        %5979 = vmatmul.mubr.bf16.gmra.mxu0 %v5899
        %v5980 = vpop.f32.mrf.mxu0
        %v5981 = vadd.f32 0.0, %v5980
        %v5982 = vpop.f32.mrf.mxu0
        %v5983 = vpop.f32.mrf.mxu0
        %v5984 = vadd.f32 0.0, %v5983
        %v5985 = vpop.f32.mrf.mxu0
        %5986 = vmatprep.mubr.bf16.mxu0 0
        %5987 = vmatmul.mubr.bf16.gmra.mxu0 %v5902
        %v5988 = vpop.f32.mrf.mxu0
        %v5989 = vadd.f32 0.0, %v5988
        %v5990 = vpop.f32.mrf.mxu0
        %v5991 = vpop.f32.mrf.mxu0
        %v5992 = vadd.f32 0.0, %v5991
        %v5993 = vpop.f32.mrf.mxu0
        %5994 = vmatprep.mubr.bf16.mxu0 0
        %5995 = vmatmul.mubr.bf16.gmra.mxu0 %v5905
        %v5996 = vpop.f32.mrf.mxu0
        %v5997 = vadd.f32 0.0, %v5996
        %v5998 = vpop.f32.mrf.mxu0
        %v5999 = vpop.f32.mrf.mxu0
        %v6000 = vadd.f32 0.0, %v5999
        %v6001 = vpop.f32.mrf.mxu0
        %6002 = vmatprep.mubr.bf16.mxu0 0
        %6003 = vmatmul.mubr.bf16.gmra.mxu0 %v5908
        %v6004 = vpop.f32.mrf.mxu0
        %v6005 = vadd.f32 0.0, %v6004
        %v6006 = vpop.f32.mrf.mxu0
        %v6007 = vpop.f32.mrf.mxu0
        %v6008 = vadd.f32 0.0, %v6007
        %v6009 = vpop.f32.mrf.mxu0
        %6010 = vmatprep.mubr.bf16.mxu0 0
        %6011 = vmatmul.mubr.bf16.gmra.mxu0 %v5911
        %v6012 = vpop.f32.mrf.mxu0
        %v6013 = vadd.f32 0.0, %v6012
        %v6014 = vpop.f32.mrf.mxu0
        %v6015 = vpop.f32.mrf.mxu0
        %v6016 = vadd.f32 0.0, %v6015
        %v6017 = vpop.f32.mrf.mxu0
        %6018 = vmatprep.mubr.bf16.mxu0 0
        %6019 = vmatmul.mubr.bf16.gmra.mxu0 %v5914
        %v6020 = vpop.f32.mrf.mxu0
        %v6021 = vadd.f32 0.0, %v6020
        %v6022 = vpop.f32.mrf.mxu0
        %v6023 = vpop.f32.mrf.mxu0
        %v6024 = vadd.f32 0.0, %v6023
        %v6025 = vpop.f32.mrf.mxu0
        %6026 = vmatprep.mubr.bf16.mxu0 0
        %6027 = vmatmul.mubr.bf16.gmra.mxu0 %v5917
        %v6028 = vpop.f32.mrf.mxu0
        %v6029 = vadd.f32 0.0, %v6028
        %v6030 = vpop.f32.mrf.mxu0
        %v6031 = vpop.f32.mrf.mxu0
        %v6032 = vadd.f32 0.0, %v6031
        %v6033 = vpop.f32.mrf.mxu0
        %6034 = vmatprep.mubr.bf16.mxu0 0
        %6035 = vmatmul.mubr.bf16.gmra.mxu0 %v5920
        %v6036 = vpop.f32.mrf.mxu0
        %v6037 = vadd.f32 0.0, %v6036
        %v6038 = vpop.f32.mrf.mxu0
        %v6039 = vpop.f32.mrf.mxu0
        %v6040 = vadd.f32 0.0, %v6039
        %v6041 = vpop.f32.mrf.mxu0
        %6042 = vmatprep.mubr.bf16.mxu0 0
        %6043 = vmatmul.mubr.bf16.gmra.mxu0 %v5923
        %v6044 = vpop.f32.mrf.mxu0
        %v6045 = vadd.f32 0.0, %v6044
        %v6046 = vpop.f32.mrf.mxu0
        %v6047 = vpop.f32.mrf.mxu0
        %v6048 = vadd.f32 0.0, %v6047
        %v6049 = vpop.f32.mrf.mxu0
        %6050 = vmatprep.mubr.bf16.mxu0 0
        %6051 = vmatmul.mubr.bf16.gmra.mxu0 %v5926
        %v6052 = vpop.f32.mrf.mxu0
        %v6053 = vadd.f32 0.0, %v6052
        %v6054 = vpop.f32.mrf.mxu0
        %v6055 = vpop.f32.mrf.mxu0
        %v6056 = vadd.f32 0.0, %v6055
        %v6057 = vpop.f32.mrf.mxu0
        %6058 = vmatprep.mubr.bf16.mxu0 0
        %6059 = vmatmul.mubr.bf16.gmra.mxu0 %v5929
        %v6060 = vpop.f32.mrf.mxu0
        %v6061 = vadd.f32 0.0, %v6060
        %v6062 = vpop.f32.mrf.mxu0
        %v6063 = vpop.f32.mrf.mxu0
        %v6064 = vadd.f32 0.0, %v6063
        %v6065 = vpop.f32.mrf.mxu0
        %6066 = vmatprep.mubr.bf16.mxu0 0
        %6067 = vmatmul.mubr.bf16.gmra.mxu0 %v5932
        %v6068 = vpop.f32.mrf.mxu0
        %v6069 = vadd.f32 0.0, %v6068
        %v6070 = vpop.f32.mrf.mxu0
        %v6071 = vpop.f32.mrf.mxu0
        %v6072 = vadd.f32 0.0, %v6071
        %v6073 = vpop.f32.mrf.mxu0
        %6074 = vmatprep.mubr.bf16.mxu0 0
        %6075 = vmatmul.mubr.bf16.gmra.mxu0 %v5935
        %v6076 = vpop.f32.mrf.mxu0
        %v6077 = vadd.f32 0.0, %v6076
        %v6078 = vpop.f32.mrf.mxu0
        %v6079 = vpop.f32.mrf.mxu0
        %v6080 = vadd.f32 0.0, %v6079
        %v6081 = vpop.f32.mrf.mxu0
        %6082 = vmatprep.mubr.bf16.mxu0 0
        %6083 = vmatmul.mubr.bf16.gmra.mxu0 %v5938
        %v6084 = vpop.f32.mrf.mxu0
        %v6085 = vadd.f32 0.0, %v6084
        %v6086 = vpop.f32.mrf.mxu0
        %v6087 = vpop.f32.mrf.mxu0
        %v6088 = vadd.f32 0.0, %v6087
        %v6089 = vpop.f32.mrf.mxu0
        %6090 = vmatprep.mubr.bf16.mxu0 0
        %6091 = vmatmul.mubr.bf16.gmra.mxu0 %v5941
        %v6092 = vpop.f32.mrf.mxu0
        %v6093 = vadd.f32 0.0, %v6092
        %v6094 = vpop.f32.mrf.mxu0
        %v6095 = vpop.f32.mrf.mxu0
        %v6096 = vadd.f32 0.0, %v6095
        %v6097 = vpop.f32.mrf.mxu0
        %6098 = vmatprep.mubr.bf16.mxu0 0
        %6099 = vmatmul.mubr.bf16.gmra.mxu0 %v5944
        %v6100 = vpop.f32.mrf.mxu0
        %v6101 = vadd.f32 0.0, %v6100
        %v6102 = vpop.f32.mrf.mxu0
        %v6103 = vpop.f32.mrf.mxu0
        %v6104 = vadd.f32 0.0, %v6103
        %v6105 = vpop.f32.mrf.mxu0
        %6106 = vdwg.mxu0
        %v6107 = vadd.f32 %v5769, %v5981
        %v6108 = vadd.f32 %v5770, %v5984
        %v6109 = vadd.f32 %v5771, %v5989
        %v6110 = vadd.f32 %v5772, %v5992
        %v6111 = vadd.f32 %v5773, %v5997
        %v6112 = vadd.f32 %v5774, %v6000
        %v6113 = vadd.f32 %v5775, %v6005
        %v6114 = vadd.f32 %v5776, %v6008
        %v6115 = vadd.f32 %v5777, %v6013
        %v6116 = vadd.f32 %v5778, %v6016
        %v6117 = vadd.f32 %v5779, %v6021
        %v6118 = vadd.f32 %v5780, %v6024
        %v6119 = vadd.f32 %v5781, %v6029
        %v6120 = vadd.f32 %v5782, %v6032
        %v6121 = vadd.f32 %v5783, %v6037
        %v6122 = vadd.f32 %v5784, %v6040
        %v6123 = vadd.f32 %v5785, %v6045
        %v6124 = vadd.f32 %v5786, %v6048
        %v6125 = vadd.f32 %v5787, %v6053
        %v6126 = vadd.f32 %v5788, %v6056
        %v6127 = vadd.f32 %v5789, %v6061
        %v6128 = vadd.f32 %v5790, %v6064
        %v6129 = vadd.f32 %v5791, %v6069
        %v6130 = vadd.f32 %v5792, %v6072
        %v6131 = vadd.f32 %v5793, %v6077
        %v6132 = vadd.f32 %v5794, %v6080
        %v6133 = vadd.f32 %v5795, %v6085
        %v6134 = vadd.f32 %v5796, %v6088
        %v6135 = vadd.f32 %v5797, %v6093
        %v6136 = vadd.f32 %v5798, %v6096
        %v6137 = vadd.f32 %v5799, %v6101
        %v6138 = vadd.f32 %v5800, %v6104
        %v6139 = vld [vmem:[#allocation2 + $0x18] sm:$0xf]
        %v6140 = vld [vmem:[#allocation2 + $0x1c] sm:$0xf]
        %v6141 = vld [vmem:[#allocation2 + $0x20] sm:$0xf]
        %v6142 = vld [vmem:[#allocation2 + $0x24] sm:$0xf]
        %v6143 = vld [vmem:[#allocation2 + $0x28] sm:$0xf]
        %v6144 = vld [vmem:[#allocation2 + $0x2c] sm:$0xf]
        %v6145 = vld [vmem:[#allocation2 + $0x30] sm:$0xf]
        %v6146 = vld [vmem:[#allocation2 + $0x34] sm:$0xf]
        %v6147 = vld [vmem:[#allocation2 + $0x38] sm:$0xf]
        %v6148 = vld [vmem:[#allocation2 + $0x3c] sm:$0xf]
        %v6149 = vld [vmem:[#allocation2 + $0x40] sm:$0xf]
        %v6150 = vld [vmem:[#allocation2 + $0x44] sm:$0xf]
        %v6151 = vld [vmem:[#allocation2 + $0x48] sm:$0xf]
        %v6152 = vld [vmem:[#allocation2 + $0x4c] sm:$0xf]
        %v6153 = vld [vmem:[#allocation2 + $0x50] sm:$0xf]
        %v6154 = vld [vmem:[#allocation2 + $0x54] sm:$0xf]
        %v6155 = vld [vmem:[#allocation2 + $0x58] sm:$0xf]
        %v6156 = vld [vmem:[#allocation2 + $0x5c] sm:$0xf]
        %v6157 = vld [vmem:[#allocation2 + $0x60] sm:$0xf]
        %v6158 = vld [vmem:[#allocation2 + $0x64] sm:$0xf]
        %v6159 = vld [vmem:[#allocation2 + $0x68] sm:$0xf]
        %v6160 = vld [vmem:[#allocation2 + $0x6c] sm:$0xf]
        %v6161 = vld [vmem:[#allocation2 + $0x70] sm:$0xf]
        %v6162 = vld [vmem:[#allocation2 + $0x74] sm:$0xf]
        %v6163 = vld [vmem:[#allocation2 + $0x78] sm:$0xf]
        %v6164 = vld [vmem:[#allocation2 + $0x7c] sm:$0xf]
        %v6165 = vld [vmem:[#allocation2 + $0x80] sm:$0xf]
        %v6166 = vld [vmem:[#allocation2 + $0x84] sm:$0xf]
        %v6167 = vld [vmem:[#allocation2 + $0x88] sm:$0xf]
        %v6168 = vld [vmem:[#allocation2 + $0x8c] sm:$0xf]
        %v6169 = vld [vmem:[#allocation2 + $0x90] sm:$0xf]
        %v6170 = vld [vmem:[#allocation2 + $0x94] sm:$0xf]
        %v6171 = vld [vmem:[#allocation2 + $0x98] sm:$0x1]
        %v6172 = vsel %vm3266, %v6139, 0
        %v6173 = vsel %vm3267, %v6140, 0
        %v6174 = vsel %vm3268, %v6141, 0
        %v6175 = vsel %vm3269, %v6142, 0
        %v6176 = vsel %vm3270, %v6143, 0
        %v6177 = vsel %vm3271, %v6144, 0
        %v6178 = vsel %vm3272, %v6145, 0
        %v6179 = vsel %vm3273, %v6146, 0
        %v6180 = vsel %vm3274, %v6147, 0
        %v6181 = vsel %vm3275, %v6148, 0
        %v6182 = vsel %vm3276, %v6149, 0
        %v6183 = vsel %vm3277, %v6150, 0
        %v6184 = vsel %vm3278, %v6151, 0
        %v6185 = vsel %vm3279, %v6152, 0
        %v6186 = vsel %vm3280, %v6153, 0
        %v6187 = vsel %vm3281, %v6154, 0
        %v6188 = vsel %vm3282, %v6155, 0
        %v6189 = vsel %vm3283, %v6156, 0
        %v6190 = vsel %vm3284, %v6157, 0
        %v6191 = vsel %vm3285, %v6158, 0
        %v6192 = vsel %vm3286, %v6159, 0
        %v6193 = vsel %vm3287, %v6160, 0
        %v6194 = vsel %vm3288, %v6161, 0
        %v6195 = vsel %vm3289, %v6162, 0
        %v6196 = vsel %vm3290, %v6163, 0
        %v6197 = vsel %vm3291, %v6164, 0
        %v6198 = vsel %vm3292, %v6165, 0
        %v6199 = vsel %vm3293, %v6166, 0
        %v6200 = vsel %vm3294, %v6167, 0
        %v6201 = vsel %vm3295, %v6168, 0
        %v6202 = vsel %vm3296, %v6169, 0
        %v6203 = vsel %vm3297, %v6170, 0
        %v6204 = vsel %vm3298, %v6171, 0
        %s6205 = scalar_lea.vmem [#allocation9], 128
        %v6206 = vld [vmem:[%s6205] sm:$0xf]
        %v6207 = vld [vmem:[%s6205 + $0x4] sm:$0xf]
        %v6208 = vld [vmem:[%s6205 + $0x8] sm:$0xf]
        %v6209 = vld [vmem:[%s6205 + $0xc] sm:$0xf]
        %v6243 = vunpack.c.l.b16 %v6172
        %v6244 = vunpack.c.l.b16 %v6173
        %v6245 = vunpack.c.l.b16 %v6174
        %v6246 = vunpack.c.l.b16 %v6175
        %v6247 = vunpack.c.l.b16 %v6176
        %v6248 = vunpack.c.l.b16 %v6177
        %v6249 = vunpack.c.l.b16 %v6178
        %v6250 = vunpack.c.l.b16 %v6179
        %v6251 = vunpack.c.l.b16 %v6180
        %v6252 = vunpack.c.l.b16 %v6181
        %v6253 = vunpack.c.l.b16 %v6182
        %v6254 = vunpack.c.l.b16 %v6183
        %v6255 = vunpack.c.l.b16 %v6184
        %v6256 = vunpack.c.l.b16 %v6185
        %v6257 = vunpack.c.l.b16 %v6186
        %v6258 = vunpack.c.l.b16 %v6187
        %v6259 = vunpack.c.l.b16 %v6188
        %v6260 = vunpack.c.l.b16 %v6189
        %v6261 = vunpack.c.l.b16 %v6190
        %v6262 = vunpack.c.l.b16 %v6191
        %v6263 = vunpack.c.l.b16 %v6192
        %v6264 = vunpack.c.l.b16 %v6193
        %v6265 = vunpack.c.l.b16 %v6194
        %v6266 = vunpack.c.l.b16 %v6195
        %v6267 = vunpack.c.l.b16 %v6196
        %v6268 = vunpack.c.l.b16 %v6197
        %v6269 = vunpack.c.l.b16 %v6198
        %v6270 = vunpack.c.l.b16 %v6199
        %v6271 = vunpack.c.l.b16 %v6200
        %v6272 = vunpack.c.l.b16 %v6201
        %v6273 = vunpack.c.l.b16 %v6202
        %v6274 = vunpack.c.l.b16 %v6203
        %v6275 = vunpack.c.l.b16 %v6204
        %v6276 = vpack.c.b16 %v6244, %v6243
        %v6277 = vpack.c.b16 %v6246, %v6245
        %v6278 = vpack.c.b16 %v6248, %v6247
        %v6279 = vpack.c.b16 %v6250, %v6249
        %v6280 = vpack.c.b16 %v6252, %v6251
        %v6281 = vpack.c.b16 %v6254, %v6253
        %v6282 = vpack.c.b16 %v6256, %v6255
        %v6283 = vpack.c.b16 %v6258, %v6257
        %v6284 = vpack.c.b16 %v6260, %v6259
        %v6285 = vpack.c.b16 %v6262, %v6261
        %v6286 = vpack.c.b16 %v6264, %v6263
        %v6287 = vpack.c.b16 %v6266, %v6265
        %v6288 = vpack.c.b16 %v6268, %v6267
        %v6289 = vpack.c.b16 %v6270, %v6269
        %v6290 = vpack.c.b16 %v6272, %v6271
        %v6291 = vpack.c.b16 %v6274, %v6273
        %v6292 = vpack.c.b16 %v6275, %v6275
        %v6294 = vshrl.u32 %v6276, 16
        %v6296 = vshll.u32 %v6276, 16
        %v6298 = vrot.slane %v6296, 1
        %v6299 = vor.u32 %v6294, %v6298
        %v6301 = vshll.u32 %v6277, 16
        %v6303 = vrot.slane %v6301, 1
        %v6304 = vsel %vm3420, %v6299, %v6303
        %v6305 = vshrl.u32 %v6277, 16
        %v6307 = vor.u32 %v6305, %v6303
        %v6309 = vshll.u32 %v6278, 16
        %v6311 = vrot.slane %v6309, 1
        %v6312 = vsel %vm3420, %v6307, %v6311
        %v6313 = vshrl.u32 %v6278, 16
        %v6315 = vor.u32 %v6313, %v6311
        %v6317 = vshll.u32 %v6279, 16
        %v6319 = vrot.slane %v6317, 1
        %v6320 = vsel %vm3420, %v6315, %v6319
        %v6321 = vshrl.u32 %v6279, 16
        %v6323 = vor.u32 %v6321, %v6319
        %v6325 = vshll.u32 %v6280, 16
        %v6327 = vrot.slane %v6325, 1
        %v6328 = vsel %vm3420, %v6323, %v6327
        %v6329 = vshrl.u32 %v6280, 16
        %v6331 = vor.u32 %v6329, %v6327
        %v6333 = vshll.u32 %v6281, 16
        %v6335 = vrot.slane %v6333, 1
        %v6336 = vsel %vm3420, %v6331, %v6335
        %v6337 = vshrl.u32 %v6281, 16
        %v6339 = vor.u32 %v6337, %v6335
        %v6341 = vshll.u32 %v6282, 16
        %v6343 = vrot.slane %v6341, 1
        %v6344 = vsel %vm3420, %v6339, %v6343
        %v6345 = vshrl.u32 %v6282, 16
        %v6347 = vor.u32 %v6345, %v6343
        %v6349 = vshll.u32 %v6283, 16
        %v6351 = vrot.slane %v6349, 1
        %v6352 = vsel %vm3420, %v6347, %v6351
        %v6353 = vshrl.u32 %v6283, 16
        %v6355 = vor.u32 %v6353, %v6351
        %v6357 = vshll.u32 %v6284, 16
        %v6359 = vrot.slane %v6357, 1
        %v6360 = vsel %vm3420, %v6355, %v6359
        %v6361 = vshrl.u32 %v6284, 16
        %v6363 = vor.u32 %v6361, %v6359
        %v6365 = vshll.u32 %v6285, 16
        %v6367 = vrot.slane %v6365, 1
        %v6368 = vsel %vm3420, %v6363, %v6367
        %v6369 = vshrl.u32 %v6285, 16
        %v6371 = vor.u32 %v6369, %v6367
        %v6373 = vshll.u32 %v6286, 16
        %v6375 = vrot.slane %v6373, 1
        %v6376 = vsel %vm3420, %v6371, %v6375
        %v6377 = vshrl.u32 %v6286, 16
        %v6379 = vor.u32 %v6377, %v6375
        %v6381 = vshll.u32 %v6287, 16
        %v6383 = vrot.slane %v6381, 1
        %v6384 = vsel %vm3420, %v6379, %v6383
        %v6385 = vshrl.u32 %v6287, 16
        %v6387 = vor.u32 %v6385, %v6383
        %v6389 = vshll.u32 %v6288, 16
        %v6391 = vrot.slane %v6389, 1
        %v6392 = vsel %vm3420, %v6387, %v6391
        %v6393 = vshrl.u32 %v6288, 16
        %v6395 = vor.u32 %v6393, %v6391
        %v6397 = vshll.u32 %v6289, 16
        %v6399 = vrot.slane %v6397, 1
        %v6400 = vsel %vm3420, %v6395, %v6399
        %v6401 = vshrl.u32 %v6289, 16
        %v6403 = vor.u32 %v6401, %v6399
        %v6405 = vshll.u32 %v6290, 16
        %v6407 = vrot.slane %v6405, 1
        %v6408 = vsel %vm3420, %v6403, %v6407
        %v6409 = vshrl.u32 %v6290, 16
        %v6411 = vor.u32 %v6409, %v6407
        %v6413 = vshll.u32 %v6291, 16
        %v6415 = vrot.slane %v6413, 1
        %v6416 = vsel %vm3420, %v6411, %v6415
        %v6417 = vshrl.u32 %v6291, 16
        %v6419 = vor.u32 %v6417, %v6415
        %v6421 = vshll.u32 %v6292, 16
        %v6423 = vrot.slane %v6421, 1
        %v6424 = vsel %vm3420, %v6419, %v6423
        %v6429 = vunpack.c.l.b16 %v6206
        %v6430 = vunpack.c.l.b16 %v6207
        %v6431 = vunpack.c.l.b16 %v6208
        %v6432 = vunpack.c.l.b16 %v6209
        %v6433 = vpack.c.b16 %v6430, %v6429
        %v6434 = vpack.c.b16 %v6432, %v6431
        %v6438 = vsel %vm2148, %v6304, 0
        %v6441 = vsel %vm2148, %v6312, 0
        %v6444 = vsel %vm2148, %v6320, 0
        %v6447 = vsel %vm2148, %v6328, 0
        %v6450 = vsel %vm2148, %v6336, 0
        %v6453 = vsel %vm2148, %v6344, 0
        %v6456 = vsel %vm2148, %v6352, 0
        %v6459 = vsel %vm2148, %v6360, 0
        %v6462 = vsel %vm2148, %v6368, 0
        %v6465 = vsel %vm2148, %v6376, 0
        %v6468 = vsel %vm2148, %v6384, 0
        %v6471 = vsel %vm2148, %v6392, 0
        %v6474 = vsel %vm2148, %v6400, 0
        %v6477 = vsel %vm2148, %v6408, 0
        %v6480 = vsel %vm2148, %v6416, 0
        %v6483 = vsel %vm2148, %v6424, 0
        %6485 = vmatprep.subr.bf16.mxu0 0
        %6486 = vmatpush1.bf16.msra.mxu0 0
        %6487 = vmatprep.subr.bf16.mxu0 0
        %6488 = vmatpush1.bf16.msra.mxu0 0
        %6489 = vmatprep.subr.bf16.mxu0 0
        %6490 = vmatpush1.bf16.msra.mxu0 0
        %6491 = vmatprep.subr.bf16.mxu0 0
        %6492 = vmatpush1.bf16.msra.mxu0 0
        %6493 = vmatprep.subr.bf16.mxu0 0
        %6494 = vmatpush1.bf16.msra.mxu0 0
        %6495 = vmatprep.subr.bf16.mxu0 0
        %6496 = vmatpush1.bf16.msra.mxu0 0
        %6497 = vmatprep.subr.bf16.mxu0 0
        %6498 = vmatpush1.bf16.msra.mxu0 %v6434
        %6499 = vmatprep.subr.bf16.mxu0 0
        %6500 = vmatpush1.bf16.msra.mxu0 %v6433
        %6501 = vmatprep.subr.bf16.mxu0 0
        %6502 = vmatpush2.bf16.msra.mxu0 0
        %6503 = vmatprep.subr.bf16.mxu0 0
        %6504 = vmatpush2.bf16.msra.mxu0 0
        %6505 = vmatprep.subr.bf16.mxu0 0
        %6506 = vmatpush2.bf16.msra.mxu0 0
        %6507 = vmatprep.subr.bf16.mxu0 0
        %6508 = vmatpush2.bf16.msra.mxu0 0
        %6509 = vmatprep.subr.bf16.mxu0 0
        %6510 = vmatpush2.bf16.msra.mxu0 0
        %6511 = vmatprep.subr.bf16.mxu0 0
        %6512 = vmatpush2.bf16.msra.mxu0 0
        %6513 = vmatprep.subr.bf16.mxu0 0
        %6514 = vmatpush2.bf16.msra.mxu0 0
        %6515 = vmatprep.subr.bf16.mxu0 0
        %6516 = vmatpush2.bf16.msra.mxu0 0
        %6517 = vmatprep.mubr.bf16.mxu0 0
        %6518 = vmatmul.mubr.bf16.gmra.mxu0 %v6438
        %v6519 = vpop.f32.mrf.mxu0
        %v6520 = vadd.f32 0.0, %v6519
        %v6521 = vpop.f32.mrf.mxu0
        %v6522 = vpop.f32.mrf.mxu0
        %v6523 = vadd.f32 0.0, %v6522
        %v6524 = vpop.f32.mrf.mxu0
        %6525 = vmatprep.mubr.bf16.mxu0 0
        %6526 = vmatmul.mubr.bf16.gmra.mxu0 %v6441
        %v6527 = vpop.f32.mrf.mxu0
        %v6528 = vadd.f32 0.0, %v6527
        %v6529 = vpop.f32.mrf.mxu0
        %v6530 = vpop.f32.mrf.mxu0
        %v6531 = vadd.f32 0.0, %v6530
        %v6532 = vpop.f32.mrf.mxu0
        %6533 = vmatprep.mubr.bf16.mxu0 0
        %6534 = vmatmul.mubr.bf16.gmra.mxu0 %v6444
        %v6535 = vpop.f32.mrf.mxu0
        %v6536 = vadd.f32 0.0, %v6535
        %v6537 = vpop.f32.mrf.mxu0
        %v6538 = vpop.f32.mrf.mxu0
        %v6539 = vadd.f32 0.0, %v6538
        %v6540 = vpop.f32.mrf.mxu0
        %6541 = vmatprep.mubr.bf16.mxu0 0
        %6542 = vmatmul.mubr.bf16.gmra.mxu0 %v6447
        %v6543 = vpop.f32.mrf.mxu0
        %v6544 = vadd.f32 0.0, %v6543
        %v6545 = vpop.f32.mrf.mxu0
        %v6546 = vpop.f32.mrf.mxu0
        %v6547 = vadd.f32 0.0, %v6546
        %v6548 = vpop.f32.mrf.mxu0
        %6549 = vmatprep.mubr.bf16.mxu0 0
        %6550 = vmatmul.mubr.bf16.gmra.mxu0 %v6450
        %v6551 = vpop.f32.mrf.mxu0
        %v6552 = vadd.f32 0.0, %v6551
        %v6553 = vpop.f32.mrf.mxu0
        %v6554 = vpop.f32.mrf.mxu0
        %v6555 = vadd.f32 0.0, %v6554
        %v6556 = vpop.f32.mrf.mxu0
        %6557 = vmatprep.mubr.bf16.mxu0 0
        %6558 = vmatmul.mubr.bf16.gmra.mxu0 %v6453
        %v6559 = vpop.f32.mrf.mxu0
        %v6560 = vadd.f32 0.0, %v6559
        %v6561 = vpop.f32.mrf.mxu0
        %v6562 = vpop.f32.mrf.mxu0
        %v6563 = vadd.f32 0.0, %v6562
        %v6564 = vpop.f32.mrf.mxu0
        %6565 = vmatprep.mubr.bf16.mxu0 0
        %6566 = vmatmul.mubr.bf16.gmra.mxu0 %v6456
        %v6567 = vpop.f32.mrf.mxu0
        %v6568 = vadd.f32 0.0, %v6567
        %v6569 = vpop.f32.mrf.mxu0
        %v6570 = vpop.f32.mrf.mxu0
        %v6571 = vadd.f32 0.0, %v6570
        %v6572 = vpop.f32.mrf.mxu0
        %6573 = vmatprep.mubr.bf16.mxu0 0
        %6574 = vmatmul.mubr.bf16.gmra.mxu0 %v6459
        %v6575 = vpop.f32.mrf.mxu0
        %v6576 = vadd.f32 0.0, %v6575
        %v6577 = vpop.f32.mrf.mxu0
        %v6578 = vpop.f32.mrf.mxu0
        %v6579 = vadd.f32 0.0, %v6578
        %v6580 = vpop.f32.mrf.mxu0
        %6581 = vmatprep.mubr.bf16.mxu0 0
        %6582 = vmatmul.mubr.bf16.gmra.mxu0 %v6462
        %v6583 = vpop.f32.mrf.mxu0
        %v6584 = vadd.f32 0.0, %v6583
        %v6585 = vpop.f32.mrf.mxu0
        %v6586 = vpop.f32.mrf.mxu0
        %v6587 = vadd.f32 0.0, %v6586
        %v6588 = vpop.f32.mrf.mxu0
        %6589 = vmatprep.mubr.bf16.mxu0 0
        %6590 = vmatmul.mubr.bf16.gmra.mxu0 %v6465
        %v6591 = vpop.f32.mrf.mxu0
        %v6592 = vadd.f32 0.0, %v6591
        %v6593 = vpop.f32.mrf.mxu0
        %v6594 = vpop.f32.mrf.mxu0
        %v6595 = vadd.f32 0.0, %v6594
        %v6596 = vpop.f32.mrf.mxu0
        %6597 = vmatprep.mubr.bf16.mxu0 0
        %6598 = vmatmul.mubr.bf16.gmra.mxu0 %v6468
        %v6599 = vpop.f32.mrf.mxu0
        %v6600 = vadd.f32 0.0, %v6599
        %v6601 = vpop.f32.mrf.mxu0
        %v6602 = vpop.f32.mrf.mxu0
        %v6603 = vadd.f32 0.0, %v6602
        %v6604 = vpop.f32.mrf.mxu0
        %6605 = vmatprep.mubr.bf16.mxu0 0
        %6606 = vmatmul.mubr.bf16.gmra.mxu0 %v6471
        %v6607 = vpop.f32.mrf.mxu0
        %v6608 = vadd.f32 0.0, %v6607
        %v6609 = vpop.f32.mrf.mxu0
        %v6610 = vpop.f32.mrf.mxu0
        %v6611 = vadd.f32 0.0, %v6610
        %v6612 = vpop.f32.mrf.mxu0
        %6613 = vmatprep.mubr.bf16.mxu0 0
        %6614 = vmatmul.mubr.bf16.gmra.mxu0 %v6474
        %v6615 = vpop.f32.mrf.mxu0
        %v6616 = vadd.f32 0.0, %v6615
        %v6617 = vpop.f32.mrf.mxu0
        %v6618 = vpop.f32.mrf.mxu0
        %v6619 = vadd.f32 0.0, %v6618
        %v6620 = vpop.f32.mrf.mxu0
        %6621 = vmatprep.mubr.bf16.mxu0 0
        %6622 = vmatmul.mubr.bf16.gmra.mxu0 %v6477
        %v6623 = vpop.f32.mrf.mxu0
        %v6624 = vadd.f32 0.0, %v6623
        %v6625 = vpop.f32.mrf.mxu0
        %v6626 = vpop.f32.mrf.mxu0
        %v6627 = vadd.f32 0.0, %v6626
        %v6628 = vpop.f32.mrf.mxu0
        %6629 = vmatprep.mubr.bf16.mxu0 0
        %6630 = vmatmul.mubr.bf16.gmra.mxu0 %v6480
        %v6631 = vpop.f32.mrf.mxu0
        %v6632 = vadd.f32 0.0, %v6631
        %v6633 = vpop.f32.mrf.mxu0
        %v6634 = vpop.f32.mrf.mxu0
        %v6635 = vadd.f32 0.0, %v6634
        %v6636 = vpop.f32.mrf.mxu0
        %6637 = vmatprep.mubr.bf16.mxu0 0
        %6638 = vmatmul.mubr.bf16.gmra.mxu0 %v6483
        %v6639 = vpop.f32.mrf.mxu0
        %v6640 = vadd.f32 0.0, %v6639
        %v6641 = vpop.f32.mrf.mxu0
        %v6642 = vpop.f32.mrf.mxu0
        %v6643 = vadd.f32 0.0, %v6642
        %v6644 = vpop.f32.mrf.mxu0
        %6645 = vdwg.mxu0
        %v6646 = vadd.f32 %v6107, %v6520
        %v6647 = vadd.f32 %v6108, %v6523
        %v6648 = vadd.f32 %v6109, %v6528
        %v6649 = vadd.f32 %v6110, %v6531
        %v6650 = vadd.f32 %v6111, %v6536
        %v6651 = vadd.f32 %v6112, %v6539
        %v6652 = vadd.f32 %v6113, %v6544
        %v6653 = vadd.f32 %v6114, %v6547
        %v6654 = vadd.f32 %v6115, %v6552
        %v6655 = vadd.f32 %v6116, %v6555
        %v6656 = vadd.f32 %v6117, %v6560
        %v6657 = vadd.f32 %v6118, %v6563
        %v6658 = vadd.f32 %v6119, %v6568
        %v6659 = vadd.f32 %v6120, %v6571
        %v6660 = vadd.f32 %v6121, %v6576
        %v6661 = vadd.f32 %v6122, %v6579
        %v6662 = vadd.f32 %v6123, %v6584
        %v6663 = vadd.f32 %v6124, %v6587
        %v6664 = vadd.f32 %v6125, %v6592
        %v6665 = vadd.f32 %v6126, %v6595
        %v6666 = vadd.f32 %v6127, %v6600
        %v6667 = vadd.f32 %v6128, %v6603
        %v6668 = vadd.f32 %v6129, %v6608
        %v6669 = vadd.f32 %v6130, %v6611
        %v6670 = vadd.f32 %v6131, %v6616
        %v6671 = vadd.f32 %v6132, %v6619
        %v6672 = vadd.f32 %v6133, %v6624
        %v6673 = vadd.f32 %v6134, %v6627
        %v6674 = vadd.f32 %v6135, %v6632
        %v6675 = vadd.f32 %v6136, %v6635
        %v6676 = vadd.f32 %v6137, %v6640
        %v6677 = vadd.f32 %v6138, %v6643
        %v6678 = vld [vmem:[#allocation11] sm:$0x1]
        %v6680 = vlaneseq
        %v6681 = vshrl.u32 %v6680, 7
        %v6682 = vsub.s32 0, %v6681
        %v6683 = vrot.slane %v6678, %v6682
        %v6685 = vadd.f32 %v6646, %v6683
        %v6686 = vadd.f32 %v6647, %v6683
        %v6687 = vadd.f32 %v6648, %v6683
        %v6688 = vadd.f32 %v6649, %v6683
        %v6689 = vadd.f32 %v6650, %v6683
        %v6690 = vadd.f32 %v6651, %v6683
        %v6691 = vadd.f32 %v6652, %v6683
        %v6692 = vadd.f32 %v6653, %v6683
        %v6693 = vadd.f32 %v6654, %v6683
        %v6694 = vadd.f32 %v6655, %v6683
        %v6695 = vadd.f32 %v6656, %v6683
        %v6696 = vadd.f32 %v6657, %v6683
        %v6697 = vadd.f32 %v6658, %v6683
        %v6698 = vadd.f32 %v6659, %v6683
        %v6699 = vadd.f32 %v6660, %v6683
        %v6700 = vadd.f32 %v6661, %v6683
        %v6701 = vadd.f32 %v6662, %v6683
        %v6702 = vadd.f32 %v6663, %v6683
        %v6703 = vadd.f32 %v6664, %v6683
        %v6704 = vadd.f32 %v6665, %v6683
        %v6705 = vadd.f32 %v6666, %v6683
        %v6706 = vadd.f32 %v6667, %v6683
        %v6707 = vadd.f32 %v6668, %v6683
        %v6708 = vadd.f32 %v6669, %v6683
        %v6709 = vadd.f32 %v6670, %v6683
        %v6710 = vadd.f32 %v6671, %v6683
        %v6711 = vadd.f32 %v6672, %v6683
        %v6712 = vadd.f32 %v6673, %v6683
        %v6713 = vadd.f32 %v6674, %v6683
        %v6714 = vadd.f32 %v6675, %v6683
        %v6715 = vadd.f32 %v6676, %v6683
        %v6716 = vadd.f32 %v6677, %v6683
        %v6717 = vmax.f32 %v6685, 0.0
        %v6718 = vmax.f32 %v6686, 0.0
        %v6719 = vmax.f32 %v6687, 0.0
        %v6720 = vmax.f32 %v6688, 0.0
        %v6721 = vmax.f32 %v6689, 0.0
        %v6722 = vmax.f32 %v6690, 0.0
        %v6723 = vmax.f32 %v6691, 0.0
        %v6724 = vmax.f32 %v6692, 0.0
        %v6725 = vmax.f32 %v6693, 0.0
        %v6726 = vmax.f32 %v6694, 0.0
        %v6727 = vmax.f32 %v6695, 0.0
        %v6728 = vmax.f32 %v6696, 0.0
        %v6729 = vmax.f32 %v6697, 0.0
        %v6730 = vmax.f32 %v6698, 0.0
        %v6731 = vmax.f32 %v6699, 0.0
        %v6732 = vmax.f32 %v6700, 0.0
        %v6733 = vmax.f32 %v6701, 0.0
        %v6734 = vmax.f32 %v6702, 0.0
        %v6735 = vmax.f32 %v6703, 0.0
        %v6736 = vmax.f32 %v6704, 0.0
        %v6737 = vmax.f32 %v6705, 0.0
        %v6738 = vmax.f32 %v6706, 0.0
        %v6739 = vmax.f32 %v6707, 0.0
        %v6740 = vmax.f32 %v6708, 0.0
        %v6741 = vmax.f32 %v6709, 0.0
        %v6742 = vmax.f32 %v6710, 0.0
        %v6743 = vmax.f32 %v6711, 0.0
        %v6744 = vmax.f32 %v6712, 0.0
        %v6745 = vmax.f32 %v6713, 0.0
        %v6746 = vmax.f32 %v6714, 0.0
        %v6747 = vmax.f32 %v6715, 0.0
        %v6748 = vmax.f32 %v6716, 0.0
        %6781 = vrot.lane.b32.xlu0 %v6717, 96
        %v6782 = vpop.permute.xlu0 %6781
        %6783 = vrot.lane.b32.xlu0 %v6718, 96
        %v6784 = vpop.permute.xlu0 %6783
        %6785 = vrot.lane.b32.xlu0 %v6719, 96
        %v6786 = vpop.permute.xlu0 %6785
        %6787 = vrot.lane.b32.xlu0 %v6720, 96
        %v6788 = vpop.permute.xlu0 %6787
        %6789 = vrot.lane.b32.xlu0 %v6721, 96
        %v6790 = vpop.permute.xlu0 %6789
        %6791 = vrot.lane.b32.xlu0 %v6722, 96
        %v6792 = vpop.permute.xlu0 %6791
        %6793 = vrot.lane.b32.xlu0 %v6723, 96
        %v6794 = vpop.permute.xlu0 %6793
        %6795 = vrot.lane.b32.xlu0 %v6724, 96
        %v6796 = vpop.permute.xlu0 %6795
        %6797 = vrot.lane.b32.xlu0 %v6725, 96
        %v6798 = vpop.permute.xlu0 %6797
        %6799 = vrot.lane.b32.xlu0 %v6726, 96
        %v6800 = vpop.permute.xlu0 %6799
        %6801 = vrot.lane.b32.xlu0 %v6727, 96
        %v6802 = vpop.permute.xlu0 %6801
        %6803 = vrot.lane.b32.xlu0 %v6728, 96
        %v6804 = vpop.permute.xlu0 %6803
        %6805 = vrot.lane.b32.xlu0 %v6729, 96
        %v6806 = vpop.permute.xlu0 %6805
        %6807 = vrot.lane.b32.xlu0 %v6730, 96
        %v6808 = vpop.permute.xlu0 %6807
        %6809 = vrot.lane.b32.xlu0 %v6731, 96
        %v6810 = vpop.permute.xlu0 %6809
        %6811 = vrot.lane.b32.xlu0 %v6732, 96
        %v6812 = vpop.permute.xlu0 %6811
        %6813 = vrot.lane.b32.xlu0 %v6733, 96
        %v6814 = vpop.permute.xlu0 %6813
        %6815 = vrot.lane.b32.xlu0 %v6734, 96
        %v6816 = vpop.permute.xlu0 %6815
        %6817 = vrot.lane.b32.xlu0 %v6735, 96
        %v6818 = vpop.permute.xlu0 %6817
        %6819 = vrot.lane.b32.xlu0 %v6736, 96
        %v6820 = vpop.permute.xlu0 %6819
        %6821 = vrot.lane.b32.xlu0 %v6737, 96
        %v6822 = vpop.permute.xlu0 %6821
        %6823 = vrot.lane.b32.xlu0 %v6738, 96
        %v6824 = vpop.permute.xlu0 %6823
        %6825 = vrot.lane.b32.xlu0 %v6739, 96
        %v6826 = vpop.permute.xlu0 %6825
        %6827 = vrot.lane.b32.xlu0 %v6740, 96
        %v6828 = vpop.permute.xlu0 %6827
        %6829 = vrot.lane.b32.xlu0 %v6741, 96
        %v6830 = vpop.permute.xlu0 %6829
        %6831 = vrot.lane.b32.xlu0 %v6742, 96
        %v6832 = vpop.permute.xlu0 %6831
        %6833 = vrot.lane.b32.xlu0 %v6743, 96
        %v6834 = vpop.permute.xlu0 %6833
        %6835 = vrot.lane.b32.xlu0 %v6744, 96
        %v6836 = vpop.permute.xlu0 %6835
        %6837 = vrot.lane.b32.xlu0 %v6745, 96
        %v6838 = vpop.permute.xlu0 %6837
        %6839 = vrot.lane.b32.xlu0 %v6746, 96
        %v6840 = vpop.permute.xlu0 %6839
        %6841 = vrot.lane.b32.xlu0 %v6747, 96
        %v6842 = vpop.permute.xlu0 %6841
        %6843 = vrot.lane.b32.xlu0 %v6748, 96
        %v6844 = vpop.permute.xlu0 %6843
        %v6877 = vadd.f32 %v6717, %v6782
        %v6878 = vadd.f32 %v6718, %v6784
        %v6879 = vadd.f32 %v6719, %v6786
        %v6880 = vadd.f32 %v6720, %v6788
        %v6881 = vadd.f32 %v6721, %v6790
        %v6882 = vadd.f32 %v6722, %v6792
        %v6883 = vadd.f32 %v6723, %v6794
        %v6884 = vadd.f32 %v6724, %v6796
        %v6885 = vadd.f32 %v6725, %v6798
        %v6886 = vadd.f32 %v6726, %v6800
        %v6887 = vadd.f32 %v6727, %v6802
        %v6888 = vadd.f32 %v6728, %v6804
        %v6889 = vadd.f32 %v6729, %v6806
        %v6890 = vadd.f32 %v6730, %v6808
        %v6891 = vadd.f32 %v6731, %v6810
        %v6892 = vadd.f32 %v6732, %v6812
        %v6893 = vadd.f32 %v6733, %v6814
        %v6894 = vadd.f32 %v6734, %v6816
        %v6895 = vadd.f32 %v6735, %v6818
        %v6896 = vadd.f32 %v6736, %v6820
        %v6897 = vadd.f32 %v6737, %v6822
        %v6898 = vadd.f32 %v6738, %v6824
        %v6899 = vadd.f32 %v6739, %v6826
        %v6900 = vadd.f32 %v6740, %v6828
        %v6901 = vadd.f32 %v6741, %v6830
        %v6902 = vadd.f32 %v6742, %v6832
        %v6903 = vadd.f32 %v6743, %v6834
        %v6904 = vadd.f32 %v6744, %v6836
        %v6905 = vadd.f32 %v6745, %v6838
        %v6906 = vadd.f32 %v6746, %v6840
        %v6907 = vadd.f32 %v6747, %v6842
        %v6908 = vadd.f32 %v6748, %v6844
        %v6909 = vsel %vm2148, %v6877, 0.0
        %v6910 = vsel %vm2148, %v6878, 0.0
        %v6911 = vadd.f32 %v6909, %v6910
        %v6912 = vsel %vm2148, %v6879, 0.0
        %v6913 = vadd.f32 %v6911, %v6912
        %v6914 = vsel %vm2148, %v6880, 0.0
        %v6915 = vadd.f32 %v6913, %v6914
        %v6916 = vsel %vm2148, %v6881, 0.0
        %v6917 = vadd.f32 %v6915, %v6916
        %v6918 = vsel %vm2148, %v6882, 0.0
        %v6919 = vadd.f32 %v6917, %v6918
        %v6920 = vsel %vm2148, %v6883, 0.0
        %v6921 = vadd.f32 %v6919, %v6920
        %v6922 = vsel %vm2148, %v6884, 0.0
        %v6923 = vadd.f32 %v6921, %v6922
        %v6924 = vsel %vm2148, %v6885, 0.0
        %v6925 = vadd.f32 %v6923, %v6924
        %v6926 = vsel %vm2148, %v6886, 0.0
        %v6927 = vadd.f32 %v6925, %v6926
        %v6928 = vsel %vm2148, %v6887, 0.0
        %v6929 = vadd.f32 %v6927, %v6928
        %v6930 = vsel %vm2148, %v6888, 0.0
        %v6931 = vadd.f32 %v6929, %v6930
        %v6932 = vsel %vm2148, %v6889, 0.0
        %v6933 = vadd.f32 %v6931, %v6932
        %v6934 = vsel %vm2148, %v6890, 0.0
        %v6935 = vadd.f32 %v6933, %v6934
        %v6936 = vsel %vm2148, %v6891, 0.0
        %v6937 = vadd.f32 %v6935, %v6936
        %v6938 = vsel %vm2148, %v6892, 0.0
        %v6939 = vadd.f32 %v6937, %v6938
        %v6940 = vsel %vm2148, %v6893, 0.0
        %v6941 = vadd.f32 %v6939, %v6940
        %v6942 = vsel %vm2148, %v6894, 0.0
        %v6943 = vadd.f32 %v6941, %v6942
        %v6944 = vsel %vm2148, %v6895, 0.0
        %v6945 = vadd.f32 %v6943, %v6944
        %v6946 = vsel %vm2148, %v6896, 0.0
        %v6947 = vadd.f32 %v6945, %v6946
        %v6948 = vsel %vm2148, %v6897, 0.0
        %v6949 = vadd.f32 %v6947, %v6948
        %v6950 = vsel %vm2148, %v6898, 0.0
        %v6951 = vadd.f32 %v6949, %v6950
        %v6952 = vsel %vm2148, %v6899, 0.0
        %v6953 = vadd.f32 %v6951, %v6952
        %v6954 = vsel %vm2148, %v6900, 0.0
        %v6955 = vadd.f32 %v6953, %v6954
        %v6956 = vsel %vm2148, %v6901, 0.0
        %v6957 = vadd.f32 %v6955, %v6956
        %v6958 = vsel %vm2148, %v6902, 0.0
        %v6959 = vadd.f32 %v6957, %v6958
        %v6960 = vsel %vm2148, %v6903, 0.0
        %v6961 = vadd.f32 %v6959, %v6960
        %v6962 = vsel %vm2148, %v6904, 0.0
        %v6963 = vadd.f32 %v6961, %v6962
        %v6964 = vsel %vm2148, %v6905, 0.0
        %v6965 = vadd.f32 %v6963, %v6964
        %v6966 = vsel %vm2148, %v6906, 0.0
        %v6967 = vadd.f32 %v6965, %v6966
        %v6968 = vsel %vm2148, %v6907, 0.0
        %v6969 = vadd.f32 %v6967, %v6968
        %v6970 = vsel %vm2148, %v6908, 0.0
        %v6971 = vadd.f32 %v6969, %v6970
        %v6972 = vrot.slane %v6971, 4
        %v6973 = vadd.f32 %v6971, %v6972
        %v6974 = vrot.slane %v6973, 2
        %v6975 = vadd.f32 %v6973, %v6974
        %v6976 = vrot.slane %v6975, 1
        %v6977 = vadd.f32 %v6975, %v6976
        %v6978 = vmul.f32 %v6977, 0.00390625
        %v6979 = vpack.c.bf16 %v6978, %v6978
        %v6980 = vld [vmem:[#allocation12] sm:$0xf]
        %v6981 = vld [vmem:[#allocation12 + $0x4] sm:$0xf]
        %v6982 = vld [vmem:[#allocation12 + $0x8] sm:$0xf]
        %v6983 = vld [vmem:[#allocation12 + $0xc] sm:$0xf]
        %v6984 = vld [vmem:[#allocation14] sm:$0x1]
        %v6989 = vunpack.c.l.b16 %v6980
        %v6990 = vunpack.c.l.b16 %v6981
        %v6991 = vunpack.c.l.b16 %v6982
        %v6992 = vunpack.c.l.b16 %v6983
        %v6993 = vpack.c.b16 %v6990, %v6989
        %v6994 = vpack.c.b16 %v6992, %v6991
        %v6998 = vsel %vm2148, %v6979, 0
        %7000 = vmatprep.subr.bf16.mxu0 0
        %7001 = vmatpush1.bf16.msra.mxu0 0
        %7002 = vmatprep.subr.bf16.mxu0 0
        %7003 = vmatpush1.bf16.msra.mxu0 0
        %7004 = vmatprep.subr.bf16.mxu0 0
        %7005 = vmatpush1.bf16.msra.mxu0 0
        %7006 = vmatprep.subr.bf16.mxu0 0
        %7007 = vmatpush1.bf16.msra.mxu0 0
        %7008 = vmatprep.subr.bf16.mxu0 0
        %7009 = vmatpush1.bf16.msra.mxu0 0
        %7010 = vmatprep.subr.bf16.mxu0 0
        %7011 = vmatpush1.bf16.msra.mxu0 0
        %7012 = vmatprep.subr.bf16.mxu0 0
        %7013 = vmatpush1.bf16.msra.mxu0 %v6994
        %7014 = vmatprep.subr.bf16.mxu0 0
        %7015 = vmatpush1.bf16.msra.mxu0 %v6993
        %7016 = vmatprep.subr.bf16.mxu0 0
        %7017 = vmatpush2.bf16.msra.mxu0 0
        %7018 = vmatprep.subr.bf16.mxu0 0
        %7019 = vmatpush2.bf16.msra.mxu0 0
        %7020 = vmatprep.subr.bf16.mxu0 0
        %7021 = vmatpush2.bf16.msra.mxu0 0
        %7022 = vmatprep.subr.bf16.mxu0 0
        %7023 = vmatpush2.bf16.msra.mxu0 0
        %7024 = vmatprep.subr.bf16.mxu0 0
        %7025 = vmatpush2.bf16.msra.mxu0 0
        %7026 = vmatprep.subr.bf16.mxu0 0
        %7027 = vmatpush2.bf16.msra.mxu0 0
        %7028 = vmatprep.subr.bf16.mxu0 0
        %7029 = vmatpush2.bf16.msra.mxu0 0
        %7030 = vmatprep.subr.bf16.mxu0 0
        %7031 = vmatpush2.bf16.msra.mxu0 0
        %7032 = vmatprep.mubr.bf16.mxu0 0
        %7033 = vmatmul.mubr.bf16.gmra.mxu0 %v6998
        %v7034 = vpop.f32.mrf.mxu0
        %v7035 = vadd.f32 %v6984, %v7034
        %v7036 = vpop.f32.mrf.mxu0
        %v7037 = vpop.f32.mrf.mxu0
        %v7038 = vpop.f32.mrf.mxu0
        %7039 = vdwg.mxu0
        %v7040 = vmax.f32 %v7035, 0.0
        %v7041 = vpack.c.bf16 %v7040, %v7040
        %v7042 = vld [vmem:[#allocation15] sm:$0xf]
        %v7043 = vld [vmem:[#allocation15 + $0x4] sm:$0xf]
        %v7044 = vld [vmem:[#allocation15 + $0x8] sm:$0xf]
        %v7045 = vld [vmem:[#allocation15 + $0xc] sm:$0xf]
        %v7046 = vld [vmem:[%s8] sm:$0x1]
        %v7051 = vunpack.c.l.b16 %v7042
        %v7052 = vunpack.c.l.b16 %v7043
        %v7053 = vunpack.c.l.b16 %v7044
        %v7054 = vunpack.c.l.b16 %v7045
        %v7055 = vpack.c.b16 %v7052, %v7051
        %v7056 = vpack.c.b16 %v7054, %v7053
        %v7060 = vsel %vm2148, %v7041, 0
        %7062 = vmatprep.subr.bf16.mxu0 0
        %7063 = vmatpush1.bf16.msra.mxu0 0
        %7064 = vmatprep.subr.bf16.mxu0 0
        %7065 = vmatpush1.bf16.msra.mxu0 0
        %7066 = vmatprep.subr.bf16.mxu0 0
        %7067 = vmatpush1.bf16.msra.mxu0 0
        %7068 = vmatprep.subr.bf16.mxu0 0
        %7069 = vmatpush1.bf16.msra.mxu0 0
        %7070 = vmatprep.subr.bf16.mxu0 0
        %7071 = vmatpush1.bf16.msra.mxu0 0
        %7072 = vmatprep.subr.bf16.mxu0 0
        %7073 = vmatpush1.bf16.msra.mxu0 0
        %7074 = vmatprep.subr.bf16.mxu0 0
        %7075 = vmatpush1.bf16.msra.mxu0 %v7056
        %7076 = vmatprep.subr.bf16.mxu0 0
        %7077 = vmatpush1.bf16.msra.mxu0 %v7055
        %7078 = vmatprep.subr.bf16.mxu0 0
        %7079 = vmatpush2.bf16.msra.mxu0 0
        %7080 = vmatprep.subr.bf16.mxu0 0
        %7081 = vmatpush2.bf16.msra.mxu0 0
        %7082 = vmatprep.subr.bf16.mxu0 0
        %7083 = vmatpush2.bf16.msra.mxu0 0
        %7084 = vmatprep.subr.bf16.mxu0 0
        %7085 = vmatpush2.bf16.msra.mxu0 0
        %7086 = vmatprep.subr.bf16.mxu0 0
        %7087 = vmatpush2.bf16.msra.mxu0 0
        %7088 = vmatprep.subr.bf16.mxu0 0
        %7089 = vmatpush2.bf16.msra.mxu0 0
        %7090 = vmatprep.subr.bf16.mxu0 0
        %7091 = vmatpush2.bf16.msra.mxu0 0
        %7092 = vmatprep.subr.bf16.mxu0 0
        %7093 = vmatpush2.bf16.msra.mxu0 0
        %7094 = vmatprep.mubr.bf16.mxu0 0
        %7095 = vmatmul.mubr.bf16.gmra.mxu0 %v7060
        %v7096 = vpop.f32.mrf.mxu0
        %v7097 = vadd.f32 %v7046, %v7096
        %v7098 = vpop.f32.mrf.mxu0
        %v7099 = vpop.f32.mrf.mxu0
        %v7100 = vpop.f32.mrf.mxu0
        %7101 = vdwg.mxu0
        %7103 = vrot.lane.b32.xlu0 %v7097, 96
        %v7104 = vpop.permute.xlu0 %7103
        %v7106 = vmax.f32 %v7097, %v7104
        %v7107 = vsub.f32 %v7097, %v7106
        %v7108 = vmul.f32 %v7107, 1.442695
        %v7109 = vpow.pop %v7108
        %7111 = vrot.lane.b32.xlu0 %v7106, 32
        %v7112 = vpop.permute.xlu0 %7111
        %v7114 = vsub.f32 %v7097, %v7112
        %v7115 = vmul.f32 %v7114, 1.442695
        %v7116 = vpow.pop %v7115
        %7118 = vrot.lane.b32.xlu0 %v7116, 96
        %v7119 = vpop.permute.xlu0 %7118
        %v7121 = vadd.f32 %v7109, %v7119
        %v7122 = vrcp.pop %v7121
        %v7123 = vmul.f32 1.0, %v7122
        %v7124 = vmul.f32 %v7109, %v7123
        %v7125 = vlaneseq
        %v7126 = vshrl.u32 %v7125, 7
        %v7127 = vsub.s32 0, %v7126
        %v7128 = vrot.slane %v7124, %v7127
        %v7129 = vmul.f32 %v7128, %v6717
        %v7130 = vmul.f32 %v7128, %v6718
        %v7131 = vmul.f32 %v7128, %v6719
        %v7132 = vmul.f32 %v7128, %v6720
        %v7133 = vmul.f32 %v7128, %v6721
        %v7134 = vmul.f32 %v7128, %v6722
        %v7135 = vmul.f32 %v7128, %v6723
        %v7136 = vmul.f32 %v7128, %v6724
        %v7137 = vmul.f32 %v7128, %v6725
        %v7138 = vmul.f32 %v7128, %v6726
        %v7139 = vmul.f32 %v7128, %v6727
        %v7140 = vmul.f32 %v7128, %v6728
        %v7141 = vmul.f32 %v7128, %v6729
        %v7142 = vmul.f32 %v7128, %v6730
        %v7143 = vmul.f32 %v7128, %v6731
        %v7144 = vmul.f32 %v7128, %v6732
        %v7145 = vmul.f32 %v7128, %v6733
        %v7146 = vmul.f32 %v7128, %v6734
        %v7147 = vmul.f32 %v7128, %v6735
        %v7148 = vmul.f32 %v7128, %v6736
        %v7149 = vmul.f32 %v7128, %v6737
        %v7150 = vmul.f32 %v7128, %v6738
        %v7151 = vmul.f32 %v7128, %v6739
        %v7152 = vmul.f32 %v7128, %v6740
        %v7153 = vmul.f32 %v7128, %v6741
        %v7154 = vmul.f32 %v7128, %v6742
        %v7155 = vmul.f32 %v7128, %v6743
        %v7156 = vmul.f32 %v7128, %v6744
        %v7157 = vmul.f32 %v7128, %v6745
        %v7158 = vmul.f32 %v7128, %v6746
        %v7159 = vmul.f32 %v7128, %v6747
        %v7160 = vmul.f32 %v7128, %v6748
        %7162 = vrot.lane.b32.xlu0 %v7123, 32
        %v7163 = vpop.permute.xlu0 %7162
        %v7165 = vmul.f32 %v7116, %v7163
        %v7166 = vlaneseq
        %v7167 = vshrl.u32 %v7166, 7
        %v7168 = vsub.s32 0, %v7167
        %v7169 = vrot.slane %v7165, %v7168
        %v7170 = vmul.f32 %v7169, %v6717
        %v7171 = vmul.f32 %v7169, %v6718
        %v7172 = vmul.f32 %v7169, %v6719
        %v7173 = vmul.f32 %v7169, %v6720
        %v7174 = vmul.f32 %v7169, %v6721
        %v7175 = vmul.f32 %v7169, %v6722
        %v7176 = vmul.f32 %v7169, %v6723
        %v7177 = vmul.f32 %v7169, %v6724
        %v7178 = vmul.f32 %v7169, %v6725
        %v7179 = vmul.f32 %v7169, %v6726
        %v7180 = vmul.f32 %v7169, %v6727
        %v7181 = vmul.f32 %v7169, %v6728
        %v7182 = vmul.f32 %v7169, %v6729
        %v7183 = vmul.f32 %v7169, %v6730
        %v7184 = vmul.f32 %v7169, %v6731
        %v7185 = vmul.f32 %v7169, %v6732
        %v7186 = vmul.f32 %v7169, %v6733
        %v7187 = vmul.f32 %v7169, %v6734
        %v7188 = vmul.f32 %v7169, %v6735
        %v7189 = vmul.f32 %v7169, %v6736
        %v7190 = vmul.f32 %v7169, %v6737
        %v7191 = vmul.f32 %v7169, %v6738
        %v7192 = vmul.f32 %v7169, %v6739
        %v7193 = vmul.f32 %v7169, %v6740
        %v7194 = vmul.f32 %v7169, %v6741
        %v7195 = vmul.f32 %v7169, %v6742
        %v7196 = vmul.f32 %v7169, %v6743
        %v7197 = vmul.f32 %v7169, %v6744
        %v7198 = vmul.f32 %v7169, %v6745
        %v7199 = vmul.f32 %v7169, %v6746
        %v7200 = vmul.f32 %v7169, %v6747
        %v7201 = vmul.f32 %v7169, %v6748
        %7234 = vrot.lane.b32.xlu0 %v7170, 96
        %v7235 = vpop.permute.xlu0 %7234
        %7236 = vrot.lane.b32.xlu0 %v7171, 96
        %v7237 = vpop.permute.xlu0 %7236
        %7238 = vrot.lane.b32.xlu0 %v7172, 96
        %v7239 = vpop.permute.xlu0 %7238
        %7240 = vrot.lane.b32.xlu0 %v7173, 96
        %v7241 = vpop.permute.xlu0 %7240
        %7242 = vrot.lane.b32.xlu0 %v7174, 96
        %v7243 = vpop.permute.xlu0 %7242
        %7244 = vrot.lane.b32.xlu0 %v7175, 96
        %v7245 = vpop.permute.xlu0 %7244
        %7246 = vrot.lane.b32.xlu0 %v7176, 96
        %v7247 = vpop.permute.xlu0 %7246
        %7248 = vrot.lane.b32.xlu0 %v7177, 96
        %v7249 = vpop.permute.xlu0 %7248
        %7250 = vrot.lane.b32.xlu0 %v7178, 96
        %v7251 = vpop.permute.xlu0 %7250
        %7252 = vrot.lane.b32.xlu0 %v7179, 96
        %v7253 = vpop.permute.xlu0 %7252
        %7254 = vrot.lane.b32.xlu0 %v7180, 96
        %v7255 = vpop.permute.xlu0 %7254
        %7256 = vrot.lane.b32.xlu0 %v7181, 96
        %v7257 = vpop.permute.xlu0 %7256
        %7258 = vrot.lane.b32.xlu0 %v7182, 96
        %v7259 = vpop.permute.xlu0 %7258
        %7260 = vrot.lane.b32.xlu0 %v7183, 96
        %v7261 = vpop.permute.xlu0 %7260
        %7262 = vrot.lane.b32.xlu0 %v7184, 96
        %v7263 = vpop.permute.xlu0 %7262
        %7264 = vrot.lane.b32.xlu0 %v7185, 96
        %v7265 = vpop.permute.xlu0 %7264
        %7266 = vrot.lane.b32.xlu0 %v7186, 96
        %v7267 = vpop.permute.xlu0 %7266
        %7268 = vrot.lane.b32.xlu0 %v7187, 96
        %v7269 = vpop.permute.xlu0 %7268
        %7270 = vrot.lane.b32.xlu0 %v7188, 96
        %v7271 = vpop.permute.xlu0 %7270
        %7272 = vrot.lane.b32.xlu0 %v7189, 96
        %v7273 = vpop.permute.xlu0 %7272
        %7274 = vrot.lane.b32.xlu0 %v7190, 96
        %v7275 = vpop.permute.xlu0 %7274
        %7276 = vrot.lane.b32.xlu0 %v7191, 96
        %v7277 = vpop.permute.xlu0 %7276
        %7278 = vrot.lane.b32.xlu0 %v7192, 96
        %v7279 = vpop.permute.xlu0 %7278
        %7280 = vrot.lane.b32.xlu0 %v7193, 96
        %v7281 = vpop.permute.xlu0 %7280
        %7282 = vrot.lane.b32.xlu0 %v7194, 96
        %v7283 = vpop.permute.xlu0 %7282
        %7284 = vrot.lane.b32.xlu0 %v7195, 96
        %v7285 = vpop.permute.xlu0 %7284
        %7286 = vrot.lane.b32.xlu0 %v7196, 96
        %v7287 = vpop.permute.xlu0 %7286
        %7288 = vrot.lane.b32.xlu0 %v7197, 96
        %v7289 = vpop.permute.xlu0 %7288
        %7290 = vrot.lane.b32.xlu0 %v7198, 96
        %v7291 = vpop.permute.xlu0 %7290
        %7292 = vrot.lane.b32.xlu0 %v7199, 96
        %v7293 = vpop.permute.xlu0 %7292
        %7294 = vrot.lane.b32.xlu0 %v7200, 96
        %v7295 = vpop.permute.xlu0 %7294
        %7296 = vrot.lane.b32.xlu0 %v7201, 96
        %v7297 = vpop.permute.xlu0 %7296
        %v7330 = vadd.f32 %v7129, %v7235
        %v7331 = vadd.f32 %v7130, %v7237
        %v7332 = vadd.f32 %v7131, %v7239
        %v7333 = vadd.f32 %v7132, %v7241
        %v7334 = vadd.f32 %v7133, %v7243
        %v7335 = vadd.f32 %v7134, %v7245
        %v7336 = vadd.f32 %v7135, %v7247
        %v7337 = vadd.f32 %v7136, %v7249
        %v7338 = vadd.f32 %v7137, %v7251
        %v7339 = vadd.f32 %v7138, %v7253
        %v7340 = vadd.f32 %v7139, %v7255
        %v7341 = vadd.f32 %v7140, %v7257
        %v7342 = vadd.f32 %v7141, %v7259
        %v7343 = vadd.f32 %v7142, %v7261
        %v7344 = vadd.f32 %v7143, %v7263
        %v7345 = vadd.f32 %v7144, %v7265
        %v7346 = vadd.f32 %v7145, %v7267
        %v7347 = vadd.f32 %v7146, %v7269
        %v7348 = vadd.f32 %v7147, %v7271
        %v7349 = vadd.f32 %v7148, %v7273
        %v7350 = vadd.f32 %v7149, %v7275
        %v7351 = vadd.f32 %v7150, %v7277
        %v7352 = vadd.f32 %v7151, %v7279
        %v7353 = vadd.f32 %v7152, %v7281
        %v7354 = vadd.f32 %v7153, %v7283
        %v7355 = vadd.f32 %v7154, %v7285
        %v7356 = vadd.f32 %v7155, %v7287
        %v7357 = vadd.f32 %v7156, %v7289
        %v7358 = vadd.f32 %v7157, %v7291
        %v7359 = vadd.f32 %v7158, %v7293
        %v7360 = vadd.f32 %v7159, %v7295
        %v7361 = vadd.f32 %v7160, %v7297
        %v7362 = vpack.c.bf16 %v7331, %v7330
        %v7363 = vpack.c.bf16 %v7333, %v7332
        %v7364 = vpack.c.bf16 %v7335, %v7334
        %v7365 = vpack.c.bf16 %v7337, %v7336
        %v7366 = vpack.c.bf16 %v7339, %v7338
        %v7367 = vpack.c.bf16 %v7341, %v7340
        %v7368 = vpack.c.bf16 %v7343, %v7342
        %v7369 = vpack.c.bf16 %v7345, %v7344
        %v7370 = vpack.c.bf16 %v7347, %v7346
        %v7371 = vpack.c.bf16 %v7349, %v7348
        %v7372 = vpack.c.bf16 %v7351, %v7350
        %v7373 = vpack.c.bf16 %v7353, %v7352
        %v7374 = vpack.c.bf16 %v7355, %v7354
        %v7375 = vpack.c.bf16 %v7357, %v7356
        %v7376 = vpack.c.bf16 %v7359, %v7358
        %v7377 = vpack.c.bf16 %v7361, %v7360
        %v7378 = vld [vmem:[%s9] sm:$0xf]
        %v7379 = vld [vmem:[%s9 + $0x4] sm:$0xf]
        %v7380 = vld [vmem:[%s9 + $0x8] sm:$0xf]
        %v7381 = vld [vmem:[%s9 + $0xc] sm:$0xf]
        %v7382 = vld [vmem:[%s10] sm:$0x1]
        %v7384 = vlaneseq
        %v7385 = vshrl.u32 %v7384, 7
        %v7386 = vsub.s32 0, %v7385
        %v7387 = vrot.slane %v7382, %v7386
        %v7393 = vunpack.c.l.b16 %v7378
        %v7394 = vunpack.c.l.b16 %v7379
        %v7395 = vunpack.c.l.b16 %v7380
        %v7396 = vunpack.c.l.b16 %v7381
        %v7397 = vpack.c.b16 %v7394, %v7393
        %v7398 = vpack.c.b16 %v7396, %v7395
        %v7402 = vsel %vm2148, %v7362, 0
        %v7405 = vsel %vm2148, %v7363, 0
        %v7408 = vsel %vm2148, %v7364, 0
        %v7411 = vsel %vm2148, %v7365, 0
        %v7414 = vsel %vm2148, %v7366, 0
        %v7417 = vsel %vm2148, %v7367, 0
        %v7420 = vsel %vm2148, %v7368, 0
        %v7423 = vsel %vm2148, %v7369, 0
        %v7426 = vsel %vm2148, %v7370, 0
        %v7429 = vsel %vm2148, %v7371, 0
        %v7432 = vsel %vm2148, %v7372, 0
        %v7435 = vsel %vm2148, %v7373, 0
        %v7438 = vsel %vm2148, %v7374, 0
        %v7441 = vsel %vm2148, %v7375, 0
        %v7444 = vsel %vm2148, %v7376, 0
        %v7447 = vsel %vm2148, %v7377, 0
        %7449 = vmatprep.subr.bf16.mxu0 0
        %7450 = vmatpush1.bf16.msra.mxu0 0
        %7451 = vmatprep.subr.bf16.mxu0 0
        %7452 = vmatpush1.bf16.msra.mxu0 0
        %7453 = vmatprep.subr.bf16.mxu0 0
        %7454 = vmatpush1.bf16.msra.mxu0 0
        %7455 = vmatprep.subr.bf16.mxu0 0
        %7456 = vmatpush1.bf16.msra.mxu0 0
        %7457 = vmatprep.subr.bf16.mxu0 0
        %7458 = vmatpush1.bf16.msra.mxu0 0
        %7459 = vmatprep.subr.bf16.mxu0 0
        %7460 = vmatpush1.bf16.msra.mxu0 0
        %7461 = vmatprep.subr.bf16.mxu0 0
        %7462 = vmatpush1.bf16.msra.mxu0 %v7398
        %7463 = vmatprep.subr.bf16.mxu0 0
        %7464 = vmatpush1.bf16.msra.mxu0 %v7397
        %7465 = vmatprep.subr.bf16.mxu0 0
        %7466 = vmatpush2.bf16.msra.mxu0 0
        %7467 = vmatprep.subr.bf16.mxu0 0
        %7468 = vmatpush2.bf16.msra.mxu0 0
        %7469 = vmatprep.subr.bf16.mxu0 0
        %7470 = vmatpush2.bf16.msra.mxu0 0
        %7471 = vmatprep.subr.bf16.mxu0 0
        %7472 = vmatpush2.bf16.msra.mxu0 0
        %7473 = vmatprep.subr.bf16.mxu0 0
        %7474 = vmatpush2.bf16.msra.mxu0 0
        %7475 = vmatprep.subr.bf16.mxu0 0
        %7476 = vmatpush2.bf16.msra.mxu0 0
        %7477 = vmatprep.subr.bf16.mxu0 0
        %7478 = vmatpush2.bf16.msra.mxu0 0
        %7479 = vmatprep.subr.bf16.mxu0 0
        %7480 = vmatpush2.bf16.msra.mxu0 0
        %7481 = vmatprep.mubr.bf16.mxu0 0
        %7482 = vmatmul.mubr.bf16.gmra.mxu0 %v7402
        %v7483 = vpop.f32.mrf.mxu0
        %v7484 = vadd.f32 %v7387, %v7483
        %v7485 = vpop.f32.mrf.mxu0
        %v7486 = vpop.f32.mrf.mxu0
        %v7487 = vadd.f32 %v7387, %v7486
        %v7488 = vpop.f32.mrf.mxu0
        %7489 = vmatprep.mubr.bf16.mxu0 0
        %7490 = vmatmul.mubr.bf16.gmra.mxu0 %v7405
        %v7491 = vpop.f32.mrf.mxu0
        %v7492 = vadd.f32 %v7387, %v7491
        %v7493 = vpop.f32.mrf.mxu0
        %v7494 = vpop.f32.mrf.mxu0
        %v7495 = vadd.f32 %v7387, %v7494
        %v7496 = vpop.f32.mrf.mxu0
        %7497 = vmatprep.mubr.bf16.mxu0 0
        %7498 = vmatmul.mubr.bf16.gmra.mxu0 %v7408
        %v7499 = vpop.f32.mrf.mxu0
        %v7500 = vadd.f32 %v7387, %v7499
        %v7501 = vpop.f32.mrf.mxu0
        %v7502 = vpop.f32.mrf.mxu0
        %v7503 = vadd.f32 %v7387, %v7502
        %v7504 = vpop.f32.mrf.mxu0
        %7505 = vmatprep.mubr.bf16.mxu0 0
        %7506 = vmatmul.mubr.bf16.gmra.mxu0 %v7411
        %v7507 = vpop.f32.mrf.mxu0
        %v7508 = vadd.f32 %v7387, %v7507
        %v7509 = vpop.f32.mrf.mxu0
        %v7510 = vpop.f32.mrf.mxu0
        %v7511 = vadd.f32 %v7387, %v7510
        %v7512 = vpop.f32.mrf.mxu0
        %7513 = vmatprep.mubr.bf16.mxu0 0
        %7514 = vmatmul.mubr.bf16.gmra.mxu0 %v7414
        %v7515 = vpop.f32.mrf.mxu0
        %v7516 = vadd.f32 %v7387, %v7515
        %v7517 = vpop.f32.mrf.mxu0
        %v7518 = vpop.f32.mrf.mxu0
        %v7519 = vadd.f32 %v7387, %v7518
        %v7520 = vpop.f32.mrf.mxu0
        %7521 = vmatprep.mubr.bf16.mxu0 0
        %7522 = vmatmul.mubr.bf16.gmra.mxu0 %v7417
        %v7523 = vpop.f32.mrf.mxu0
        %v7524 = vadd.f32 %v7387, %v7523
        %v7525 = vpop.f32.mrf.mxu0
        %v7526 = vpop.f32.mrf.mxu0
        %v7527 = vadd.f32 %v7387, %v7526
        %v7528 = vpop.f32.mrf.mxu0
        %7529 = vmatprep.mubr.bf16.mxu0 0
        %7530 = vmatmul.mubr.bf16.gmra.mxu0 %v7420
        %v7531 = vpop.f32.mrf.mxu0
        %v7532 = vadd.f32 %v7387, %v7531
        %v7533 = vpop.f32.mrf.mxu0
        %v7534 = vpop.f32.mrf.mxu0
        %v7535 = vadd.f32 %v7387, %v7534
        %v7536 = vpop.f32.mrf.mxu0
        %7537 = vmatprep.mubr.bf16.mxu0 0
        %7538 = vmatmul.mubr.bf16.gmra.mxu0 %v7423
        %v7539 = vpop.f32.mrf.mxu0
        %v7540 = vadd.f32 %v7387, %v7539
        %v7541 = vpop.f32.mrf.mxu0
        %v7542 = vpop.f32.mrf.mxu0
        %v7543 = vadd.f32 %v7387, %v7542
        %v7544 = vpop.f32.mrf.mxu0
        %7545 = vmatprep.mubr.bf16.mxu0 0
        %7546 = vmatmul.mubr.bf16.gmra.mxu0 %v7426
        %v7547 = vpop.f32.mrf.mxu0
        %v7548 = vadd.f32 %v7387, %v7547
        %v7549 = vpop.f32.mrf.mxu0
        %v7550 = vpop.f32.mrf.mxu0
        %v7551 = vadd.f32 %v7387, %v7550
        %v7552 = vpop.f32.mrf.mxu0
        %7553 = vmatprep.mubr.bf16.mxu0 0
        %7554 = vmatmul.mubr.bf16.gmra.mxu0 %v7429
        %v7555 = vpop.f32.mrf.mxu0
        %v7556 = vadd.f32 %v7387, %v7555
        %v7557 = vpop.f32.mrf.mxu0
        %v7558 = vpop.f32.mrf.mxu0
        %v7559 = vadd.f32 %v7387, %v7558
        %v7560 = vpop.f32.mrf.mxu0
        %7561 = vmatprep.mubr.bf16.mxu0 0
        %7562 = vmatmul.mubr.bf16.gmra.mxu0 %v7432
        %v7563 = vpop.f32.mrf.mxu0
        %v7564 = vadd.f32 %v7387, %v7563
        %v7565 = vpop.f32.mrf.mxu0
        %v7566 = vpop.f32.mrf.mxu0
        %v7567 = vadd.f32 %v7387, %v7566
        %v7568 = vpop.f32.mrf.mxu0
        %7569 = vmatprep.mubr.bf16.mxu0 0
        %7570 = vmatmul.mubr.bf16.gmra.mxu0 %v7435
        %v7571 = vpop.f32.mrf.mxu0
        %v7572 = vadd.f32 %v7387, %v7571
        %v7573 = vpop.f32.mrf.mxu0
        %v7574 = vpop.f32.mrf.mxu0
        %v7575 = vadd.f32 %v7387, %v7574
        %v7576 = vpop.f32.mrf.mxu0
        %7577 = vmatprep.mubr.bf16.mxu0 0
        %7578 = vmatmul.mubr.bf16.gmra.mxu0 %v7438
        %v7579 = vpop.f32.mrf.mxu0
        %v7580 = vadd.f32 %v7387, %v7579
        %v7581 = vpop.f32.mrf.mxu0
        %v7582 = vpop.f32.mrf.mxu0
        %v7583 = vadd.f32 %v7387, %v7582
        %v7584 = vpop.f32.mrf.mxu0
        %7585 = vmatprep.mubr.bf16.mxu0 0
        %7586 = vmatmul.mubr.bf16.gmra.mxu0 %v7441
        %v7587 = vpop.f32.mrf.mxu0
        %v7588 = vadd.f32 %v7387, %v7587
        %v7589 = vpop.f32.mrf.mxu0
        %v7590 = vpop.f32.mrf.mxu0
        %v7591 = vadd.f32 %v7387, %v7590
        %v7592 = vpop.f32.mrf.mxu0
        %7593 = vmatprep.mubr.bf16.mxu0 0
        %7594 = vmatmul.mubr.bf16.gmra.mxu0 %v7444
        %v7595 = vpop.f32.mrf.mxu0
        %v7596 = vadd.f32 %v7387, %v7595
        %v7597 = vpop.f32.mrf.mxu0
        %v7598 = vpop.f32.mrf.mxu0
        %v7599 = vadd.f32 %v7387, %v7598
        %v7600 = vpop.f32.mrf.mxu0
        %7601 = vmatprep.mubr.bf16.mxu0 0
        %7602 = vmatmul.mubr.bf16.gmra.mxu0 %v7447
        %v7603 = vpop.f32.mrf.mxu0
        %v7604 = vadd.f32 %v7387, %v7603
        %v7605 = vpop.f32.mrf.mxu0
        %v7606 = vpop.f32.mrf.mxu0
        %v7607 = vadd.f32 %v7387, %v7606
        %v7608 = vpop.f32.mrf.mxu0
        %7609 = vdwg.mxu0
        %v7610 = vld [vmem:[%s434] sm:$0xff]
        %v7611 = vld [vmem:[%s434 + $0x8] sm:$0xff]
        %v7612 = vld [vmem:[%s434 + $0x10] sm:$0xff]
        %v7613 = vld [vmem:[%s434 + $0x18] sm:$0xff]
        %v7614 = vld [vmem:[%s434 + $0x20] sm:$0xff]
        %v7615 = vld [vmem:[%s434 + $0x28] sm:$0xff]
        %v7616 = vld [vmem:[%s434 + $0x30] sm:$0xff]
        %v7617 = vld [vmem:[%s434 + $0x38] sm:$0xff]
        %v7618 = vld [vmem:[%s434 + $0x40] sm:$0xff]
        %v7619 = vld [vmem:[%s434 + $0x48] sm:$0xff]
        %v7620 = vld [vmem:[%s434 + $0x50] sm:$0xff]
        %v7621 = vld [vmem:[%s434 + $0x58] sm:$0xff]
        %v7622 = vld [vmem:[%s434 + $0x60] sm:$0xff]
        %v7623 = vld [vmem:[%s434 + $0x68] sm:$0xff]
        %v7624 = vld [vmem:[%s434 + $0x70] sm:$0xff]
        %v7625 = vld [vmem:[%s434 + $0x78] sm:$0xff]
        %v7626 = vld [vmem:[%s434 + $0x80] sm:$0xff]
        %v7627 = vld [vmem:[%s434 + $0x88] sm:$0xff]
        %v7628 = vld [vmem:[%s434 + $0x90] sm:$0xff]
        %v7629 = vld [vmem:[%s434 + $0x98] sm:$0xff]
        %v7630 = vld [vmem:[%s434 + $0xa0] sm:$0xff]
        %v7631 = vld [vmem:[%s434 + $0xa8] sm:$0xff]
        %v7632 = vld [vmem:[%s434 + $0xb0] sm:$0xff]
        %v7633 = vld [vmem:[%s434 + $0xb8] sm:$0xff]
        %v7634 = vld [vmem:[%s434 + $0xc0] sm:$0xff]
        %v7635 = vld [vmem:[%s434 + $0xc8] sm:$0xff]
        %v7636 = vld [vmem:[%s434 + $0xd0] sm:$0xff]
        %v7637 = vld [vmem:[%s434 + $0xd8] sm:$0xff]
        %v7638 = vld [vmem:[%s434 + $0xe0] sm:$0xff]
        %v7639 = vld [vmem:[%s434 + $0xe8] sm:$0xff]
        %v7640 = vld [vmem:[%s434 + $0xf0] sm:$0xff]
        %v7641 = vld [vmem:[%s434 + $0xf8] sm:$0xff]
        %v7642 = vadd.f32 %v7484, %v7610
        %v7643 = vadd.f32 %v7487, %v7611
        %v7644 = vadd.f32 %v7492, %v7612
        %v7645 = vadd.f32 %v7495, %v7613
        %v7646 = vadd.f32 %v7500, %v7614
        %v7647 = vadd.f32 %v7503, %v7615
        %v7648 = vadd.f32 %v7508, %v7616
        %v7649 = vadd.f32 %v7511, %v7617
        %v7650 = vadd.f32 %v7516, %v7618
        %v7651 = vadd.f32 %v7519, %v7619
        %v7652 = vadd.f32 %v7524, %v7620
        %v7653 = vadd.f32 %v7527, %v7621
        %v7654 = vadd.f32 %v7532, %v7622
        %v7655 = vadd.f32 %v7535, %v7623
        %v7656 = vadd.f32 %v7540, %v7624
        %v7657 = vadd.f32 %v7543, %v7625
        %v7658 = vadd.f32 %v7548, %v7626
        %v7659 = vadd.f32 %v7551, %v7627
        %v7660 = vadd.f32 %v7556, %v7628
        %v7661 = vadd.f32 %v7559, %v7629
        %v7662 = vadd.f32 %v7564, %v7630
        %v7663 = vadd.f32 %v7567, %v7631
        %v7664 = vadd.f32 %v7572, %v7632
        %v7665 = vadd.f32 %v7575, %v7633
        %v7666 = vadd.f32 %v7580, %v7634
        %v7667 = vadd.f32 %v7583, %v7635
        %v7668 = vadd.f32 %v7588, %v7636
        %v7669 = vadd.f32 %v7591, %v7637
        %v7670 = vadd.f32 %v7596, %v7638
        %v7671 = vadd.f32 %v7599, %v7639
        %v7672 = vadd.f32 %v7604, %v7640
        %v7673 = vadd.f32 %v7607, %v7641
        %v7674 = vmax.f32 %v7642, 0.0
        %v7675 = vmax.f32 %v7643, 0.0
        %v7676 = vmax.f32 %v7644, 0.0
        %v7677 = vmax.f32 %v7645, 0.0
        %v7678 = vmax.f32 %v7646, 0.0
        %v7679 = vmax.f32 %v7647, 0.0
        %v7680 = vmax.f32 %v7648, 0.0
        %v7681 = vmax.f32 %v7649, 0.0
        %v7682 = vmax.f32 %v7650, 0.0
        %v7683 = vmax.f32 %v7651, 0.0
        %v7684 = vmax.f32 %v7652, 0.0
        %v7685 = vmax.f32 %v7653, 0.0
        %v7686 = vmax.f32 %v7654, 0.0
        %v7687 = vmax.f32 %v7655, 0.0
        %v7688 = vmax.f32 %v7656, 0.0
        %v7689 = vmax.f32 %v7657, 0.0
        %v7690 = vmax.f32 %v7658, 0.0
        %v7691 = vmax.f32 %v7659, 0.0
        %v7692 = vmax.f32 %v7660, 0.0
        %v7693 = vmax.f32 %v7661, 0.0
        %v7694 = vmax.f32 %v7662, 0.0
        %v7695 = vmax.f32 %v7663, 0.0
        %v7696 = vmax.f32 %v7664, 0.0
        %v7697 = vmax.f32 %v7665, 0.0
        %v7698 = vmax.f32 %v7666, 0.0
        %v7699 = vmax.f32 %v7667, 0.0
        %v7700 = vmax.f32 %v7668, 0.0
        %v7701 = vmax.f32 %v7669, 0.0
        %v7702 = vmax.f32 %v7670, 0.0
        %v7703 = vmax.f32 %v7671, 0.0
        %v7704 = vmax.f32 %v7672, 0.0
        %v7705 = vmax.f32 %v7673, 0.0
        %7706 = vst [vmem:[%s500] sm:$0xff] %v7674
        %7707 = vst [vmem:[%s500 + $0x8] sm:$0xff] %v7675
        %7708 = vst [vmem:[%s500 + $0x10] sm:$0xff] %v7676
        %7709 = vst [vmem:[%s500 + $0x18] sm:$0xff] %v7677
        %7710 = vst [vmem:[%s500 + $0x20] sm:$0xff] %v7678
        %7711 = vst [vmem:[%s500 + $0x28] sm:$0xff] %v7679
        %7712 = vst [vmem:[%s500 + $0x30] sm:$0xff] %v7680
        %7713 = vst [vmem:[%s500 + $0x38] sm:$0xff] %v7681
        %7714 = vst [vmem:[%s500 + $0x40] sm:$0xff] %v7682
        %7715 = vst [vmem:[%s500 + $0x48] sm:$0xff] %v7683
        %7716 = vst [vmem:[%s500 + $0x50] sm:$0xff] %v7684
        %7717 = vst [vmem:[%s500 + $0x58] sm:$0xff] %v7685
        %7718 = vst [vmem:[%s500 + $0x60] sm:$0xff] %v7686
        %7719 = vst [vmem:[%s500 + $0x68] sm:$0xff] %v7687
        %7720 = vst [vmem:[%s500 + $0x70] sm:$0xff] %v7688
        %7721 = vst [vmem:[%s500 + $0x78] sm:$0xff] %v7689
        %7722 = vst [vmem:[%s500 + $0x80] sm:$0xff] %v7690
        %7723 = vst [vmem:[%s500 + $0x88] sm:$0xff] %v7691
        %7724 = vst [vmem:[%s500 + $0x90] sm:$0xff] %v7692
        %7725 = vst [vmem:[%s500 + $0x98] sm:$0xff] %v7693
        %7726 = vst [vmem:[%s500 + $0xa0] sm:$0xff] %v7694
        %7727 = vst [vmem:[%s500 + $0xa8] sm:$0xff] %v7695
        %7728 = vst [vmem:[%s500 + $0xb0] sm:$0xff] %v7696
        %7729 = vst [vmem:[%s500 + $0xb8] sm:$0xff] %v7697
        %7730 = vst [vmem:[%s500 + $0xc0] sm:$0xff] %v7698
        %7731 = vst [vmem:[%s500 + $0xc8] sm:$0xff] %v7699
        %7732 = vst [vmem:[%s500 + $0xd0] sm:$0xff] %v7700
        %7733 = vst [vmem:[%s500 + $0xd8] sm:$0xff] %v7701
        %7734 = vst [vmem:[%s500 + $0xe0] sm:$0xff] %v7702
        %7735 = vst [vmem:[%s500 + $0xe8] sm:$0xff] %v7703
        %7736 = vst [vmem:[%s500 + $0xf0] sm:$0xff] %v7704
        %7737 = vst [vmem:[%s500 + $0xf8] sm:$0xff] %v7705
        %s7738 = sand.u32 %s276, 1
        %s7739 = scalar_lea.sflag [#allocation5], %s7738
        %s7740 = sand.u32 %s276, 1
        %s7741 = smul.addr %s7740, 256
        %s7742 = scalar_lea.vmem [#allocation17], %s7741
        // Predicated region
        $region97: #{_lambda_.1} parent=63 // pred_check
          %p7743 = pneg %p286
        $region98: #{_lambda_.1} parent=63 // pred_check_branch
          %7745 = sbr.rel (%p7743) target = $region100
        $region99: #{_lambda_.1} parent=63 // pred_region
          %s7747 = ssub.s32 4096, 4096
          %7748 = vsyncadd %s7739, %s7747
          %s7749 = smul.addr %s32, 32
          %s7750 = smul.addr %s7749, 128
          %s7751 = scalar_lea.hbm %s11, %s7750
          %s7752 = sshll.u32 %s7742, 4
          %s7753 = int_to_ptr.vmem [resolvable:$true] %s7752
          %7758 = dma.vmem_to_hbm [thread:$0]  %s7753, 4096, %s7751, %s7739, 128, 128, 8
        $region100: #{_lambda_.1} parent=63 // pred_fallthru
          _
      $region64: #{_lambda_.1} parent=5 // pred_fallthru
        _
      %p7759 = scmp.le.s32.totalorder 2, %s27
      // Predicated region
      $region101: #{_lambda_.1} parent=5 // pred_check
        %p7760 = pneg %p7759
      $region102: #{_lambda_.1} parent=5 // pred_check_branch
        %7762 = sbr.rel (%p7760) target = $region104
      $region103: #{_lambda_.1} parent=5 // pred_region
        %s7763 = ssub.s32 %s27, 2
        // Predicated region
        $region105: #{_lambda_.1} parent=103 // pred_check
          %p7764 = pneg %p292
        $region106: #{_lambda_.1} parent=103 // pred_check_branch
          %7766 = sbr.rel (%p7764) target = $region108
        $region107: #{_lambda_.1} parent=103 // pred_region
          %s7767 = sand.u32 %s277, 1
          %s7768 = scalar_lea.sflag [#allocation5], %s7767
          %s7769 = sand.u32 %s277, 1
          %s7770 = smul.addr %s7769, 256
          %s7771 = scalar_lea.vmem [#allocation17], %s7770
          %7772 = dma.done %s7768, 4096
        $region108: #{_lambda_.1} parent=103 // pred_fallthru
          _
      $region104: #{_lambda_.1} parent=5 // pred_fallthru
        _
    $region6: #{_lambda_.1} parent=1 // loop_footer
      %s31 = sadd.s32 1, %s27
    $region7: #{_lambda_.1} parent=1 // loop_footer_branch
      %26 = sbr.rel target = $region3
    $region8: #{_lambda_.1} parent=1 // loop_exit
      _
    %7773 = vsyncpa [#allocation4], 1
    %s7774 = scalar_lea.sflag [#allocation4], 1
    %7775 = vsyncpa %s7774, 1
    %7776 = vsyncpa [#allocation7], 1
    %7777 = vsyncpa [#allocation10], 1
    %7778 = vsyncpa [#allocation13], 1
    %7779 = vsyncpa [#allocation16], 1
    %7780 = vsyncpa [#allocation5], 1
    %s7781 = scalar_lea.sflag [#allocation5], 1
    %7782 = vsyncpa %s7781, 1

</llo_original>
